<compile_context>
chip_gen: v7x
topology: tpu7x:2x2x1
jax: 0.10.0
libtpu: 0.0.40
codegen_flags: <defaults>
</compile_context>

<pallas_src>
import functools
import math

import numpy as np

import jax
import jax.numpy as jnp
from jax import lax
from jax.experimental import pallas as pl
from jax.experimental.pallas import tpu as pltpu


def sae_kernel(x_ref, bias_ref, w_ref, wt_ref, dec_ref, pk_ref, stats_ref, *,
               topk: int, batch: int, tm: int, needs_row_mask: bool,
               packed_key_topk: bool):
    x = x_ref[...].astype(jnp.float32)           # (TM, E)
    bias = bias_ref[...].astype(jnp.float32)     # (1, E)
    xb = x - bias                                # "x" after bias subtraction

    w = w_ref[...]                               # (F, E)  resident, decode layout
    wt = wt_ref[...]                             # (E, F)  resident, encode layout

    # ---- encode: xb @ W^T, both operands already in MXU-canonical layout ----
    enc = jnp.dot(xb.astype(wt.dtype), wt,
                  preferred_element_type=jnp.float32)        # (TM, F), f32 accumulate

    n_rows, n_feat = enc.shape

    # Clear the packed top-k slab once; picks are then written at static column offsets.
    pk_ref[...] = jnp.zeros(pk_ref.shape, jnp.int32)

    if packed_key_topk:
        # ---- packed monotonic key: one cross-lane max per pick --------------------
        cap = 1 << max(1, (n_feat - 1).bit_length())         # static power of two >= F
        idx_mask = cap - 1
        knock = jnp.int32(-(2 ** 31))                        # below any valid key
        bits = pltpu.bitcast(enc, jnp.int32)
        mono = jnp.where(bits < 0, bits ^ jnp.int32(0x7FFFFFFF), bits)   # order-preserving
        rev = jnp.int32(idx_mask) - lax.broadcasted_iota(jnp.int32, enc.shape, 1)
        key = (mono & jnp.int32(~idx_mask)) | rev            # low bits = reversed lane idx
        for p in range(topk):
            wk = jnp.max(key, axis=-1, keepdims=True)                        # (TM, 1)
            idx = jnp.int32(idx_mask) - (wk & jnp.int32(idx_mask))
            vt = wk & jnp.int32(~idx_mask)                                   # value bucket
            vbits = jnp.where(vt < 0, vt ^ jnp.int32(0x7FFFFFFF), vt)        # back to f32 bits
            key = jnp.where(key == wk, knock, key)                           # single-lane knockout
            pk_ref[:, p:p + 1] = vbits
            pk_ref[:, topk + p:topk + p + 1] = idx
        enc_sparse = jnp.where(key == knock, enc, 0.0)       # knockout mask == selection
    else:
        # ---- exact top-k (matches jax.lax.top_k selection & tie-break) ------------
        lane = lax.broadcasted_iota(jnp.int32, enc.shape, 1)
        curr = enc
        for p in range(topk):
            v = jnp.max(curr, axis=-1, keepdims=True)                        # (TM, 1)
            is_max = curr == v
            idx = jnp.min(jnp.where(is_max, lane, n_feat), axis=-1, keepdims=True)
            curr = jnp.where(lane == idx, -jnp.inf, curr)
            pk_ref[:, p:p + 1] = pltpu.bitcast(v, jnp.int32)
            pk_ref[:, topk + p:topk + p + 1] = idx
        enc_sparse = jnp.where(curr < enc, enc, 0.0)         # knocked-out lanes == selected

    # ---- decode: enc_sparse @ W + bias (canonical row-major dot) ----
    dec = jnp.dot(enc_sparse.astype(w.dtype), w,
                  preferred_element_type=jnp.float32) + bias
    dec_ref[...] = dec.astype(dec_ref.dtype)

    # ---- per-tile partial stats; mse / R^2 are finished over the FULL batch outside.
    diff = dec - xb
    if needs_row_mask:
        i = pl.program_id(0)
        row = lax.broadcasted_iota(jnp.int32, (n_rows, 1), 0)
        valid = ((i * tm + row) < batch).astype(jnp.float32)
        diff = diff * valid
        xb = xb * valid
        nv = jnp.minimum(tm, batch - i * tm).astype(jnp.float32)
    else:
        nv = jnp.float32(tm)

    colsum_diff2 = jnp.sum(diff * diff, axis=0, keepdims=True)               # (1, E)
    colsum_xb = jnp.sum(xb, axis=0, keepdims=True)                           # (1, E)
    tile_mean = colsum_xb / nv
    cen = xb - tile_mean
    if needs_row_mask:
        cen = cen * valid
    colsum_m2 = jnp.sum(cen * cen, axis=0, keepdims=True)                    # centered 2nd moment

    n_emb = x.shape[1]
    pad = jnp.zeros((5, n_emb), jnp.float32)                                 # pad to 8 sublanes
    stats_ref[0] = jnp.concatenate([colsum_diff2, colsum_xb, colsum_m2, pad], axis=0)


def topk_sae_forward(x, w_enc, bias, topk, return_r2=False, *,
                     block_batch=128,
                     matmul_dtype=jnp.float32,
                     packed_key_topk=False,
                     return_encoded=True,
                     core_parallel=False,
                     resident_buffer_count=1,
                     vmem_limit_bytes=None):
    """x: (B, E) f32, w_enc: (F, E) f32 (== encode.weight), bias: (E,) f32.

    core_parallel=True uses pltpu.CORE_PARALLEL on the batch axis (v7x, 2 TensorCores;
    the weight is then replicated into each core's VMEM).  vmem_limit_bytes: leave None
    here; ~100-110 MiB on v5e/v6e, <= ~60 MiB on v7x at production sizes.
    """
    B, E = x.shape
    Fn = w_enc.shape[0]
    assert 0 < topk <= Fn
    lanes = 128                                  # lane-dense packed top-k slab width
    assert 2 * topk <= lanes, "widen the packed top-k slab for topk > 64"

    # Batch tile: multiple of 8 (sublane granularity).  Ragged batches are padded up to
    # a multiple of the tile; padded rows are masked out of the stats inside the kernel.
    tm = min(block_batch, B)
    tm = max(8, -(-tm // 8) * 8)
    b_pad = -(-B // tm) * tm
    num_tiles = b_pad // tm
    x_pad = x if b_pad == B else jnp.pad(x, ((0, b_pad - B), (0, 0)))

    # Single HBM weight plus its transpose: decode uses (F,E), encode uses (E,F), so both
    # MXU dots contract along the RHS sublane axis (no per-tile transpose in-kernel).
    # TODO(synk): at production F*E, stream (F_chunk, E) weight blocks over an inner
    # "arbitrary" grid axis instead of keeping both layouts fully resident.
    w_in = w_enc.astype(matmul_dtype)
    wt_in = jnp.transpose(w_in)

    def resident(shape):
        # Resident operands: constant index_map; single-buffer them (feedback item 1).
        if resident_buffer_count == 1:
            return pl.BlockSpec(shape, lambda i: (0,) * len(shape),
                                pipeline_mode=pl.Buffered(1))
        return pl.BlockSpec(shape, lambda i: (0,) * len(shape))

    cp_kwargs = dict(dimension_semantics=(
        pltpu.CORE_PARALLEL if core_parallel else pltpu.PARALLEL,))
    if vmem_limit_bytes is not None:
        cp_kwargs["vmem_limit_bytes"] = int(vmem_limit_bytes)

    kernel = functools.partial(
        sae_kernel, topk=topk, batch=B, tm=tm,
        needs_row_mask=(b_pad != B), packed_key_topk=packed_key_topk)

    dec, pk, stats = pl.pallas_call(
        kernel,
        out_shape=(
            jax.ShapeDtypeStruct((b_pad, E), jnp.float32),            # decoded
            jax.ShapeDtypeStruct((b_pad, lanes), jnp.int32),          # packed [vals|idxs|pad]
            jax.ShapeDtypeStruct((num_tiles, 8, E), jnp.float32),     # per-tile partial sums
        ),
        grid=(num_tiles,),
        in_specs=[
            pl.BlockSpec((tm, E), lambda i: (i, 0)),                  # x tile (pipelined)
            resident((1, E)),                                         # bias
            resident((Fn, E)),                                        # W   (decode layout)
            resident((E, Fn)),                                        # W^T (encode layout)
        ],
        out_specs=(
            pl.BlockSpec((tm, E), lambda i: (i, 0)),
            pl.BlockSpec((tm, lanes), lambda i: (i, 0)),
            pl.BlockSpec((1, 8, E), lambda i: (i, 0, 0)),
        ),
        compiler_params=pltpu.CompilerParams(**cp_kwargs),
    )(x_pad, bias.reshape(1, E), w_in, wt_in)

    dec = dec[:B]
    vals = lax.bitcast_convert_type(pk[:B, :topk], jnp.float32)      # (B, K)
    idxs = pk[:B, topk:2 * topk]                                     # (B, K) int32 (torch: int64)

    sum_diff2 = jnp.sum(stats[:, 0, :], axis=0)                      # (E,)
    mse = jnp.sum(sum_diff2) / jnp.float32(B * E)

    result = {"decoded": dec, "topk_idxs": idxs, "topk_values": vals, "mse": mse}
    if return_encoded:
        # Exact reconstruction of the dense sparse-encoded tensor from the kernel's picks
        # (avoids a dense (B, F) HBM writeback from the kernel itself).
        result["encoded"] = jnp.zeros((B, Fn), jnp.float32).at[
            jnp.arange(B)[:, None], idxs].set(vals)
    if return_r2:
        # Chan combination of per-tile centered second moments -> full-batch variance.
        n_t = jnp.asarray([min(tm, B - t * tm) for t in range(num_tiles)],
                          jnp.float32)[:, None]                      # (T, 1)
        sum_xb_t = stats[:, 1, :]                                    # (T, E)
        m2_t = stats[:, 2, :]                                        # (T, E)
        mean_t = sum_xb_t / n_t
        mu = jnp.sum(sum_xb_t, axis=0) / jnp.float32(B)
        ss = jnp.sum(m2_t, axis=0) + jnp.sum(n_t * (mean_t - mu) ** 2, axis=0)
        var = ss / jnp.float32(B)
        r2 = 1.0 - (sum_diff2 / jnp.float32(B)) / var
        result["mean_r2"] = jnp.mean(r2)
    return result


def reference_forward(x, w_enc, bias, topk):
    """Pure-JAX reference mirroring the PyTorch module (full-f32 matmuls)."""
    hp = jax.lax.Precision.HIGHEST
    xb = x - bias
    enc = jnp.dot(xb, w_enc.T, precision=hp)
    vals, idxs = jax.lax.top_k(enc, topk)
    mask = jnp.zeros_like(enc).at[jnp.arange(x.shape[0])[:, None], idxs].set(1.0)
    enc_sparse = enc * mask
    dec = jnp.dot(enc_sparse, w_enc, precision=hp) + bias
    mse = jnp.mean((xb - dec) ** 2)
    ch_mean = jnp.mean(xb, axis=0)
    r2 = 1 - jnp.mean((dec - xb) ** 2, axis=0) / jnp.mean((xb - ch_mean) ** 2, axis=0)
    return enc_sparse, dec, vals, idxs, mse, jnp.mean(r2)


def check_against_reference(out, x, w_enc, bias, topk, *, check_encoded=True):
    ref_enc_sp, ref_dec, ref_vals, ref_idxs, _, _ = reference_forward(x, w_enc, bias, topk)

    # Rows whose top-(k+1) gaps are comfortably above fp / key-quantization noise;
    # on those rows the selection must match jax.lax.top_k exactly.
    enc = jnp.dot(x - bias, w_enc.T, precision=jax.lax.Precision.HIGHEST)
    tv = jax.lax.top_k(enc, min(topk + 1, enc.shape[-1]))[0]
    ok = np.asarray(jnp.min(tv[:, :-1] - tv[:, 1:], axis=-1) > 1e-4)
    assert ok.mean() > 0.9, "test data has too many near-ties"

    vals = np.asarray(out["topk_values"])
    idxs = np.asarray(out["topk_idxs"])
    assert np.array_equal(idxs[ok], np.asarray(ref_idxs)[ok])
    assert np.allclose(vals[ok], np.asarray(ref_vals)[ok], atol=1e-4)
    assert np.allclose(np.asarray(out["decoded"])[ok], np.asarray(ref_dec)[ok], atol=1e-4)
    if check_encoded and "encoded" in out:
        assert np.allclose(np.asarray(out["encoded"])[ok],
                           np.asarray(ref_enc_sp)[ok], atol=1e-4)

    # mse / R^2: validate the in-kernel masked partial sums and the cross-tile Chan
    # combination against a float64 recomputation from the kernel's own decoded output.
    xb64 = np.asarray(x - bias, np.float64)
    dec64 = np.asarray(out["decoded"], np.float64)
    mse64 = np.mean((xb64 - dec64) ** 2)
    assert np.allclose(np.asarray(out["mse"]), mse64, rtol=1e-4, atol=1e-6)
    if "mean_r2" in out:
        var = np.mean((xb64 - xb64.mean(axis=0)) ** 2, axis=0)
        r2 = 1.0 - np.mean((dec64 - xb64) ** 2, axis=0) / var
        assert np.allclose(np.asarray(out["mean_r2"]), r2.mean(), atol=1e-3)


if __name__ == "__main__":
    # Full-f32 matmuls everywhere (reference XLA dots and in-kernel MXU dots) so the
    # kernel and the pure-JAX reference agree to ~1e-5.
    jax.config.update("jax_default_matmul_precision", "highest")

    # Small, module-consistent shapes; B=128 with TM=64 exercises the batch grid.
    B, E, Fn, K = 128, 128, 256, 4     # batch, embedding_size, n_features, topk
    TM = 64

    key = jax.random.PRNGKey(0)
    k_w, k_len, k_b, k_x = jax.random.split(key, 4)

    # nn.Linear(embedding_size, n_features, bias=False) init, then module's row rescale.
    bound = 1.0 / math.sqrt(E)
    w_raw = jax.random.uniform(k_w, (Fn, E), jnp.float32, minval=-bound, maxval=bound)
    dir_len = jax.random.uniform(k_len, (Fn,), jnp.float32) * 0.95 + 0.05
    w_enc = w_raw / jnp.linalg.norm(w_raw, axis=-1, keepdims=True) * dir_len[:, None]
    bias = 0.1 * jax.random.normal(k_b, (E,), jnp.float32)
    x = jax.random.normal(k_x, (B, E), jnp.float32)

    # 1) main path: exact top-k, f32 MXU, single-buffered resident weight/bias.
    try:
        rbc = 1
        out = topk_sae_forward(x, w_enc, bias, K, return_r2=True, block_batch=TM,
                               resident_buffer_count=rbc)
        jax.block_until_ready(out)
    except Exception:
        # Portability fallback: jax without BlockSpec(pipeline_mode=pl.Buffered(1)).
        rbc = 2
        out = topk_sae_forward(x, w_enc, bias, K, return_r2=True, block_batch=TM,
                               resident_buffer_count=rbc)
        jax.block_until_ready(out)
    check_against_reference(out, x, w_enc, bias, K)

    # 2) ragged batch (B=100 -> padded to 128): padded rows masked out of mse / R^2.
    xr = x[:100]
    out_r = topk_sae_forward(xr, w_enc, bias, K, return_r2=True, block_batch=TM,
                             resident_buffer_count=rbc)
    jax.block_until_ready(out_r)
    check_against_reference(out_r, xr, w_enc, bias, K)

    # 3) packed-key top-k (single cross-lane max per pick); reported values carry a
    #    <= 2^-(23-log2 F) quantization from the embedded index bits.
    out_pk = topk_sae_forward(x, w_enc, bias, K, return_r2=True, block_batch=TM,
                              packed_key_topk=True, return_encoded=False,
                              resident_buffer_count=rbc)
    jax.block_until_ready(out_pk)
    check_against_reference(out_pk, x, w_enc, bias, K, check_encoded=False)

    # 4) bf16 MXU weight path: structure / finiteness check only.
    out_bf = topk_sae_forward(x, w_enc, bias, K, return_r2=True, block_batch=TM,
                              matmul_dtype=jnp.bfloat16, return_encoded=False,
                              resident_buffer_count=rbc)
    jax.block_until_ready(out_bf)
    assert bool(jnp.all(jnp.isfinite(out_bf["decoded"])))
    assert bool(jnp.isfinite(out_bf["mse"])) and bool(jnp.isfinite(out_bf["mean_r2"]))

    print("KERNEL_OK")
</pallas_src>

<mosaic_0001>
module attributes {stable_mosaic.version = 11 : i64} {
  func.func @sae_kernel(%arg0: i32, %arg1: memref<64x128xf32, #tpu.memory_space<vmem>>, %arg2: memref<1x128xf32, #tpu.memory_space<vmem>>, %arg3: memref<256x128xf32, #tpu.memory_space<vmem>>, %arg4: memref<128x256xf32, #tpu.memory_space<vmem>>, %arg5: memref<64x128xf32, #tpu.memory_space<vmem>>, %arg6: memref<64x128xi32, #tpu.memory_space<vmem>>, %arg7: memref<1x8x128xf32, #tpu.memory_space<vmem>>) attributes {dimension_semantics = [#tpu.dimension_semantics<parallel>], iteration_bounds = array<i64: 2>, scalar_prefetch = 0 : i64, scratch_operands = 0 : i64, tpu.core_type = #tpu.core_type<tc>, window_params = [{transform_indices = @transform_0, window_bounds = array<i64: 64, 128>}, {pipeline_mode = #tpu.pipeline_mode<synchronous>, transform_indices = @transform_1, window_bounds = array<i64: 1, 128>}, {pipeline_mode = #tpu.pipeline_mode<synchronous>, transform_indices = @transform_2, window_bounds = array<i64: 256, 128>}, {pipeline_mode = #tpu.pipeline_mode<synchronous>, transform_indices = @transform_3, window_bounds = array<i64: 128, 256>}, {transform_indices = @transform_4, window_bounds = array<i64: 64, 128>}, {transform_indices = @transform_5, window_bounds = array<i64: 64, 128>}, {transform_indices = @transform_6, window_bounds = array<i64: 1, 8, 128>}]} {
    %c0 = arith.constant 0 : index
    %c0_0 = arith.constant 0 : index
    %0 = vector.load %arg1[%c0, %c0_0] : memref<64x128xf32, #tpu.memory_space<vmem>>, vector<64x128xf32>
    %c0_1 = arith.constant 0 : index
    %c0_2 = arith.constant 0 : index
    %1 = vector.load %arg2[%c0_1, %c0_2] : memref<1x128xf32, #tpu.memory_space<vmem>>, vector<1x128xf32>
    %2 = vector.broadcast %1 : vector<1x128xf32> to vector<64x128xf32>
    %3 = arith.subf %0, %2 : vector<64x128xf32>
    %c0_3 = arith.constant 0 : index
    %c0_4 = arith.constant 0 : index
    %4 = vector.load %arg3[%c0_3, %c0_4] : memref<256x128xf32, #tpu.memory_space<vmem>>, vector<256x128xf32>
    %c0_5 = arith.constant 0 : index
    %c0_6 = arith.constant 0 : index
    %5 = vector.load %arg4[%c0_5, %c0_6] : memref<128x256xf32, #tpu.memory_space<vmem>>, vector<128x256xf32>
    %cst = arith.constant dense<0.000000e+00> : vector<64x256xf32>
    %6 = tpu.matmul %3, %5, %cst {dimension_numbers = #tpu.dot_dimension_numbers<[1], [0], [0], [1], [0, 0, 1, 1], [], []>, precision = #tpu.contract_precision<fp32>} : vector<64x128xf32>, vector<128x256xf32>, vector<64x256xf32> -> vector<64x256xf32>
    %c0_i32 = arith.constant 0 : i32
    %7 = vector.broadcast %c0_i32 : i32 to vector<64x128xi32>
    %c0_7 = arith.constant 0 : index
    %c0_8 = arith.constant 0 : index
    %8 = vector.load %arg6[%c0_7, %c0_8] : memref<64x128xi32, #tpu.memory_space<vmem>>, vector<64x128xi32>
    tpu.vector_store %arg6[%c0_7, %c0_8], %7 {strides = array<i32>} : memref<64x128xi32, #tpu.memory_space<vmem>>, vector<64x128xi32>,
    %9 = tpu.iota {dimensions = array<i32: 1>} : vector<64x256xi32>
    %cst_9 = arith.constant dense<0xFF800000> : vector<64xf32>
    %10 = vector.multi_reduction <maximumf>, %6, %cst_9 [1] : vector<64x256xf32> to vector<64xf32>
    %11 = vector.shape_cast %10 : vector<64xf32> to vector<64x1xf32>
    %12 = vector.broadcast %11 : vector<64x1xf32> to vector<64x256xf32>
    %13 = arith.cmpf oeq, %6, %12 : vector<64x256xf32>
    %c256_i32 = arith.constant 256 : i32
    %14 = vector.broadcast %c256_i32 : i32 to vector<64x256xi32>
    %15 = arith.select %13, %9, %14 : vector<64x256xi1>, vector<64x256xi32>
    %cst_10 = arith.constant dense<2147483647> : vector<64xi32>
    %16 = vector.multi_reduction <minsi>, %15, %cst_10 [1] : vector<64x256xi32> to vector<64xi32>
    %17 = vector.shape_cast %16 : vector<64xi32> to vector<64x1xi32>
    %18 = vector.broadcast %17 : vector<64x1xi32> to vector<64x256xi32>
    %19 = arith.cmpi eq, %9, %18 : vector<64x256xi32>
    %cst_11 = arith.constant 0xFF800000 : f32
    %20 = vector.broadcast %cst_11 : f32 to vector<64x256xf32>
    %21 = arith.select %19, %20, %6 : vector<64x256xi1>, vector<64x256xf32>
    %22 = tpu.bitcast %11 : vector<64x1xf32> -> vector<64x1xi32>
    %c0_12 = arith.constant 0 : index
    %c0_13 = arith.constant 0 : index
    %23 = vector.load %arg6[%c0_12, %c0_13] : memref<64x128xi32, #tpu.memory_space<vmem>>, vector<64x1xi32>
    tpu.vector_store %arg6[%c0_12, %c0_13], %22 {strides = array<i32>} : memref<64x128xi32, #tpu.memory_space<vmem>>, vector<64x1xi32>,
    %c0_14 = arith.constant 0 : index
    %c4 = arith.constant 4 : index
    %24 = vector.load %arg6[%c0_14, %c4] : memref<64x128xi32, #tpu.memory_space<vmem>>, vector<64x1xi32>
    tpu.vector_store %arg6[%c0_14, %c4], %17 {strides = array<i32>} : memref<64x128xi32, #tpu.memory_space<vmem>>, vector<64x1xi32>,
    %cst_15 = arith.constant dense<0xFF800000> : vector<64xf32>
    %25 = vector.multi_reduction <maximumf>, %21, %cst_15 [1] : vector<64x256xf32> to vector<64xf32>
    %26 = vector.shape_cast %25 : vector<64xf32> to vector<64x1xf32>
    %27 = vector.broadcast %26 : vector<64x1xf32> to vector<64x256xf32>
    %28 = arith.cmpf oeq, %21, %27 : vector<64x256xf32>
    %c256_i32_16 = arith.constant 256 : i32
    %29 = vector.broadcast %c256_i32_16 : i32 to vector<64x256xi32>
    %30 = arith.select %28, %9, %29 : vector<64x256xi1>, vector<64x256xi32>
    %cst_17 = arith.constant dense<2147483647> : vector<64xi32>
    %31 = vector.multi_reduction <minsi>, %30, %cst_17 [1] : vector<64x256xi32> to vector<64xi32>
    %32 = vector.shape_cast %31 : vector<64xi32> to vector<64x1xi32>
    %33 = vector.broadcast %32 : vector<64x1xi32> to vector<64x256xi32>
    %34 = arith.cmpi eq, %9, %33 : vector<64x256xi32>
    %cst_18 = arith.constant 0xFF800000 : f32
    %35 = vector.broadcast %cst_18 : f32 to vector<64x256xf32>
    %36 = arith.select %34, %35, %21 : vector<64x256xi1>, vector<64x256xf32>
    %37 = tpu.bitcast %26 : vector<64x1xf32> -> vector<64x1xi32>
    %c0_19 = arith.constant 0 : index
    %c1 = arith.constant 1 : index
    %38 = vector.load %arg6[%c0_19, %c1] : memref<64x128xi32, #tpu.memory_space<vmem>>, vector<64x1xi32>
    tpu.vector_store %arg6[%c0_19, %c1], %37 {strides = array<i32>} : memref<64x128xi32, #tpu.memory_space<vmem>>, vector<64x1xi32>,
    %c0_20 = arith.constant 0 : index
    %c5 = arith.constant 5 : index
    %39 = vector.load %arg6[%c0_20, %c5] : memref<64x128xi32, #tpu.memory_space<vmem>>, vector<64x1xi32>
    tpu.vector_store %arg6[%c0_20, %c5], %32 {strides = array<i32>} : memref<64x128xi32, #tpu.memory_space<vmem>>, vector<64x1xi32>,
    %cst_21 = arith.constant dense<0xFF800000> : vector<64xf32>
    %40 = vector.multi_reduction <maximumf>, %36, %cst_21 [1] : vector<64x256xf32> to vector<64xf32>
    %41 = vector.shape_cast %40 : vector<64xf32> to vector<64x1xf32>
    %42 = vector.broadcast %41 : vector<64x1xf32> to vector<64x256xf32>
    %43 = arith.cmpf oeq, %36, %42 : vector<64x256xf32>
    %c256_i32_22 = arith.constant 256 : i32
    %44 = vector.broadcast %c256_i32_22 : i32 to vector<64x256xi32>
    %45 = arith.select %43, %9, %44 : vector<64x256xi1>, vector<64x256xi32>
    %cst_23 = arith.constant dense<2147483647> : vector<64xi32>
    %46 = vector.multi_reduction <minsi>, %45, %cst_23 [1] : vector<64x256xi32> to vector<64xi32>
    %47 = vector.shape_cast %46 : vector<64xi32> to vector<64x1xi32>
    %48 = vector.broadcast %47 : vector<64x1xi32> to vector<64x256xi32>
    %49 = arith.cmpi eq, %9, %48 : vector<64x256xi32>
    %cst_24 = arith.constant 0xFF800000 : f32
    %50 = vector.broadcast %cst_24 : f32 to vector<64x256xf32>
    %51 = arith.select %49, %50, %36 : vector<64x256xi1>, vector<64x256xf32>
    %52 = tpu.bitcast %41 : vector<64x1xf32> -> vector<64x1xi32>
    %c0_25 = arith.constant 0 : index
    %c2 = arith.constant 2 : index
    %53 = vector.load %arg6[%c0_25, %c2] : memref<64x128xi32, #tpu.memory_space<vmem>>, vector<64x1xi32>
    tpu.vector_store %arg6[%c0_25, %c2], %52 {strides = array<i32>} : memref<64x128xi32, #tpu.memory_space<vmem>>, vector<64x1xi32>,
    %c0_26 = arith.constant 0 : index
    %c6 = arith.constant 6 : index
    %54 = vector.load %arg6[%c0_26, %c6] : memref<64x128xi32, #tpu.memory_space<vmem>>, vector<64x1xi32>
    tpu.vector_store %arg6[%c0_26, %c6], %47 {strides = array<i32>} : memref<64x128xi32, #tpu.memory_space<vmem>>, vector<64x1xi32>,
    %cst_27 = arith.constant dense<0xFF800000> : vector<64xf32>
    %55 = vector.multi_reduction <maximumf>, %51, %cst_27 [1] : vector<64x256xf32> to vector<64xf32>
    %56 = vector.shape_cast %55 : vector<64xf32> to vector<64x1xf32>
    %57 = vector.broadcast %56 : vector<64x1xf32> to vector<64x256xf32>
    %58 = arith.cmpf oeq, %51, %57 : vector<64x256xf32>
    %c256_i32_28 = arith.constant 256 : i32
    %59 = vector.broadcast %c256_i32_28 : i32 to vector<64x256xi32>
    %60 = arith.select %58, %9, %59 : vector<64x256xi1>, vector<64x256xi32>
    %cst_29 = arith.constant dense<2147483647> : vector<64xi32>
    %61 = vector.multi_reduction <minsi>, %60, %cst_29 [1] : vector<64x256xi32> to vector<64xi32>
    %62 = vector.shape_cast %61 : vector<64xi32> to vector<64x1xi32>
    %63 = vector.broadcast %62 : vector<64x1xi32> to vector<64x256xi32>
    %64 = arith.cmpi eq, %9, %63 : vector<64x256xi32>
    %cst_30 = arith.constant 0xFF800000 : f32
    %65 = vector.broadcast %cst_30 : f32 to vector<64x256xf32>
    %66 = arith.select %64, %65, %51 : vector<64x256xi1>, vector<64x256xf32>
    %67 = tpu.bitcast %56 : vector<64x1xf32> -> vector<64x1xi32>
    %c0_31 = arith.constant 0 : index
    %c3 = arith.constant 3 : index
    %68 = vector.load %arg6[%c0_31, %c3] : memref<64x128xi32, #tpu.memory_space<vmem>>, vector<64x1xi32>
    tpu.vector_store %arg6[%c0_31, %c3], %67 {strides = array<i32>} : memref<64x128xi32, #tpu.memory_space<vmem>>, vector<64x1xi32>,
    %c0_32 = arith.constant 0 : index
    %c7 = arith.constant 7 : index
    %69 = vector.load %arg6[%c0_32, %c7] : memref<64x128xi32, #tpu.memory_space<vmem>>, vector<64x1xi32>
    tpu.vector_store %arg6[%c0_32, %c7], %62 {strides = array<i32>} : memref<64x128xi32, #tpu.memory_space<vmem>>, vector<64x1xi32>,
    %70 = arith.cmpf olt, %66, %6 : vector<64x256xf32>
    %cst_33 = arith.constant 0.000000e+00 : f32
    %71 = vector.broadcast %cst_33 : f32 to vector<64x256xf32>
    %72 = arith.select %70, %6, %71 : vector<64x256xi1>, vector<64x256xf32>
    %cst_34 = arith.constant dense<0.000000e+00> : vector<64x128xf32>
    %73 = tpu.matmul %72, %4, %cst_34 {dimension_numbers = #tpu.dot_dimension_numbers<[1], [0], [0], [1], [0, 0, 1, 1], [], []>, precision = #tpu.contract_precision<fp32>} : vector<64x256xf32>, vector<256x128xf32>, vector<64x128xf32> -> vector<64x128xf32>
    %74 = vector.broadcast %1 : vector<1x128xf32> to vector<64x128xf32>
    %75 = arith.addf %73, %74 : vector<64x128xf32>
    %c0_35 = arith.constant 0 : index
    %c0_36 = arith.constant 0 : index
    %76 = vector.load %arg5[%c0_35, %c0_36] : memref<64x128xf32, #tpu.memory_space<vmem>>, vector<64x128xf32>
    tpu.vector_store %arg5[%c0_35, %c0_36], %75 {strides = array<i32>} : memref<64x128xf32, #tpu.memory_space<vmem>>, vector<64x128xf32>,
    %77 = arith.subf %75, %3 : vector<64x128xf32>
    %78 = arith.mulf %77, %77 : vector<64x128xf32>
    %cst_37 = arith.constant dense<0.000000e+00> : vector<128xf32>
    %79 = vector.multi_reduction <add>, %78, %cst_37 [0] : vector<64x128xf32> to vector<128xf32>
    %80 = vector.shape_cast %79 : vector<128xf32> to vector<1x128xf32>
    %cst_38 = arith.constant dense<0.000000e+00> : vector<128xf32>
    %81 = vector.multi_reduction <add>, %3, %cst_38 [0] : vector<64x128xf32> to vector<128xf32>
    %82 = vector.shape_cast %81 : vector<128xf32> to vector<1x128xf32>
    %cst_39 = arith.constant 6.400000e+01 : f32
    %83 = vector.broadcast %cst_39 : f32 to vector<1x128xf32>
    %84 = arith.divf %82, %83 : vector<1x128xf32>
    %85 = vector.broadcast %84 : vector<1x128xf32> to vector<64x128xf32>
    %86 = arith.subf %3, %85 : vector<64x128xf32>
    %87 = arith.mulf %86, %86 : vector<64x128xf32>
    %cst_40 = arith.constant dense<0.000000e+00> : vector<128xf32>
    %88 = vector.multi_reduction <add>, %87, %cst_40 [0] : vector<64x128xf32> to vector<128xf32>
    %89 = vector.shape_cast %88 : vector<128xf32> to vector<1x128xf32>
    %cst_41 = arith.constant 0.000000e+00 : f32
    %90 = vector.broadcast %cst_41 : f32 to vector<5x128xf32>
    %91 = tpu.concatenate %80, %82, %89, %90 in 0 : vector<1x128xf32>, vector<1x128xf32>, vector<1x128xf32>, vector<5x128xf32> -> vector<8x128xf32>
    %c0_42 = arith.constant 0 : index
    %c0_43 = arith.constant 0 : index
    %c0_44 = arith.constant 0 : index
    %92 = vector.load %arg7[%c0_42, %c0_43, %c0_44] : memref<1x8x128xf32, #tpu.memory_space<vmem>>, vector<1x8x128xf32>
    %93 = vector.shape_cast %92 : vector<1x8x128xf32> to vector<8x128xf32>
    %94 = vector.shape_cast %91 : vector<8x128xf32> to vector<1x8x128xf32>
    tpu.vector_store %arg7[%c0_42, %c0_43, %c0_44], %94 {strides = array<i32>} : memref<1x8x128xf32, #tpu.memory_space<vmem>>, vector<1x8x128xf32>,
    return
  }
  func.func @transform_0(%arg0: i32) -> (i32, i32) {
    %c0_i32 = arith.constant 0 : i32
    %c0_i32_0 = arith.constant 0 : i32
    return %arg0, %c0_i32 : i32, i32
  }
  func.func @transform_1(%arg0: i32) -> (i32, i32) {
    %c0_i32 = arith.constant 0 : i32
    %c0_i32_0 = arith.constant 0 : i32
    %c0_i32_1 = arith.constant 0 : i32
    return %c0_i32, %c0_i32_0 : i32, i32
  }
  func.func @transform_2(%arg0: i32) -> (i32, i32) {
    %c0_i32 = arith.constant 0 : i32
    %c0_i32_0 = arith.constant 0 : i32
    %c0_i32_1 = arith.constant 0 : i32
    return %c0_i32, %c0_i32_0 : i32, i32
  }
  func.func @transform_3(%arg0: i32) -> (i32, i32) {
    %c0_i32 = arith.constant 0 : i32
    %c0_i32_0 = arith.constant 0 : i32
    %c0_i32_1 = arith.constant 0 : i32
    return %c0_i32, %c0_i32_0 : i32, i32
  }
  func.func @transform_4(%arg0: i32) -> (i32, i32) {
    %c0_i32 = arith.constant 0 : i32
    %c0_i32_0 = arith.constant 0 : i32
    return %arg0, %c0_i32 : i32, i32
  }
  func.func @transform_5(%arg0: i32) -> (i32, i32) {
    %c0_i32 = arith.constant 0 : i32
    %c0_i32_0 = arith.constant 0 : i32
    return %arg0, %c0_i32 : i32, i32
  }
  func.func @transform_6(%arg0: i32) -> (i32, i32, i32) {
    %c0_i32 = arith.constant 0 : i32
    %c0_i32_0 = arith.constant 0 : i32
    %c0_i32_1 = arith.constant 0 : i32
    return %arg0, %c0_i32, %c0_i32_0 : i32, i32, i32
  }
}

module attributes {stable_mosaic.version = 11 : i64} {
  func.func @sae_kernel(%arg0: i32, %arg1: memref<64x128xf32, #tpu.memory_space<vmem>>, %arg2: memref<1x128xf32, #tpu.memory_space<vmem>>, %arg3: memref<256x128xf32, #tpu.memory_space<vmem>>, %arg4: memref<128x256xf32, #tpu.memory_space<vmem>>, %arg5: memref<64x128xf32, #tpu.memory_space<vmem>>, %arg6: memref<64x128xi32, #tpu.memory_space<vmem>>, %arg7: memref<1x8x128xf32, #tpu.memory_space<vmem>>) attributes {dimension_semantics = [#tpu.dimension_semantics<parallel>], iteration_bounds = array<i64: 2>, scalar_prefetch = 0 : i64, scratch_operands = 0 : i64, tpu.core_type = #tpu.core_type<tc>, window_params = [{transform_indices = @transform_0, window_bounds = array<i64: 64, 128>}, {pipeline_mode = #tpu.pipeline_mode<synchronous>, transform_indices = @transform_1, window_bounds = array<i64: 1, 128>}, {pipeline_mode = #tpu.pipeline_mode<synchronous>, transform_indices = @transform_2, window_bounds = array<i64: 256, 128>}, {pipeline_mode = #tpu.pipeline_mode<synchronous>, transform_indices = @transform_3, window_bounds = array<i64: 128, 256>}, {transform_indices = @transform_4, window_bounds = array<i64: 64, 128>}, {transform_indices = @transform_5, window_bounds = array<i64: 64, 128>}, {transform_indices = @transform_6, window_bounds = array<i64: 1, 8, 128>}]} {
    %c0 = arith.constant 0 : index
    %c0_0 = arith.constant 0 : index
    %0 = vector.load %arg1[%c0, %c0_0] : memref<64x128xf32, #tpu.memory_space<vmem>>, vector<64x128xf32>
    %c0_1 = arith.constant 0 : index
    %c0_2 = arith.constant 0 : index
    %1 = vector.load %arg2[%c0_1, %c0_2] : memref<1x128xf32, #tpu.memory_space<vmem>>, vector<1x128xf32>
    %2 = vector.broadcast %1 : vector<1x128xf32> to vector<64x128xf32>
    %3 = arith.subf %0, %2 : vector<64x128xf32>
    %c0_3 = arith.constant 0 : index
    %c0_4 = arith.constant 0 : index
    %4 = vector.load %arg3[%c0_3, %c0_4] : memref<256x128xf32, #tpu.memory_space<vmem>>, vector<256x128xf32>
    %c0_5 = arith.constant 0 : index
    %c0_6 = arith.constant 0 : index
    %5 = vector.load %arg4[%c0_5, %c0_6] : memref<128x256xf32, #tpu.memory_space<vmem>>, vector<128x256xf32>
    %cst = arith.constant dense<0.000000e+00> : vector<64x256xf32>
    %6 = tpu.matmul %3, %5, %cst {dimension_numbers = #tpu.dot_dimension_numbers<[1], [0], [0], [1], [0, 0, 1, 1], [], []>, precision = #tpu.contract_precision<fp32>} : vector<64x128xf32>, vector<128x256xf32>, vector<64x256xf32> -> vector<64x256xf32>
    %c0_i32 = arith.constant 0 : i32
    %7 = vector.broadcast %c0_i32 : i32 to vector<64x128xi32>
    %c0_7 = arith.constant 0 : index
    %c0_8 = arith.constant 0 : index
    %8 = vector.load %arg6[%c0_7, %c0_8] : memref<64x128xi32, #tpu.memory_space<vmem>>, vector<64x128xi32>
    tpu.vector_store %arg6[%c0_7, %c0_8], %7 {strides = array<i32>} : memref<64x128xi32, #tpu.memory_space<vmem>>, vector<64x128xi32>,
    %9 = tpu.iota {dimensions = array<i32: 1>} : vector<64x256xi32>
    %cst_9 = arith.constant dense<0xFF800000> : vector<64xf32>
    %10 = vector.multi_reduction <maximumf>, %6, %cst_9 [1] : vector<64x256xf32> to vector<64xf32>
    %11 = vector.shape_cast %10 : vector<64xf32> to vector<64x1xf32>
    %12 = vector.broadcast %11 : vector<64x1xf32> to vector<64x256xf32>
    %13 = arith.cmpf oeq, %6, %12 : vector<64x256xf32>
    %c256_i32 = arith.constant 256 : i32
    %14 = vector.broadcast %c256_i32 : i32 to vector<64x256xi32>
    %15 = arith.select %13, %9, %14 : vector<64x256xi1>, vector<64x256xi32>
    %cst_10 = arith.constant dense<2147483647> : vector<64xi32>
    %16 = vector.multi_reduction <minsi>, %15, %cst_10 [1] : vector<64x256xi32> to vector<64xi32>
    %17 = vector.shape_cast %16 : vector<64xi32> to vector<64x1xi32>
    %18 = vector.broadcast %17 : vector<64x1xi32> to vector<64x256xi32>
    %19 = arith.cmpi eq, %9, %18 : vector<64x256xi32>
    %cst_11 = arith.constant 0xFF800000 : f32
    %20 = vector.broadcast %cst_11 : f32 to vector<64x256xf32>
    %21 = arith.select %19, %20, %6 : vector<64x256xi1>, vector<64x256xf32>
    %22 = tpu.bitcast %11 : vector<64x1xf32> -> vector<64x1xi32>
    %c0_12 = arith.constant 0 : index
    %c0_13 = arith.constant 0 : index
    %23 = vector.load %arg6[%c0_12, %c0_13] : memref<64x128xi32, #tpu.memory_space<vmem>>, vector<64x1xi32>
    tpu.vector_store %arg6[%c0_12, %c0_13], %22 {strides = array<i32>} : memref<64x128xi32, #tpu.memory_space<vmem>>, vector<64x1xi32>,
    %c0_14 = arith.constant 0 : index
    %c4 = arith.constant 4 : index
    %24 = vector.load %arg6[%c0_14, %c4] : memref<64x128xi32, #tpu.memory_space<vmem>>, vector<64x1xi32>
    tpu.vector_store %arg6[%c0_14, %c4], %17 {strides = array<i32>} : memref<64x128xi32, #tpu.memory_space<vmem>>, vector<64x1xi32>,
    %cst_15 = arith.constant dense<0xFF800000> : vector<64xf32>
    %25 = vector.multi_reduction <maximumf>, %21, %cst_15 [1] : vector<64x256xf32> to vector<64xf32>
    %26 = vector.shape_cast %25 : vector<64xf32> to vector<64x1xf32>
    %27 = vector.broadcast %26 : vector<64x1xf32> to vector<64x256xf32>
    %28 = arith.cmpf oeq, %21, %27 : vector<64x256xf32>
    %c256_i32_16 = arith.constant 256 : i32
    %29 = vector.broadcast %c256_i32_16 : i32 to vector<64x256xi32>
    %30 = arith.select %28, %9, %29 : vector<64x256xi1>, vector<64x256xi32>
    %cst_17 = arith.constant dense<2147483647> : vector<64xi32>
    %31 = vector.multi_reduction <minsi>, %30, %cst_17 [1] : vector<64x256xi32> to vector<64xi32>
    %32 = vector.shape_cast %31 : vector<64xi32> to vector<64x1xi32>
    %33 = vector.broadcast %32 : vector<64x1xi32> to vector<64x256xi32>
    %34 = arith.cmpi eq, %9, %33 : vector<64x256xi32>
    %cst_18 = arith.constant 0xFF800000 : f32
    %35 = vector.broadcast %cst_18 : f32 to vector<64x256xf32>
    %36 = arith.select %34, %35, %21 : vector<64x256xi1>, vector<64x256xf32>
    %37 = tpu.bitcast %26 : vector<64x1xf32> -> vector<64x1xi32>
    %c0_19 = arith.constant 0 : index
    %c1 = arith.constant 1 : index
    %38 = vector.load %arg6[%c0_19, %c1] : memref<64x128xi32, #tpu.memory_space<vmem>>, vector<64x1xi32>
    tpu.vector_store %arg6[%c0_19, %c1], %37 {strides = array<i32>} : memref<64x128xi32, #tpu.memory_space<vmem>>, vector<64x1xi32>,
    %c0_20 = arith.constant 0 : index
    %c5 = arith.constant 5 : index
    %39 = vector.load %arg6[%c0_20, %c5] : memref<64x128xi32, #tpu.memory_space<vmem>>, vector<64x1xi32>
    tpu.vector_store %arg6[%c0_20, %c5], %32 {strides = array<i32>} : memref<64x128xi32, #tpu.memory_space<vmem>>, vector<64x1xi32>,
    %cst_21 = arith.constant dense<0xFF800000> : vector<64xf32>
    %40 = vector.multi_reduction <maximumf>, %36, %cst_21 [1] : vector<64x256xf32> to vector<64xf32>
    %41 = vector.shape_cast %40 : vector<64xf32> to vector<64x1xf32>
    %42 = vector.broadcast %41 : vector<64x1xf32> to vector<64x256xf32>
    %43 = arith.cmpf oeq, %36, %42 : vector<64x256xf32>
    %c256_i32_22 = arith.constant 256 : i32
    %44 = vector.broadcast %c256_i32_22 : i32 to vector<64x256xi32>
    %45 = arith.select %43, %9, %44 : vector<64x256xi1>, vector<64x256xi32>
    %cst_23 = arith.constant dense<2147483647> : vector<64xi32>
    %46 = vector.multi_reduction <minsi>, %45, %cst_23 [1] : vector<64x256xi32> to vector<64xi32>
    %47 = vector.shape_cast %46 : vector<64xi32> to vector<64x1xi32>
    %48 = vector.broadcast %47 : vector<64x1xi32> to vector<64x256xi32>
    %49 = arith.cmpi eq, %9, %48 : vector<64x256xi32>
    %cst_24 = arith.constant 0xFF800000 : f32
    %50 = vector.broadcast %cst_24 : f32 to vector<64x256xf32>
    %51 = arith.select %49, %50, %36 : vector<64x256xi1>, vector<64x256xf32>
    %52 = tpu.bitcast %41 : vector<64x1xf32> -> vector<64x1xi32>
    %c0_25 = arith.constant 0 : index
    %c2 = arith.constant 2 : index
    %53 = vector.load %arg6[%c0_25, %c2] : memref<64x128xi32, #tpu.memory_space<vmem>>, vector<64x1xi32>
    tpu.vector_store %arg6[%c0_25, %c2], %52 {strides = array<i32>} : memref<64x128xi32, #tpu.memory_space<vmem>>, vector<64x1xi32>,
    %c0_26 = arith.constant 0 : index
    %c6 = arith.constant 6 : index
    %54 = vector.load %arg6[%c0_26, %c6] : memref<64x128xi32, #tpu.memory_space<vmem>>, vector<64x1xi32>
    tpu.vector_store %arg6[%c0_26, %c6], %47 {strides = array<i32>} : memref<64x128xi32, #tpu.memory_space<vmem>>, vector<64x1xi32>,
    %cst_27 = arith.constant dense<0xFF800000> : vector<64xf32>
    %55 = vector.multi_reduction <maximumf>, %51, %cst_27 [1] : vector<64x256xf32> to vector<64xf32>
    %56 = vector.shape_cast %55 : vector<64xf32> to vector<64x1xf32>
    %57 = vector.broadcast %56 : vector<64x1xf32> to vector<64x256xf32>
    %58 = arith.cmpf oeq, %51, %57 : vector<64x256xf32>
    %c256_i32_28 = arith.constant 256 : i32
    %59 = vector.broadcast %c256_i32_28 : i32 to vector<64x256xi32>
    %60 = arith.select %58, %9, %59 : vector<64x256xi1>, vector<64x256xi32>
    %cst_29 = arith.constant dense<2147483647> : vector<64xi32>
    %61 = vector.multi_reduction <minsi>, %60, %cst_29 [1] : vector<64x256xi32> to vector<64xi32>
    %62 = vector.shape_cast %61 : vector<64xi32> to vector<64x1xi32>
    %63 = vector.broadcast %62 : vector<64x1xi32> to vector<64x256xi32>
    %64 = arith.cmpi eq, %9, %63 : vector<64x256xi32>
    %cst_30 = arith.constant 0xFF800000 : f32
    %65 = vector.broadcast %cst_30 : f32 to vector<64x256xf32>
    %66 = arith.select %64, %65, %51 : vector<64x256xi1>, vector<64x256xf32>
    %67 = tpu.bitcast %56 : vector<64x1xf32> -> vector<64x1xi32>
    %c0_31 = arith.constant 0 : index
    %c3 = arith.constant 3 : index
    %68 = vector.load %arg6[%c0_31, %c3] : memref<64x128xi32, #tpu.memory_space<vmem>>, vector<64x1xi32>
    tpu.vector_store %arg6[%c0_31, %c3], %67 {strides = array<i32>} : memref<64x128xi32, #tpu.memory_space<vmem>>, vector<64x1xi32>,
    %c0_32 = arith.constant 0 : index
    %c7 = arith.constant 7 : index
    %69 = vector.load %arg6[%c0_32, %c7] : memref<64x128xi32, #tpu.memory_space<vmem>>, vector<64x1xi32>
    tpu.vector_store %arg6[%c0_32, %c7], %62 {strides = array<i32>} : memref<64x128xi32, #tpu.memory_space<vmem>>, vector<64x1xi32>,
    %70 = arith.cmpf olt, %66, %6 : vector<64x256xf32>
    %cst_33 = arith.constant 0.000000e+00 : f32
    %71 = vector.broadcast %cst_33 : f32 to vector<64x256xf32>
    %72 = arith.select %70, %6, %71 : vector<64x256xi1>, vector<64x256xf32>
    %cst_34 = arith.constant dense<0.000000e+00> : vector<64x128xf32>
    %73 = tpu.matmul %72, %4, %cst_34 {dimension_numbers = #tpu.dot_dimension_numbers<[1], [0], [0], [1], [0, 0, 1, 1], [], []>, precision = #tpu.contract_precision<fp32>} : vector<64x256xf32>, vector<256x128xf32>, vector<64x128xf32> -> vector<64x128xf32>
    %74 = vector.broadcast %1 : vector<1x128xf32> to vector<64x128xf32>
    %75 = arith.addf %73, %74 : vector<64x128xf32>
    %c0_35 = arith.constant 0 : index
    %c0_36 = arith.constant 0 : index
    %76 = vector.load %arg5[%c0_35, %c0_36] : memref<64x128xf32, #tpu.memory_space<vmem>>, vector<64x128xf32>
    tpu.vector_store %arg5[%c0_35, %c0_36], %75 {strides = array<i32>} : memref<64x128xf32, #tpu.memory_space<vmem>>, vector<64x128xf32>,
    %77 = arith.subf %75, %3 : vector<64x128xf32>
    %78 = arith.mulf %77, %77 : vector<64x128xf32>
    %cst_37 = arith.constant dense<0.000000e+00> : vector<128xf32>
    %79 = vector.multi_reduction <add>, %78, %cst_37 [0] : vector<64x128xf32> to vector<128xf32>
    %80 = vector.shape_cast %79 : vector<128xf32> to vector<1x128xf32>
    %cst_38 = arith.constant dense<0.000000e+00> : vector<128xf32>
    %81 = vector.multi_reduction <add>, %3, %cst_38 [0] : vector<64x128xf32> to vector<128xf32>
    %82 = vector.shape_cast %81 : vector<128xf32> to vector<1x128xf32>
    %cst_39 = arith.constant 6.400000e+01 : f32
    %83 = vector.broadcast %cst_39 : f32 to vector<1x128xf32>
    %84 = arith.divf %82, %83 : vector<1x128xf32>
    %85 = vector.broadcast %84 : vector<1x128xf32> to vector<64x128xf32>
    %86 = arith.subf %3, %85 : vector<64x128xf32>
    %87 = arith.mulf %86, %86 : vector<64x128xf32>
    %cst_40 = arith.constant dense<0.000000e+00> : vector<128xf32>
    %88 = vector.multi_reduction <add>, %87, %cst_40 [0] : vector<64x128xf32> to vector<128xf32>
    %89 = vector.shape_cast %88 : vector<128xf32> to vector<1x128xf32>
    %cst_41 = arith.constant 0.000000e+00 : f32
    %90 = vector.broadcast %cst_41 : f32 to vector<5x128xf32>
    %91 = tpu.concatenate %80, %82, %89, %90 in 0 : vector<1x128xf32>, vector<1x128xf32>, vector<1x128xf32>, vector<5x128xf32> -> vector<8x128xf32>
    %c0_42 = arith.constant 0 : index
    %c0_43 = arith.constant 0 : index
    %c0_44 = arith.constant 0 : index
    %92 = vector.load %arg7[%c0_42, %c0_43, %c0_44] : memref<1x8x128xf32, #tpu.memory_space<vmem>>, vector<1x8x128xf32>
    %93 = vector.shape_cast %92 : vector<1x8x128xf32> to vector<8x128xf32>
    %94 = vector.shape_cast %91 : vector<8x128xf32> to vector<1x8x128xf32>
    tpu.vector_store %arg7[%c0_42, %c0_43, %c0_44], %94 {strides = array<i32>} : memref<1x8x128xf32, #tpu.memory_space<vmem>>, vector<1x8x128xf32>,
    return
  }
  func.func @transform_0(%arg0: i32) -> (i32, i32) {
    %c0_i32 = arith.constant 0 : i32
    %c0_i32_0 = arith.constant 0 : i32
    return %arg0, %c0_i32 : i32, i32
  }
  func.func @transform_1(%arg0: i32) -> (i32, i32) {
    %c0_i32 = arith.constant 0 : i32
    %c0_i32_0 = arith.constant 0 : i32
    %c0_i32_1 = arith.constant 0 : i32
    return %c0_i32, %c0_i32_0 : i32, i32
  }
  func.func @transform_2(%arg0: i32) -> (i32, i32) {
    %c0_i32 = arith.constant 0 : i32
    %c0_i32_0 = arith.constant 0 : i32
    %c0_i32_1 = arith.constant 0 : i32
    return %c0_i32, %c0_i32_0 : i32, i32
  }
  func.func @transform_3(%arg0: i32) -> (i32, i32) {
    %c0_i32 = arith.constant 0 : i32
    %c0_i32_0 = arith.constant 0 : i32
    %c0_i32_1 = arith.constant 0 : i32
    return %c0_i32, %c0_i32_0 : i32, i32
  }
  func.func @transform_4(%arg0: i32) -> (i32, i32) {
    %c0_i32 = arith.constant 0 : i32
    %c0_i32_0 = arith.constant 0 : i32
    return %arg0, %c0_i32 : i32, i32
  }
  func.func @transform_5(%arg0: i32) -> (i32, i32) {
    %c0_i32 = arith.constant 0 : i32
    %c0_i32_0 = arith.constant 0 : i32
    return %arg0, %c0_i32 : i32, i32
  }
  func.func @transform_6(%arg0: i32) -> (i32, i32, i32) {
    %c0_i32 = arith.constant 0 : i32
    %c0_i32_0 = arith.constant 0 : i32
    %c0_i32_1 = arith.constant 0 : i32
    return %arg0, %c0_i32, %c0_i32_0 : i32, i32, i32
  }
}

</mosaic_0001>

<llo_original>
// kernel: tpu_custom_call.1
$region0: #{tpu_custom_call.1}
  #allocation0 [shape = 'u32[]', space=smem, size = 0x4, offset = 0x4, fixed_abs, tag = 'smem constant byte address 0x4 - core index']
  #allocation1 [shape = 'u32[144,128]{1,0:T(1,128)}', space=vmem, size = 0x12000, scoped, tag = 'internal scratch']
  %s0 = inlined_call_operand.hbm [shape: f32[128,128], index: 0, kind: input, shape index: {}]
  %s1 = inlined_call_operand.vmem [shape: f32[1,128], index: 1, kind: input, shape index: {}]
  %s2 = inlined_call_operand.hbm [shape: f32[256,128], index: 2, kind: input, shape index: {}]
  %s3 = inlined_call_operand.hbm [shape: f32[128,256], index: 3, kind: input, shape index: {}]
  %s4 = inlined_call_operand.hbm [shape: f32[128,128], index: 4, kind: output, shape index: {0}]
  %s5 = inlined_call_operand.hbm [shape: s32[128,128], index: 5, kind: output, shape index: {1}]
  %s6 = inlined_call_operand.hbm [shape: f32[2,8,128], index: 6, kind: output, shape index: {2}]
  %7 = xla_tuple %s4, %s5, %s6
  %s8 = sld [smem:[#allocation0]]
  $region77: #{tpu_custom_call.1} parent=0
    _
  %s10 = ssub.s32 1, %s8
  %s11 = scalar_select 0, %s10, %s8
  $region1: #{tpu_custom_call.1} parent=0
    #allocation2 [shape = 'u8[65536]{0}', space=vmem, size = 0x10000, scoped, tag = 'input window, operand 0']
    #allocation3 [shape = 's32[2]{0}', space=sflag, size = 0x8, scoped, tag = 'scoped memory for tpu_custom_call.1']
    #allocation4 [shape = 's32[2]{0}', space=sflag, size = 0x8, scoped, tag = 'scoped memory for tpu_custom_call.1']
    #allocation5 [shape = 'u8[131072]{0}', space=vmem, size = 0x20000, scoped, tag = 'input window, operand 2, single buffered']
    #allocation6 [shape = 's32[1]{0}', space=sflag, size = 0x4, scoped, tag = 'scoped memory for tpu_custom_call.1']
    #allocation7 [shape = 'u8[131072]{0}', space=vmem, size = 0x20000, scoped, tag = 'input window, operand 3, single buffered']
    #allocation8 [shape = 'u8[65536]{0}', space=vmem, size = 0x10000, scoped, tag = 'output window, operand 0']
    #allocation9 [shape = 'u8[65536]{0}', space=vmem, size = 0x10000, scoped, tag = 'output window, operand 1']
    #allocation10 [shape = 's32[2]{0}', space=sflag, size = 0x8, scoped, tag = 'scoped memory for tpu_custom_call.1']
    #allocation11 [shape = 'u8[8192]{0}', space=vmem, size = 0x2000, scoped, tag = 'output window, operand 2']
    %12 = vsyncpa [#allocation3], 0
    %s13 = scalar_lea.sflag [#allocation3], 1
    %14 = vsyncpa %s13, 0
    %15 = vsyncpa [#allocation6], 0
    %16 = vsyncpa [#allocation4], 0
    %s17 = scalar_lea.sflag [#allocation4], 1
    %18 = vsyncpa %s17, 0
    %19 = vsyncpa [#allocation10], 0
    %s20 = scalar_lea.sflag [#allocation10], 1
    %21 = vsyncpa %s20, 0
    loop: start=0, step=1, limit=4
    $region2: #{tpu_custom_call.1} parent=1 // loop_pre_header
      _
    $region3: #{tpu_custom_call.1} parent=1 // loop_header
      %s23 = sphi 0, %s27
      %p24 = scmp.ge.s32.totalorder %s23, 4
      %s33 = sphi 0, %s35
      %s36 = sphi 0, %s33
      %s37 = sphi 0, %s36
      %s53 = sphi 0, %s37
      %s57 = sphi 0, %s57
      %s59 = sphi 0, %s57
      %s60 = sphi 0, %s59
      %s74 = sphi 0, %s60
      %s78 = sphi 0, %s78
      %s80 = sphi 0, %s78
      %s81 = sphi 0, %s80
      %s95 = sphi 0, %s81
      %s99 = sphi 0, %s99
      %s101 = sphi 0, %s99
      %s102 = sphi 0, %s101
      %s116 = sphi 0, %s102
      %s122 = sphi 0, %s124
      %s125 = sphi 0, %s122
      %s126 = sphi 0, %s125
      %s142 = sphi 0, %s126
      %s148 = sphi 0, %s150
      %s151 = sphi 0, %s148
      %s152 = sphi 0, %s151
      %s168 = sphi 0, %s152
      %s174 = sphi 0, %s176
      %s177 = sphi 0, %s174
      %s178 = sphi 0, %s177
      %s194 = sphi 0, %s178
    $region4: #{tpu_custom_call.1} parent=1 // loop_header_branch
      %26 = sbr.rel (%p24) target = $region8
    $region5: #{tpu_custom_call.1} parent=1 // loop_body
      %s28 = ssub.s32 %s23, 1
      %s29 = ssub.s32 %s23, 2
      %s30 = sadd.s32 %s23, 1
      %s31 = ssub.s32 %s23, %s30
      %p32 = scmp.eq.s32.totalorder %s31, 0
      %s34 = sadd.s32 %s33, 1
      %s35 = scalar_select %p32, %s33, %s34
      %p38 = pneg %p32
      %p39 = scmp.eq.s32.totalorder %s23, 1
      %p40 = por %p38, %p39
      %p41 = scmp.ne.s32.totalorder %s33, %s36
      %p42 = scmp.eq.s32.totalorder %s23, 0
      %p43 = por %p41, %p42
      %p44 = scmp.ne.s32.totalorder %s33, %s36
      %p45 = scmp.eq.s32.totalorder %s28, 1
      %p46 = por %p44, %p45
      %p47 = scmp.ne.s32.totalorder %s36, %s37
      %p48 = scmp.eq.s32.totalorder %s28, 0
      %p49 = por %p47, %p48
      %p50 = scmp.ne.s32.totalorder %s36, %s37
      %p51 = scmp.eq.s32.totalorder %s29, 1
      %p52 = por %p50, %p51
      %p54 = scmp.ne.s32.totalorder %s37, %s53
      %p55 = scmp.eq.s32.totalorder %s29, 0
      %p56 = por %p54, %p55
      %s58 = sadd.s32 %s57, 1
      %p61 = scmp.eq.s32.totalorder %s23, 1
      %p62 = scmp.ne.s32.totalorder %s57, %s59
      %p63 = scmp.eq.s32.totalorder %s23, 0
      %p64 = por %p62, %p63
      %p65 = scmp.ne.s32.totalorder %s57, %s59
      %p66 = scmp.eq.s32.totalorder %s28, 1
      %p67 = por %p65, %p66
      %p68 = scmp.ne.s32.totalorder %s59, %s60
      %p69 = scmp.eq.s32.totalorder %s28, 0
      %p70 = por %p68, %p69
      %p71 = scmp.ne.s32.totalorder %s59, %s60
      %p72 = scmp.eq.s32.totalorder %s29, 1
      %p73 = por %p71, %p72
      %p75 = scmp.ne.s32.totalorder %s60, %s74
      %p76 = scmp.eq.s32.totalorder %s29, 0
      %p77 = por %p75, %p76
      %s79 = sadd.s32 %s78, 1
      %p82 = scmp.eq.s32.totalorder %s23, 1
      %p83 = scmp.ne.s32.totalorder %s78, %s80
      %p84 = scmp.eq.s32.totalorder %s23, 0
      %p85 = por %p83, %p84
      %p86 = scmp.ne.s32.totalorder %s78, %s80
      %p87 = scmp.eq.s32.totalorder %s28, 1
      %p88 = por %p86, %p87
      %p89 = scmp.ne.s32.totalorder %s80, %s81
      %p90 = scmp.eq.s32.totalorder %s28, 0
      %p91 = por %p89, %p90
      %p92 = scmp.ne.s32.totalorder %s80, %s81
      %p93 = scmp.eq.s32.totalorder %s29, 1
      %p94 = por %p92, %p93
      %p96 = scmp.ne.s32.totalorder %s81, %s95
      %p97 = scmp.eq.s32.totalorder %s29, 0
      %p98 = por %p96, %p97
      %s100 = sadd.s32 %s99, 1
      %p103 = scmp.eq.s32.totalorder %s23, 1
      %p104 = scmp.ne.s32.totalorder %s99, %s101
      %p105 = scmp.eq.s32.totalorder %s23, 0
      %p106 = por %p104, %p105
      %p107 = scmp.ne.s32.totalorder %s99, %s101
      %p108 = scmp.eq.s32.totalorder %s28, 1
      %p109 = por %p107, %p108
      %p110 = scmp.ne.s32.totalorder %s101, %s102
      %p111 = scmp.eq.s32.totalorder %s28, 0
      %p112 = por %p110, %p111
      %p113 = scmp.ne.s32.totalorder %s101, %s102
      %p114 = scmp.eq.s32.totalorder %s29, 1
      %p115 = por %p113, %p114
      %p117 = scmp.ne.s32.totalorder %s102, %s116
      %p118 = scmp.eq.s32.totalorder %s29, 0
      %p119 = por %p117, %p118
      %s120 = ssub.s32 %s23, %s30
      %p121 = scmp.eq.s32.totalorder %s120, 0
      %s123 = sadd.s32 %s122, 1
      %s124 = scalar_select %p121, %s122, %s123
      %p127 = pneg %p121
      %p128 = scmp.eq.s32.totalorder %s23, 1
      %p129 = por %p127, %p128
      %p130 = scmp.ne.s32.totalorder %s122, %s125
      %p131 = scmp.eq.s32.totalorder %s23, 0
      %p132 = por %p130, %p131
      %p133 = scmp.ne.s32.totalorder %s122, %s125
      %p134 = scmp.eq.s32.totalorder %s28, 1
      %p135 = por %p133, %p134
      %p136 = scmp.ne.s32.totalorder %s125, %s126
      %p137 = scmp.eq.s32.totalorder %s28, 0
      %p138 = por %p136, %p137
      %p139 = scmp.ne.s32.totalorder %s125, %s126
      %p140 = scmp.eq.s32.totalorder %s29, 1
      %p141 = por %p139, %p140
      %p143 = scmp.ne.s32.totalorder %s126, %s142
      %p144 = scmp.eq.s32.totalorder %s29, 0
      %p145 = por %p143, %p144
      %s146 = ssub.s32 %s23, %s30
      %p147 = scmp.eq.s32.totalorder %s146, 0
      %s149 = sadd.s32 %s148, 1
      %s150 = scalar_select %p147, %s148, %s149
      %p153 = pneg %p147
      %p154 = scmp.eq.s32.totalorder %s23, 1
      %p155 = por %p153, %p154
      %p156 = scmp.ne.s32.totalorder %s148, %s151
      %p157 = scmp.eq.s32.totalorder %s23, 0
      %p158 = por %p156, %p157
      %p159 = scmp.ne.s32.totalorder %s148, %s151
      %p160 = scmp.eq.s32.totalorder %s28, 1
      %p161 = por %p159, %p160
      %p162 = scmp.ne.s32.totalorder %s151, %s152
      %p163 = scmp.eq.s32.totalorder %s28, 0
      %p164 = por %p162, %p163
      %p165 = scmp.ne.s32.totalorder %s151, %s152
      %p166 = scmp.eq.s32.totalorder %s29, 1
      %p167 = por %p165, %p166
      %p169 = scmp.ne.s32.totalorder %s152, %s168
      %p170 = scmp.eq.s32.totalorder %s29, 0
      %p171 = por %p169, %p170
      %s172 = ssub.s32 %s23, %s30
      %p173 = scmp.eq.s32.totalorder %s172, 0
      %s175 = sadd.s32 %s174, 1
      %s176 = scalar_select %p173, %s174, %s175
      %p179 = pneg %p173
      %p180 = scmp.eq.s32.totalorder %s23, 1
      %p181 = por %p179, %p180
      %p182 = scmp.ne.s32.totalorder %s174, %s177
      %p183 = scmp.eq.s32.totalorder %s23, 0
      %p184 = por %p182, %p183
      %p185 = scmp.ne.s32.totalorder %s174, %s177
      %p186 = scmp.eq.s32.totalorder %s28, 1
      %p187 = por %p185, %p186
      %p188 = scmp.ne.s32.totalorder %s177, %s178
      %p189 = scmp.eq.s32.totalorder %s28, 0
      %p190 = por %p188, %p189
      %p191 = scmp.ne.s32.totalorder %s177, %s178
      %p192 = scmp.eq.s32.totalorder %s29, 1
      %p193 = por %p191, %p192
      %p195 = scmp.ne.s32.totalorder %s178, %s194
      %p196 = scmp.eq.s32.totalorder %s29, 0
      %p197 = por %p195, %p196
      %p198 = scmp.le.s32.totalorder 1, %s23
      %p199 = scmp.lt.s32.totalorder %s23, 3
      %p200 = pnand %p198, %p199
      %p201 = pneg %p200
      // Predicated region
      $region9: #{tpu_custom_call.1} parent=5 // pred_check
        _
      $region10: #{tpu_custom_call.1} parent=5 // pred_check_branch
        %203 = sbr.rel (%p200) target = $region12
      $region11: #{tpu_custom_call.1} parent=5 // pred_region
        %s204 = ssub.s32 %s23, 1
        // Predicated region
        $region13: #{tpu_custom_call.1} parent=11 // pred_check
          %p205 = pneg %p70
        $region14: #{tpu_custom_call.1} parent=11 // pred_check_branch
          %207 = sbr.rel (%p205) target = $region16
        $region15: #{tpu_custom_call.1} parent=11 // pred_region
          _
        $region16: #{tpu_custom_call.1} parent=11 // pred_fallthru
          _
        // Predicated region
        $region17: #{tpu_custom_call.1} parent=11 // pred_check
          %p208 = pneg %p91
        $region18: #{tpu_custom_call.1} parent=11 // pred_check_branch
          %210 = sbr.rel (%p208) target = $region20
        $region19: #{tpu_custom_call.1} parent=11 // pred_region
          %s212 = ssub.s32 4096, 4096
          %213 = vsyncadd [#allocation6], %s212
          %s214 = sshll.u32 [#allocation5], 4
          %s215 = int_to_ptr.vmem [resolvable:$true] %s214
          %220 = dma.hbm_to_vmem [thread:$0]  %s2, 4096, %s215, [#allocation6], 128, 128, 8
        $region20: #{tpu_custom_call.1} parent=11 // pred_fallthru
          _
        // Predicated region
        $region21: #{tpu_custom_call.1} parent=11 // pred_check
          %p221 = pneg %p112
        $region22: #{tpu_custom_call.1} parent=11 // pred_check_branch
          %223 = sbr.rel (%p221) target = $region24
        $region23: #{tpu_custom_call.1} parent=11 // pred_region
          %s225 = ssub.s32 4096, 4096
          %226 = vsyncadd [#allocation6], %s225
          %s227 = sshll.u32 [#allocation7], 4
          %s228 = int_to_ptr.vmem [resolvable:$true] %s227
          %233 = dma.hbm_to_vmem [thread:$0]  %s3, 4096, %s228, [#allocation6], 256, 256, 16
        $region24: #{tpu_custom_call.1} parent=11 // pred_fallthru
          _
      $region12: #{tpu_custom_call.1} parent=5 // pred_fallthru
        _
      %p234 = scmp.lt.s32.totalorder %s23, 2
      // Predicated region
      $region25: #{tpu_custom_call.1} parent=5 // pred_check
        %p235 = pneg %p234
      $region26: #{tpu_custom_call.1} parent=5 // pred_check_branch
        %237 = sbr.rel (%p235) target = $region28
      $region27: #{tpu_custom_call.1} parent=5 // pred_region
        // Predicated region
        $region29: #{tpu_custom_call.1} parent=27 // pred_check
          %p238 = pneg %p43
        $region30: #{tpu_custom_call.1} parent=27 // pred_check_branch
          %240 = sbr.rel (%p238) target = $region32
        $region31: #{tpu_custom_call.1} parent=27 // pred_region
          %s241 = sand.u32 %s33, 1
          %s242 = scalar_lea.sflag [#allocation3], %s241
          %s243 = sand.u32 %s33, 1
          %s244 = smul.addr %s243, 64
          %s245 = scalar_lea.vmem [#allocation2], %s244
          %s246 = smul.u32 8, %s23
          %s248 = ssub.s32 1024, 1024
          %249 = vsyncadd %s242, %s248
          %s250 = smul.addr %s246, 128
          %s251 = scalar_lea.hbm %s0, %s250
          %s252 = sshll.u32 %s245, 4
          %s253 = int_to_ptr.vmem [resolvable:$true] %s252
          %258 = dma.hbm_to_vmem [thread:$0]  %s251, 1024, %s253, %s242, 128, 128, 8
        $region32: #{tpu_custom_call.1} parent=27 // pred_fallthru
          _
      $region28: #{tpu_custom_call.1} parent=5 // pred_fallthru
        _
      %p259 = scmp.le.s32.totalorder 1, %s23
      %p260 = scmp.lt.s32.totalorder %s23, 3
      %p261 = pnand %p259, %p260
      %p262 = pneg %p261
      // Predicated region
      $region33: #{tpu_custom_call.1} parent=5 // pred_check
        _
      $region34: #{tpu_custom_call.1} parent=5 // pred_check_branch
        %264 = sbr.rel (%p261) target = $region36
      $region35: #{tpu_custom_call.1} parent=5 // pred_region
        %s265 = ssub.s32 %s23, 1
        %s266 = sand.u32 %s36, 1
        %s267 = scalar_lea.sflag [#allocation3], %s266
        %s268 = sand.u32 %s36, 1
        %s269 = smul.addr %s268, 64
        %s270 = scalar_lea.vmem [#allocation2], %s269
        // Predicated region
        $region37: #{tpu_custom_call.1} parent=35 // pred_check
          %p271 = pneg %p49
        $region38: #{tpu_custom_call.1} parent=35 // pred_check_branch
          %273 = sbr.rel (%p271) target = $region40
        $region39: #{tpu_custom_call.1} parent=35 // pred_region
          %274 = dma.done %s267, 1024
        $region40: #{tpu_custom_call.1} parent=35 // pred_fallthru
          _
        // Predicated region
        $region41: #{tpu_custom_call.1} parent=35 // pred_check
          %p275 = pneg %p91
        $region42: #{tpu_custom_call.1} parent=35 // pred_check_branch
          %277 = sbr.rel (%p275) target = $region44
        $region43: #{tpu_custom_call.1} parent=35 // pred_region
          %278 = dma.done [#allocation6], 4096
        $region44: #{tpu_custom_call.1} parent=35 // pred_fallthru
          _
        // Predicated region
        $region45: #{tpu_custom_call.1} parent=35 // pred_check
          %p279 = pneg %p112
        $region46: #{tpu_custom_call.1} parent=35 // pred_check_branch
          %281 = sbr.rel (%p279) target = $region48
        $region47: #{tpu_custom_call.1} parent=35 // pred_region
          %282 = dma.done [#allocation6], 4096
        $region48: #{tpu_custom_call.1} parent=35 // pred_fallthru
          _
        %s283 = sand.u32 %s36, 1
        %s284 = scalar_lea.sflag [#allocation3], %s283
        %s285 = sand.u32 %s36, 1
        %s286 = smul.addr %s285, 64
        %s287 = scalar_lea.vmem [#allocation2], %s286
        %p288 = pneg %p49
        %p289 = pneg %p46
        %p290 = pneg %p70
        %p291 = pneg %p67
        %p292 = pneg %p91
        %p293 = pneg %p88
        %p294 = pneg %p112
        %p295 = pneg %p109
        %p296 = pneg %p138
        %p297 = pneg %p135
        %s298 = sand.u32 %s125, 1
        %s299 = scalar_lea.sflag [#allocation4], %s298
        %s300 = sand.u32 %s125, 1
        %s301 = smul.addr %s300, 64
        %s302 = scalar_lea.vmem [#allocation8], %s301
        %p303 = pneg %p164
        %p304 = pneg %p161
        %s305 = sand.u32 %s28, 1
        %s306 = scalar_lea.sflag [#allocation10], %s305
        %s307 = sand.u32 %s151, 1
        %s308 = smul.addr %s307, 64
        %s309 = scalar_lea.vmem [#allocation9], %s308
        %p310 = pneg %p190
        %p311 = pneg %p187
        %s312 = sand.u32 %s28, 1
        %s313 = scalar_lea.sflag [#allocation10], %s312
        %s314 = sand.u32 %s177, 1
        %s315 = smul.addr %s314, 8
        %s316 = scalar_lea.vmem [#allocation11], %s315
        %s317 = smul.u32 8, %s28
        %s318 = smul.u32 8, %s28
        %s319 = smul.u32 8, %s28
        %v320 = vld [vmem:[%s270] sm:$0xff]
        %v321 = vld [vmem:[%s270 + $0x8] sm:$0xff]
        %v322 = vld [vmem:[%s270 + $0x10] sm:$0xff]
        %v323 = vld [vmem:[%s270 + $0x18] sm:$0xff]
        %v324 = vld [vmem:[%s270 + $0x20] sm:$0xff]
        %v325 = vld [vmem:[%s270 + $0x28] sm:$0xff]
        %v326 = vld [vmem:[%s270 + $0x30] sm:$0xff]
        %v327 = vld [vmem:[%s270 + $0x38] sm:$0xff]
        %v328 = vld [vmem:[%s1] sm:$0x1]
        %v330 = vlaneseq
        %v331 = vshrl.u32 %v330, 7
        %v332 = vsub.s32 0, %v331
        %v333 = vrot.slane %v328, %v332
        %v335 = vsub.f32 %v320, %v333
        %v336 = vsub.f32 %v321, %v333
        %v337 = vsub.f32 %v322, %v333
        %v338 = vsub.f32 %v323, %v333
        %v339 = vsub.f32 %v324, %v333
        %v340 = vsub.f32 %v325, %v333
        %v341 = vsub.f32 %v326, %v333
        %v342 = vsub.f32 %v327, %v333
        %v343 = vld [vmem:[#allocation5] sm:$0xff]
        %v344 = vld [vmem:[#allocation5 + $0x8] sm:$0xff]
        %v345 = vld [vmem:[#allocation5 + $0x10] sm:$0xff]
        %v346 = vld [vmem:[#allocation5 + $0x18] sm:$0xff]
        %v347 = vld [vmem:[#allocation5 + $0x20] sm:$0xff]
        %v348 = vld [vmem:[#allocation5 + $0x28] sm:$0xff]
        %v349 = vld [vmem:[#allocation5 + $0x30] sm:$0xff]
        %v350 = vld [vmem:[#allocation5 + $0x38] sm:$0xff]
        %v351 = vld [vmem:[#allocation5 + $0x40] sm:$0xff]
        %v352 = vld [vmem:[#allocation5 + $0x48] sm:$0xff]
        %v353 = vld [vmem:[#allocation5 + $0x50] sm:$0xff]
        %v354 = vld [vmem:[#allocation5 + $0x58] sm:$0xff]
        %v355 = vld [vmem:[#allocation5 + $0x60] sm:$0xff]
        %v356 = vld [vmem:[#allocation5 + $0x68] sm:$0xff]
        %v357 = vld [vmem:[#allocation5 + $0x70] sm:$0xff]
        %v358 = vld [vmem:[#allocation5 + $0x78] sm:$0xff]
        %v359 = vld [vmem:[#allocation5 + $0x80] sm:$0xff]
        %v360 = vld [vmem:[#allocation5 + $0x88] sm:$0xff]
        %v361 = vld [vmem:[#allocation5 + $0x90] sm:$0xff]
        %v362 = vld [vmem:[#allocation5 + $0x98] sm:$0xff]
        %v363 = vld [vmem:[#allocation5 + $0xa0] sm:$0xff]
        %v364 = vld [vmem:[#allocation5 + $0xa8] sm:$0xff]
        %v365 = vld [vmem:[#allocation5 + $0xb0] sm:$0xff]
        %v366 = vld [vmem:[#allocation5 + $0xb8] sm:$0xff]
        %v367 = vld [vmem:[#allocation5 + $0xc0] sm:$0xff]
        %v368 = vld [vmem:[#allocation5 + $0xc8] sm:$0xff]
        %v369 = vld [vmem:[#allocation5 + $0xd0] sm:$0xff]
        %v370 = vld [vmem:[#allocation5 + $0xd8] sm:$0xff]
        %v371 = vld [vmem:[#allocation5 + $0xe0] sm:$0xff]
        %v372 = vld [vmem:[#allocation5 + $0xe8] sm:$0xff]
        %v373 = vld [vmem:[#allocation5 + $0xf0] sm:$0xff]
        %v374 = vld [vmem:[#allocation5 + $0xf8] sm:$0xff]
        %v375 = vld [vmem:[#allocation7] sm:$0xff]
        %v376 = vld [vmem:[#allocation7 + $0x8] sm:$0xff]
        %v377 = vld [vmem:[#allocation7 + $0x10] sm:$0xff]
        %v378 = vld [vmem:[#allocation7 + $0x18] sm:$0xff]
        %v379 = vld [vmem:[#allocation7 + $0x20] sm:$0xff]
        %v380 = vld [vmem:[#allocation7 + $0x28] sm:$0xff]
        %v381 = vld [vmem:[#allocation7 + $0x30] sm:$0xff]
        %v382 = vld [vmem:[#allocation7 + $0x38] sm:$0xff]
        %v383 = vld [vmem:[#allocation7 + $0x40] sm:$0xff]
        %v384 = vld [vmem:[#allocation7 + $0x48] sm:$0xff]
        %v385 = vld [vmem:[#allocation7 + $0x50] sm:$0xff]
        %v386 = vld [vmem:[#allocation7 + $0x58] sm:$0xff]
        %v387 = vld [vmem:[#allocation7 + $0x60] sm:$0xff]
        %v388 = vld [vmem:[#allocation7 + $0x68] sm:$0xff]
        %v389 = vld [vmem:[#allocation7 + $0x70] sm:$0xff]
        %v390 = vld [vmem:[#allocation7 + $0x78] sm:$0xff]
        %v391 = vld [vmem:[#allocation7 + $0x80] sm:$0xff]
        %v392 = vld [vmem:[#allocation7 + $0x88] sm:$0xff]
        %v393 = vld [vmem:[#allocation7 + $0x90] sm:$0xff]
        %v394 = vld [vmem:[#allocation7 + $0x98] sm:$0xff]
        %v395 = vld [vmem:[#allocation7 + $0xa0] sm:$0xff]
        %v396 = vld [vmem:[#allocation7 + $0xa8] sm:$0xff]
        %v397 = vld [vmem:[#allocation7 + $0xb0] sm:$0xff]
        %v398 = vld [vmem:[#allocation7 + $0xb8] sm:$0xff]
        %v399 = vld [vmem:[#allocation7 + $0xc0] sm:$0xff]
        %v400 = vld [vmem:[#allocation7 + $0xc8] sm:$0xff]
        %v401 = vld [vmem:[#allocation7 + $0xd0] sm:$0xff]
        %v402 = vld [vmem:[#allocation7 + $0xd8] sm:$0xff]
        %v403 = vld [vmem:[#allocation7 + $0xe0] sm:$0xff]
        %v404 = vld [vmem:[#allocation7 + $0xe8] sm:$0xff]
        %v405 = vld [vmem:[#allocation7 + $0xf0] sm:$0xff]
        %v406 = vld [vmem:[#allocation7 + $0xf8] sm:$0xff]
        %v407 = vand.u32 %v376, 4294901760
        %408 = vmatprep.subr.mxu0 %v407
        %v409 = vand.u32 %v375, 4294901760
        %410 = vmatpush1.msra.mxu0 %v409
        %v411 = vand.u32 %v378, 4294901760
        %412 = vmatprep.subr.mxu0 %v411
        %v413 = vand.u32 %v377, 4294901760
        %414 = vmatpush1.msra.mxu0 %v413
        %v415 = vand.u32 %v380, 4294901760
        %416 = vmatprep.subr.mxu0 %v415
        %v417 = vand.u32 %v379, 4294901760
        %418 = vmatpush1.msra.mxu0 %v417
        %v419 = vand.u32 %v382, 4294901760
        %420 = vmatprep.subr.mxu0 %v419
        %v421 = vand.u32 %v381, 4294901760
        %422 = vmatpush1.msra.mxu0 %v421
        %v423 = vand.u32 %v384, 4294901760
        %424 = vmatprep.subr.mxu0 %v423
        %v425 = vand.u32 %v383, 4294901760
        %426 = vmatpush1.msra.mxu0 %v425
        %v427 = vand.u32 %v386, 4294901760
        %428 = vmatprep.subr.mxu0 %v427
        %v429 = vand.u32 %v385, 4294901760
        %430 = vmatpush1.msra.mxu0 %v429
        %v431 = vand.u32 %v388, 4294901760
        %432 = vmatprep.subr.mxu0 %v431
        %v433 = vand.u32 %v387, 4294901760
        %434 = vmatpush1.msra.mxu0 %v433
        %v435 = vand.u32 %v390, 4294901760
        %436 = vmatprep.subr.mxu0 %v435
        %v437 = vand.u32 %v389, 4294901760
        %438 = vmatpush1.msra.mxu0 %v437
        %v439 = vand.u32 %v392, 4294901760
        %440 = vmatprep.subr.mxu0 %v439
        %v441 = vand.u32 %v391, 4294901760
        %442 = vmatpush1.msra.mxu0 %v441
        %v443 = vand.u32 %v394, 4294901760
        %444 = vmatprep.subr.mxu0 %v443
        %v445 = vand.u32 %v393, 4294901760
        %446 = vmatpush1.msra.mxu0 %v445
        %v447 = vand.u32 %v396, 4294901760
        %448 = vmatprep.subr.mxu0 %v447
        %v449 = vand.u32 %v395, 4294901760
        %450 = vmatpush1.msra.mxu0 %v449
        %v451 = vand.u32 %v398, 4294901760
        %452 = vmatprep.subr.mxu0 %v451
        %v453 = vand.u32 %v397, 4294901760
        %454 = vmatpush1.msra.mxu0 %v453
        %v455 = vand.u32 %v400, 4294901760
        %456 = vmatprep.subr.mxu0 %v455
        %v457 = vand.u32 %v399, 4294901760
        %458 = vmatpush1.msra.mxu0 %v457
        %v459 = vand.u32 %v402, 4294901760
        %460 = vmatprep.subr.mxu0 %v459
        %v461 = vand.u32 %v401, 4294901760
        %462 = vmatpush1.msra.mxu0 %v461
        %v463 = vand.u32 %v404, 4294901760
        %464 = vmatprep.subr.mxu0 %v463
        %v465 = vand.u32 %v403, 4294901760
        %466 = vmatpush1.msra.mxu0 %v465
        %v467 = vand.u32 %v406, 4294901760
        %468 = vmatprep.subr.mxu0 %v467
        %v469 = vand.u32 %v405, 4294901760
        %470 = vmatpush1.msra.mxu0 %v469
        %471 = vmatprep.subr.mxu0 0.0
        %472 = vmatpush1.msra.mxu0 0.0
        %473 = vmatprep.subr.mxu0 0.0
        %474 = vmatpush1.msra.mxu0 0.0
        %475 = vmatprep.subr.mxu0 0.0
        %476 = vmatpush1.msra.mxu0 0.0
        %477 = vmatprep.subr.mxu0 0.0
        %478 = vmatpush1.msra.mxu0 0.0
        %479 = vmatprep.subr.mxu0 0.0
        %480 = vmatpush1.msra.mxu0 0.0
        %481 = vmatprep.subr.mxu0 0.0
        %482 = vmatpush1.msra.mxu0 0.0
        %483 = vmatprep.subr.mxu0 0.0
        %484 = vmatpush1.msra.mxu0 0.0
        %485 = vmatprep.subr.mxu0 0.0
        %486 = vmatpush1.msra.mxu0 0.0
        %487 = vmatprep.subr.mxu0 0.0
        %488 = vmatpush1.msra.mxu0 0.0
        %489 = vmatprep.subr.mxu0 0.0
        %490 = vmatpush1.msra.mxu0 0.0
        %491 = vmatprep.subr.mxu0 0.0
        %492 = vmatpush1.msra.mxu0 0.0
        %493 = vmatprep.subr.mxu0 0.0
        %494 = vmatpush1.msra.mxu0 0.0
        %495 = vmatprep.subr.mxu0 0.0
        %496 = vmatpush1.msra.mxu0 0.0
        %497 = vmatprep.subr.mxu0 0.0
        %498 = vmatpush1.msra.mxu0 0.0
        %499 = vmatprep.subr.mxu0 0.0
        %500 = vmatpush1.msra.mxu0 0.0
        %501 = vmatprep.subr.mxu0 0.0
        %502 = vmatpush1.msra.mxu0 0.0
        %503 = vmatprep.mubr.f32.mxu0 0.0
        %v504 = vand.u32 %v335, 4294901760
        %v505 = vsub.f32 %v335, %v504
        %v506 = vand.u32 %v505, 4294901760
        %v507 = vsub.f32 %v505, %v506
        %v508 = vand.u32 %v507, 4294901760
        %509 = vmatmul.mubr.f32.gmra.mrb[0].mxu0 %v508
        %v510 = vpop.f32.mrb[0].mxu0
        %v511 = vadd.f32 0.0, %v510
        %v512 = vpop.f32.mrb[0].mxu0
        %v513 = vadd.f32 0.0, %v512
        %514 = vmatprep.mubr.f32.mxu0 0.0
        %v515 = vand.u32 %v336, 4294901760
        %v516 = vsub.f32 %v336, %v515
        %v517 = vand.u32 %v516, 4294901760
        %v518 = vsub.f32 %v516, %v517
        %v519 = vand.u32 %v518, 4294901760
        %520 = vmatmul.mubr.f32.gmra.mrb[0].mxu0 %v519
        %v521 = vpop.f32.mrb[0].mxu0
        %v522 = vadd.f32 0.0, %v521
        %v523 = vpop.f32.mrb[0].mxu0
        %v524 = vadd.f32 0.0, %v523
        %525 = vmatprep.mubr.f32.mxu0 0.0
        %v526 = vand.u32 %v337, 4294901760
        %v527 = vsub.f32 %v337, %v526
        %v528 = vand.u32 %v527, 4294901760
        %v529 = vsub.f32 %v527, %v528
        %v530 = vand.u32 %v529, 4294901760
        %531 = vmatmul.mubr.f32.gmra.mrb[0].mxu0 %v530
        %v532 = vpop.f32.mrb[0].mxu0
        %v533 = vadd.f32 0.0, %v532
        %v534 = vpop.f32.mrb[0].mxu0
        %v535 = vadd.f32 0.0, %v534
        %536 = vmatprep.mubr.f32.mxu0 0.0
        %v537 = vand.u32 %v338, 4294901760
        %v538 = vsub.f32 %v338, %v537
        %v539 = vand.u32 %v538, 4294901760
        %v540 = vsub.f32 %v538, %v539
        %v541 = vand.u32 %v540, 4294901760
        %542 = vmatmul.mubr.f32.gmra.mrb[0].mxu0 %v541
        %v543 = vpop.f32.mrb[0].mxu0
        %v544 = vadd.f32 0.0, %v543
        %v545 = vpop.f32.mrb[0].mxu0
        %v546 = vadd.f32 0.0, %v545
        %547 = vmatprep.mubr.f32.mxu0 0.0
        %v548 = vand.u32 %v339, 4294901760
        %v549 = vsub.f32 %v339, %v548
        %v550 = vand.u32 %v549, 4294901760
        %v551 = vsub.f32 %v549, %v550
        %v552 = vand.u32 %v551, 4294901760
        %553 = vmatmul.mubr.f32.gmra.mrb[0].mxu0 %v552
        %v554 = vpop.f32.mrb[0].mxu0
        %v555 = vadd.f32 0.0, %v554
        %v556 = vpop.f32.mrb[0].mxu0
        %v557 = vadd.f32 0.0, %v556
        %558 = vmatprep.mubr.f32.mxu0 0.0
        %v559 = vand.u32 %v340, 4294901760
        %v560 = vsub.f32 %v340, %v559
        %v561 = vand.u32 %v560, 4294901760
        %v562 = vsub.f32 %v560, %v561
        %v563 = vand.u32 %v562, 4294901760
        %564 = vmatmul.mubr.f32.gmra.mrb[0].mxu0 %v563
        %v565 = vpop.f32.mrb[0].mxu0
        %v566 = vadd.f32 0.0, %v565
        %v567 = vpop.f32.mrb[0].mxu0
        %v568 = vadd.f32 0.0, %v567
        %569 = vmatprep.mubr.f32.mxu0 0.0
        %v570 = vand.u32 %v341, 4294901760
        %v571 = vsub.f32 %v341, %v570
        %v572 = vand.u32 %v571, 4294901760
        %v573 = vsub.f32 %v571, %v572
        %v574 = vand.u32 %v573, 4294901760
        %575 = vmatmul.mubr.f32.gmra.mrb[0].mxu0 %v574
        %v576 = vpop.f32.mrb[0].mxu0
        %v577 = vadd.f32 0.0, %v576
        %v578 = vpop.f32.mrb[0].mxu0
        %v579 = vadd.f32 0.0, %v578
        %580 = vmatprep.mubr.f32.mxu0 0.0
        %v581 = vand.u32 %v342, 4294901760
        %v582 = vsub.f32 %v342, %v581
        %v583 = vand.u32 %v582, 4294901760
        %v584 = vsub.f32 %v582, %v583
        %v585 = vand.u32 %v584, 4294901760
        %586 = vmatmul.mubr.f32.gmra.mrb[0].mxu0 %v585
        %v587 = vpop.f32.mrb[0].mxu0
        %v588 = vadd.f32 0.0, %v587
        %v589 = vpop.f32.mrb[0].mxu0
        %v590 = vadd.f32 0.0, %v589
        %591 = vdwg.mxu0
        %v592 = vand.u32 %v376, 4294901760
        %v593 = vsub.f32 %v376, %v592
        %v594 = vand.u32 %v593, 4294901760
        %v595 = vsub.f32 %v593, %v594
        %v596 = vand.u32 %v595, 4294901760
        %597 = vmatprep.subr.mxu0 %v596
        %v598 = vand.u32 %v375, 4294901760
        %v599 = vsub.f32 %v375, %v598
        %v600 = vand.u32 %v599, 4294901760
        %v601 = vsub.f32 %v599, %v600
        %v602 = vand.u32 %v601, 4294901760
        %603 = vmatpush1.msra.mxu0 %v602
        %v604 = vand.u32 %v378, 4294901760
        %v605 = vsub.f32 %v378, %v604
        %v606 = vand.u32 %v605, 4294901760
        %v607 = vsub.f32 %v605, %v606
        %v608 = vand.u32 %v607, 4294901760
        %609 = vmatprep.subr.mxu0 %v608
        %v610 = vand.u32 %v377, 4294901760
        %v611 = vsub.f32 %v377, %v610
        %v612 = vand.u32 %v611, 4294901760
        %v613 = vsub.f32 %v611, %v612
        %v614 = vand.u32 %v613, 4294901760
        %615 = vmatpush1.msra.mxu0 %v614
        %v616 = vand.u32 %v380, 4294901760
        %v617 = vsub.f32 %v380, %v616
        %v618 = vand.u32 %v617, 4294901760
        %v619 = vsub.f32 %v617, %v618
        %v620 = vand.u32 %v619, 4294901760
        %621 = vmatprep.subr.mxu0 %v620
        %v622 = vand.u32 %v379, 4294901760
        %v623 = vsub.f32 %v379, %v622
        %v624 = vand.u32 %v623, 4294901760
        %v625 = vsub.f32 %v623, %v624
        %v626 = vand.u32 %v625, 4294901760
        %627 = vmatpush1.msra.mxu0 %v626
        %v628 = vand.u32 %v382, 4294901760
        %v629 = vsub.f32 %v382, %v628
        %v630 = vand.u32 %v629, 4294901760
        %v631 = vsub.f32 %v629, %v630
        %v632 = vand.u32 %v631, 4294901760
        %633 = vmatprep.subr.mxu0 %v632
        %v634 = vand.u32 %v381, 4294901760
        %v635 = vsub.f32 %v381, %v634
        %v636 = vand.u32 %v635, 4294901760
        %v637 = vsub.f32 %v635, %v636
        %v638 = vand.u32 %v637, 4294901760
        %639 = vmatpush1.msra.mxu0 %v638
        %v640 = vand.u32 %v384, 4294901760
        %v641 = vsub.f32 %v384, %v640
        %v642 = vand.u32 %v641, 4294901760
        %v643 = vsub.f32 %v641, %v642
        %v644 = vand.u32 %v643, 4294901760
        %645 = vmatprep.subr.mxu0 %v644
        %v646 = vand.u32 %v383, 4294901760
        %v647 = vsub.f32 %v383, %v646
        %v648 = vand.u32 %v647, 4294901760
        %v649 = vsub.f32 %v647, %v648
        %v650 = vand.u32 %v649, 4294901760
        %651 = vmatpush1.msra.mxu0 %v650
        %v652 = vand.u32 %v386, 4294901760
        %v653 = vsub.f32 %v386, %v652
        %v654 = vand.u32 %v653, 4294901760
        %v655 = vsub.f32 %v653, %v654
        %v656 = vand.u32 %v655, 4294901760
        %657 = vmatprep.subr.mxu0 %v656
        %v658 = vand.u32 %v385, 4294901760
        %v659 = vsub.f32 %v385, %v658
        %v660 = vand.u32 %v659, 4294901760
        %v661 = vsub.f32 %v659, %v660
        %v662 = vand.u32 %v661, 4294901760
        %663 = vmatpush1.msra.mxu0 %v662
        %v664 = vand.u32 %v388, 4294901760
        %v665 = vsub.f32 %v388, %v664
        %v666 = vand.u32 %v665, 4294901760
        %v667 = vsub.f32 %v665, %v666
        %v668 = vand.u32 %v667, 4294901760
        %669 = vmatprep.subr.mxu0 %v668
        %v670 = vand.u32 %v387, 4294901760
        %v671 = vsub.f32 %v387, %v670
        %v672 = vand.u32 %v671, 4294901760
        %v673 = vsub.f32 %v671, %v672
        %v674 = vand.u32 %v673, 4294901760
        %675 = vmatpush1.msra.mxu0 %v674
        %v676 = vand.u32 %v390, 4294901760
        %v677 = vsub.f32 %v390, %v676
        %v678 = vand.u32 %v677, 4294901760
        %v679 = vsub.f32 %v677, %v678
        %v680 = vand.u32 %v679, 4294901760
        %681 = vmatprep.subr.mxu0 %v680
        %v682 = vand.u32 %v389, 4294901760
        %v683 = vsub.f32 %v389, %v682
        %v684 = vand.u32 %v683, 4294901760
        %v685 = vsub.f32 %v683, %v684
        %v686 = vand.u32 %v685, 4294901760
        %687 = vmatpush1.msra.mxu0 %v686
        %v688 = vand.u32 %v392, 4294901760
        %v689 = vsub.f32 %v392, %v688
        %v690 = vand.u32 %v689, 4294901760
        %v691 = vsub.f32 %v689, %v690
        %v692 = vand.u32 %v691, 4294901760
        %693 = vmatprep.subr.mxu0 %v692
        %v694 = vand.u32 %v391, 4294901760
        %v695 = vsub.f32 %v391, %v694
        %v696 = vand.u32 %v695, 4294901760
        %v697 = vsub.f32 %v695, %v696
        %v698 = vand.u32 %v697, 4294901760
        %699 = vmatpush1.msra.mxu0 %v698
        %v700 = vand.u32 %v394, 4294901760
        %v701 = vsub.f32 %v394, %v700
        %v702 = vand.u32 %v701, 4294901760
        %v703 = vsub.f32 %v701, %v702
        %v704 = vand.u32 %v703, 4294901760
        %705 = vmatprep.subr.mxu0 %v704
        %v706 = vand.u32 %v393, 4294901760
        %v707 = vsub.f32 %v393, %v706
        %v708 = vand.u32 %v707, 4294901760
        %v709 = vsub.f32 %v707, %v708
        %v710 = vand.u32 %v709, 4294901760
        %711 = vmatpush1.msra.mxu0 %v710
        %v712 = vand.u32 %v396, 4294901760
        %v713 = vsub.f32 %v396, %v712
        %v714 = vand.u32 %v713, 4294901760
        %v715 = vsub.f32 %v713, %v714
        %v716 = vand.u32 %v715, 4294901760
        %717 = vmatprep.subr.mxu0 %v716
        %v718 = vand.u32 %v395, 4294901760
        %v719 = vsub.f32 %v395, %v718
        %v720 = vand.u32 %v719, 4294901760
        %v721 = vsub.f32 %v719, %v720
        %v722 = vand.u32 %v721, 4294901760
        %723 = vmatpush1.msra.mxu0 %v722
        %v724 = vand.u32 %v398, 4294901760
        %v725 = vsub.f32 %v398, %v724
        %v726 = vand.u32 %v725, 4294901760
        %v727 = vsub.f32 %v725, %v726
        %v728 = vand.u32 %v727, 4294901760
        %729 = vmatprep.subr.mxu0 %v728
        %v730 = vand.u32 %v397, 4294901760
        %v731 = vsub.f32 %v397, %v730
        %v732 = vand.u32 %v731, 4294901760
        %v733 = vsub.f32 %v731, %v732
        %v734 = vand.u32 %v733, 4294901760
        %735 = vmatpush1.msra.mxu0 %v734
        %v736 = vand.u32 %v400, 4294901760
        %v737 = vsub.f32 %v400, %v736
        %v738 = vand.u32 %v737, 4294901760
        %v739 = vsub.f32 %v737, %v738
        %v740 = vand.u32 %v739, 4294901760
        %741 = vmatprep.subr.mxu0 %v740
        %v742 = vand.u32 %v399, 4294901760
        %v743 = vsub.f32 %v399, %v742
        %v744 = vand.u32 %v743, 4294901760
        %v745 = vsub.f32 %v743, %v744
        %v746 = vand.u32 %v745, 4294901760
        %747 = vmatpush1.msra.mxu0 %v746
        %v748 = vand.u32 %v402, 4294901760
        %v749 = vsub.f32 %v402, %v748
        %v750 = vand.u32 %v749, 4294901760
        %v751 = vsub.f32 %v749, %v750
        %v752 = vand.u32 %v751, 4294901760
        %753 = vmatprep.subr.mxu0 %v752
        %v754 = vand.u32 %v401, 4294901760
        %v755 = vsub.f32 %v401, %v754
        %v756 = vand.u32 %v755, 4294901760
        %v757 = vsub.f32 %v755, %v756
        %v758 = vand.u32 %v757, 4294901760
        %759 = vmatpush1.msra.mxu0 %v758
        %v760 = vand.u32 %v404, 4294901760
        %v761 = vsub.f32 %v404, %v760
        %v762 = vand.u32 %v761, 4294901760
        %v763 = vsub.f32 %v761, %v762
        %v764 = vand.u32 %v763, 4294901760
        %765 = vmatprep.subr.mxu0 %v764
        %v766 = vand.u32 %v403, 4294901760
        %v767 = vsub.f32 %v403, %v766
        %v768 = vand.u32 %v767, 4294901760
        %v769 = vsub.f32 %v767, %v768
        %v770 = vand.u32 %v769, 4294901760
        %771 = vmatpush1.msra.mxu0 %v770
        %v772 = vand.u32 %v406, 4294901760
        %v773 = vsub.f32 %v406, %v772
        %v774 = vand.u32 %v773, 4294901760
        %v775 = vsub.f32 %v773, %v774
        %v776 = vand.u32 %v775, 4294901760
        %777 = vmatprep.subr.mxu0 %v776
        %v778 = vand.u32 %v405, 4294901760
        %v779 = vsub.f32 %v405, %v778
        %v780 = vand.u32 %v779, 4294901760
        %v781 = vsub.f32 %v779, %v780
        %v782 = vand.u32 %v781, 4294901760
        %783 = vmatpush1.msra.mxu0 %v782
        %784 = vmatprep.subr.mxu0 0.0
        %785 = vmatpush1.msra.mxu0 0.0
        %786 = vmatprep.subr.mxu0 0.0
        %787 = vmatpush1.msra.mxu0 0.0
        %788 = vmatprep.subr.mxu0 0.0
        %789 = vmatpush1.msra.mxu0 0.0
        %790 = vmatprep.subr.mxu0 0.0
        %791 = vmatpush1.msra.mxu0 0.0
        %792 = vmatprep.subr.mxu0 0.0
        %793 = vmatpush1.msra.mxu0 0.0
        %794 = vmatprep.subr.mxu0 0.0
        %795 = vmatpush1.msra.mxu0 0.0
        %796 = vmatprep.subr.mxu0 0.0
        %797 = vmatpush1.msra.mxu0 0.0
        %798 = vmatprep.subr.mxu0 0.0
        %799 = vmatpush1.msra.mxu0 0.0
        %800 = vmatprep.subr.mxu0 0.0
        %801 = vmatpush1.msra.mxu0 0.0
        %802 = vmatprep.subr.mxu0 0.0
        %803 = vmatpush1.msra.mxu0 0.0
        %804 = vmatprep.subr.mxu0 0.0
        %805 = vmatpush1.msra.mxu0 0.0
        %806 = vmatprep.subr.mxu0 0.0
        %807 = vmatpush1.msra.mxu0 0.0
        %808 = vmatprep.subr.mxu0 0.0
        %809 = vmatpush1.msra.mxu0 0.0
        %810 = vmatprep.subr.mxu0 0.0
        %811 = vmatpush1.msra.mxu0 0.0
        %812 = vmatprep.subr.mxu0 0.0
        %813 = vmatpush1.msra.mxu0 0.0
        %814 = vmatprep.subr.mxu0 0.0
        %815 = vmatpush1.msra.mxu0 0.0
        %816 = vmatprep.mubr.f32.mxu0 0.0
        %v817 = vand.u32 %v335, 4294901760
        %818 = vmatmul.mubr.f32.gmra.mrb[0].mxu0 %v817
        %v819 = vpop.f32.mrb[0].mxu0
        %v820 = vadd.f32 %v511, %v819
        %v821 = vpop.f32.mrb[0].mxu0
        %v822 = vadd.f32 %v513, %v821
        %823 = vmatprep.mubr.f32.mxu0 0.0
        %v824 = vand.u32 %v336, 4294901760
        %825 = vmatmul.mubr.f32.gmra.mrb[0].mxu0 %v824
        %v826 = vpop.f32.mrb[0].mxu0
        %v827 = vadd.f32 %v522, %v826
        %v828 = vpop.f32.mrb[0].mxu0
        %v829 = vadd.f32 %v524, %v828
        %830 = vmatprep.mubr.f32.mxu0 0.0
        %v831 = vand.u32 %v337, 4294901760
        %832 = vmatmul.mubr.f32.gmra.mrb[0].mxu0 %v831
        %v833 = vpop.f32.mrb[0].mxu0
        %v834 = vadd.f32 %v533, %v833
        %v835 = vpop.f32.mrb[0].mxu0
        %v836 = vadd.f32 %v535, %v835
        %837 = vmatprep.mubr.f32.mxu0 0.0
        %v838 = vand.u32 %v338, 4294901760
        %839 = vmatmul.mubr.f32.gmra.mrb[0].mxu0 %v838
        %v840 = vpop.f32.mrb[0].mxu0
        %v841 = vadd.f32 %v544, %v840
        %v842 = vpop.f32.mrb[0].mxu0
        %v843 = vadd.f32 %v546, %v842
        %844 = vmatprep.mubr.f32.mxu0 0.0
        %v845 = vand.u32 %v339, 4294901760
        %846 = vmatmul.mubr.f32.gmra.mrb[0].mxu0 %v845
        %v847 = vpop.f32.mrb[0].mxu0
        %v848 = vadd.f32 %v555, %v847
        %v849 = vpop.f32.mrb[0].mxu0
        %v850 = vadd.f32 %v557, %v849
        %851 = vmatprep.mubr.f32.mxu0 0.0
        %v852 = vand.u32 %v340, 4294901760
        %853 = vmatmul.mubr.f32.gmra.mrb[0].mxu0 %v852
        %v854 = vpop.f32.mrb[0].mxu0
        %v855 = vadd.f32 %v566, %v854
        %v856 = vpop.f32.mrb[0].mxu0
        %v857 = vadd.f32 %v568, %v856
        %858 = vmatprep.mubr.f32.mxu0 0.0
        %v859 = vand.u32 %v341, 4294901760
        %860 = vmatmul.mubr.f32.gmra.mrb[0].mxu0 %v859
        %v861 = vpop.f32.mrb[0].mxu0
        %v862 = vadd.f32 %v577, %v861
        %v863 = vpop.f32.mrb[0].mxu0
        %v864 = vadd.f32 %v579, %v863
        %865 = vmatprep.mubr.f32.mxu0 0.0
        %v866 = vand.u32 %v342, 4294901760
        %867 = vmatmul.mubr.f32.gmra.mrb[0].mxu0 %v866
        %v868 = vpop.f32.mrb[0].mxu0
        %v869 = vadd.f32 %v588, %v868
        %v870 = vpop.f32.mrb[0].mxu0
        %v871 = vadd.f32 %v590, %v870
        %872 = vdwg.mxu0
        %v873 = vand.u32 %v376, 4294901760
        %v874 = vsub.f32 %v376, %v873
        %875 = vmatprep.subr.mxu0 %v874
        %v876 = vand.u32 %v375, 4294901760
        %v877 = vsub.f32 %v375, %v876
        %878 = vmatpush1.msra.mxu0 %v877
        %v879 = vand.u32 %v378, 4294901760
        %v880 = vsub.f32 %v378, %v879
        %881 = vmatprep.subr.mxu0 %v880
        %v882 = vand.u32 %v377, 4294901760
        %v883 = vsub.f32 %v377, %v882
        %884 = vmatpush1.msra.mxu0 %v883
        %v885 = vand.u32 %v380, 4294901760
        %v886 = vsub.f32 %v380, %v885
        %887 = vmatprep.subr.mxu0 %v886
        %v888 = vand.u32 %v379, 4294901760
        %v889 = vsub.f32 %v379, %v888
        %890 = vmatpush1.msra.mxu0 %v889
        %v891 = vand.u32 %v382, 4294901760
        %v892 = vsub.f32 %v382, %v891
        %893 = vmatprep.subr.mxu0 %v892
        %v894 = vand.u32 %v381, 4294901760
        %v895 = vsub.f32 %v381, %v894
        %896 = vmatpush1.msra.mxu0 %v895
        %v897 = vand.u32 %v384, 4294901760
        %v898 = vsub.f32 %v384, %v897
        %899 = vmatprep.subr.mxu0 %v898
        %v900 = vand.u32 %v383, 4294901760
        %v901 = vsub.f32 %v383, %v900
        %902 = vmatpush1.msra.mxu0 %v901
        %v903 = vand.u32 %v386, 4294901760
        %v904 = vsub.f32 %v386, %v903
        %905 = vmatprep.subr.mxu0 %v904
        %v906 = vand.u32 %v385, 4294901760
        %v907 = vsub.f32 %v385, %v906
        %908 = vmatpush1.msra.mxu0 %v907
        %v909 = vand.u32 %v388, 4294901760
        %v910 = vsub.f32 %v388, %v909
        %911 = vmatprep.subr.mxu0 %v910
        %v912 = vand.u32 %v387, 4294901760
        %v913 = vsub.f32 %v387, %v912
        %914 = vmatpush1.msra.mxu0 %v913
        %v915 = vand.u32 %v390, 4294901760
        %v916 = vsub.f32 %v390, %v915
        %917 = vmatprep.subr.mxu0 %v916
        %v918 = vand.u32 %v389, 4294901760
        %v919 = vsub.f32 %v389, %v918
        %920 = vmatpush1.msra.mxu0 %v919
        %v921 = vand.u32 %v392, 4294901760
        %v922 = vsub.f32 %v392, %v921
        %923 = vmatprep.subr.mxu0 %v922
        %v924 = vand.u32 %v391, 4294901760
        %v925 = vsub.f32 %v391, %v924
        %926 = vmatpush1.msra.mxu0 %v925
        %v927 = vand.u32 %v394, 4294901760
        %v928 = vsub.f32 %v394, %v927
        %929 = vmatprep.subr.mxu0 %v928
        %v930 = vand.u32 %v393, 4294901760
        %v931 = vsub.f32 %v393, %v930
        %932 = vmatpush1.msra.mxu0 %v931
        %v933 = vand.u32 %v396, 4294901760
        %v934 = vsub.f32 %v396, %v933
        %935 = vmatprep.subr.mxu0 %v934
        %v936 = vand.u32 %v395, 4294901760
        %v937 = vsub.f32 %v395, %v936
        %938 = vmatpush1.msra.mxu0 %v937
        %v939 = vand.u32 %v398, 4294901760
        %v940 = vsub.f32 %v398, %v939
        %941 = vmatprep.subr.mxu0 %v940
        %v942 = vand.u32 %v397, 4294901760
        %v943 = vsub.f32 %v397, %v942
        %944 = vmatpush1.msra.mxu0 %v943
        %v945 = vand.u32 %v400, 4294901760
        %v946 = vsub.f32 %v400, %v945
        %947 = vmatprep.subr.mxu0 %v946
        %v948 = vand.u32 %v399, 4294901760
        %v949 = vsub.f32 %v399, %v948
        %950 = vmatpush1.msra.mxu0 %v949
        %v951 = vand.u32 %v402, 4294901760
        %v952 = vsub.f32 %v402, %v951
        %953 = vmatprep.subr.mxu0 %v952
        %v954 = vand.u32 %v401, 4294901760
        %v955 = vsub.f32 %v401, %v954
        %956 = vmatpush1.msra.mxu0 %v955
        %v957 = vand.u32 %v404, 4294901760
        %v958 = vsub.f32 %v404, %v957
        %959 = vmatprep.subr.mxu0 %v958
        %v960 = vand.u32 %v403, 4294901760
        %v961 = vsub.f32 %v403, %v960
        %962 = vmatpush1.msra.mxu0 %v961
        %v963 = vand.u32 %v406, 4294901760
        %v964 = vsub.f32 %v406, %v963
        %965 = vmatprep.subr.mxu0 %v964
        %v966 = vand.u32 %v405, 4294901760
        %v967 = vsub.f32 %v405, %v966
        %968 = vmatpush1.msra.mxu0 %v967
        %969 = vmatprep.subr.mxu0 0.0
        %970 = vmatpush1.msra.mxu0 0.0
        %971 = vmatprep.subr.mxu0 0.0
        %972 = vmatpush1.msra.mxu0 0.0
        %973 = vmatprep.subr.mxu0 0.0
        %974 = vmatpush1.msra.mxu0 0.0
        %975 = vmatprep.subr.mxu0 0.0
        %976 = vmatpush1.msra.mxu0 0.0
        %977 = vmatprep.subr.mxu0 0.0
        %978 = vmatpush1.msra.mxu0 0.0
        %979 = vmatprep.subr.mxu0 0.0
        %980 = vmatpush1.msra.mxu0 0.0
        %981 = vmatprep.subr.mxu0 0.0
        %982 = vmatpush1.msra.mxu0 0.0
        %983 = vmatprep.subr.mxu0 0.0
        %984 = vmatpush1.msra.mxu0 0.0
        %985 = vmatprep.subr.mxu0 0.0
        %986 = vmatpush1.msra.mxu0 0.0
        %987 = vmatprep.subr.mxu0 0.0
        %988 = vmatpush1.msra.mxu0 0.0
        %989 = vmatprep.subr.mxu0 0.0
        %990 = vmatpush1.msra.mxu0 0.0
        %991 = vmatprep.subr.mxu0 0.0
        %992 = vmatpush1.msra.mxu0 0.0
        %993 = vmatprep.subr.mxu0 0.0
        %994 = vmatpush1.msra.mxu0 0.0
        %995 = vmatprep.subr.mxu0 0.0
        %996 = vmatpush1.msra.mxu0 0.0
        %997 = vmatprep.subr.mxu0 0.0
        %998 = vmatpush1.msra.mxu0 0.0
        %999 = vmatprep.subr.mxu0 0.0
        %1000 = vmatpush1.msra.mxu0 0.0
        %1001 = vmatprep.mubr.f32.mxu0 0.0
        %v1002 = vand.u32 %v335, 4294901760
        %v1003 = vsub.f32 %v335, %v1002
        %1004 = vmatmul.mubr.f32.gmra.mrb[0].mxu0 %v1003
        %v1005 = vpop.f32.mrb[0].mxu0
        %v1006 = vadd.f32 %v820, %v1005
        %v1007 = vpop.f32.mrb[0].mxu0
        %v1008 = vadd.f32 %v822, %v1007
        %1009 = vmatprep.mubr.f32.mxu0 0.0
        %v1010 = vand.u32 %v336, 4294901760
        %v1011 = vsub.f32 %v336, %v1010
        %1012 = vmatmul.mubr.f32.gmra.mrb[0].mxu0 %v1011
        %v1013 = vpop.f32.mrb[0].mxu0
        %v1014 = vadd.f32 %v827, %v1013
        %v1015 = vpop.f32.mrb[0].mxu0
        %v1016 = vadd.f32 %v829, %v1015
        %1017 = vmatprep.mubr.f32.mxu0 0.0
        %v1018 = vand.u32 %v337, 4294901760
        %v1019 = vsub.f32 %v337, %v1018
        %1020 = vmatmul.mubr.f32.gmra.mrb[0].mxu0 %v1019
        %v1021 = vpop.f32.mrb[0].mxu0
        %v1022 = vadd.f32 %v834, %v1021
        %v1023 = vpop.f32.mrb[0].mxu0
        %v1024 = vadd.f32 %v836, %v1023
        %1025 = vmatprep.mubr.f32.mxu0 0.0
        %v1026 = vand.u32 %v338, 4294901760
        %v1027 = vsub.f32 %v338, %v1026
        %1028 = vmatmul.mubr.f32.gmra.mrb[0].mxu0 %v1027
        %v1029 = vpop.f32.mrb[0].mxu0
        %v1030 = vadd.f32 %v841, %v1029
        %v1031 = vpop.f32.mrb[0].mxu0
        %v1032 = vadd.f32 %v843, %v1031
        %1033 = vmatprep.mubr.f32.mxu0 0.0
        %v1034 = vand.u32 %v339, 4294901760
        %v1035 = vsub.f32 %v339, %v1034
        %1036 = vmatmul.mubr.f32.gmra.mrb[0].mxu0 %v1035
        %v1037 = vpop.f32.mrb[0].mxu0
        %v1038 = vadd.f32 %v848, %v1037
        %v1039 = vpop.f32.mrb[0].mxu0
        %v1040 = vadd.f32 %v850, %v1039
        %1041 = vmatprep.mubr.f32.mxu0 0.0
        %v1042 = vand.u32 %v340, 4294901760
        %v1043 = vsub.f32 %v340, %v1042
        %1044 = vmatmul.mubr.f32.gmra.mrb[0].mxu0 %v1043
        %v1045 = vpop.f32.mrb[0].mxu0
        %v1046 = vadd.f32 %v855, %v1045
        %v1047 = vpop.f32.mrb[0].mxu0
        %v1048 = vadd.f32 %v857, %v1047
        %1049 = vmatprep.mubr.f32.mxu0 0.0
        %v1050 = vand.u32 %v341, 4294901760
        %v1051 = vsub.f32 %v341, %v1050
        %1052 = vmatmul.mubr.f32.gmra.mrb[0].mxu0 %v1051
        %v1053 = vpop.f32.mrb[0].mxu0
        %v1054 = vadd.f32 %v862, %v1053
        %v1055 = vpop.f32.mrb[0].mxu0
        %v1056 = vadd.f32 %v864, %v1055
        %1057 = vmatprep.mubr.f32.mxu0 0.0
        %v1058 = vand.u32 %v342, 4294901760
        %v1059 = vsub.f32 %v342, %v1058
        %1060 = vmatmul.mubr.f32.gmra.mrb[0].mxu0 %v1059
        %v1061 = vpop.f32.mrb[0].mxu0
        %v1062 = vadd.f32 %v869, %v1061
        %v1063 = vpop.f32.mrb[0].mxu0
        %v1064 = vadd.f32 %v871, %v1063
        %1065 = vdwg.mxu0
        %v1066 = vand.u32 %v376, 4294901760
        %1067 = vmatprep.subr.mxu0 %v1066
        %v1068 = vand.u32 %v375, 4294901760
        %1069 = vmatpush1.msra.mxu0 %v1068
        %v1070 = vand.u32 %v378, 4294901760
        %1071 = vmatprep.subr.mxu0 %v1070
        %v1072 = vand.u32 %v377, 4294901760
        %1073 = vmatpush1.msra.mxu0 %v1072
        %v1074 = vand.u32 %v380, 4294901760
        %1075 = vmatprep.subr.mxu0 %v1074
        %v1076 = vand.u32 %v379, 4294901760
        %1077 = vmatpush1.msra.mxu0 %v1076
        %v1078 = vand.u32 %v382, 4294901760
        %1079 = vmatprep.subr.mxu0 %v1078
        %v1080 = vand.u32 %v381, 4294901760
        %1081 = vmatpush1.msra.mxu0 %v1080
        %v1082 = vand.u32 %v384, 4294901760
        %1083 = vmatprep.subr.mxu0 %v1082
        %v1084 = vand.u32 %v383, 4294901760
        %1085 = vmatpush1.msra.mxu0 %v1084
        %v1086 = vand.u32 %v386, 4294901760
        %1087 = vmatprep.subr.mxu0 %v1086
        %v1088 = vand.u32 %v385, 4294901760
        %1089 = vmatpush1.msra.mxu0 %v1088
        %v1090 = vand.u32 %v388, 4294901760
        %1091 = vmatprep.subr.mxu0 %v1090
        %v1092 = vand.u32 %v387, 4294901760
        %1093 = vmatpush1.msra.mxu0 %v1092
        %v1094 = vand.u32 %v390, 4294901760
        %1095 = vmatprep.subr.mxu0 %v1094
        %v1096 = vand.u32 %v389, 4294901760
        %1097 = vmatpush1.msra.mxu0 %v1096
        %v1098 = vand.u32 %v392, 4294901760
        %1099 = vmatprep.subr.mxu0 %v1098
        %v1100 = vand.u32 %v391, 4294901760
        %1101 = vmatpush1.msra.mxu0 %v1100
        %v1102 = vand.u32 %v394, 4294901760
        %1103 = vmatprep.subr.mxu0 %v1102
        %v1104 = vand.u32 %v393, 4294901760
        %1105 = vmatpush1.msra.mxu0 %v1104
        %v1106 = vand.u32 %v396, 4294901760
        %1107 = vmatprep.subr.mxu0 %v1106
        %v1108 = vand.u32 %v395, 4294901760
        %1109 = vmatpush1.msra.mxu0 %v1108
        %v1110 = vand.u32 %v398, 4294901760
        %1111 = vmatprep.subr.mxu0 %v1110
        %v1112 = vand.u32 %v397, 4294901760
        %1113 = vmatpush1.msra.mxu0 %v1112
        %v1114 = vand.u32 %v400, 4294901760
        %1115 = vmatprep.subr.mxu0 %v1114
        %v1116 = vand.u32 %v399, 4294901760
        %1117 = vmatpush1.msra.mxu0 %v1116
        %v1118 = vand.u32 %v402, 4294901760
        %1119 = vmatprep.subr.mxu0 %v1118
        %v1120 = vand.u32 %v401, 4294901760
        %1121 = vmatpush1.msra.mxu0 %v1120
        %v1122 = vand.u32 %v404, 4294901760
        %1123 = vmatprep.subr.mxu0 %v1122
        %v1124 = vand.u32 %v403, 4294901760
        %1125 = vmatpush1.msra.mxu0 %v1124
        %v1126 = vand.u32 %v406, 4294901760
        %1127 = vmatprep.subr.mxu0 %v1126
        %v1128 = vand.u32 %v405, 4294901760
        %1129 = vmatpush1.msra.mxu0 %v1128
        %1130 = vmatprep.subr.mxu0 0.0
        %1131 = vmatpush1.msra.mxu0 0.0
        %1132 = vmatprep.subr.mxu0 0.0
        %1133 = vmatpush1.msra.mxu0 0.0
        %1134 = vmatprep.subr.mxu0 0.0
        %1135 = vmatpush1.msra.mxu0 0.0
        %1136 = vmatprep.subr.mxu0 0.0
        %1137 = vmatpush1.msra.mxu0 0.0
        %1138 = vmatprep.subr.mxu0 0.0
        %1139 = vmatpush1.msra.mxu0 0.0
        %1140 = vmatprep.subr.mxu0 0.0
        %1141 = vmatpush1.msra.mxu0 0.0
        %1142 = vmatprep.subr.mxu0 0.0
        %1143 = vmatpush1.msra.mxu0 0.0
        %1144 = vmatprep.subr.mxu0 0.0
        %1145 = vmatpush1.msra.mxu0 0.0
        %1146 = vmatprep.subr.mxu0 0.0
        %1147 = vmatpush1.msra.mxu0 0.0
        %1148 = vmatprep.subr.mxu0 0.0
        %1149 = vmatpush1.msra.mxu0 0.0
        %1150 = vmatprep.subr.mxu0 0.0
        %1151 = vmatpush1.msra.mxu0 0.0
        %1152 = vmatprep.subr.mxu0 0.0
        %1153 = vmatpush1.msra.mxu0 0.0
        %1154 = vmatprep.subr.mxu0 0.0
        %1155 = vmatpush1.msra.mxu0 0.0
        %1156 = vmatprep.subr.mxu0 0.0
        %1157 = vmatpush1.msra.mxu0 0.0
        %1158 = vmatprep.subr.mxu0 0.0
        %1159 = vmatpush1.msra.mxu0 0.0
        %1160 = vmatprep.subr.mxu0 0.0
        %1161 = vmatpush1.msra.mxu0 0.0
        %1162 = vmatprep.mubr.f32.mxu0 0.0
        %v1163 = vand.u32 %v335, 4294901760
        %v1164 = vsub.f32 %v335, %v1163
        %v1165 = vand.u32 %v1164, 4294901760
        %1166 = vmatmul.mubr.f32.gmra.mrb[0].mxu0 %v1165
        %v1167 = vpop.f32.mrb[0].mxu0
        %v1168 = vadd.f32 %v1006, %v1167
        %v1169 = vpop.f32.mrb[0].mxu0
        %v1170 = vadd.f32 %v1008, %v1169
        %1171 = vmatprep.mubr.f32.mxu0 0.0
        %v1172 = vand.u32 %v336, 4294901760
        %v1173 = vsub.f32 %v336, %v1172
        %v1174 = vand.u32 %v1173, 4294901760
        %1175 = vmatmul.mubr.f32.gmra.mrb[0].mxu0 %v1174
        %v1176 = vpop.f32.mrb[0].mxu0
        %v1177 = vadd.f32 %v1014, %v1176
        %v1178 = vpop.f32.mrb[0].mxu0
        %v1179 = vadd.f32 %v1016, %v1178
        %1180 = vmatprep.mubr.f32.mxu0 0.0
        %v1181 = vand.u32 %v337, 4294901760
        %v1182 = vsub.f32 %v337, %v1181
        %v1183 = vand.u32 %v1182, 4294901760
        %1184 = vmatmul.mubr.f32.gmra.mrb[0].mxu0 %v1183
        %v1185 = vpop.f32.mrb[0].mxu0
        %v1186 = vadd.f32 %v1022, %v1185
        %v1187 = vpop.f32.mrb[0].mxu0
        %v1188 = vadd.f32 %v1024, %v1187
        %1189 = vmatprep.mubr.f32.mxu0 0.0
        %v1190 = vand.u32 %v338, 4294901760
        %v1191 = vsub.f32 %v338, %v1190
        %v1192 = vand.u32 %v1191, 4294901760
        %1193 = vmatmul.mubr.f32.gmra.mrb[0].mxu0 %v1192
        %v1194 = vpop.f32.mrb[0].mxu0
        %v1195 = vadd.f32 %v1030, %v1194
        %v1196 = vpop.f32.mrb[0].mxu0
        %v1197 = vadd.f32 %v1032, %v1196
        %1198 = vmatprep.mubr.f32.mxu0 0.0
        %v1199 = vand.u32 %v339, 4294901760
        %v1200 = vsub.f32 %v339, %v1199
        %v1201 = vand.u32 %v1200, 4294901760
        %1202 = vmatmul.mubr.f32.gmra.mrb[0].mxu0 %v1201
        %v1203 = vpop.f32.mrb[0].mxu0
        %v1204 = vadd.f32 %v1038, %v1203
        %v1205 = vpop.f32.mrb[0].mxu0
        %v1206 = vadd.f32 %v1040, %v1205
        %1207 = vmatprep.mubr.f32.mxu0 0.0
        %v1208 = vand.u32 %v340, 4294901760
        %v1209 = vsub.f32 %v340, %v1208
        %v1210 = vand.u32 %v1209, 4294901760
        %1211 = vmatmul.mubr.f32.gmra.mrb[0].mxu0 %v1210
        %v1212 = vpop.f32.mrb[0].mxu0
        %v1213 = vadd.f32 %v1046, %v1212
        %v1214 = vpop.f32.mrb[0].mxu0
        %v1215 = vadd.f32 %v1048, %v1214
        %1216 = vmatprep.mubr.f32.mxu0 0.0
        %v1217 = vand.u32 %v341, 4294901760
        %v1218 = vsub.f32 %v341, %v1217
        %v1219 = vand.u32 %v1218, 4294901760
        %1220 = vmatmul.mubr.f32.gmra.mrb[0].mxu0 %v1219
        %v1221 = vpop.f32.mrb[0].mxu0
        %v1222 = vadd.f32 %v1054, %v1221
        %v1223 = vpop.f32.mrb[0].mxu0
        %v1224 = vadd.f32 %v1056, %v1223
        %1225 = vmatprep.mubr.f32.mxu0 0.0
        %v1226 = vand.u32 %v342, 4294901760
        %v1227 = vsub.f32 %v342, %v1226
        %v1228 = vand.u32 %v1227, 4294901760
        %1229 = vmatmul.mubr.f32.gmra.mrb[0].mxu0 %v1228
        %v1230 = vpop.f32.mrb[0].mxu0
        %v1231 = vadd.f32 %v1062, %v1230
        %v1232 = vpop.f32.mrb[0].mxu0
        %v1233 = vadd.f32 %v1064, %v1232
        %1234 = vdwg.mxu0
        %v1235 = vand.u32 %v376, 4294901760
        %v1236 = vsub.f32 %v376, %v1235
        %v1237 = vand.u32 %v1236, 4294901760
        %1238 = vmatprep.subr.mxu0 %v1237
        %v1239 = vand.u32 %v375, 4294901760
        %v1240 = vsub.f32 %v375, %v1239
        %v1241 = vand.u32 %v1240, 4294901760
        %1242 = vmatpush1.msra.mxu0 %v1241
        %v1243 = vand.u32 %v378, 4294901760
        %v1244 = vsub.f32 %v378, %v1243
        %v1245 = vand.u32 %v1244, 4294901760
        %1246 = vmatprep.subr.mxu0 %v1245
        %v1247 = vand.u32 %v377, 4294901760
        %v1248 = vsub.f32 %v377, %v1247
        %v1249 = vand.u32 %v1248, 4294901760
        %1250 = vmatpush1.msra.mxu0 %v1249
        %v1251 = vand.u32 %v380, 4294901760
        %v1252 = vsub.f32 %v380, %v1251
        %v1253 = vand.u32 %v1252, 4294901760
        %1254 = vmatprep.subr.mxu0 %v1253
        %v1255 = vand.u32 %v379, 4294901760
        %v1256 = vsub.f32 %v379, %v1255
        %v1257 = vand.u32 %v1256, 4294901760
        %1258 = vmatpush1.msra.mxu0 %v1257
        %v1259 = vand.u32 %v382, 4294901760
        %v1260 = vsub.f32 %v382, %v1259
        %v1261 = vand.u32 %v1260, 4294901760
        %1262 = vmatprep.subr.mxu0 %v1261
        %v1263 = vand.u32 %v381, 4294901760
        %v1264 = vsub.f32 %v381, %v1263
        %v1265 = vand.u32 %v1264, 4294901760
        %1266 = vmatpush1.msra.mxu0 %v1265
        %v1267 = vand.u32 %v384, 4294901760
        %v1268 = vsub.f32 %v384, %v1267
        %v1269 = vand.u32 %v1268, 4294901760
        %1270 = vmatprep.subr.mxu0 %v1269
        %v1271 = vand.u32 %v383, 4294901760
        %v1272 = vsub.f32 %v383, %v1271
        %v1273 = vand.u32 %v1272, 4294901760
        %1274 = vmatpush1.msra.mxu0 %v1273
        %v1275 = vand.u32 %v386, 4294901760
        %v1276 = vsub.f32 %v386, %v1275
        %v1277 = vand.u32 %v1276, 4294901760
        %1278 = vmatprep.subr.mxu0 %v1277
        %v1279 = vand.u32 %v385, 4294901760
        %v1280 = vsub.f32 %v385, %v1279
        %v1281 = vand.u32 %v1280, 4294901760
        %1282 = vmatpush1.msra.mxu0 %v1281
        %v1283 = vand.u32 %v388, 4294901760
        %v1284 = vsub.f32 %v388, %v1283
        %v1285 = vand.u32 %v1284, 4294901760
        %1286 = vmatprep.subr.mxu0 %v1285
        %v1287 = vand.u32 %v387, 4294901760
        %v1288 = vsub.f32 %v387, %v1287
        %v1289 = vand.u32 %v1288, 4294901760
        %1290 = vmatpush1.msra.mxu0 %v1289
        %v1291 = vand.u32 %v390, 4294901760
        %v1292 = vsub.f32 %v390, %v1291
        %v1293 = vand.u32 %v1292, 4294901760
        %1294 = vmatprep.subr.mxu0 %v1293
        %v1295 = vand.u32 %v389, 4294901760
        %v1296 = vsub.f32 %v389, %v1295
        %v1297 = vand.u32 %v1296, 4294901760
        %1298 = vmatpush1.msra.mxu0 %v1297
        %v1299 = vand.u32 %v392, 4294901760
        %v1300 = vsub.f32 %v392, %v1299
        %v1301 = vand.u32 %v1300, 4294901760
        %1302 = vmatprep.subr.mxu0 %v1301
        %v1303 = vand.u32 %v391, 4294901760
        %v1304 = vsub.f32 %v391, %v1303
        %v1305 = vand.u32 %v1304, 4294901760
        %1306 = vmatpush1.msra.mxu0 %v1305
        %v1307 = vand.u32 %v394, 4294901760
        %v1308 = vsub.f32 %v394, %v1307
        %v1309 = vand.u32 %v1308, 4294901760
        %1310 = vmatprep.subr.mxu0 %v1309
        %v1311 = vand.u32 %v393, 4294901760
        %v1312 = vsub.f32 %v393, %v1311
        %v1313 = vand.u32 %v1312, 4294901760
        %1314 = vmatpush1.msra.mxu0 %v1313
        %v1315 = vand.u32 %v396, 4294901760
        %v1316 = vsub.f32 %v396, %v1315
        %v1317 = vand.u32 %v1316, 4294901760
        %1318 = vmatprep.subr.mxu0 %v1317
        %v1319 = vand.u32 %v395, 4294901760
        %v1320 = vsub.f32 %v395, %v1319
        %v1321 = vand.u32 %v1320, 4294901760
        %1322 = vmatpush1.msra.mxu0 %v1321
        %v1323 = vand.u32 %v398, 4294901760
        %v1324 = vsub.f32 %v398, %v1323
        %v1325 = vand.u32 %v1324, 4294901760
        %1326 = vmatprep.subr.mxu0 %v1325
        %v1327 = vand.u32 %v397, 4294901760
        %v1328 = vsub.f32 %v397, %v1327
        %v1329 = vand.u32 %v1328, 4294901760
        %1330 = vmatpush1.msra.mxu0 %v1329
        %v1331 = vand.u32 %v400, 4294901760
        %v1332 = vsub.f32 %v400, %v1331
        %v1333 = vand.u32 %v1332, 4294901760
        %1334 = vmatprep.subr.mxu0 %v1333
        %v1335 = vand.u32 %v399, 4294901760
        %v1336 = vsub.f32 %v399, %v1335
        %v1337 = vand.u32 %v1336, 4294901760
        %1338 = vmatpush1.msra.mxu0 %v1337
        %v1339 = vand.u32 %v402, 4294901760
        %v1340 = vsub.f32 %v402, %v1339
        %v1341 = vand.u32 %v1340, 4294901760
        %1342 = vmatprep.subr.mxu0 %v1341
        %v1343 = vand.u32 %v401, 4294901760
        %v1344 = vsub.f32 %v401, %v1343
        %v1345 = vand.u32 %v1344, 4294901760
        %1346 = vmatpush1.msra.mxu0 %v1345
        %v1347 = vand.u32 %v404, 4294901760
        %v1348 = vsub.f32 %v404, %v1347
        %v1349 = vand.u32 %v1348, 4294901760
        %1350 = vmatprep.subr.mxu0 %v1349
        %v1351 = vand.u32 %v403, 4294901760
        %v1352 = vsub.f32 %v403, %v1351
        %v1353 = vand.u32 %v1352, 4294901760
        %1354 = vmatpush1.msra.mxu0 %v1353
        %v1355 = vand.u32 %v406, 4294901760
        %v1356 = vsub.f32 %v406, %v1355
        %v1357 = vand.u32 %v1356, 4294901760
        %1358 = vmatprep.subr.mxu0 %v1357
        %v1359 = vand.u32 %v405, 4294901760
        %v1360 = vsub.f32 %v405, %v1359
        %v1361 = vand.u32 %v1360, 4294901760
        %1362 = vmatpush1.msra.mxu0 %v1361
        %1363 = vmatprep.subr.mxu0 0.0
        %1364 = vmatpush1.msra.mxu0 0.0
        %1365 = vmatprep.subr.mxu0 0.0
        %1366 = vmatpush1.msra.mxu0 0.0
        %1367 = vmatprep.subr.mxu0 0.0
        %1368 = vmatpush1.msra.mxu0 0.0
        %1369 = vmatprep.subr.mxu0 0.0
        %1370 = vmatpush1.msra.mxu0 0.0
        %1371 = vmatprep.subr.mxu0 0.0
        %1372 = vmatpush1.msra.mxu0 0.0
        %1373 = vmatprep.subr.mxu0 0.0
        %1374 = vmatpush1.msra.mxu0 0.0
        %1375 = vmatprep.subr.mxu0 0.0
        %1376 = vmatpush1.msra.mxu0 0.0
        %1377 = vmatprep.subr.mxu0 0.0
        %1378 = vmatpush1.msra.mxu0 0.0
        %1379 = vmatprep.subr.mxu0 0.0
        %1380 = vmatpush1.msra.mxu0 0.0
        %1381 = vmatprep.subr.mxu0 0.0
        %1382 = vmatpush1.msra.mxu0 0.0
        %1383 = vmatprep.subr.mxu0 0.0
        %1384 = vmatpush1.msra.mxu0 0.0
        %1385 = vmatprep.subr.mxu0 0.0
        %1386 = vmatpush1.msra.mxu0 0.0
        %1387 = vmatprep.subr.mxu0 0.0
        %1388 = vmatpush1.msra.mxu0 0.0
        %1389 = vmatprep.subr.mxu0 0.0
        %1390 = vmatpush1.msra.mxu0 0.0
        %1391 = vmatprep.subr.mxu0 0.0
        %1392 = vmatpush1.msra.mxu0 0.0
        %1393 = vmatprep.subr.mxu0 0.0
        %1394 = vmatpush1.msra.mxu0 0.0
        %1395 = vmatprep.mubr.f32.mxu0 0.0
        %v1396 = vand.u32 %v335, 4294901760
        %1397 = vmatmul.mubr.f32.gmra.mrb[0].mxu0 %v1396
        %v1398 = vpop.f32.mrb[0].mxu0
        %v1399 = vadd.f32 %v1168, %v1398
        %v1400 = vpop.f32.mrb[0].mxu0
        %v1401 = vadd.f32 %v1170, %v1400
        %1402 = vmatprep.mubr.f32.mxu0 0.0
        %v1403 = vand.u32 %v336, 4294901760
        %1404 = vmatmul.mubr.f32.gmra.mrb[0].mxu0 %v1403
        %v1405 = vpop.f32.mrb[0].mxu0
        %v1406 = vadd.f32 %v1177, %v1405
        %v1407 = vpop.f32.mrb[0].mxu0
        %v1408 = vadd.f32 %v1179, %v1407
        %1409 = vmatprep.mubr.f32.mxu0 0.0
        %v1410 = vand.u32 %v337, 4294901760
        %1411 = vmatmul.mubr.f32.gmra.mrb[0].mxu0 %v1410
        %v1412 = vpop.f32.mrb[0].mxu0
        %v1413 = vadd.f32 %v1186, %v1412
        %v1414 = vpop.f32.mrb[0].mxu0
        %v1415 = vadd.f32 %v1188, %v1414
        %1416 = vmatprep.mubr.f32.mxu0 0.0
        %v1417 = vand.u32 %v338, 4294901760
        %1418 = vmatmul.mubr.f32.gmra.mrb[0].mxu0 %v1417
        %v1419 = vpop.f32.mrb[0].mxu0
        %v1420 = vadd.f32 %v1195, %v1419
        %v1421 = vpop.f32.mrb[0].mxu0
        %v1422 = vadd.f32 %v1197, %v1421
        %1423 = vmatprep.mubr.f32.mxu0 0.0
        %v1424 = vand.u32 %v339, 4294901760
        %1425 = vmatmul.mubr.f32.gmra.mrb[0].mxu0 %v1424
        %v1426 = vpop.f32.mrb[0].mxu0
        %v1427 = vadd.f32 %v1204, %v1426
        %v1428 = vpop.f32.mrb[0].mxu0
        %v1429 = vadd.f32 %v1206, %v1428
        %1430 = vmatprep.mubr.f32.mxu0 0.0
        %v1431 = vand.u32 %v340, 4294901760
        %1432 = vmatmul.mubr.f32.gmra.mrb[0].mxu0 %v1431
        %v1433 = vpop.f32.mrb[0].mxu0
        %v1434 = vadd.f32 %v1213, %v1433
        %v1435 = vpop.f32.mrb[0].mxu0
        %v1436 = vadd.f32 %v1215, %v1435
        %1437 = vmatprep.mubr.f32.mxu0 0.0
        %v1438 = vand.u32 %v341, 4294901760
        %1439 = vmatmul.mubr.f32.gmra.mrb[0].mxu0 %v1438
        %v1440 = vpop.f32.mrb[0].mxu0
        %v1441 = vadd.f32 %v1222, %v1440
        %v1442 = vpop.f32.mrb[0].mxu0
        %v1443 = vadd.f32 %v1224, %v1442
        %1444 = vmatprep.mubr.f32.mxu0 0.0
        %v1445 = vand.u32 %v342, 4294901760
        %1446 = vmatmul.mubr.f32.gmra.mrb[0].mxu0 %v1445
        %v1447 = vpop.f32.mrb[0].mxu0
        %v1448 = vadd.f32 %v1231, %v1447
        %v1449 = vpop.f32.mrb[0].mxu0
        %v1450 = vadd.f32 %v1233, %v1449
        %1451 = vdwg.mxu0
        %v1452 = vand.u32 %v376, 4294901760
        %1453 = vmatprep.subr.mxu0 %v1452
        %v1454 = vand.u32 %v375, 4294901760
        %1455 = vmatpush1.msra.mxu0 %v1454
        %v1456 = vand.u32 %v378, 4294901760
        %1457 = vmatprep.subr.mxu0 %v1456
        %v1458 = vand.u32 %v377, 4294901760
        %1459 = vmatpush1.msra.mxu0 %v1458
        %v1460 = vand.u32 %v380, 4294901760
        %1461 = vmatprep.subr.mxu0 %v1460
        %v1462 = vand.u32 %v379, 4294901760
        %1463 = vmatpush1.msra.mxu0 %v1462
        %v1464 = vand.u32 %v382, 4294901760
        %1465 = vmatprep.subr.mxu0 %v1464
        %v1466 = vand.u32 %v381, 4294901760
        %1467 = vmatpush1.msra.mxu0 %v1466
        %v1468 = vand.u32 %v384, 4294901760
        %1469 = vmatprep.subr.mxu0 %v1468
        %v1470 = vand.u32 %v383, 4294901760
        %1471 = vmatpush1.msra.mxu0 %v1470
        %v1472 = vand.u32 %v386, 4294901760
        %1473 = vmatprep.subr.mxu0 %v1472
        %v1474 = vand.u32 %v385, 4294901760
        %1475 = vmatpush1.msra.mxu0 %v1474
        %v1476 = vand.u32 %v388, 4294901760
        %1477 = vmatprep.subr.mxu0 %v1476
        %v1478 = vand.u32 %v387, 4294901760
        %1479 = vmatpush1.msra.mxu0 %v1478
        %v1480 = vand.u32 %v390, 4294901760
        %1481 = vmatprep.subr.mxu0 %v1480
        %v1482 = vand.u32 %v389, 4294901760
        %1483 = vmatpush1.msra.mxu0 %v1482
        %v1484 = vand.u32 %v392, 4294901760
        %1485 = vmatprep.subr.mxu0 %v1484
        %v1486 = vand.u32 %v391, 4294901760
        %1487 = vmatpush1.msra.mxu0 %v1486
        %v1488 = vand.u32 %v394, 4294901760
        %1489 = vmatprep.subr.mxu0 %v1488
        %v1490 = vand.u32 %v393, 4294901760
        %1491 = vmatpush1.msra.mxu0 %v1490
        %v1492 = vand.u32 %v396, 4294901760
        %1493 = vmatprep.subr.mxu0 %v1492
        %v1494 = vand.u32 %v395, 4294901760
        %1495 = vmatpush1.msra.mxu0 %v1494
        %v1496 = vand.u32 %v398, 4294901760
        %1497 = vmatprep.subr.mxu0 %v1496
        %v1498 = vand.u32 %v397, 4294901760
        %1499 = vmatpush1.msra.mxu0 %v1498
        %v1500 = vand.u32 %v400, 4294901760
        %1501 = vmatprep.subr.mxu0 %v1500
        %v1502 = vand.u32 %v399, 4294901760
        %1503 = vmatpush1.msra.mxu0 %v1502
        %v1504 = vand.u32 %v402, 4294901760
        %1505 = vmatprep.subr.mxu0 %v1504
        %v1506 = vand.u32 %v401, 4294901760
        %1507 = vmatpush1.msra.mxu0 %v1506
        %v1508 = vand.u32 %v404, 4294901760
        %1509 = vmatprep.subr.mxu0 %v1508
        %v1510 = vand.u32 %v403, 4294901760
        %1511 = vmatpush1.msra.mxu0 %v1510
        %v1512 = vand.u32 %v406, 4294901760
        %1513 = vmatprep.subr.mxu0 %v1512
        %v1514 = vand.u32 %v405, 4294901760
        %1515 = vmatpush1.msra.mxu0 %v1514
        %1516 = vmatprep.subr.mxu0 0.0
        %1517 = vmatpush1.msra.mxu0 0.0
        %1518 = vmatprep.subr.mxu0 0.0
        %1519 = vmatpush1.msra.mxu0 0.0
        %1520 = vmatprep.subr.mxu0 0.0
        %1521 = vmatpush1.msra.mxu0 0.0
        %1522 = vmatprep.subr.mxu0 0.0
        %1523 = vmatpush1.msra.mxu0 0.0
        %1524 = vmatprep.subr.mxu0 0.0
        %1525 = vmatpush1.msra.mxu0 0.0
        %1526 = vmatprep.subr.mxu0 0.0
        %1527 = vmatpush1.msra.mxu0 0.0
        %1528 = vmatprep.subr.mxu0 0.0
        %1529 = vmatpush1.msra.mxu0 0.0
        %1530 = vmatprep.subr.mxu0 0.0
        %1531 = vmatpush1.msra.mxu0 0.0
        %1532 = vmatprep.subr.mxu0 0.0
        %1533 = vmatpush1.msra.mxu0 0.0
        %1534 = vmatprep.subr.mxu0 0.0
        %1535 = vmatpush1.msra.mxu0 0.0
        %1536 = vmatprep.subr.mxu0 0.0
        %1537 = vmatpush1.msra.mxu0 0.0
        %1538 = vmatprep.subr.mxu0 0.0
        %1539 = vmatpush1.msra.mxu0 0.0
        %1540 = vmatprep.subr.mxu0 0.0
        %1541 = vmatpush1.msra.mxu0 0.0
        %1542 = vmatprep.subr.mxu0 0.0
        %1543 = vmatpush1.msra.mxu0 0.0
        %1544 = vmatprep.subr.mxu0 0.0
        %1545 = vmatpush1.msra.mxu0 0.0
        %1546 = vmatprep.subr.mxu0 0.0
        %1547 = vmatpush1.msra.mxu0 0.0
        %1548 = vmatprep.mubr.f32.mxu0 0.0
        %v1549 = vand.u32 %v335, 4294901760
        %1550 = vmatmul.mubr.f32.gmra.mrb[0].mxu0 %v1549
        %v1551 = vpop.f32.mrb[0].mxu0
        %v1552 = vadd.f32 %v1399, %v1551
        %v1553 = vpop.f32.mrb[0].mxu0
        %v1554 = vadd.f32 %v1401, %v1553
        %1555 = vmatprep.mubr.f32.mxu0 0.0
        %v1556 = vand.u32 %v336, 4294901760
        %1557 = vmatmul.mubr.f32.gmra.mrb[0].mxu0 %v1556
        %v1558 = vpop.f32.mrb[0].mxu0
        %v1559 = vadd.f32 %v1406, %v1558
        %v1560 = vpop.f32.mrb[0].mxu0
        %v1561 = vadd.f32 %v1408, %v1560
        %1562 = vmatprep.mubr.f32.mxu0 0.0
        %v1563 = vand.u32 %v337, 4294901760
        %1564 = vmatmul.mubr.f32.gmra.mrb[0].mxu0 %v1563
        %v1565 = vpop.f32.mrb[0].mxu0
        %v1566 = vadd.f32 %v1413, %v1565
        %v1567 = vpop.f32.mrb[0].mxu0
        %v1568 = vadd.f32 %v1415, %v1567
        %1569 = vmatprep.mubr.f32.mxu0 0.0
        %v1570 = vand.u32 %v338, 4294901760
        %1571 = vmatmul.mubr.f32.gmra.mrb[0].mxu0 %v1570
        %v1572 = vpop.f32.mrb[0].mxu0
        %v1573 = vadd.f32 %v1420, %v1572
        %v1574 = vpop.f32.mrb[0].mxu0
        %v1575 = vadd.f32 %v1422, %v1574
        %1576 = vmatprep.mubr.f32.mxu0 0.0
        %v1577 = vand.u32 %v339, 4294901760
        %1578 = vmatmul.mubr.f32.gmra.mrb[0].mxu0 %v1577
        %v1579 = vpop.f32.mrb[0].mxu0
        %v1580 = vadd.f32 %v1427, %v1579
        %v1581 = vpop.f32.mrb[0].mxu0
        %v1582 = vadd.f32 %v1429, %v1581
        %1583 = vmatprep.mubr.f32.mxu0 0.0
        %v1584 = vand.u32 %v340, 4294901760
        %1585 = vmatmul.mubr.f32.gmra.mrb[0].mxu0 %v1584
        %v1586 = vpop.f32.mrb[0].mxu0
        %v1587 = vadd.f32 %v1434, %v1586
        %v1588 = vpop.f32.mrb[0].mxu0
        %v1589 = vadd.f32 %v1436, %v1588
        %1590 = vmatprep.mubr.f32.mxu0 0.0
        %v1591 = vand.u32 %v341, 4294901760
        %1592 = vmatmul.mubr.f32.gmra.mrb[0].mxu0 %v1591
        %v1593 = vpop.f32.mrb[0].mxu0
        %v1594 = vadd.f32 %v1441, %v1593
        %v1595 = vpop.f32.mrb[0].mxu0
        %v1596 = vadd.f32 %v1443, %v1595
        %1597 = vmatprep.mubr.f32.mxu0 0.0
        %v1598 = vand.u32 %v342, 4294901760
        %1599 = vmatmul.mubr.f32.gmra.mrb[0].mxu0 %v1598
        %v1600 = vpop.f32.mrb[0].mxu0
        %v1601 = vadd.f32 %v1448, %v1600
        %v1602 = vpop.f32.mrb[0].mxu0
        %v1603 = vadd.f32 %v1450, %v1602
        %1604 = vdwg.mxu0
        %1605 = vst [vmem:[%s309] sm:$0xff] 0
        %1606 = vst [vmem:[%s309 + $0x8] sm:$0xff] 0
        %1607 = vst [vmem:[%s309 + $0x10] sm:$0xff] 0
        %1608 = vst [vmem:[%s309 + $0x18] sm:$0xff] 0
        %1609 = vst [vmem:[%s309 + $0x20] sm:$0xff] 0
        %1610 = vst [vmem:[%s309 + $0x28] sm:$0xff] 0
        %1611 = vst [vmem:[%s309 + $0x30] sm:$0xff] 0
        %1612 = vst [vmem:[%s309 + $0x38] sm:$0xff] 0
        %v1613 = vlaneseq
        %v1614 = vand.u32 %v1613, 127
        %v1615 = vadd.s32 %v1614, 128
        %v1616 = vmax.f32 %v1552, %v1554
        %1617 = vmax.xlane.f32.xlu0 %v1616
        %v1618 = vpop.xlane.xlu0 %1617
        %v1619 = vmax.f32 %v1559, %v1561
        %1620 = vmax.xlane.f32.xlu0 %v1619
        %v1621 = vpop.xlane.xlu0 %1620
        %v1622 = vmax.f32 %v1566, %v1568
        %1623 = vmax.xlane.f32.xlu0 %v1622
        %v1624 = vpop.xlane.xlu0 %1623
        %v1625 = vmax.f32 %v1573, %v1575
        %1626 = vmax.xlane.f32.xlu0 %v1625
        %v1627 = vpop.xlane.xlu0 %1626
        %v1628 = vmax.f32 %v1580, %v1582
        %1629 = vmax.xlane.f32.xlu0 %v1628
        %v1630 = vpop.xlane.xlu0 %1629
        %v1631 = vmax.f32 %v1587, %v1589
        %1632 = vmax.xlane.f32.xlu0 %v1631
        %v1633 = vpop.xlane.xlu0 %1632
        %v1634 = vmax.f32 %v1594, %v1596
        %1635 = vmax.xlane.f32.xlu0 %v1634
        %v1636 = vpop.xlane.xlu0 %1635
        %v1637 = vmax.f32 %v1601, %v1603
        %1638 = vmax.xlane.f32.xlu0 %v1637
        %v1639 = vpop.xlane.xlu0 %1638
        %vm1640 = vcmp.eq.f32.partialorder %v1552, %v1618
        %vm1641 = vcmp.eq.f32.partialorder %v1554, %v1618
        %vm1642 = vcmp.eq.f32.partialorder %v1559, %v1621
        %vm1643 = vcmp.eq.f32.partialorder %v1561, %v1621
        %vm1644 = vcmp.eq.f32.partialorder %v1566, %v1624
        %vm1645 = vcmp.eq.f32.partialorder %v1568, %v1624
        %vm1646 = vcmp.eq.f32.partialorder %v1573, %v1627
        %vm1647 = vcmp.eq.f32.partialorder %v1575, %v1627
        %vm1648 = vcmp.eq.f32.partialorder %v1580, %v1630
        %vm1649 = vcmp.eq.f32.partialorder %v1582, %v1630
        %vm1650 = vcmp.eq.f32.partialorder %v1587, %v1633
        %vm1651 = vcmp.eq.f32.partialorder %v1589, %v1633
        %vm1652 = vcmp.eq.f32.partialorder %v1594, %v1636
        %vm1653 = vcmp.eq.f32.partialorder %v1596, %v1636
        %vm1654 = vcmp.eq.f32.partialorder %v1601, %v1639
        %vm1655 = vcmp.eq.f32.partialorder %v1603, %v1639
        %v1656 = vsel %vm1640, %v1614, 256
        %v1657 = vsel %vm1641, %v1615, 256
        %v1658 = vsel %vm1642, %v1614, 256
        %v1659 = vsel %vm1643, %v1615, 256
        %v1660 = vsel %vm1644, %v1614, 256
        %v1661 = vsel %vm1645, %v1615, 256
        %v1662 = vsel %vm1646, %v1614, 256
        %v1663 = vsel %vm1647, %v1615, 256
        %v1664 = vsel %vm1648, %v1614, 256
        %v1665 = vsel %vm1649, %v1615, 256
        %v1666 = vsel %vm1650, %v1614, 256
        %v1667 = vsel %vm1651, %v1615, 256
        %v1668 = vsel %vm1652, %v1614, 256
        %v1669 = vsel %vm1653, %v1615, 256
        %v1670 = vsel %vm1654, %v1614, 256
        %v1671 = vsel %vm1655, %v1615, 256
        %vm1672 = vcmp.lt.s32.totalorder %v1656, %v1657
        %v1673 = vsel %vm1672, %v1656, %v1657
        %v1674 = vand.u32 %v1673, 65535
        %v1675 = vshra.s32 %v1673, 16
        %v1676 = vcvt.s32.f32 %v1674
        %v1677 = vcvt.s32.f32 %v1675
        %1678 = vmin.xlane.f32.xlu0 %v1677
        %v1679 = vpop.xlane.xlu0 %1678
        %vm1680 = vcmp.eq.f32.partialorder %v1677, %v1679
        %v1681 = vsel %vm1680, %v1676, inf
        %1682 = vmin.xlane.f32.xlu0 %v1681
        %v1683 = vpop.xlane.xlu0 %1682
        %v1684 = vcvt.f32.s32 %v1683
        %v1685 = vcvt.f32.s32 %v1679
        %v1686 = vshll.u32 %v1685, 16
        %v1687 = vadd.s32 %v1686, %v1684
        %vm1688 = vcmp.lt.s32.totalorder %v1658, %v1659
        %v1689 = vsel %vm1688, %v1658, %v1659
        %v1690 = vand.u32 %v1689, 65535
        %v1691 = vshra.s32 %v1689, 16
        %v1692 = vcvt.s32.f32 %v1690
        %v1693 = vcvt.s32.f32 %v1691
        %1694 = vmin.xlane.f32.xlu0 %v1693
        %v1695 = vpop.xlane.xlu0 %1694
        %vm1696 = vcmp.eq.f32.partialorder %v1693, %v1695
        %v1697 = vsel %vm1696, %v1692, inf
        %1698 = vmin.xlane.f32.xlu0 %v1697
        %v1699 = vpop.xlane.xlu0 %1698
        %v1700 = vcvt.f32.s32 %v1699
        %v1701 = vcvt.f32.s32 %v1695
        %v1702 = vshll.u32 %v1701, 16
        %v1703 = vadd.s32 %v1702, %v1700
        %vm1704 = vcmp.lt.s32.totalorder %v1660, %v1661
        %v1705 = vsel %vm1704, %v1660, %v1661
        %v1706 = vand.u32 %v1705, 65535
        %v1707 = vshra.s32 %v1705, 16
        %v1708 = vcvt.s32.f32 %v1706
        %v1709 = vcvt.s32.f32 %v1707
        %1710 = vmin.xlane.f32.xlu0 %v1709
        %v1711 = vpop.xlane.xlu0 %1710
        %vm1712 = vcmp.eq.f32.partialorder %v1709, %v1711
        %v1713 = vsel %vm1712, %v1708, inf
        %1714 = vmin.xlane.f32.xlu0 %v1713
        %v1715 = vpop.xlane.xlu0 %1714
        %v1716 = vcvt.f32.s32 %v1715
        %v1717 = vcvt.f32.s32 %v1711
        %v1718 = vshll.u32 %v1717, 16
        %v1719 = vadd.s32 %v1718, %v1716
        %vm1720 = vcmp.lt.s32.totalorder %v1662, %v1663
        %v1721 = vsel %vm1720, %v1662, %v1663
        %v1722 = vand.u32 %v1721, 65535
        %v1723 = vshra.s32 %v1721, 16
        %v1724 = vcvt.s32.f32 %v1722
        %v1725 = vcvt.s32.f32 %v1723
        %1726 = vmin.xlane.f32.xlu0 %v1725
        %v1727 = vpop.xlane.xlu0 %1726
        %vm1728 = vcmp.eq.f32.partialorder %v1725, %v1727
        %v1729 = vsel %vm1728, %v1724, inf
        %1730 = vmin.xlane.f32.xlu0 %v1729
        %v1731 = vpop.xlane.xlu0 %1730
        %v1732 = vcvt.f32.s32 %v1731
        %v1733 = vcvt.f32.s32 %v1727
        %v1734 = vshll.u32 %v1733, 16
        %v1735 = vadd.s32 %v1734, %v1732
        %vm1736 = vcmp.lt.s32.totalorder %v1664, %v1665
        %v1737 = vsel %vm1736, %v1664, %v1665
        %v1738 = vand.u32 %v1737, 65535
        %v1739 = vshra.s32 %v1737, 16
        %v1740 = vcvt.s32.f32 %v1738
        %v1741 = vcvt.s32.f32 %v1739
        %1742 = vmin.xlane.f32.xlu0 %v1741
        %v1743 = vpop.xlane.xlu0 %1742
        %vm1744 = vcmp.eq.f32.partialorder %v1741, %v1743
        %v1745 = vsel %vm1744, %v1740, inf
        %1746 = vmin.xlane.f32.xlu0 %v1745
        %v1747 = vpop.xlane.xlu0 %1746
        %v1748 = vcvt.f32.s32 %v1747
        %v1749 = vcvt.f32.s32 %v1743
        %v1750 = vshll.u32 %v1749, 16
        %v1751 = vadd.s32 %v1750, %v1748
        %vm1752 = vcmp.lt.s32.totalorder %v1666, %v1667
        %v1753 = vsel %vm1752, %v1666, %v1667
        %v1754 = vand.u32 %v1753, 65535
        %v1755 = vshra.s32 %v1753, 16
        %v1756 = vcvt.s32.f32 %v1754
        %v1757 = vcvt.s32.f32 %v1755
        %1758 = vmin.xlane.f32.xlu0 %v1757
        %v1759 = vpop.xlane.xlu0 %1758
        %vm1760 = vcmp.eq.f32.partialorder %v1757, %v1759
        %v1761 = vsel %vm1760, %v1756, inf
        %1762 = vmin.xlane.f32.xlu0 %v1761
        %v1763 = vpop.xlane.xlu0 %1762
        %v1764 = vcvt.f32.s32 %v1763
        %v1765 = vcvt.f32.s32 %v1759
        %v1766 = vshll.u32 %v1765, 16
        %v1767 = vadd.s32 %v1766, %v1764
        %vm1768 = vcmp.lt.s32.totalorder %v1668, %v1669
        %v1769 = vsel %vm1768, %v1668, %v1669
        %v1770 = vand.u32 %v1769, 65535
        %v1771 = vshra.s32 %v1769, 16
        %v1772 = vcvt.s32.f32 %v1770
        %v1773 = vcvt.s32.f32 %v1771
        %1774 = vmin.xlane.f32.xlu0 %v1773
        %v1775 = vpop.xlane.xlu0 %1774
        %vm1776 = vcmp.eq.f32.partialorder %v1773, %v1775
        %v1777 = vsel %vm1776, %v1772, inf
        %1778 = vmin.xlane.f32.xlu0 %v1777
        %v1779 = vpop.xlane.xlu0 %1778
        %v1780 = vcvt.f32.s32 %v1779
        %v1781 = vcvt.f32.s32 %v1775
        %v1782 = vshll.u32 %v1781, 16
        %v1783 = vadd.s32 %v1782, %v1780
        %vm1784 = vcmp.lt.s32.totalorder %v1670, %v1671
        %v1785 = vsel %vm1784, %v1670, %v1671
        %v1786 = vand.u32 %v1785, 65535
        %v1787 = vshra.s32 %v1785, 16
        %v1788 = vcvt.s32.f32 %v1786
        %v1789 = vcvt.s32.f32 %v1787
        %1790 = vmin.xlane.f32.xlu0 %v1789
        %v1791 = vpop.xlane.xlu0 %1790
        %vm1792 = vcmp.eq.f32.partialorder %v1789, %v1791
        %v1793 = vsel %vm1792, %v1788, inf
        %1794 = vmin.xlane.f32.xlu0 %v1793
        %v1795 = vpop.xlane.xlu0 %1794
        %v1796 = vcvt.f32.s32 %v1795
        %v1797 = vcvt.f32.s32 %v1791
        %v1798 = vshll.u32 %v1797, 16
        %v1799 = vadd.s32 %v1798, %v1796
        %vm1800 = vcmp.eq.s32.totalorder %v1614, %v1687
        %vm1801 = vcmp.eq.s32.totalorder %v1615, %v1687
        %vm1802 = vcmp.eq.s32.totalorder %v1614, %v1703
        %vm1803 = vcmp.eq.s32.totalorder %v1615, %v1703
        %vm1804 = vcmp.eq.s32.totalorder %v1614, %v1719
        %vm1805 = vcmp.eq.s32.totalorder %v1615, %v1719
        %vm1806 = vcmp.eq.s32.totalorder %v1614, %v1735
        %vm1807 = vcmp.eq.s32.totalorder %v1615, %v1735
        %vm1808 = vcmp.eq.s32.totalorder %v1614, %v1751
        %vm1809 = vcmp.eq.s32.totalorder %v1615, %v1751
        %vm1810 = vcmp.eq.s32.totalorder %v1614, %v1767
        %vm1811 = vcmp.eq.s32.totalorder %v1615, %v1767
        %vm1812 = vcmp.eq.s32.totalorder %v1614, %v1783
        %vm1813 = vcmp.eq.s32.totalorder %v1615, %v1783
        %vm1814 = vcmp.eq.s32.totalorder %v1614, %v1799
        %vm1815 = vcmp.eq.s32.totalorder %v1615, %v1799
        %v1816 = vsel %vm1800, -inf, %v1552
        %v1817 = vsel %vm1801, -inf, %v1554
        %v1818 = vsel %vm1802, -inf, %v1559
        %v1819 = vsel %vm1803, -inf, %v1561
        %v1820 = vsel %vm1804, -inf, %v1566
        %v1821 = vsel %vm1805, -inf, %v1568
        %v1822 = vsel %vm1806, -inf, %v1573
        %v1823 = vsel %vm1807, -inf, %v1575
        %v1824 = vsel %vm1808, -inf, %v1580
        %v1825 = vsel %vm1809, -inf, %v1582
        %v1826 = vsel %vm1810, -inf, %v1587
        %v1827 = vsel %vm1811, -inf, %v1589
        %v1828 = vsel %vm1812, -inf, %v1594
        %v1829 = vsel %vm1813, -inf, %v1596
        %v1830 = vsel %vm1814, -inf, %v1601
        %v1831 = vsel %vm1815, -inf, %v1603
        %vm1840 = vcmask 7168
        %1841 = vst.msk [vmem:[%s309] sm:$0xff] %vm1840, %v1618
        %1842 = vst.msk [vmem:[%s309 + $0x8] sm:$0xff] %vm1840, %v1621
        %1843 = vst.msk [vmem:[%s309 + $0x10] sm:$0xff] %vm1840, %v1624
        %1844 = vst.msk [vmem:[%s309 + $0x18] sm:$0xff] %vm1840, %v1627
        %1845 = vst.msk [vmem:[%s309 + $0x20] sm:$0xff] %vm1840, %v1630
        %1846 = vst.msk [vmem:[%s309 + $0x28] sm:$0xff] %vm1840, %v1633
        %1847 = vst.msk [vmem:[%s309 + $0x30] sm:$0xff] %vm1840, %v1636
        %1848 = vst.msk [vmem:[%s309 + $0x38] sm:$0xff] %vm1840, %v1639
        %vm1849 = vcmask 39968
        %1850 = vst.msk [vmem:[%s309] sm:$0xff] %vm1849, %v1687
        %1851 = vst.msk [vmem:[%s309 + $0x8] sm:$0xff] %vm1849, %v1703
        %1852 = vst.msk [vmem:[%s309 + $0x10] sm:$0xff] %vm1849, %v1719
        %1853 = vst.msk [vmem:[%s309 + $0x18] sm:$0xff] %vm1849, %v1735
        %1854 = vst.msk [vmem:[%s309 + $0x20] sm:$0xff] %vm1849, %v1751
        %1855 = vst.msk [vmem:[%s309 + $0x28] sm:$0xff] %vm1849, %v1767
        %1856 = vst.msk [vmem:[%s309 + $0x30] sm:$0xff] %vm1849, %v1783
        %1857 = vst.msk [vmem:[%s309 + $0x38] sm:$0xff] %vm1849, %v1799
        %v1858 = vmax.f32 %v1816, %v1817
        %1859 = vmax.xlane.f32.xlu0 %v1858
        %v1860 = vpop.xlane.xlu0 %1859
        %v1861 = vmax.f32 %v1818, %v1819
        %1862 = vmax.xlane.f32.xlu0 %v1861
        %v1863 = vpop.xlane.xlu0 %1862
        %v1864 = vmax.f32 %v1820, %v1821
        %1865 = vmax.xlane.f32.xlu0 %v1864
        %v1866 = vpop.xlane.xlu0 %1865
        %v1867 = vmax.f32 %v1822, %v1823
        %1868 = vmax.xlane.f32.xlu0 %v1867
        %v1869 = vpop.xlane.xlu0 %1868
        %v1870 = vmax.f32 %v1824, %v1825
        %1871 = vmax.xlane.f32.xlu0 %v1870
        %v1872 = vpop.xlane.xlu0 %1871
        %v1873 = vmax.f32 %v1826, %v1827
        %1874 = vmax.xlane.f32.xlu0 %v1873
        %v1875 = vpop.xlane.xlu0 %1874
        %v1876 = vmax.f32 %v1828, %v1829
        %1877 = vmax.xlane.f32.xlu0 %v1876
        %v1878 = vpop.xlane.xlu0 %1877
        %v1879 = vmax.f32 %v1830, %v1831
        %1880 = vmax.xlane.f32.xlu0 %v1879
        %v1881 = vpop.xlane.xlu0 %1880
        %vm1882 = vcmp.eq.f32.partialorder %v1816, %v1860
        %vm1883 = vcmp.eq.f32.partialorder %v1817, %v1860
        %vm1884 = vcmp.eq.f32.partialorder %v1818, %v1863
        %vm1885 = vcmp.eq.f32.partialorder %v1819, %v1863
        %vm1886 = vcmp.eq.f32.partialorder %v1820, %v1866
        %vm1887 = vcmp.eq.f32.partialorder %v1821, %v1866
        %vm1888 = vcmp.eq.f32.partialorder %v1822, %v1869
        %vm1889 = vcmp.eq.f32.partialorder %v1823, %v1869
        %vm1890 = vcmp.eq.f32.partialorder %v1824, %v1872
        %vm1891 = vcmp.eq.f32.partialorder %v1825, %v1872
        %vm1892 = vcmp.eq.f32.partialorder %v1826, %v1875
        %vm1893 = vcmp.eq.f32.partialorder %v1827, %v1875
        %vm1894 = vcmp.eq.f32.partialorder %v1828, %v1878
        %vm1895 = vcmp.eq.f32.partialorder %v1829, %v1878
        %vm1896 = vcmp.eq.f32.partialorder %v1830, %v1881
        %vm1897 = vcmp.eq.f32.partialorder %v1831, %v1881
        %v1898 = vsel %vm1882, %v1614, 256
        %v1899 = vsel %vm1883, %v1615, 256
        %v1900 = vsel %vm1884, %v1614, 256
        %v1901 = vsel %vm1885, %v1615, 256
        %v1902 = vsel %vm1886, %v1614, 256
        %v1903 = vsel %vm1887, %v1615, 256
        %v1904 = vsel %vm1888, %v1614, 256
        %v1905 = vsel %vm1889, %v1615, 256
        %v1906 = vsel %vm1890, %v1614, 256
        %v1907 = vsel %vm1891, %v1615, 256
        %v1908 = vsel %vm1892, %v1614, 256
        %v1909 = vsel %vm1893, %v1615, 256
        %v1910 = vsel %vm1894, %v1614, 256
        %v1911 = vsel %vm1895, %v1615, 256
        %v1912 = vsel %vm1896, %v1614, 256
        %v1913 = vsel %vm1897, %v1615, 256
        %vm1914 = vcmp.lt.s32.totalorder %v1898, %v1899
        %v1915 = vsel %vm1914, %v1898, %v1899
        %v1916 = vand.u32 %v1915, 65535
        %v1917 = vshra.s32 %v1915, 16
        %v1918 = vcvt.s32.f32 %v1916
        %v1919 = vcvt.s32.f32 %v1917
        %1920 = vmin.xlane.f32.xlu0 %v1919
        %v1921 = vpop.xlane.xlu0 %1920
        %vm1922 = vcmp.eq.f32.partialorder %v1919, %v1921
        %v1923 = vsel %vm1922, %v1918, inf
        %1924 = vmin.xlane.f32.xlu0 %v1923
        %v1925 = vpop.xlane.xlu0 %1924
        %v1926 = vcvt.f32.s32 %v1925
        %v1927 = vcvt.f32.s32 %v1921
        %v1928 = vshll.u32 %v1927, 16
        %v1929 = vadd.s32 %v1928, %v1926
        %vm1930 = vcmp.lt.s32.totalorder %v1900, %v1901
        %v1931 = vsel %vm1930, %v1900, %v1901
        %v1932 = vand.u32 %v1931, 65535
        %v1933 = vshra.s32 %v1931, 16
        %v1934 = vcvt.s32.f32 %v1932
        %v1935 = vcvt.s32.f32 %v1933
        %1936 = vmin.xlane.f32.xlu0 %v1935
        %v1937 = vpop.xlane.xlu0 %1936
        %vm1938 = vcmp.eq.f32.partialorder %v1935, %v1937
        %v1939 = vsel %vm1938, %v1934, inf
        %1940 = vmin.xlane.f32.xlu0 %v1939
        %v1941 = vpop.xlane.xlu0 %1940
        %v1942 = vcvt.f32.s32 %v1941
        %v1943 = vcvt.f32.s32 %v1937
        %v1944 = vshll.u32 %v1943, 16
        %v1945 = vadd.s32 %v1944, %v1942
        %vm1946 = vcmp.lt.s32.totalorder %v1902, %v1903
        %v1947 = vsel %vm1946, %v1902, %v1903
        %v1948 = vand.u32 %v1947, 65535
        %v1949 = vshra.s32 %v1947, 16
        %v1950 = vcvt.s32.f32 %v1948
        %v1951 = vcvt.s32.f32 %v1949
        %1952 = vmin.xlane.f32.xlu0 %v1951
        %v1953 = vpop.xlane.xlu0 %1952
        %vm1954 = vcmp.eq.f32.partialorder %v1951, %v1953
        %v1955 = vsel %vm1954, %v1950, inf
        %1956 = vmin.xlane.f32.xlu0 %v1955
        %v1957 = vpop.xlane.xlu0 %1956
        %v1958 = vcvt.f32.s32 %v1957
        %v1959 = vcvt.f32.s32 %v1953
        %v1960 = vshll.u32 %v1959, 16
        %v1961 = vadd.s32 %v1960, %v1958
        %vm1962 = vcmp.lt.s32.totalorder %v1904, %v1905
        %v1963 = vsel %vm1962, %v1904, %v1905
        %v1964 = vand.u32 %v1963, 65535
        %v1965 = vshra.s32 %v1963, 16
        %v1966 = vcvt.s32.f32 %v1964
        %v1967 = vcvt.s32.f32 %v1965
        %1968 = vmin.xlane.f32.xlu0 %v1967
        %v1969 = vpop.xlane.xlu0 %1968
        %vm1970 = vcmp.eq.f32.partialorder %v1967, %v1969
        %v1971 = vsel %vm1970, %v1966, inf
        %1972 = vmin.xlane.f32.xlu0 %v1971
        %v1973 = vpop.xlane.xlu0 %1972
        %v1974 = vcvt.f32.s32 %v1973
        %v1975 = vcvt.f32.s32 %v1969
        %v1976 = vshll.u32 %v1975, 16
        %v1977 = vadd.s32 %v1976, %v1974
        %vm1978 = vcmp.lt.s32.totalorder %v1906, %v1907
        %v1979 = vsel %vm1978, %v1906, %v1907
        %v1980 = vand.u32 %v1979, 65535
        %v1981 = vshra.s32 %v1979, 16
        %v1982 = vcvt.s32.f32 %v1980
        %v1983 = vcvt.s32.f32 %v1981
        %1984 = vmin.xlane.f32.xlu0 %v1983
        %v1985 = vpop.xlane.xlu0 %1984
        %vm1986 = vcmp.eq.f32.partialorder %v1983, %v1985
        %v1987 = vsel %vm1986, %v1982, inf
        %1988 = vmin.xlane.f32.xlu0 %v1987
        %v1989 = vpop.xlane.xlu0 %1988
        %v1990 = vcvt.f32.s32 %v1989
        %v1991 = vcvt.f32.s32 %v1985
        %v1992 = vshll.u32 %v1991, 16
        %v1993 = vadd.s32 %v1992, %v1990
        %vm1994 = vcmp.lt.s32.totalorder %v1908, %v1909
        %v1995 = vsel %vm1994, %v1908, %v1909
        %v1996 = vand.u32 %v1995, 65535
        %v1997 = vshra.s32 %v1995, 16
        %v1998 = vcvt.s32.f32 %v1996
        %v1999 = vcvt.s32.f32 %v1997
        %2000 = vmin.xlane.f32.xlu0 %v1999
        %v2001 = vpop.xlane.xlu0 %2000
        %vm2002 = vcmp.eq.f32.partialorder %v1999, %v2001
        %v2003 = vsel %vm2002, %v1998, inf
        %2004 = vmin.xlane.f32.xlu0 %v2003
        %v2005 = vpop.xlane.xlu0 %2004
        %v2006 = vcvt.f32.s32 %v2005
        %v2007 = vcvt.f32.s32 %v2001
        %v2008 = vshll.u32 %v2007, 16
        %v2009 = vadd.s32 %v2008, %v2006
        %vm2010 = vcmp.lt.s32.totalorder %v1910, %v1911
        %v2011 = vsel %vm2010, %v1910, %v1911
        %v2012 = vand.u32 %v2011, 65535
        %v2013 = vshra.s32 %v2011, 16
        %v2014 = vcvt.s32.f32 %v2012
        %v2015 = vcvt.s32.f32 %v2013
        %2016 = vmin.xlane.f32.xlu0 %v2015
        %v2017 = vpop.xlane.xlu0 %2016
        %vm2018 = vcmp.eq.f32.partialorder %v2015, %v2017
        %v2019 = vsel %vm2018, %v2014, inf
        %2020 = vmin.xlane.f32.xlu0 %v2019
        %v2021 = vpop.xlane.xlu0 %2020
        %v2022 = vcvt.f32.s32 %v2021
        %v2023 = vcvt.f32.s32 %v2017
        %v2024 = vshll.u32 %v2023, 16
        %v2025 = vadd.s32 %v2024, %v2022
        %vm2026 = vcmp.lt.s32.totalorder %v1912, %v1913
        %v2027 = vsel %vm2026, %v1912, %v1913
        %v2028 = vand.u32 %v2027, 65535
        %v2029 = vshra.s32 %v2027, 16
        %v2030 = vcvt.s32.f32 %v2028
        %v2031 = vcvt.s32.f32 %v2029
        %2032 = vmin.xlane.f32.xlu0 %v2031
        %v2033 = vpop.xlane.xlu0 %2032
        %vm2034 = vcmp.eq.f32.partialorder %v2031, %v2033
        %v2035 = vsel %vm2034, %v2030, inf
        %2036 = vmin.xlane.f32.xlu0 %v2035
        %v2037 = vpop.xlane.xlu0 %2036
        %v2038 = vcvt.f32.s32 %v2037
        %v2039 = vcvt.f32.s32 %v2033
        %v2040 = vshll.u32 %v2039, 16
        %v2041 = vadd.s32 %v2040, %v2038
        %vm2042 = vcmp.eq.s32.totalorder %v1614, %v1929
        %vm2043 = vcmp.eq.s32.totalorder %v1615, %v1929
        %vm2044 = vcmp.eq.s32.totalorder %v1614, %v1945
        %vm2045 = vcmp.eq.s32.totalorder %v1615, %v1945
        %vm2046 = vcmp.eq.s32.totalorder %v1614, %v1961
        %vm2047 = vcmp.eq.s32.totalorder %v1615, %v1961
        %vm2048 = vcmp.eq.s32.totalorder %v1614, %v1977
        %vm2049 = vcmp.eq.s32.totalorder %v1615, %v1977
        %vm2050 = vcmp.eq.s32.totalorder %v1614, %v1993
        %vm2051 = vcmp.eq.s32.totalorder %v1615, %v1993
        %vm2052 = vcmp.eq.s32.totalorder %v1614, %v2009
        %vm2053 = vcmp.eq.s32.totalorder %v1615, %v2009
        %vm2054 = vcmp.eq.s32.totalorder %v1614, %v2025
        %vm2055 = vcmp.eq.s32.totalorder %v1615, %v2025
        %vm2056 = vcmp.eq.s32.totalorder %v1614, %v2041
        %vm2057 = vcmp.eq.s32.totalorder %v1615, %v2041
        %v2058 = vsel %vm2042, -inf, %v1816
        %v2059 = vsel %vm2043, -inf, %v1817
        %v2060 = vsel %vm2044, -inf, %v1818
        %v2061 = vsel %vm2045, -inf, %v1819
        %v2062 = vsel %vm2046, -inf, %v1820
        %v2063 = vsel %vm2047, -inf, %v1821
        %v2064 = vsel %vm2048, -inf, %v1822
        %v2065 = vsel %vm2049, -inf, %v1823
        %v2066 = vsel %vm2050, -inf, %v1824
        %v2067 = vsel %vm2051, -inf, %v1825
        %v2068 = vsel %vm2052, -inf, %v1826
        %v2069 = vsel %vm2053, -inf, %v1827
        %v2070 = vsel %vm2054, -inf, %v1828
        %v2071 = vsel %vm2055, -inf, %v1829
        %v2072 = vsel %vm2056, -inf, %v1830
        %v2073 = vsel %vm2057, -inf, %v1831
        %vm2082 = vcmask 15368
        %2083 = vst.msk [vmem:[%s309] sm:$0xff] %vm2082, %v1860
        %2084 = vst.msk [vmem:[%s309 + $0x8] sm:$0xff] %vm2082, %v1863
        %2085 = vst.msk [vmem:[%s309 + $0x10] sm:$0xff] %vm2082, %v1866
        %2086 = vst.msk [vmem:[%s309 + $0x18] sm:$0xff] %vm2082, %v1869
        %2087 = vst.msk [vmem:[%s309 + $0x20] sm:$0xff] %vm2082, %v1872
        %2088 = vst.msk [vmem:[%s309 + $0x28] sm:$0xff] %vm2082, %v1875
        %2089 = vst.msk [vmem:[%s309 + $0x30] sm:$0xff] %vm2082, %v1878
        %2090 = vst.msk [vmem:[%s309 + $0x38] sm:$0xff] %vm2082, %v1881
        %vm2091 = vcmask 48168
        %2092 = vst.msk [vmem:[%s309] sm:$0xff] %vm2091, %v1929
        %2093 = vst.msk [vmem:[%s309 + $0x8] sm:$0xff] %vm2091, %v1945
        %2094 = vst.msk [vmem:[%s309 + $0x10] sm:$0xff] %vm2091, %v1961
        %2095 = vst.msk [vmem:[%s309 + $0x18] sm:$0xff] %vm2091, %v1977
        %2096 = vst.msk [vmem:[%s309 + $0x20] sm:$0xff] %vm2091, %v1993
        %2097 = vst.msk [vmem:[%s309 + $0x28] sm:$0xff] %vm2091, %v2009
        %2098 = vst.msk [vmem:[%s309 + $0x30] sm:$0xff] %vm2091, %v2025
        %2099 = vst.msk [vmem:[%s309 + $0x38] sm:$0xff] %vm2091, %v2041
        %v2100 = vmax.f32 %v2058, %v2059
        %2101 = vmax.xlane.f32.xlu0 %v2100
        %v2102 = vpop.xlane.xlu0 %2101
        %v2103 = vmax.f32 %v2060, %v2061
        %2104 = vmax.xlane.f32.xlu0 %v2103
        %v2105 = vpop.xlane.xlu0 %2104
        %v2106 = vmax.f32 %v2062, %v2063
        %2107 = vmax.xlane.f32.xlu0 %v2106
        %v2108 = vpop.xlane.xlu0 %2107
        %v2109 = vmax.f32 %v2064, %v2065
        %2110 = vmax.xlane.f32.xlu0 %v2109
        %v2111 = vpop.xlane.xlu0 %2110
        %v2112 = vmax.f32 %v2066, %v2067
        %2113 = vmax.xlane.f32.xlu0 %v2112
        %v2114 = vpop.xlane.xlu0 %2113
        %v2115 = vmax.f32 %v2068, %v2069
        %2116 = vmax.xlane.f32.xlu0 %v2115
        %v2117 = vpop.xlane.xlu0 %2116
        %v2118 = vmax.f32 %v2070, %v2071
        %2119 = vmax.xlane.f32.xlu0 %v2118
        %v2120 = vpop.xlane.xlu0 %2119
        %v2121 = vmax.f32 %v2072, %v2073
        %2122 = vmax.xlane.f32.xlu0 %v2121
        %v2123 = vpop.xlane.xlu0 %2122
        %vm2124 = vcmp.eq.f32.partialorder %v2058, %v2102
        %vm2125 = vcmp.eq.f32.partialorder %v2059, %v2102
        %vm2126 = vcmp.eq.f32.partialorder %v2060, %v2105
        %vm2127 = vcmp.eq.f32.partialorder %v2061, %v2105
        %vm2128 = vcmp.eq.f32.partialorder %v2062, %v2108
        %vm2129 = vcmp.eq.f32.partialorder %v2063, %v2108
        %vm2130 = vcmp.eq.f32.partialorder %v2064, %v2111
        %vm2131 = vcmp.eq.f32.partialorder %v2065, %v2111
        %vm2132 = vcmp.eq.f32.partialorder %v2066, %v2114
        %vm2133 = vcmp.eq.f32.partialorder %v2067, %v2114
        %vm2134 = vcmp.eq.f32.partialorder %v2068, %v2117
        %vm2135 = vcmp.eq.f32.partialorder %v2069, %v2117
        %vm2136 = vcmp.eq.f32.partialorder %v2070, %v2120
        %vm2137 = vcmp.eq.f32.partialorder %v2071, %v2120
        %vm2138 = vcmp.eq.f32.partialorder %v2072, %v2123
        %vm2139 = vcmp.eq.f32.partialorder %v2073, %v2123
        %v2140 = vsel %vm2124, %v1614, 256
        %v2141 = vsel %vm2125, %v1615, 256
        %v2142 = vsel %vm2126, %v1614, 256
        %v2143 = vsel %vm2127, %v1615, 256
        %v2144 = vsel %vm2128, %v1614, 256
        %v2145 = vsel %vm2129, %v1615, 256
        %v2146 = vsel %vm2130, %v1614, 256
        %v2147 = vsel %vm2131, %v1615, 256
        %v2148 = vsel %vm2132, %v1614, 256
        %v2149 = vsel %vm2133, %v1615, 256
        %v2150 = vsel %vm2134, %v1614, 256
        %v2151 = vsel %vm2135, %v1615, 256
        %v2152 = vsel %vm2136, %v1614, 256
        %v2153 = vsel %vm2137, %v1615, 256
        %v2154 = vsel %vm2138, %v1614, 256
        %v2155 = vsel %vm2139, %v1615, 256
        %vm2156 = vcmp.lt.s32.totalorder %v2140, %v2141
        %v2157 = vsel %vm2156, %v2140, %v2141
        %v2158 = vand.u32 %v2157, 65535
        %v2159 = vshra.s32 %v2157, 16
        %v2160 = vcvt.s32.f32 %v2158
        %v2161 = vcvt.s32.f32 %v2159
        %2162 = vmin.xlane.f32.xlu0 %v2161
        %v2163 = vpop.xlane.xlu0 %2162
        %vm2164 = vcmp.eq.f32.partialorder %v2161, %v2163
        %v2165 = vsel %vm2164, %v2160, inf
        %2166 = vmin.xlane.f32.xlu0 %v2165
        %v2167 = vpop.xlane.xlu0 %2166
        %v2168 = vcvt.f32.s32 %v2167
        %v2169 = vcvt.f32.s32 %v2163
        %v2170 = vshll.u32 %v2169, 16
        %v2171 = vadd.s32 %v2170, %v2168
        %vm2172 = vcmp.lt.s32.totalorder %v2142, %v2143
        %v2173 = vsel %vm2172, %v2142, %v2143
        %v2174 = vand.u32 %v2173, 65535
        %v2175 = vshra.s32 %v2173, 16
        %v2176 = vcvt.s32.f32 %v2174
        %v2177 = vcvt.s32.f32 %v2175
        %2178 = vmin.xlane.f32.xlu0 %v2177
        %v2179 = vpop.xlane.xlu0 %2178
        %vm2180 = vcmp.eq.f32.partialorder %v2177, %v2179
        %v2181 = vsel %vm2180, %v2176, inf
        %2182 = vmin.xlane.f32.xlu0 %v2181
        %v2183 = vpop.xlane.xlu0 %2182
        %v2184 = vcvt.f32.s32 %v2183
        %v2185 = vcvt.f32.s32 %v2179
        %v2186 = vshll.u32 %v2185, 16
        %v2187 = vadd.s32 %v2186, %v2184
        %vm2188 = vcmp.lt.s32.totalorder %v2144, %v2145
        %v2189 = vsel %vm2188, %v2144, %v2145
        %v2190 = vand.u32 %v2189, 65535
        %v2191 = vshra.s32 %v2189, 16
        %v2192 = vcvt.s32.f32 %v2190
        %v2193 = vcvt.s32.f32 %v2191
        %2194 = vmin.xlane.f32.xlu0 %v2193
        %v2195 = vpop.xlane.xlu0 %2194
        %vm2196 = vcmp.eq.f32.partialorder %v2193, %v2195
        %v2197 = vsel %vm2196, %v2192, inf
        %2198 = vmin.xlane.f32.xlu0 %v2197
        %v2199 = vpop.xlane.xlu0 %2198
        %v2200 = vcvt.f32.s32 %v2199
        %v2201 = vcvt.f32.s32 %v2195
        %v2202 = vshll.u32 %v2201, 16
        %v2203 = vadd.s32 %v2202, %v2200
        %vm2204 = vcmp.lt.s32.totalorder %v2146, %v2147
        %v2205 = vsel %vm2204, %v2146, %v2147
        %v2206 = vand.u32 %v2205, 65535
        %v2207 = vshra.s32 %v2205, 16
        %v2208 = vcvt.s32.f32 %v2206
        %v2209 = vcvt.s32.f32 %v2207
        %2210 = vmin.xlane.f32.xlu0 %v2209
        %v2211 = vpop.xlane.xlu0 %2210
        %vm2212 = vcmp.eq.f32.partialorder %v2209, %v2211
        %v2213 = vsel %vm2212, %v2208, inf
        %2214 = vmin.xlane.f32.xlu0 %v2213
        %v2215 = vpop.xlane.xlu0 %2214
        %v2216 = vcvt.f32.s32 %v2215
        %v2217 = vcvt.f32.s32 %v2211
        %v2218 = vshll.u32 %v2217, 16
        %v2219 = vadd.s32 %v2218, %v2216
        %vm2220 = vcmp.lt.s32.totalorder %v2148, %v2149
        %v2221 = vsel %vm2220, %v2148, %v2149
        %v2222 = vand.u32 %v2221, 65535
        %v2223 = vshra.s32 %v2221, 16
        %v2224 = vcvt.s32.f32 %v2222
        %v2225 = vcvt.s32.f32 %v2223
        %2226 = vmin.xlane.f32.xlu0 %v2225
        %v2227 = vpop.xlane.xlu0 %2226
        %vm2228 = vcmp.eq.f32.partialorder %v2225, %v2227
        %v2229 = vsel %vm2228, %v2224, inf
        %2230 = vmin.xlane.f32.xlu0 %v2229
        %v2231 = vpop.xlane.xlu0 %2230
        %v2232 = vcvt.f32.s32 %v2231
        %v2233 = vcvt.f32.s32 %v2227
        %v2234 = vshll.u32 %v2233, 16
        %v2235 = vadd.s32 %v2234, %v2232
        %vm2236 = vcmp.lt.s32.totalorder %v2150, %v2151
        %v2237 = vsel %vm2236, %v2150, %v2151
        %v2238 = vand.u32 %v2237, 65535
        %v2239 = vshra.s32 %v2237, 16
        %v2240 = vcvt.s32.f32 %v2238
        %v2241 = vcvt.s32.f32 %v2239
        %2242 = vmin.xlane.f32.xlu0 %v2241
        %v2243 = vpop.xlane.xlu0 %2242
        %vm2244 = vcmp.eq.f32.partialorder %v2241, %v2243
        %v2245 = vsel %vm2244, %v2240, inf
        %2246 = vmin.xlane.f32.xlu0 %v2245
        %v2247 = vpop.xlane.xlu0 %2246
        %v2248 = vcvt.f32.s32 %v2247
        %v2249 = vcvt.f32.s32 %v2243
        %v2250 = vshll.u32 %v2249, 16
        %v2251 = vadd.s32 %v2250, %v2248
        %vm2252 = vcmp.lt.s32.totalorder %v2152, %v2153
        %v2253 = vsel %vm2252, %v2152, %v2153
        %v2254 = vand.u32 %v2253, 65535
        %v2255 = vshra.s32 %v2253, 16
        %v2256 = vcvt.s32.f32 %v2254
        %v2257 = vcvt.s32.f32 %v2255
        %2258 = vmin.xlane.f32.xlu0 %v2257
        %v2259 = vpop.xlane.xlu0 %2258
        %vm2260 = vcmp.eq.f32.partialorder %v2257, %v2259
        %v2261 = vsel %vm2260, %v2256, inf
        %2262 = vmin.xlane.f32.xlu0 %v2261
        %v2263 = vpop.xlane.xlu0 %2262
        %v2264 = vcvt.f32.s32 %v2263
        %v2265 = vcvt.f32.s32 %v2259
        %v2266 = vshll.u32 %v2265, 16
        %v2267 = vadd.s32 %v2266, %v2264
        %vm2268 = vcmp.lt.s32.totalorder %v2154, %v2155
        %v2269 = vsel %vm2268, %v2154, %v2155
        %v2270 = vand.u32 %v2269, 65535
        %v2271 = vshra.s32 %v2269, 16
        %v2272 = vcvt.s32.f32 %v2270
        %v2273 = vcvt.s32.f32 %v2271
        %2274 = vmin.xlane.f32.xlu0 %v2273
        %v2275 = vpop.xlane.xlu0 %2274
        %vm2276 = vcmp.eq.f32.partialorder %v2273, %v2275
        %v2277 = vsel %vm2276, %v2272, inf
        %2278 = vmin.xlane.f32.xlu0 %v2277
        %v2279 = vpop.xlane.xlu0 %2278
        %v2280 = vcvt.f32.s32 %v2279
        %v2281 = vcvt.f32.s32 %v2275
        %v2282 = vshll.u32 %v2281, 16
        %v2283 = vadd.s32 %v2282, %v2280
        %vm2284 = vcmp.eq.s32.totalorder %v1614, %v2171
        %vm2285 = vcmp.eq.s32.totalorder %v1615, %v2171
        %vm2286 = vcmp.eq.s32.totalorder %v1614, %v2187
        %vm2287 = vcmp.eq.s32.totalorder %v1615, %v2187
        %vm2288 = vcmp.eq.s32.totalorder %v1614, %v2203
        %vm2289 = vcmp.eq.s32.totalorder %v1615, %v2203
        %vm2290 = vcmp.eq.s32.totalorder %v1614, %v2219
        %vm2291 = vcmp.eq.s32.totalorder %v1615, %v2219
        %vm2292 = vcmp.eq.s32.totalorder %v1614, %v2235
        %vm2293 = vcmp.eq.s32.totalorder %v1615, %v2235
        %vm2294 = vcmp.eq.s32.totalorder %v1614, %v2251
        %vm2295 = vcmp.eq.s32.totalorder %v1615, %v2251
        %vm2296 = vcmp.eq.s32.totalorder %v1614, %v2267
        %vm2297 = vcmp.eq.s32.totalorder %v1615, %v2267
        %vm2298 = vcmp.eq.s32.totalorder %v1614, %v2283
        %vm2299 = vcmp.eq.s32.totalorder %v1615, %v2283
        %v2300 = vsel %vm2284, -inf, %v2058
        %v2301 = vsel %vm2285, -inf, %v2059
        %v2302 = vsel %vm2286, -inf, %v2060
        %v2303 = vsel %vm2287, -inf, %v2061
        %v2304 = vsel %vm2288, -inf, %v2062
        %v2305 = vsel %vm2289, -inf, %v2063
        %v2306 = vsel %vm2290, -inf, %v2064
        %v2307 = vsel %vm2291, -inf, %v2065
        %v2308 = vsel %vm2292, -inf, %v2066
        %v2309 = vsel %vm2293, -inf, %v2067
        %v2310 = vsel %vm2294, -inf, %v2068
        %v2311 = vsel %vm2295, -inf, %v2069
        %v2312 = vsel %vm2296, -inf, %v2070
        %v2313 = vsel %vm2297, -inf, %v2071
        %v2314 = vsel %vm2298, -inf, %v2072
        %v2315 = vsel %vm2299, -inf, %v2073
        %vm2324 = vcmask 23568
        %2325 = vst.msk [vmem:[%s309] sm:$0xff] %vm2324, %v2102
        %2326 = vst.msk [vmem:[%s309 + $0x8] sm:$0xff] %vm2324, %v2105
        %2327 = vst.msk [vmem:[%s309 + $0x10] sm:$0xff] %vm2324, %v2108
        %2328 = vst.msk [vmem:[%s309 + $0x18] sm:$0xff] %vm2324, %v2111
        %2329 = vst.msk [vmem:[%s309 + $0x20] sm:$0xff] %vm2324, %v2114
        %2330 = vst.msk [vmem:[%s309 + $0x28] sm:$0xff] %vm2324, %v2117
        %2331 = vst.msk [vmem:[%s309 + $0x30] sm:$0xff] %vm2324, %v2120
        %2332 = vst.msk [vmem:[%s309 + $0x38] sm:$0xff] %vm2324, %v2123
        %vm2333 = vcmask 56368
        %2334 = vst.msk [vmem:[%s309] sm:$0xff] %vm2333, %v2171
        %2335 = vst.msk [vmem:[%s309 + $0x8] sm:$0xff] %vm2333, %v2187
        %2336 = vst.msk [vmem:[%s309 + $0x10] sm:$0xff] %vm2333, %v2203
        %2337 = vst.msk [vmem:[%s309 + $0x18] sm:$0xff] %vm2333, %v2219
        %2338 = vst.msk [vmem:[%s309 + $0x20] sm:$0xff] %vm2333, %v2235
        %2339 = vst.msk [vmem:[%s309 + $0x28] sm:$0xff] %vm2333, %v2251
        %2340 = vst.msk [vmem:[%s309 + $0x30] sm:$0xff] %vm2333, %v2267
        %2341 = vst.msk [vmem:[%s309 + $0x38] sm:$0xff] %vm2333, %v2283
        %v2342 = vmax.f32 %v2300, %v2301
        %2343 = vmax.xlane.f32.xlu0 %v2342
        %v2344 = vpop.xlane.xlu0 %2343
        %v2345 = vmax.f32 %v2302, %v2303
        %2346 = vmax.xlane.f32.xlu0 %v2345
        %v2347 = vpop.xlane.xlu0 %2346
        %v2348 = vmax.f32 %v2304, %v2305
        %2349 = vmax.xlane.f32.xlu0 %v2348
        %v2350 = vpop.xlane.xlu0 %2349
        %v2351 = vmax.f32 %v2306, %v2307
        %2352 = vmax.xlane.f32.xlu0 %v2351
        %v2353 = vpop.xlane.xlu0 %2352
        %v2354 = vmax.f32 %v2308, %v2309
        %2355 = vmax.xlane.f32.xlu0 %v2354
        %v2356 = vpop.xlane.xlu0 %2355
        %v2357 = vmax.f32 %v2310, %v2311
        %2358 = vmax.xlane.f32.xlu0 %v2357
        %v2359 = vpop.xlane.xlu0 %2358
        %v2360 = vmax.f32 %v2312, %v2313
        %2361 = vmax.xlane.f32.xlu0 %v2360
        %v2362 = vpop.xlane.xlu0 %2361
        %v2363 = vmax.f32 %v2314, %v2315
        %2364 = vmax.xlane.f32.xlu0 %v2363
        %v2365 = vpop.xlane.xlu0 %2364
        %vm2366 = vcmp.eq.f32.partialorder %v2300, %v2344
        %vm2367 = vcmp.eq.f32.partialorder %v2301, %v2344
        %vm2368 = vcmp.eq.f32.partialorder %v2302, %v2347
        %vm2369 = vcmp.eq.f32.partialorder %v2303, %v2347
        %vm2370 = vcmp.eq.f32.partialorder %v2304, %v2350
        %vm2371 = vcmp.eq.f32.partialorder %v2305, %v2350
        %vm2372 = vcmp.eq.f32.partialorder %v2306, %v2353
        %vm2373 = vcmp.eq.f32.partialorder %v2307, %v2353
        %vm2374 = vcmp.eq.f32.partialorder %v2308, %v2356
        %vm2375 = vcmp.eq.f32.partialorder %v2309, %v2356
        %vm2376 = vcmp.eq.f32.partialorder %v2310, %v2359
        %vm2377 = vcmp.eq.f32.partialorder %v2311, %v2359
        %vm2378 = vcmp.eq.f32.partialorder %v2312, %v2362
        %vm2379 = vcmp.eq.f32.partialorder %v2313, %v2362
        %vm2380 = vcmp.eq.f32.partialorder %v2314, %v2365
        %vm2381 = vcmp.eq.f32.partialorder %v2315, %v2365
        %v2382 = vsel %vm2366, %v1614, 256
        %v2383 = vsel %vm2367, %v1615, 256
        %v2384 = vsel %vm2368, %v1614, 256
        %v2385 = vsel %vm2369, %v1615, 256
        %v2386 = vsel %vm2370, %v1614, 256
        %v2387 = vsel %vm2371, %v1615, 256
        %v2388 = vsel %vm2372, %v1614, 256
        %v2389 = vsel %vm2373, %v1615, 256
        %v2390 = vsel %vm2374, %v1614, 256
        %v2391 = vsel %vm2375, %v1615, 256
        %v2392 = vsel %vm2376, %v1614, 256
        %v2393 = vsel %vm2377, %v1615, 256
        %v2394 = vsel %vm2378, %v1614, 256
        %v2395 = vsel %vm2379, %v1615, 256
        %v2396 = vsel %vm2380, %v1614, 256
        %v2397 = vsel %vm2381, %v1615, 256
        %vm2398 = vcmp.lt.s32.totalorder %v2382, %v2383
        %v2399 = vsel %vm2398, %v2382, %v2383
        %v2400 = vand.u32 %v2399, 65535
        %v2401 = vshra.s32 %v2399, 16
        %v2402 = vcvt.s32.f32 %v2400
        %v2403 = vcvt.s32.f32 %v2401
        %2404 = vmin.xlane.f32.xlu0 %v2403
        %v2405 = vpop.xlane.xlu0 %2404
        %vm2406 = vcmp.eq.f32.partialorder %v2403, %v2405
        %v2407 = vsel %vm2406, %v2402, inf
        %2408 = vmin.xlane.f32.xlu0 %v2407
        %v2409 = vpop.xlane.xlu0 %2408
        %v2410 = vcvt.f32.s32 %v2409
        %v2411 = vcvt.f32.s32 %v2405
        %v2412 = vshll.u32 %v2411, 16
        %v2413 = vadd.s32 %v2412, %v2410
        %vm2414 = vcmp.lt.s32.totalorder %v2384, %v2385
        %v2415 = vsel %vm2414, %v2384, %v2385
        %v2416 = vand.u32 %v2415, 65535
        %v2417 = vshra.s32 %v2415, 16
        %v2418 = vcvt.s32.f32 %v2416
        %v2419 = vcvt.s32.f32 %v2417
        %2420 = vmin.xlane.f32.xlu0 %v2419
        %v2421 = vpop.xlane.xlu0 %2420
        %vm2422 = vcmp.eq.f32.partialorder %v2419, %v2421
        %v2423 = vsel %vm2422, %v2418, inf
        %2424 = vmin.xlane.f32.xlu0 %v2423
        %v2425 = vpop.xlane.xlu0 %2424
        %v2426 = vcvt.f32.s32 %v2425
        %v2427 = vcvt.f32.s32 %v2421
        %v2428 = vshll.u32 %v2427, 16
        %v2429 = vadd.s32 %v2428, %v2426
        %vm2430 = vcmp.lt.s32.totalorder %v2386, %v2387
        %v2431 = vsel %vm2430, %v2386, %v2387
        %v2432 = vand.u32 %v2431, 65535
        %v2433 = vshra.s32 %v2431, 16
        %v2434 = vcvt.s32.f32 %v2432
        %v2435 = vcvt.s32.f32 %v2433
        %2436 = vmin.xlane.f32.xlu0 %v2435
        %v2437 = vpop.xlane.xlu0 %2436
        %vm2438 = vcmp.eq.f32.partialorder %v2435, %v2437
        %v2439 = vsel %vm2438, %v2434, inf
        %2440 = vmin.xlane.f32.xlu0 %v2439
        %v2441 = vpop.xlane.xlu0 %2440
        %v2442 = vcvt.f32.s32 %v2441
        %v2443 = vcvt.f32.s32 %v2437
        %v2444 = vshll.u32 %v2443, 16
        %v2445 = vadd.s32 %v2444, %v2442
        %vm2446 = vcmp.lt.s32.totalorder %v2388, %v2389
        %v2447 = vsel %vm2446, %v2388, %v2389
        %v2448 = vand.u32 %v2447, 65535
        %v2449 = vshra.s32 %v2447, 16
        %v2450 = vcvt.s32.f32 %v2448
        %v2451 = vcvt.s32.f32 %v2449
        %2452 = vmin.xlane.f32.xlu0 %v2451
        %v2453 = vpop.xlane.xlu0 %2452
        %vm2454 = vcmp.eq.f32.partialorder %v2451, %v2453
        %v2455 = vsel %vm2454, %v2450, inf
        %2456 = vmin.xlane.f32.xlu0 %v2455
        %v2457 = vpop.xlane.xlu0 %2456
        %v2458 = vcvt.f32.s32 %v2457
        %v2459 = vcvt.f32.s32 %v2453
        %v2460 = vshll.u32 %v2459, 16
        %v2461 = vadd.s32 %v2460, %v2458
        %vm2462 = vcmp.lt.s32.totalorder %v2390, %v2391
        %v2463 = vsel %vm2462, %v2390, %v2391
        %v2464 = vand.u32 %v2463, 65535
        %v2465 = vshra.s32 %v2463, 16
        %v2466 = vcvt.s32.f32 %v2464
        %v2467 = vcvt.s32.f32 %v2465
        %2468 = vmin.xlane.f32.xlu0 %v2467
        %v2469 = vpop.xlane.xlu0 %2468
        %vm2470 = vcmp.eq.f32.partialorder %v2467, %v2469
        %v2471 = vsel %vm2470, %v2466, inf
        %2472 = vmin.xlane.f32.xlu0 %v2471
        %v2473 = vpop.xlane.xlu0 %2472
        %v2474 = vcvt.f32.s32 %v2473
        %v2475 = vcvt.f32.s32 %v2469
        %v2476 = vshll.u32 %v2475, 16
        %v2477 = vadd.s32 %v2476, %v2474
        %vm2478 = vcmp.lt.s32.totalorder %v2392, %v2393
        %v2479 = vsel %vm2478, %v2392, %v2393
        %v2480 = vand.u32 %v2479, 65535
        %v2481 = vshra.s32 %v2479, 16
        %v2482 = vcvt.s32.f32 %v2480
        %v2483 = vcvt.s32.f32 %v2481
        %2484 = vmin.xlane.f32.xlu0 %v2483
        %v2485 = vpop.xlane.xlu0 %2484
        %vm2486 = vcmp.eq.f32.partialorder %v2483, %v2485
        %v2487 = vsel %vm2486, %v2482, inf
        %2488 = vmin.xlane.f32.xlu0 %v2487
        %v2489 = vpop.xlane.xlu0 %2488
        %v2490 = vcvt.f32.s32 %v2489
        %v2491 = vcvt.f32.s32 %v2485
        %v2492 = vshll.u32 %v2491, 16
        %v2493 = vadd.s32 %v2492, %v2490
        %vm2494 = vcmp.lt.s32.totalorder %v2394, %v2395
        %v2495 = vsel %vm2494, %v2394, %v2395
        %v2496 = vand.u32 %v2495, 65535
        %v2497 = vshra.s32 %v2495, 16
        %v2498 = vcvt.s32.f32 %v2496
        %v2499 = vcvt.s32.f32 %v2497
        %2500 = vmin.xlane.f32.xlu0 %v2499
        %v2501 = vpop.xlane.xlu0 %2500
        %vm2502 = vcmp.eq.f32.partialorder %v2499, %v2501
        %v2503 = vsel %vm2502, %v2498, inf
        %2504 = vmin.xlane.f32.xlu0 %v2503
        %v2505 = vpop.xlane.xlu0 %2504
        %v2506 = vcvt.f32.s32 %v2505
        %v2507 = vcvt.f32.s32 %v2501
        %v2508 = vshll.u32 %v2507, 16
        %v2509 = vadd.s32 %v2508, %v2506
        %vm2510 = vcmp.lt.s32.totalorder %v2396, %v2397
        %v2511 = vsel %vm2510, %v2396, %v2397
        %v2512 = vand.u32 %v2511, 65535
        %v2513 = vshra.s32 %v2511, 16
        %v2514 = vcvt.s32.f32 %v2512
        %v2515 = vcvt.s32.f32 %v2513
        %2516 = vmin.xlane.f32.xlu0 %v2515
        %v2517 = vpop.xlane.xlu0 %2516
        %vm2518 = vcmp.eq.f32.partialorder %v2515, %v2517
        %v2519 = vsel %vm2518, %v2514, inf
        %2520 = vmin.xlane.f32.xlu0 %v2519
        %v2521 = vpop.xlane.xlu0 %2520
        %v2522 = vcvt.f32.s32 %v2521
        %v2523 = vcvt.f32.s32 %v2517
        %v2524 = vshll.u32 %v2523, 16
        %v2525 = vadd.s32 %v2524, %v2522
        %vm2526 = vcmp.eq.s32.totalorder %v1614, %v2413
        %vm2527 = vcmp.eq.s32.totalorder %v1615, %v2413
        %vm2528 = vcmp.eq.s32.totalorder %v1614, %v2429
        %vm2529 = vcmp.eq.s32.totalorder %v1615, %v2429
        %vm2530 = vcmp.eq.s32.totalorder %v1614, %v2445
        %vm2531 = vcmp.eq.s32.totalorder %v1615, %v2445
        %vm2532 = vcmp.eq.s32.totalorder %v1614, %v2461
        %vm2533 = vcmp.eq.s32.totalorder %v1615, %v2461
        %vm2534 = vcmp.eq.s32.totalorder %v1614, %v2477
        %vm2535 = vcmp.eq.s32.totalorder %v1615, %v2477
        %vm2536 = vcmp.eq.s32.totalorder %v1614, %v2493
        %vm2537 = vcmp.eq.s32.totalorder %v1615, %v2493
        %vm2538 = vcmp.eq.s32.totalorder %v1614, %v2509
        %vm2539 = vcmp.eq.s32.totalorder %v1615, %v2509
        %vm2540 = vcmp.eq.s32.totalorder %v1614, %v2525
        %vm2541 = vcmp.eq.s32.totalorder %v1615, %v2525
        %v2542 = vsel %vm2526, -inf, %v2300
        %v2543 = vsel %vm2527, -inf, %v2301
        %v2544 = vsel %vm2528, -inf, %v2302
        %v2545 = vsel %vm2529, -inf, %v2303
        %v2546 = vsel %vm2530, -inf, %v2304
        %v2547 = vsel %vm2531, -inf, %v2305
        %v2548 = vsel %vm2532, -inf, %v2306
        %v2549 = vsel %vm2533, -inf, %v2307
        %v2550 = vsel %vm2534, -inf, %v2308
        %v2551 = vsel %vm2535, -inf, %v2309
        %v2552 = vsel %vm2536, -inf, %v2310
        %v2553 = vsel %vm2537, -inf, %v2311
        %v2554 = vsel %vm2538, -inf, %v2312
        %v2555 = vsel %vm2539, -inf, %v2313
        %v2556 = vsel %vm2540, -inf, %v2314
        %v2557 = vsel %vm2541, -inf, %v2315
        %vm2566 = vcmask 31768
        %2567 = vst.msk [vmem:[%s309] sm:$0xff] %vm2566, %v2344
        %2568 = vst.msk [vmem:[%s309 + $0x8] sm:$0xff] %vm2566, %v2347
        %2569 = vst.msk [vmem:[%s309 + $0x10] sm:$0xff] %vm2566, %v2350
        %2570 = vst.msk [vmem:[%s309 + $0x18] sm:$0xff] %vm2566, %v2353
        %2571 = vst.msk [vmem:[%s309 + $0x20] sm:$0xff] %vm2566, %v2356
        %2572 = vst.msk [vmem:[%s309 + $0x28] sm:$0xff] %vm2566, %v2359
        %2573 = vst.msk [vmem:[%s309 + $0x30] sm:$0xff] %vm2566, %v2362
        %2574 = vst.msk [vmem:[%s309 + $0x38] sm:$0xff] %vm2566, %v2365
        %vm2575 = vcmask 64568
        %2576 = vst.msk [vmem:[%s309] sm:$0xff] %vm2575, %v2413
        %2577 = vst.msk [vmem:[%s309 + $0x8] sm:$0xff] %vm2575, %v2429
        %2578 = vst.msk [vmem:[%s309 + $0x10] sm:$0xff] %vm2575, %v2445
        %2579 = vst.msk [vmem:[%s309 + $0x18] sm:$0xff] %vm2575, %v2461
        %2580 = vst.msk [vmem:[%s309 + $0x20] sm:$0xff] %vm2575, %v2477
        %2581 = vst.msk [vmem:[%s309 + $0x28] sm:$0xff] %vm2575, %v2493
        %2582 = vst.msk [vmem:[%s309 + $0x30] sm:$0xff] %vm2575, %v2509
        %2583 = vst.msk [vmem:[%s309 + $0x38] sm:$0xff] %vm2575, %v2525
        %vm2584 = vcmp.lt.f32.partialorder %v2542, %v1552
        %vm2585 = vcmp.lt.f32.partialorder %v2543, %v1554
        %vm2586 = vcmp.lt.f32.partialorder %v2544, %v1559
        %vm2587 = vcmp.lt.f32.partialorder %v2545, %v1561
        %vm2588 = vcmp.lt.f32.partialorder %v2546, %v1566
        %vm2589 = vcmp.lt.f32.partialorder %v2547, %v1568
        %vm2590 = vcmp.lt.f32.partialorder %v2548, %v1573
        %vm2591 = vcmp.lt.f32.partialorder %v2549, %v1575
        %vm2592 = vcmp.lt.f32.partialorder %v2550, %v1580
        %vm2593 = vcmp.lt.f32.partialorder %v2551, %v1582
        %vm2594 = vcmp.lt.f32.partialorder %v2552, %v1587
        %vm2595 = vcmp.lt.f32.partialorder %v2553, %v1589
        %vm2596 = vcmp.lt.f32.partialorder %v2554, %v1594
        %vm2597 = vcmp.lt.f32.partialorder %v2555, %v1596
        %vm2598 = vcmp.lt.f32.partialorder %v2556, %v1601
        %vm2599 = vcmp.lt.f32.partialorder %v2557, %v1603
        %v2600 = vsel %vm2584, %v1552, 0.0
        %v2601 = vsel %vm2585, %v1554, 0.0
        %v2602 = vsel %vm2586, %v1559, 0.0
        %v2603 = vsel %vm2587, %v1561, 0.0
        %v2604 = vsel %vm2588, %v1566, 0.0
        %v2605 = vsel %vm2589, %v1568, 0.0
        %v2606 = vsel %vm2590, %v1573, 0.0
        %v2607 = vsel %vm2591, %v1575, 0.0
        %v2608 = vsel %vm2592, %v1580, 0.0
        %v2609 = vsel %vm2593, %v1582, 0.0
        %v2610 = vsel %vm2594, %v1587, 0.0
        %v2611 = vsel %vm2595, %v1589, 0.0
        %v2612 = vsel %vm2596, %v1594, 0.0
        %v2613 = vsel %vm2597, %v1596, 0.0
        %v2614 = vsel %vm2598, %v1601, 0.0
        %v2615 = vsel %vm2599, %v1603, 0.0
        %2616 = vmatprep.subr.mxu0 0.0
        %v2617 = vand.u32 %v343, 4294901760
        %2618 = vmatpush1.msra.mxu0 %v2617
        %2619 = vmatprep.subr.mxu0 0.0
        %v2620 = vand.u32 %v344, 4294901760
        %2621 = vmatpush1.msra.mxu0 %v2620
        %2622 = vmatprep.subr.mxu0 0.0
        %v2623 = vand.u32 %v345, 4294901760
        %2624 = vmatpush1.msra.mxu0 %v2623
        %2625 = vmatprep.subr.mxu0 0.0
        %v2626 = vand.u32 %v346, 4294901760
        %2627 = vmatpush1.msra.mxu0 %v2626
        %2628 = vmatprep.subr.mxu0 0.0
        %v2629 = vand.u32 %v347, 4294901760
        %2630 = vmatpush1.msra.mxu0 %v2629
        %2631 = vmatprep.subr.mxu0 0.0
        %v2632 = vand.u32 %v348, 4294901760
        %2633 = vmatpush1.msra.mxu0 %v2632
        %2634 = vmatprep.subr.mxu0 0.0
        %v2635 = vand.u32 %v349, 4294901760
        %2636 = vmatpush1.msra.mxu0 %v2635
        %2637 = vmatprep.subr.mxu0 0.0
        %v2638 = vand.u32 %v350, 4294901760
        %2639 = vmatpush1.msra.mxu0 %v2638
        %2640 = vmatprep.subr.mxu0 0.0
        %v2641 = vand.u32 %v351, 4294901760
        %2642 = vmatpush1.msra.mxu0 %v2641
        %2643 = vmatprep.subr.mxu0 0.0
        %v2644 = vand.u32 %v352, 4294901760
        %2645 = vmatpush1.msra.mxu0 %v2644
        %2646 = vmatprep.subr.mxu0 0.0
        %v2647 = vand.u32 %v353, 4294901760
        %2648 = vmatpush1.msra.mxu0 %v2647
        %2649 = vmatprep.subr.mxu0 0.0
        %v2650 = vand.u32 %v354, 4294901760
        %2651 = vmatpush1.msra.mxu0 %v2650
        %2652 = vmatprep.subr.mxu0 0.0
        %v2653 = vand.u32 %v355, 4294901760
        %2654 = vmatpush1.msra.mxu0 %v2653
        %2655 = vmatprep.subr.mxu0 0.0
        %v2656 = vand.u32 %v356, 4294901760
        %2657 = vmatpush1.msra.mxu0 %v2656
        %2658 = vmatprep.subr.mxu0 0.0
        %v2659 = vand.u32 %v357, 4294901760
        %2660 = vmatpush1.msra.mxu0 %v2659
        %2661 = vmatprep.subr.mxu0 0.0
        %v2662 = vand.u32 %v358, 4294901760
        %2663 = vmatpush1.msra.mxu0 %v2662
        %2664 = vmatprep.subr.mxu0 0.0
        %v2665 = vand.u32 %v359, 4294901760
        %2666 = vmatpush1.msra.mxu0 %v2665
        %2667 = vmatprep.subr.mxu0 0.0
        %v2668 = vand.u32 %v360, 4294901760
        %2669 = vmatpush1.msra.mxu0 %v2668
        %2670 = vmatprep.subr.mxu0 0.0
        %v2671 = vand.u32 %v361, 4294901760
        %2672 = vmatpush1.msra.mxu0 %v2671
        %2673 = vmatprep.subr.mxu0 0.0
        %v2674 = vand.u32 %v362, 4294901760
        %2675 = vmatpush1.msra.mxu0 %v2674
        %2676 = vmatprep.subr.mxu0 0.0
        %v2677 = vand.u32 %v363, 4294901760
        %2678 = vmatpush1.msra.mxu0 %v2677
        %2679 = vmatprep.subr.mxu0 0.0
        %v2680 = vand.u32 %v364, 4294901760
        %2681 = vmatpush1.msra.mxu0 %v2680
        %2682 = vmatprep.subr.mxu0 0.0
        %v2683 = vand.u32 %v365, 4294901760
        %2684 = vmatpush1.msra.mxu0 %v2683
        %2685 = vmatprep.subr.mxu0 0.0
        %v2686 = vand.u32 %v366, 4294901760
        %2687 = vmatpush1.msra.mxu0 %v2686
        %2688 = vmatprep.subr.mxu0 0.0
        %v2689 = vand.u32 %v367, 4294901760
        %2690 = vmatpush1.msra.mxu0 %v2689
        %2691 = vmatprep.subr.mxu0 0.0
        %v2692 = vand.u32 %v368, 4294901760
        %2693 = vmatpush1.msra.mxu0 %v2692
        %2694 = vmatprep.subr.mxu0 0.0
        %v2695 = vand.u32 %v369, 4294901760
        %2696 = vmatpush1.msra.mxu0 %v2695
        %2697 = vmatprep.subr.mxu0 0.0
        %v2698 = vand.u32 %v370, 4294901760
        %2699 = vmatpush1.msra.mxu0 %v2698
        %2700 = vmatprep.subr.mxu0 0.0
        %v2701 = vand.u32 %v371, 4294901760
        %2702 = vmatpush1.msra.mxu0 %v2701
        %2703 = vmatprep.subr.mxu0 0.0
        %v2704 = vand.u32 %v372, 4294901760
        %2705 = vmatpush1.msra.mxu0 %v2704
        %2706 = vmatprep.subr.mxu0 0.0
        %v2707 = vand.u32 %v373, 4294901760
        %2708 = vmatpush1.msra.mxu0 %v2707
        %2709 = vmatprep.subr.mxu0 0.0
        %v2710 = vand.u32 %v374, 4294901760
        %2711 = vmatpush1.msra.mxu0 %v2710
        %v2712 = vand.u32 %v2601, 4294901760
        %v2713 = vsub.f32 %v2601, %v2712
        %v2714 = vand.u32 %v2713, 4294901760
        %v2715 = vsub.f32 %v2713, %v2714
        %v2716 = vand.u32 %v2715, 4294901760
        %2717 = vmatprep.mubr.f32.mxu0 %v2716
        %v2718 = vand.u32 %v2600, 4294901760
        %v2719 = vsub.f32 %v2600, %v2718
        %v2720 = vand.u32 %v2719, 4294901760
        %v2721 = vsub.f32 %v2719, %v2720
        %v2722 = vand.u32 %v2721, 4294901760
        %2723 = vmatmul.mubr.f32.gmra.mrb[0].mxu0 %v2722
        %v2724 = vpop.f32.mrb[0].mxu0
        %v2725 = vadd.f32 %v333, %v2724
        %v2726 = vpop.f32.mrb[0].mxu0
        %v2727 = vand.u32 %v2603, 4294901760
        %v2728 = vsub.f32 %v2603, %v2727
        %v2729 = vand.u32 %v2728, 4294901760
        %v2730 = vsub.f32 %v2728, %v2729
        %v2731 = vand.u32 %v2730, 4294901760
        %2732 = vmatprep.mubr.f32.mxu0 %v2731
        %v2733 = vand.u32 %v2602, 4294901760
        %v2734 = vsub.f32 %v2602, %v2733
        %v2735 = vand.u32 %v2734, 4294901760
        %v2736 = vsub.f32 %v2734, %v2735
        %v2737 = vand.u32 %v2736, 4294901760
        %2738 = vmatmul.mubr.f32.gmra.mrb[0].mxu0 %v2737
        %v2739 = vpop.f32.mrb[0].mxu0
        %v2740 = vadd.f32 %v333, %v2739
        %v2741 = vpop.f32.mrb[0].mxu0
        %v2742 = vand.u32 %v2605, 4294901760
        %v2743 = vsub.f32 %v2605, %v2742
        %v2744 = vand.u32 %v2743, 4294901760
        %v2745 = vsub.f32 %v2743, %v2744
        %v2746 = vand.u32 %v2745, 4294901760
        %2747 = vmatprep.mubr.f32.mxu0 %v2746
        %v2748 = vand.u32 %v2604, 4294901760
        %v2749 = vsub.f32 %v2604, %v2748
        %v2750 = vand.u32 %v2749, 4294901760
        %v2751 = vsub.f32 %v2749, %v2750
        %v2752 = vand.u32 %v2751, 4294901760
        %2753 = vmatmul.mubr.f32.gmra.mrb[0].mxu0 %v2752
        %v2754 = vpop.f32.mrb[0].mxu0
        %v2755 = vadd.f32 %v333, %v2754
        %v2756 = vpop.f32.mrb[0].mxu0
        %v2757 = vand.u32 %v2607, 4294901760
        %v2758 = vsub.f32 %v2607, %v2757
        %v2759 = vand.u32 %v2758, 4294901760
        %v2760 = vsub.f32 %v2758, %v2759
        %v2761 = vand.u32 %v2760, 4294901760
        %2762 = vmatprep.mubr.f32.mxu0 %v2761
        %v2763 = vand.u32 %v2606, 4294901760
        %v2764 = vsub.f32 %v2606, %v2763
        %v2765 = vand.u32 %v2764, 4294901760
        %v2766 = vsub.f32 %v2764, %v2765
        %v2767 = vand.u32 %v2766, 4294901760
        %2768 = vmatmul.mubr.f32.gmra.mrb[0].mxu0 %v2767
        %v2769 = vpop.f32.mrb[0].mxu0
        %v2770 = vadd.f32 %v333, %v2769
        %v2771 = vpop.f32.mrb[0].mxu0
        %v2772 = vand.u32 %v2609, 4294901760
        %v2773 = vsub.f32 %v2609, %v2772
        %v2774 = vand.u32 %v2773, 4294901760
        %v2775 = vsub.f32 %v2773, %v2774
        %v2776 = vand.u32 %v2775, 4294901760
        %2777 = vmatprep.mubr.f32.mxu0 %v2776
        %v2778 = vand.u32 %v2608, 4294901760
        %v2779 = vsub.f32 %v2608, %v2778
        %v2780 = vand.u32 %v2779, 4294901760
        %v2781 = vsub.f32 %v2779, %v2780
        %v2782 = vand.u32 %v2781, 4294901760
        %2783 = vmatmul.mubr.f32.gmra.mrb[0].mxu0 %v2782
        %v2784 = vpop.f32.mrb[0].mxu0
        %v2785 = vadd.f32 %v333, %v2784
        %v2786 = vpop.f32.mrb[0].mxu0
        %v2787 = vand.u32 %v2611, 4294901760
        %v2788 = vsub.f32 %v2611, %v2787
        %v2789 = vand.u32 %v2788, 4294901760
        %v2790 = vsub.f32 %v2788, %v2789
        %v2791 = vand.u32 %v2790, 4294901760
        %2792 = vmatprep.mubr.f32.mxu0 %v2791
        %v2793 = vand.u32 %v2610, 4294901760
        %v2794 = vsub.f32 %v2610, %v2793
        %v2795 = vand.u32 %v2794, 4294901760
        %v2796 = vsub.f32 %v2794, %v2795
        %v2797 = vand.u32 %v2796, 4294901760
        %2798 = vmatmul.mubr.f32.gmra.mrb[0].mxu0 %v2797
        %v2799 = vpop.f32.mrb[0].mxu0
        %v2800 = vadd.f32 %v333, %v2799
        %v2801 = vpop.f32.mrb[0].mxu0
        %v2802 = vand.u32 %v2613, 4294901760
        %v2803 = vsub.f32 %v2613, %v2802
        %v2804 = vand.u32 %v2803, 4294901760
        %v2805 = vsub.f32 %v2803, %v2804
        %v2806 = vand.u32 %v2805, 4294901760
        %2807 = vmatprep.mubr.f32.mxu0 %v2806
        %v2808 = vand.u32 %v2612, 4294901760
        %v2809 = vsub.f32 %v2612, %v2808
        %v2810 = vand.u32 %v2809, 4294901760
        %v2811 = vsub.f32 %v2809, %v2810
        %v2812 = vand.u32 %v2811, 4294901760
        %2813 = vmatmul.mubr.f32.gmra.mrb[0].mxu0 %v2812
        %v2814 = vpop.f32.mrb[0].mxu0
        %v2815 = vadd.f32 %v333, %v2814
        %v2816 = vpop.f32.mrb[0].mxu0
        %v2817 = vand.u32 %v2615, 4294901760
        %v2818 = vsub.f32 %v2615, %v2817
        %v2819 = vand.u32 %v2818, 4294901760
        %v2820 = vsub.f32 %v2818, %v2819
        %v2821 = vand.u32 %v2820, 4294901760
        %2822 = vmatprep.mubr.f32.mxu0 %v2821
        %v2823 = vand.u32 %v2614, 4294901760
        %v2824 = vsub.f32 %v2614, %v2823
        %v2825 = vand.u32 %v2824, 4294901760
        %v2826 = vsub.f32 %v2824, %v2825
        %v2827 = vand.u32 %v2826, 4294901760
        %2828 = vmatmul.mubr.f32.gmra.mrb[0].mxu0 %v2827
        %v2829 = vpop.f32.mrb[0].mxu0
        %v2830 = vadd.f32 %v333, %v2829
        %v2831 = vpop.f32.mrb[0].mxu0
        %2832 = vdwg.mxu0
        %2833 = vmatprep.subr.mxu0 0.0
        %v2834 = vand.u32 %v343, 4294901760
        %v2835 = vsub.f32 %v343, %v2834
        %v2836 = vand.u32 %v2835, 4294901760
        %v2837 = vsub.f32 %v2835, %v2836
        %v2838 = vand.u32 %v2837, 4294901760
        %2839 = vmatpush1.msra.mxu0 %v2838
        %2840 = vmatprep.subr.mxu0 0.0
        %v2841 = vand.u32 %v344, 4294901760
        %v2842 = vsub.f32 %v344, %v2841
        %v2843 = vand.u32 %v2842, 4294901760
        %v2844 = vsub.f32 %v2842, %v2843
        %v2845 = vand.u32 %v2844, 4294901760
        %2846 = vmatpush1.msra.mxu0 %v2845
        %2847 = vmatprep.subr.mxu0 0.0
        %v2848 = vand.u32 %v345, 4294901760
        %v2849 = vsub.f32 %v345, %v2848
        %v2850 = vand.u32 %v2849, 4294901760
        %v2851 = vsub.f32 %v2849, %v2850
        %v2852 = vand.u32 %v2851, 4294901760
        %2853 = vmatpush1.msra.mxu0 %v2852
        %2854 = vmatprep.subr.mxu0 0.0
        %v2855 = vand.u32 %v346, 4294901760
        %v2856 = vsub.f32 %v346, %v2855
        %v2857 = vand.u32 %v2856, 4294901760
        %v2858 = vsub.f32 %v2856, %v2857
        %v2859 = vand.u32 %v2858, 4294901760
        %2860 = vmatpush1.msra.mxu0 %v2859
        %2861 = vmatprep.subr.mxu0 0.0
        %v2862 = vand.u32 %v347, 4294901760
        %v2863 = vsub.f32 %v347, %v2862
        %v2864 = vand.u32 %v2863, 4294901760
        %v2865 = vsub.f32 %v2863, %v2864
        %v2866 = vand.u32 %v2865, 4294901760
        %2867 = vmatpush1.msra.mxu0 %v2866
        %2868 = vmatprep.subr.mxu0 0.0
        %v2869 = vand.u32 %v348, 4294901760
        %v2870 = vsub.f32 %v348, %v2869
        %v2871 = vand.u32 %v2870, 4294901760
        %v2872 = vsub.f32 %v2870, %v2871
        %v2873 = vand.u32 %v2872, 4294901760
        %2874 = vmatpush1.msra.mxu0 %v2873
        %2875 = vmatprep.subr.mxu0 0.0
        %v2876 = vand.u32 %v349, 4294901760
        %v2877 = vsub.f32 %v349, %v2876
        %v2878 = vand.u32 %v2877, 4294901760
        %v2879 = vsub.f32 %v2877, %v2878
        %v2880 = vand.u32 %v2879, 4294901760
        %2881 = vmatpush1.msra.mxu0 %v2880
        %2882 = vmatprep.subr.mxu0 0.0
        %v2883 = vand.u32 %v350, 4294901760
        %v2884 = vsub.f32 %v350, %v2883
        %v2885 = vand.u32 %v2884, 4294901760
        %v2886 = vsub.f32 %v2884, %v2885
        %v2887 = vand.u32 %v2886, 4294901760
        %2888 = vmatpush1.msra.mxu0 %v2887
        %2889 = vmatprep.subr.mxu0 0.0
        %v2890 = vand.u32 %v351, 4294901760
        %v2891 = vsub.f32 %v351, %v2890
        %v2892 = vand.u32 %v2891, 4294901760
        %v2893 = vsub.f32 %v2891, %v2892
        %v2894 = vand.u32 %v2893, 4294901760
        %2895 = vmatpush1.msra.mxu0 %v2894
        %2896 = vmatprep.subr.mxu0 0.0
        %v2897 = vand.u32 %v352, 4294901760
        %v2898 = vsub.f32 %v352, %v2897
        %v2899 = vand.u32 %v2898, 4294901760
        %v2900 = vsub.f32 %v2898, %v2899
        %v2901 = vand.u32 %v2900, 4294901760
        %2902 = vmatpush1.msra.mxu0 %v2901
        %2903 = vmatprep.subr.mxu0 0.0
        %v2904 = vand.u32 %v353, 4294901760
        %v2905 = vsub.f32 %v353, %v2904
        %v2906 = vand.u32 %v2905, 4294901760
        %v2907 = vsub.f32 %v2905, %v2906
        %v2908 = vand.u32 %v2907, 4294901760
        %2909 = vmatpush1.msra.mxu0 %v2908
        %2910 = vmatprep.subr.mxu0 0.0
        %v2911 = vand.u32 %v354, 4294901760
        %v2912 = vsub.f32 %v354, %v2911
        %v2913 = vand.u32 %v2912, 4294901760
        %v2914 = vsub.f32 %v2912, %v2913
        %v2915 = vand.u32 %v2914, 4294901760
        %2916 = vmatpush1.msra.mxu0 %v2915
        %2917 = vmatprep.subr.mxu0 0.0
        %v2918 = vand.u32 %v355, 4294901760
        %v2919 = vsub.f32 %v355, %v2918
        %v2920 = vand.u32 %v2919, 4294901760
        %v2921 = vsub.f32 %v2919, %v2920
        %v2922 = vand.u32 %v2921, 4294901760
        %2923 = vmatpush1.msra.mxu0 %v2922
        %2924 = vmatprep.subr.mxu0 0.0
        %v2925 = vand.u32 %v356, 4294901760
        %v2926 = vsub.f32 %v356, %v2925
        %v2927 = vand.u32 %v2926, 4294901760
        %v2928 = vsub.f32 %v2926, %v2927
        %v2929 = vand.u32 %v2928, 4294901760
        %2930 = vmatpush1.msra.mxu0 %v2929
        %2931 = vmatprep.subr.mxu0 0.0
        %v2932 = vand.u32 %v357, 4294901760
        %v2933 = vsub.f32 %v357, %v2932
        %v2934 = vand.u32 %v2933, 4294901760
        %v2935 = vsub.f32 %v2933, %v2934
        %v2936 = vand.u32 %v2935, 4294901760
        %2937 = vmatpush1.msra.mxu0 %v2936
        %2938 = vmatprep.subr.mxu0 0.0
        %v2939 = vand.u32 %v358, 4294901760
        %v2940 = vsub.f32 %v358, %v2939
        %v2941 = vand.u32 %v2940, 4294901760
        %v2942 = vsub.f32 %v2940, %v2941
        %v2943 = vand.u32 %v2942, 4294901760
        %2944 = vmatpush1.msra.mxu0 %v2943
        %2945 = vmatprep.subr.mxu0 0.0
        %v2946 = vand.u32 %v359, 4294901760
        %v2947 = vsub.f32 %v359, %v2946
        %v2948 = vand.u32 %v2947, 4294901760
        %v2949 = vsub.f32 %v2947, %v2948
        %v2950 = vand.u32 %v2949, 4294901760
        %2951 = vmatpush1.msra.mxu0 %v2950
        %2952 = vmatprep.subr.mxu0 0.0
        %v2953 = vand.u32 %v360, 4294901760
        %v2954 = vsub.f32 %v360, %v2953
        %v2955 = vand.u32 %v2954, 4294901760
        %v2956 = vsub.f32 %v2954, %v2955
        %v2957 = vand.u32 %v2956, 4294901760
        %2958 = vmatpush1.msra.mxu0 %v2957
        %2959 = vmatprep.subr.mxu0 0.0
        %v2960 = vand.u32 %v361, 4294901760
        %v2961 = vsub.f32 %v361, %v2960
        %v2962 = vand.u32 %v2961, 4294901760
        %v2963 = vsub.f32 %v2961, %v2962
        %v2964 = vand.u32 %v2963, 4294901760
        %2965 = vmatpush1.msra.mxu0 %v2964
        %2966 = vmatprep.subr.mxu0 0.0
        %v2967 = vand.u32 %v362, 4294901760
        %v2968 = vsub.f32 %v362, %v2967
        %v2969 = vand.u32 %v2968, 4294901760
        %v2970 = vsub.f32 %v2968, %v2969
        %v2971 = vand.u32 %v2970, 4294901760
        %2972 = vmatpush1.msra.mxu0 %v2971
        %2973 = vmatprep.subr.mxu0 0.0
        %v2974 = vand.u32 %v363, 4294901760
        %v2975 = vsub.f32 %v363, %v2974
        %v2976 = vand.u32 %v2975, 4294901760
        %v2977 = vsub.f32 %v2975, %v2976
        %v2978 = vand.u32 %v2977, 4294901760
        %2979 = vmatpush1.msra.mxu0 %v2978
        %2980 = vmatprep.subr.mxu0 0.0
        %v2981 = vand.u32 %v364, 4294901760
        %v2982 = vsub.f32 %v364, %v2981
        %v2983 = vand.u32 %v2982, 4294901760
        %v2984 = vsub.f32 %v2982, %v2983
        %v2985 = vand.u32 %v2984, 4294901760
        %2986 = vmatpush1.msra.mxu0 %v2985
        %2987 = vmatprep.subr.mxu0 0.0
        %v2988 = vand.u32 %v365, 4294901760
        %v2989 = vsub.f32 %v365, %v2988
        %v2990 = vand.u32 %v2989, 4294901760
        %v2991 = vsub.f32 %v2989, %v2990
        %v2992 = vand.u32 %v2991, 4294901760
        %2993 = vmatpush1.msra.mxu0 %v2992
        %2994 = vmatprep.subr.mxu0 0.0
        %v2995 = vand.u32 %v366, 4294901760
        %v2996 = vsub.f32 %v366, %v2995
        %v2997 = vand.u32 %v2996, 4294901760
        %v2998 = vsub.f32 %v2996, %v2997
        %v2999 = vand.u32 %v2998, 4294901760
        %3000 = vmatpush1.msra.mxu0 %v2999
        %3001 = vmatprep.subr.mxu0 0.0
        %v3002 = vand.u32 %v367, 4294901760
        %v3003 = vsub.f32 %v367, %v3002
        %v3004 = vand.u32 %v3003, 4294901760
        %v3005 = vsub.f32 %v3003, %v3004
        %v3006 = vand.u32 %v3005, 4294901760
        %3007 = vmatpush1.msra.mxu0 %v3006
        %3008 = vmatprep.subr.mxu0 0.0
        %v3009 = vand.u32 %v368, 4294901760
        %v3010 = vsub.f32 %v368, %v3009
        %v3011 = vand.u32 %v3010, 4294901760
        %v3012 = vsub.f32 %v3010, %v3011
        %v3013 = vand.u32 %v3012, 4294901760
        %3014 = vmatpush1.msra.mxu0 %v3013
        %3015 = vmatprep.subr.mxu0 0.0
        %v3016 = vand.u32 %v369, 4294901760
        %v3017 = vsub.f32 %v369, %v3016
        %v3018 = vand.u32 %v3017, 4294901760
        %v3019 = vsub.f32 %v3017, %v3018
        %v3020 = vand.u32 %v3019, 4294901760
        %3021 = vmatpush1.msra.mxu0 %v3020
        %3022 = vmatprep.subr.mxu0 0.0
        %v3023 = vand.u32 %v370, 4294901760
        %v3024 = vsub.f32 %v370, %v3023
        %v3025 = vand.u32 %v3024, 4294901760
        %v3026 = vsub.f32 %v3024, %v3025
        %v3027 = vand.u32 %v3026, 4294901760
        %3028 = vmatpush1.msra.mxu0 %v3027
        %3029 = vmatprep.subr.mxu0 0.0
        %v3030 = vand.u32 %v371, 4294901760
        %v3031 = vsub.f32 %v371, %v3030
        %v3032 = vand.u32 %v3031, 4294901760
        %v3033 = vsub.f32 %v3031, %v3032
        %v3034 = vand.u32 %v3033, 4294901760
        %3035 = vmatpush1.msra.mxu0 %v3034
        %3036 = vmatprep.subr.mxu0 0.0
        %v3037 = vand.u32 %v372, 4294901760
        %v3038 = vsub.f32 %v372, %v3037
        %v3039 = vand.u32 %v3038, 4294901760
        %v3040 = vsub.f32 %v3038, %v3039
        %v3041 = vand.u32 %v3040, 4294901760
        %3042 = vmatpush1.msra.mxu0 %v3041
        %3043 = vmatprep.subr.mxu0 0.0
        %v3044 = vand.u32 %v373, 4294901760
        %v3045 = vsub.f32 %v373, %v3044
        %v3046 = vand.u32 %v3045, 4294901760
        %v3047 = vsub.f32 %v3045, %v3046
        %v3048 = vand.u32 %v3047, 4294901760
        %3049 = vmatpush1.msra.mxu0 %v3048
        %3050 = vmatprep.subr.mxu0 0.0
        %v3051 = vand.u32 %v374, 4294901760
        %v3052 = vsub.f32 %v374, %v3051
        %v3053 = vand.u32 %v3052, 4294901760
        %v3054 = vsub.f32 %v3052, %v3053
        %v3055 = vand.u32 %v3054, 4294901760
        %3056 = vmatpush1.msra.mxu0 %v3055
        %v3057 = vand.u32 %v2601, 4294901760
        %3058 = vmatprep.mubr.f32.mxu0 %v3057
        %v3059 = vand.u32 %v2600, 4294901760
        %3060 = vmatmul.mubr.f32.gmra.mrb[0].mxu0 %v3059
        %v3061 = vpop.f32.mrb[0].mxu0
        %v3062 = vadd.f32 %v2725, %v3061
        %v3063 = vpop.f32.mrb[0].mxu0
        %v3064 = vand.u32 %v2603, 4294901760
        %3065 = vmatprep.mubr.f32.mxu0 %v3064
        %v3066 = vand.u32 %v2602, 4294901760
        %3067 = vmatmul.mubr.f32.gmra.mrb[0].mxu0 %v3066
        %v3068 = vpop.f32.mrb[0].mxu0
        %v3069 = vadd.f32 %v2740, %v3068
        %v3070 = vpop.f32.mrb[0].mxu0
        %v3071 = vand.u32 %v2605, 4294901760
        %3072 = vmatprep.mubr.f32.mxu0 %v3071
        %v3073 = vand.u32 %v2604, 4294901760
        %3074 = vmatmul.mubr.f32.gmra.mrb[0].mxu0 %v3073
        %v3075 = vpop.f32.mrb[0].mxu0
        %v3076 = vadd.f32 %v2755, %v3075
        %v3077 = vpop.f32.mrb[0].mxu0
        %v3078 = vand.u32 %v2607, 4294901760
        %3079 = vmatprep.mubr.f32.mxu0 %v3078
        %v3080 = vand.u32 %v2606, 4294901760
        %3081 = vmatmul.mubr.f32.gmra.mrb[0].mxu0 %v3080
        %v3082 = vpop.f32.mrb[0].mxu0
        %v3083 = vadd.f32 %v2770, %v3082
        %v3084 = vpop.f32.mrb[0].mxu0
        %v3085 = vand.u32 %v2609, 4294901760
        %3086 = vmatprep.mubr.f32.mxu0 %v3085
        %v3087 = vand.u32 %v2608, 4294901760
        %3088 = vmatmul.mubr.f32.gmra.mrb[0].mxu0 %v3087
        %v3089 = vpop.f32.mrb[0].mxu0
        %v3090 = vadd.f32 %v2785, %v3089
        %v3091 = vpop.f32.mrb[0].mxu0
        %v3092 = vand.u32 %v2611, 4294901760
        %3093 = vmatprep.mubr.f32.mxu0 %v3092
        %v3094 = vand.u32 %v2610, 4294901760
        %3095 = vmatmul.mubr.f32.gmra.mrb[0].mxu0 %v3094
        %v3096 = vpop.f32.mrb[0].mxu0
        %v3097 = vadd.f32 %v2800, %v3096
        %v3098 = vpop.f32.mrb[0].mxu0
        %v3099 = vand.u32 %v2613, 4294901760
        %3100 = vmatprep.mubr.f32.mxu0 %v3099
        %v3101 = vand.u32 %v2612, 4294901760
        %3102 = vmatmul.mubr.f32.gmra.mrb[0].mxu0 %v3101
        %v3103 = vpop.f32.mrb[0].mxu0
        %v3104 = vadd.f32 %v2815, %v3103
        %v3105 = vpop.f32.mrb[0].mxu0
        %v3106 = vand.u32 %v2615, 4294901760
        %3107 = vmatprep.mubr.f32.mxu0 %v3106
        %v3108 = vand.u32 %v2614, 4294901760
        %3109 = vmatmul.mubr.f32.gmra.mrb[0].mxu0 %v3108
        %v3110 = vpop.f32.mrb[0].mxu0
        %v3111 = vadd.f32 %v2830, %v3110
        %v3112 = vpop.f32.mrb[0].mxu0
        %3113 = vdwg.mxu0
        %3114 = vmatprep.subr.mxu0 0.0
        %v3115 = vand.u32 %v343, 4294901760
        %v3116 = vsub.f32 %v343, %v3115
        %3117 = vmatpush1.msra.mxu0 %v3116
        %3118 = vmatprep.subr.mxu0 0.0
        %v3119 = vand.u32 %v344, 4294901760
        %v3120 = vsub.f32 %v344, %v3119
        %3121 = vmatpush1.msra.mxu0 %v3120
        %3122 = vmatprep.subr.mxu0 0.0
        %v3123 = vand.u32 %v345, 4294901760
        %v3124 = vsub.f32 %v345, %v3123
        %3125 = vmatpush1.msra.mxu0 %v3124
        %3126 = vmatprep.subr.mxu0 0.0
        %v3127 = vand.u32 %v346, 4294901760
        %v3128 = vsub.f32 %v346, %v3127
        %3129 = vmatpush1.msra.mxu0 %v3128
        %3130 = vmatprep.subr.mxu0 0.0
        %v3131 = vand.u32 %v347, 4294901760
        %v3132 = vsub.f32 %v347, %v3131
        %3133 = vmatpush1.msra.mxu0 %v3132
        %3134 = vmatprep.subr.mxu0 0.0
        %v3135 = vand.u32 %v348, 4294901760
        %v3136 = vsub.f32 %v348, %v3135
        %3137 = vmatpush1.msra.mxu0 %v3136
        %3138 = vmatprep.subr.mxu0 0.0
        %v3139 = vand.u32 %v349, 4294901760
        %v3140 = vsub.f32 %v349, %v3139
        %3141 = vmatpush1.msra.mxu0 %v3140
        %3142 = vmatprep.subr.mxu0 0.0
        %v3143 = vand.u32 %v350, 4294901760
        %v3144 = vsub.f32 %v350, %v3143
        %3145 = vmatpush1.msra.mxu0 %v3144
        %3146 = vmatprep.subr.mxu0 0.0
        %v3147 = vand.u32 %v351, 4294901760
        %v3148 = vsub.f32 %v351, %v3147
        %3149 = vmatpush1.msra.mxu0 %v3148
        %3150 = vmatprep.subr.mxu0 0.0
        %v3151 = vand.u32 %v352, 4294901760
        %v3152 = vsub.f32 %v352, %v3151
        %3153 = vmatpush1.msra.mxu0 %v3152
        %3154 = vmatprep.subr.mxu0 0.0
        %v3155 = vand.u32 %v353, 4294901760
        %v3156 = vsub.f32 %v353, %v3155
        %3157 = vmatpush1.msra.mxu0 %v3156
        %3158 = vmatprep.subr.mxu0 0.0
        %v3159 = vand.u32 %v354, 4294901760
        %v3160 = vsub.f32 %v354, %v3159
        %3161 = vmatpush1.msra.mxu0 %v3160
        %3162 = vmatprep.subr.mxu0 0.0
        %v3163 = vand.u32 %v355, 4294901760
        %v3164 = vsub.f32 %v355, %v3163
        %3165 = vmatpush1.msra.mxu0 %v3164
        %3166 = vmatprep.subr.mxu0 0.0
        %v3167 = vand.u32 %v356, 4294901760
        %v3168 = vsub.f32 %v356, %v3167
        %3169 = vmatpush1.msra.mxu0 %v3168
        %3170 = vmatprep.subr.mxu0 0.0
        %v3171 = vand.u32 %v357, 4294901760
        %v3172 = vsub.f32 %v357, %v3171
        %3173 = vmatpush1.msra.mxu0 %v3172
        %3174 = vmatprep.subr.mxu0 0.0
        %v3175 = vand.u32 %v358, 4294901760
        %v3176 = vsub.f32 %v358, %v3175
        %3177 = vmatpush1.msra.mxu0 %v3176
        %3178 = vmatprep.subr.mxu0 0.0
        %v3179 = vand.u32 %v359, 4294901760
        %v3180 = vsub.f32 %v359, %v3179
        %3181 = vmatpush1.msra.mxu0 %v3180
        %3182 = vmatprep.subr.mxu0 0.0
        %v3183 = vand.u32 %v360, 4294901760
        %v3184 = vsub.f32 %v360, %v3183
        %3185 = vmatpush1.msra.mxu0 %v3184
        %3186 = vmatprep.subr.mxu0 0.0
        %v3187 = vand.u32 %v361, 4294901760
        %v3188 = vsub.f32 %v361, %v3187
        %3189 = vmatpush1.msra.mxu0 %v3188
        %3190 = vmatprep.subr.mxu0 0.0
        %v3191 = vand.u32 %v362, 4294901760
        %v3192 = vsub.f32 %v362, %v3191
        %3193 = vmatpush1.msra.mxu0 %v3192
        %3194 = vmatprep.subr.mxu0 0.0
        %v3195 = vand.u32 %v363, 4294901760
        %v3196 = vsub.f32 %v363, %v3195
        %3197 = vmatpush1.msra.mxu0 %v3196
        %3198 = vmatprep.subr.mxu0 0.0
        %v3199 = vand.u32 %v364, 4294901760
        %v3200 = vsub.f32 %v364, %v3199
        %3201 = vmatpush1.msra.mxu0 %v3200
        %3202 = vmatprep.subr.mxu0 0.0
        %v3203 = vand.u32 %v365, 4294901760
        %v3204 = vsub.f32 %v365, %v3203
        %3205 = vmatpush1.msra.mxu0 %v3204
        %3206 = vmatprep.subr.mxu0 0.0
        %v3207 = vand.u32 %v366, 4294901760
        %v3208 = vsub.f32 %v366, %v3207
        %3209 = vmatpush1.msra.mxu0 %v3208
        %3210 = vmatprep.subr.mxu0 0.0
        %v3211 = vand.u32 %v367, 4294901760
        %v3212 = vsub.f32 %v367, %v3211
        %3213 = vmatpush1.msra.mxu0 %v3212
        %3214 = vmatprep.subr.mxu0 0.0
        %v3215 = vand.u32 %v368, 4294901760
        %v3216 = vsub.f32 %v368, %v3215
        %3217 = vmatpush1.msra.mxu0 %v3216
        %3218 = vmatprep.subr.mxu0 0.0
        %v3219 = vand.u32 %v369, 4294901760
        %v3220 = vsub.f32 %v369, %v3219
        %3221 = vmatpush1.msra.mxu0 %v3220
        %3222 = vmatprep.subr.mxu0 0.0
        %v3223 = vand.u32 %v370, 4294901760
        %v3224 = vsub.f32 %v370, %v3223
        %3225 = vmatpush1.msra.mxu0 %v3224
        %3226 = vmatprep.subr.mxu0 0.0
        %v3227 = vand.u32 %v371, 4294901760
        %v3228 = vsub.f32 %v371, %v3227
        %3229 = vmatpush1.msra.mxu0 %v3228
        %3230 = vmatprep.subr.mxu0 0.0
        %v3231 = vand.u32 %v372, 4294901760
        %v3232 = vsub.f32 %v372, %v3231
        %3233 = vmatpush1.msra.mxu0 %v3232
        %3234 = vmatprep.subr.mxu0 0.0
        %v3235 = vand.u32 %v373, 4294901760
        %v3236 = vsub.f32 %v373, %v3235
        %3237 = vmatpush1.msra.mxu0 %v3236
        %3238 = vmatprep.subr.mxu0 0.0
        %v3239 = vand.u32 %v374, 4294901760
        %v3240 = vsub.f32 %v374, %v3239
        %3241 = vmatpush1.msra.mxu0 %v3240
        %v3242 = vand.u32 %v2601, 4294901760
        %v3243 = vsub.f32 %v2601, %v3242
        %3244 = vmatprep.mubr.f32.mxu0 %v3243
        %v3245 = vand.u32 %v2600, 4294901760
        %v3246 = vsub.f32 %v2600, %v3245
        %3247 = vmatmul.mubr.f32.gmra.mrb[0].mxu0 %v3246
        %v3248 = vpop.f32.mrb[0].mxu0
        %v3249 = vadd.f32 %v3062, %v3248
        %v3250 = vpop.f32.mrb[0].mxu0
        %v3251 = vand.u32 %v2603, 4294901760
        %v3252 = vsub.f32 %v2603, %v3251
        %3253 = vmatprep.mubr.f32.mxu0 %v3252
        %v3254 = vand.u32 %v2602, 4294901760
        %v3255 = vsub.f32 %v2602, %v3254
        %3256 = vmatmul.mubr.f32.gmra.mrb[0].mxu0 %v3255
        %v3257 = vpop.f32.mrb[0].mxu0
        %v3258 = vadd.f32 %v3069, %v3257
        %v3259 = vpop.f32.mrb[0].mxu0
        %v3260 = vand.u32 %v2605, 4294901760
        %v3261 = vsub.f32 %v2605, %v3260
        %3262 = vmatprep.mubr.f32.mxu0 %v3261
        %v3263 = vand.u32 %v2604, 4294901760
        %v3264 = vsub.f32 %v2604, %v3263
        %3265 = vmatmul.mubr.f32.gmra.mrb[0].mxu0 %v3264
        %v3266 = vpop.f32.mrb[0].mxu0
        %v3267 = vadd.f32 %v3076, %v3266
        %v3268 = vpop.f32.mrb[0].mxu0
        %v3269 = vand.u32 %v2607, 4294901760
        %v3270 = vsub.f32 %v2607, %v3269
        %3271 = vmatprep.mubr.f32.mxu0 %v3270
        %v3272 = vand.u32 %v2606, 4294901760
        %v3273 = vsub.f32 %v2606, %v3272
        %3274 = vmatmul.mubr.f32.gmra.mrb[0].mxu0 %v3273
        %v3275 = vpop.f32.mrb[0].mxu0
        %v3276 = vadd.f32 %v3083, %v3275
        %v3277 = vpop.f32.mrb[0].mxu0
        %v3278 = vand.u32 %v2609, 4294901760
        %v3279 = vsub.f32 %v2609, %v3278
        %3280 = vmatprep.mubr.f32.mxu0 %v3279
        %v3281 = vand.u32 %v2608, 4294901760
        %v3282 = vsub.f32 %v2608, %v3281
        %3283 = vmatmul.mubr.f32.gmra.mrb[0].mxu0 %v3282
        %v3284 = vpop.f32.mrb[0].mxu0
        %v3285 = vadd.f32 %v3090, %v3284
        %v3286 = vpop.f32.mrb[0].mxu0
        %v3287 = vand.u32 %v2611, 4294901760
        %v3288 = vsub.f32 %v2611, %v3287
        %3289 = vmatprep.mubr.f32.mxu0 %v3288
        %v3290 = vand.u32 %v2610, 4294901760
        %v3291 = vsub.f32 %v2610, %v3290
        %3292 = vmatmul.mubr.f32.gmra.mrb[0].mxu0 %v3291
        %v3293 = vpop.f32.mrb[0].mxu0
        %v3294 = vadd.f32 %v3097, %v3293
        %v3295 = vpop.f32.mrb[0].mxu0
        %v3296 = vand.u32 %v2613, 4294901760
        %v3297 = vsub.f32 %v2613, %v3296
        %3298 = vmatprep.mubr.f32.mxu0 %v3297
        %v3299 = vand.u32 %v2612, 4294901760
        %v3300 = vsub.f32 %v2612, %v3299
        %3301 = vmatmul.mubr.f32.gmra.mrb[0].mxu0 %v3300
        %v3302 = vpop.f32.mrb[0].mxu0
        %v3303 = vadd.f32 %v3104, %v3302
        %v3304 = vpop.f32.mrb[0].mxu0
        %v3305 = vand.u32 %v2615, 4294901760
        %v3306 = vsub.f32 %v2615, %v3305
        %3307 = vmatprep.mubr.f32.mxu0 %v3306
        %v3308 = vand.u32 %v2614, 4294901760
        %v3309 = vsub.f32 %v2614, %v3308
        %3310 = vmatmul.mubr.f32.gmra.mrb[0].mxu0 %v3309
        %v3311 = vpop.f32.mrb[0].mxu0
        %v3312 = vadd.f32 %v3111, %v3311
        %v3313 = vpop.f32.mrb[0].mxu0
        %3314 = vdwg.mxu0
        %3315 = vmatprep.subr.mxu0 0.0
        %v3316 = vand.u32 %v343, 4294901760
        %3317 = vmatpush1.msra.mxu0 %v3316
        %3318 = vmatprep.subr.mxu0 0.0
        %v3319 = vand.u32 %v344, 4294901760
        %3320 = vmatpush1.msra.mxu0 %v3319
        %3321 = vmatprep.subr.mxu0 0.0
        %v3322 = vand.u32 %v345, 4294901760
        %3323 = vmatpush1.msra.mxu0 %v3322
        %3324 = vmatprep.subr.mxu0 0.0
        %v3325 = vand.u32 %v346, 4294901760
        %3326 = vmatpush1.msra.mxu0 %v3325
        %3327 = vmatprep.subr.mxu0 0.0
        %v3328 = vand.u32 %v347, 4294901760
        %3329 = vmatpush1.msra.mxu0 %v3328
        %3330 = vmatprep.subr.mxu0 0.0
        %v3331 = vand.u32 %v348, 4294901760
        %3332 = vmatpush1.msra.mxu0 %v3331
        %3333 = vmatprep.subr.mxu0 0.0
        %v3334 = vand.u32 %v349, 4294901760
        %3335 = vmatpush1.msra.mxu0 %v3334
        %3336 = vmatprep.subr.mxu0 0.0
        %v3337 = vand.u32 %v350, 4294901760
        %3338 = vmatpush1.msra.mxu0 %v3337
        %3339 = vmatprep.subr.mxu0 0.0
        %v3340 = vand.u32 %v351, 4294901760
        %3341 = vmatpush1.msra.mxu0 %v3340
        %3342 = vmatprep.subr.mxu0 0.0
        %v3343 = vand.u32 %v352, 4294901760
        %3344 = vmatpush1.msra.mxu0 %v3343
        %3345 = vmatprep.subr.mxu0 0.0
        %v3346 = vand.u32 %v353, 4294901760
        %3347 = vmatpush1.msra.mxu0 %v3346
        %3348 = vmatprep.subr.mxu0 0.0
        %v3349 = vand.u32 %v354, 4294901760
        %3350 = vmatpush1.msra.mxu0 %v3349
        %3351 = vmatprep.subr.mxu0 0.0
        %v3352 = vand.u32 %v355, 4294901760
        %3353 = vmatpush1.msra.mxu0 %v3352
        %3354 = vmatprep.subr.mxu0 0.0
        %v3355 = vand.u32 %v356, 4294901760
        %3356 = vmatpush1.msra.mxu0 %v3355
        %3357 = vmatprep.subr.mxu0 0.0
        %v3358 = vand.u32 %v357, 4294901760
        %3359 = vmatpush1.msra.mxu0 %v3358
        %3360 = vmatprep.subr.mxu0 0.0
        %v3361 = vand.u32 %v358, 4294901760
        %3362 = vmatpush1.msra.mxu0 %v3361
        %3363 = vmatprep.subr.mxu0 0.0
        %v3364 = vand.u32 %v359, 4294901760
        %3365 = vmatpush1.msra.mxu0 %v3364
        %3366 = vmatprep.subr.mxu0 0.0
        %v3367 = vand.u32 %v360, 4294901760
        %3368 = vmatpush1.msra.mxu0 %v3367
        %3369 = vmatprep.subr.mxu0 0.0
        %v3370 = vand.u32 %v361, 4294901760
        %3371 = vmatpush1.msra.mxu0 %v3370
        %3372 = vmatprep.subr.mxu0 0.0
        %v3373 = vand.u32 %v362, 4294901760
        %3374 = vmatpush1.msra.mxu0 %v3373
        %3375 = vmatprep.subr.mxu0 0.0
        %v3376 = vand.u32 %v363, 4294901760
        %3377 = vmatpush1.msra.mxu0 %v3376
        %3378 = vmatprep.subr.mxu0 0.0
        %v3379 = vand.u32 %v364, 4294901760
        %3380 = vmatpush1.msra.mxu0 %v3379
        %3381 = vmatprep.subr.mxu0 0.0
        %v3382 = vand.u32 %v365, 4294901760
        %3383 = vmatpush1.msra.mxu0 %v3382
        %3384 = vmatprep.subr.mxu0 0.0
        %v3385 = vand.u32 %v366, 4294901760
        %3386 = vmatpush1.msra.mxu0 %v3385
        %3387 = vmatprep.subr.mxu0 0.0
        %v3388 = vand.u32 %v367, 4294901760
        %3389 = vmatpush1.msra.mxu0 %v3388
        %3390 = vmatprep.subr.mxu0 0.0
        %v3391 = vand.u32 %v368, 4294901760
        %3392 = vmatpush1.msra.mxu0 %v3391
        %3393 = vmatprep.subr.mxu0 0.0
        %v3394 = vand.u32 %v369, 4294901760
        %3395 = vmatpush1.msra.mxu0 %v3394
        %3396 = vmatprep.subr.mxu0 0.0
        %v3397 = vand.u32 %v370, 4294901760
        %3398 = vmatpush1.msra.mxu0 %v3397
        %3399 = vmatprep.subr.mxu0 0.0
        %v3400 = vand.u32 %v371, 4294901760
        %3401 = vmatpush1.msra.mxu0 %v3400
        %3402 = vmatprep.subr.mxu0 0.0
        %v3403 = vand.u32 %v372, 4294901760
        %3404 = vmatpush1.msra.mxu0 %v3403
        %3405 = vmatprep.subr.mxu0 0.0
        %v3406 = vand.u32 %v373, 4294901760
        %3407 = vmatpush1.msra.mxu0 %v3406
        %3408 = vmatprep.subr.mxu0 0.0
        %v3409 = vand.u32 %v374, 4294901760
        %3410 = vmatpush1.msra.mxu0 %v3409
        %v3411 = vand.u32 %v2601, 4294901760
        %v3412 = vsub.f32 %v2601, %v3411
        %v3413 = vand.u32 %v3412, 4294901760
        %3414 = vmatprep.mubr.f32.mxu0 %v3413
        %v3415 = vand.u32 %v2600, 4294901760
        %v3416 = vsub.f32 %v2600, %v3415
        %v3417 = vand.u32 %v3416, 4294901760
        %3418 = vmatmul.mubr.f32.gmra.mrb[0].mxu0 %v3417
        %v3419 = vpop.f32.mrb[0].mxu0
        %v3420 = vadd.f32 %v3249, %v3419
        %v3421 = vpop.f32.mrb[0].mxu0
        %v3422 = vand.u32 %v2603, 4294901760
        %v3423 = vsub.f32 %v2603, %v3422
        %v3424 = vand.u32 %v3423, 4294901760
        %3425 = vmatprep.mubr.f32.mxu0 %v3424
        %v3426 = vand.u32 %v2602, 4294901760
        %v3427 = vsub.f32 %v2602, %v3426
        %v3428 = vand.u32 %v3427, 4294901760
        %3429 = vmatmul.mubr.f32.gmra.mrb[0].mxu0 %v3428
        %v3430 = vpop.f32.mrb[0].mxu0
        %v3431 = vadd.f32 %v3258, %v3430
        %v3432 = vpop.f32.mrb[0].mxu0
        %v3433 = vand.u32 %v2605, 4294901760
        %v3434 = vsub.f32 %v2605, %v3433
        %v3435 = vand.u32 %v3434, 4294901760
        %3436 = vmatprep.mubr.f32.mxu0 %v3435
        %v3437 = vand.u32 %v2604, 4294901760
        %v3438 = vsub.f32 %v2604, %v3437
        %v3439 = vand.u32 %v3438, 4294901760
        %3440 = vmatmul.mubr.f32.gmra.mrb[0].mxu0 %v3439
        %v3441 = vpop.f32.mrb[0].mxu0
        %v3442 = vadd.f32 %v3267, %v3441
        %v3443 = vpop.f32.mrb[0].mxu0
        %v3444 = vand.u32 %v2607, 4294901760
        %v3445 = vsub.f32 %v2607, %v3444
        %v3446 = vand.u32 %v3445, 4294901760
        %3447 = vmatprep.mubr.f32.mxu0 %v3446
        %v3448 = vand.u32 %v2606, 4294901760
        %v3449 = vsub.f32 %v2606, %v3448
        %v3450 = vand.u32 %v3449, 4294901760
        %3451 = vmatmul.mubr.f32.gmra.mrb[0].mxu0 %v3450
        %v3452 = vpop.f32.mrb[0].mxu0
        %v3453 = vadd.f32 %v3276, %v3452
        %v3454 = vpop.f32.mrb[0].mxu0
        %v3455 = vand.u32 %v2609, 4294901760
        %v3456 = vsub.f32 %v2609, %v3455
        %v3457 = vand.u32 %v3456, 4294901760
        %3458 = vmatprep.mubr.f32.mxu0 %v3457
        %v3459 = vand.u32 %v2608, 4294901760
        %v3460 = vsub.f32 %v2608, %v3459
        %v3461 = vand.u32 %v3460, 4294901760
        %3462 = vmatmul.mubr.f32.gmra.mrb[0].mxu0 %v3461
        %v3463 = vpop.f32.mrb[0].mxu0
        %v3464 = vadd.f32 %v3285, %v3463
        %v3465 = vpop.f32.mrb[0].mxu0
        %v3466 = vand.u32 %v2611, 4294901760
        %v3467 = vsub.f32 %v2611, %v3466
        %v3468 = vand.u32 %v3467, 4294901760
        %3469 = vmatprep.mubr.f32.mxu0 %v3468
        %v3470 = vand.u32 %v2610, 4294901760
        %v3471 = vsub.f32 %v2610, %v3470
        %v3472 = vand.u32 %v3471, 4294901760
        %3473 = vmatmul.mubr.f32.gmra.mrb[0].mxu0 %v3472
        %v3474 = vpop.f32.mrb[0].mxu0
        %v3475 = vadd.f32 %v3294, %v3474
        %v3476 = vpop.f32.mrb[0].mxu0
        %v3477 = vand.u32 %v2613, 4294901760
        %v3478 = vsub.f32 %v2613, %v3477
        %v3479 = vand.u32 %v3478, 4294901760
        %3480 = vmatprep.mubr.f32.mxu0 %v3479
        %v3481 = vand.u32 %v2612, 4294901760
        %v3482 = vsub.f32 %v2612, %v3481
        %v3483 = vand.u32 %v3482, 4294901760
        %3484 = vmatmul.mubr.f32.gmra.mrb[0].mxu0 %v3483
        %v3485 = vpop.f32.mrb[0].mxu0
        %v3486 = vadd.f32 %v3303, %v3485
        %v3487 = vpop.f32.mrb[0].mxu0
        %v3488 = vand.u32 %v2615, 4294901760
        %v3489 = vsub.f32 %v2615, %v3488
        %v3490 = vand.u32 %v3489, 4294901760
        %3491 = vmatprep.mubr.f32.mxu0 %v3490
        %v3492 = vand.u32 %v2614, 4294901760
        %v3493 = vsub.f32 %v2614, %v3492
        %v3494 = vand.u32 %v3493, 4294901760
        %3495 = vmatmul.mubr.f32.gmra.mrb[0].mxu0 %v3494
        %v3496 = vpop.f32.mrb[0].mxu0
        %v3497 = vadd.f32 %v3312, %v3496
        %v3498 = vpop.f32.mrb[0].mxu0
        %3499 = vdwg.mxu0
        %3500 = vmatprep.subr.mxu0 0.0
        %v3501 = vand.u32 %v343, 4294901760
        %v3502 = vsub.f32 %v343, %v3501
        %v3503 = vand.u32 %v3502, 4294901760
        %3504 = vmatpush1.msra.mxu0 %v3503
        %3505 = vmatprep.subr.mxu0 0.0
        %v3506 = vand.u32 %v344, 4294901760
        %v3507 = vsub.f32 %v344, %v3506
        %v3508 = vand.u32 %v3507, 4294901760
        %3509 = vmatpush1.msra.mxu0 %v3508
        %3510 = vmatprep.subr.mxu0 0.0
        %v3511 = vand.u32 %v345, 4294901760
        %v3512 = vsub.f32 %v345, %v3511
        %v3513 = vand.u32 %v3512, 4294901760
        %3514 = vmatpush1.msra.mxu0 %v3513
        %3515 = vmatprep.subr.mxu0 0.0
        %v3516 = vand.u32 %v346, 4294901760
        %v3517 = vsub.f32 %v346, %v3516
        %v3518 = vand.u32 %v3517, 4294901760
        %3519 = vmatpush1.msra.mxu0 %v3518
        %3520 = vmatprep.subr.mxu0 0.0
        %v3521 = vand.u32 %v347, 4294901760
        %v3522 = vsub.f32 %v347, %v3521
        %v3523 = vand.u32 %v3522, 4294901760
        %3524 = vmatpush1.msra.mxu0 %v3523
        %3525 = vmatprep.subr.mxu0 0.0
        %v3526 = vand.u32 %v348, 4294901760
        %v3527 = vsub.f32 %v348, %v3526
        %v3528 = vand.u32 %v3527, 4294901760
        %3529 = vmatpush1.msra.mxu0 %v3528
        %3530 = vmatprep.subr.mxu0 0.0
        %v3531 = vand.u32 %v349, 4294901760
        %v3532 = vsub.f32 %v349, %v3531
        %v3533 = vand.u32 %v3532, 4294901760
        %3534 = vmatpush1.msra.mxu0 %v3533
        %3535 = vmatprep.subr.mxu0 0.0
        %v3536 = vand.u32 %v350, 4294901760
        %v3537 = vsub.f32 %v350, %v3536
        %v3538 = vand.u32 %v3537, 4294901760
        %3539 = vmatpush1.msra.mxu0 %v3538
        %3540 = vmatprep.subr.mxu0 0.0
        %v3541 = vand.u32 %v351, 4294901760
        %v3542 = vsub.f32 %v351, %v3541
        %v3543 = vand.u32 %v3542, 4294901760
        %3544 = vmatpush1.msra.mxu0 %v3543
        %3545 = vmatprep.subr.mxu0 0.0
        %v3546 = vand.u32 %v352, 4294901760
        %v3547 = vsub.f32 %v352, %v3546
        %v3548 = vand.u32 %v3547, 4294901760
        %3549 = vmatpush1.msra.mxu0 %v3548
        %3550 = vmatprep.subr.mxu0 0.0
        %v3551 = vand.u32 %v353, 4294901760
        %v3552 = vsub.f32 %v353, %v3551
        %v3553 = vand.u32 %v3552, 4294901760
        %3554 = vmatpush1.msra.mxu0 %v3553
        %3555 = vmatprep.subr.mxu0 0.0
        %v3556 = vand.u32 %v354, 4294901760
        %v3557 = vsub.f32 %v354, %v3556
        %v3558 = vand.u32 %v3557, 4294901760
        %3559 = vmatpush1.msra.mxu0 %v3558
        %3560 = vmatprep.subr.mxu0 0.0
        %v3561 = vand.u32 %v355, 4294901760
        %v3562 = vsub.f32 %v355, %v3561
        %v3563 = vand.u32 %v3562, 4294901760
        %3564 = vmatpush1.msra.mxu0 %v3563
        %3565 = vmatprep.subr.mxu0 0.0
        %v3566 = vand.u32 %v356, 4294901760
        %v3567 = vsub.f32 %v356, %v3566
        %v3568 = vand.u32 %v3567, 4294901760
        %3569 = vmatpush1.msra.mxu0 %v3568
        %3570 = vmatprep.subr.mxu0 0.0
        %v3571 = vand.u32 %v357, 4294901760
        %v3572 = vsub.f32 %v357, %v3571
        %v3573 = vand.u32 %v3572, 4294901760
        %3574 = vmatpush1.msra.mxu0 %v3573
        %3575 = vmatprep.subr.mxu0 0.0
        %v3576 = vand.u32 %v358, 4294901760
        %v3577 = vsub.f32 %v358, %v3576
        %v3578 = vand.u32 %v3577, 4294901760
        %3579 = vmatpush1.msra.mxu0 %v3578
        %3580 = vmatprep.subr.mxu0 0.0
        %v3581 = vand.u32 %v359, 4294901760
        %v3582 = vsub.f32 %v359, %v3581
        %v3583 = vand.u32 %v3582, 4294901760
        %3584 = vmatpush1.msra.mxu0 %v3583
        %3585 = vmatprep.subr.mxu0 0.0
        %v3586 = vand.u32 %v360, 4294901760
        %v3587 = vsub.f32 %v360, %v3586
        %v3588 = vand.u32 %v3587, 4294901760
        %3589 = vmatpush1.msra.mxu0 %v3588
        %3590 = vmatprep.subr.mxu0 0.0
        %v3591 = vand.u32 %v361, 4294901760
        %v3592 = vsub.f32 %v361, %v3591
        %v3593 = vand.u32 %v3592, 4294901760
        %3594 = vmatpush1.msra.mxu0 %v3593
        %3595 = vmatprep.subr.mxu0 0.0
        %v3596 = vand.u32 %v362, 4294901760
        %v3597 = vsub.f32 %v362, %v3596
        %v3598 = vand.u32 %v3597, 4294901760
        %3599 = vmatpush1.msra.mxu0 %v3598
        %3600 = vmatprep.subr.mxu0 0.0
        %v3601 = vand.u32 %v363, 4294901760
        %v3602 = vsub.f32 %v363, %v3601
        %v3603 = vand.u32 %v3602, 4294901760
        %3604 = vmatpush1.msra.mxu0 %v3603
        %3605 = vmatprep.subr.mxu0 0.0
        %v3606 = vand.u32 %v364, 4294901760
        %v3607 = vsub.f32 %v364, %v3606
        %v3608 = vand.u32 %v3607, 4294901760
        %3609 = vmatpush1.msra.mxu0 %v3608
        %3610 = vmatprep.subr.mxu0 0.0
        %v3611 = vand.u32 %v365, 4294901760
        %v3612 = vsub.f32 %v365, %v3611
        %v3613 = vand.u32 %v3612, 4294901760
        %3614 = vmatpush1.msra.mxu0 %v3613
        %3615 = vmatprep.subr.mxu0 0.0
        %v3616 = vand.u32 %v366, 4294901760
        %v3617 = vsub.f32 %v366, %v3616
        %v3618 = vand.u32 %v3617, 4294901760
        %3619 = vmatpush1.msra.mxu0 %v3618
        %3620 = vmatprep.subr.mxu0 0.0
        %v3621 = vand.u32 %v367, 4294901760
        %v3622 = vsub.f32 %v367, %v3621
        %v3623 = vand.u32 %v3622, 4294901760
        %3624 = vmatpush1.msra.mxu0 %v3623
        %3625 = vmatprep.subr.mxu0 0.0
        %v3626 = vand.u32 %v368, 4294901760
        %v3627 = vsub.f32 %v368, %v3626
        %v3628 = vand.u32 %v3627, 4294901760
        %3629 = vmatpush1.msra.mxu0 %v3628
        %3630 = vmatprep.subr.mxu0 0.0
        %v3631 = vand.u32 %v369, 4294901760
        %v3632 = vsub.f32 %v369, %v3631
        %v3633 = vand.u32 %v3632, 4294901760
        %3634 = vmatpush1.msra.mxu0 %v3633
        %3635 = vmatprep.subr.mxu0 0.0
        %v3636 = vand.u32 %v370, 4294901760
        %v3637 = vsub.f32 %v370, %v3636
        %v3638 = vand.u32 %v3637, 4294901760
        %3639 = vmatpush1.msra.mxu0 %v3638
        %3640 = vmatprep.subr.mxu0 0.0
        %v3641 = vand.u32 %v371, 4294901760
        %v3642 = vsub.f32 %v371, %v3641
        %v3643 = vand.u32 %v3642, 4294901760
        %3644 = vmatpush1.msra.mxu0 %v3643
        %3645 = vmatprep.subr.mxu0 0.0
        %v3646 = vand.u32 %v372, 4294901760
        %v3647 = vsub.f32 %v372, %v3646
        %v3648 = vand.u32 %v3647, 4294901760
        %3649 = vmatpush1.msra.mxu0 %v3648
        %3650 = vmatprep.subr.mxu0 0.0
        %v3651 = vand.u32 %v373, 4294901760
        %v3652 = vsub.f32 %v373, %v3651
        %v3653 = vand.u32 %v3652, 4294901760
        %3654 = vmatpush1.msra.mxu0 %v3653
        %3655 = vmatprep.subr.mxu0 0.0
        %v3656 = vand.u32 %v374, 4294901760
        %v3657 = vsub.f32 %v374, %v3656
        %v3658 = vand.u32 %v3657, 4294901760
        %3659 = vmatpush1.msra.mxu0 %v3658
        %v3660 = vand.u32 %v2601, 4294901760
        %3661 = vmatprep.mubr.f32.mxu0 %v3660
        %v3662 = vand.u32 %v2600, 4294901760
        %3663 = vmatmul.mubr.f32.gmra.mrb[0].mxu0 %v3662
        %v3664 = vpop.f32.mrb[0].mxu0
        %v3665 = vadd.f32 %v3420, %v3664
        %v3666 = vpop.f32.mrb[0].mxu0
        %v3667 = vand.u32 %v2603, 4294901760
        %3668 = vmatprep.mubr.f32.mxu0 %v3667
        %v3669 = vand.u32 %v2602, 4294901760
        %3670 = vmatmul.mubr.f32.gmra.mrb[0].mxu0 %v3669
        %v3671 = vpop.f32.mrb[0].mxu0
        %v3672 = vadd.f32 %v3431, %v3671
        %v3673 = vpop.f32.mrb[0].mxu0
        %v3674 = vand.u32 %v2605, 4294901760
        %3675 = vmatprep.mubr.f32.mxu0 %v3674
        %v3676 = vand.u32 %v2604, 4294901760
        %3677 = vmatmul.mubr.f32.gmra.mrb[0].mxu0 %v3676
        %v3678 = vpop.f32.mrb[0].mxu0
        %v3679 = vadd.f32 %v3442, %v3678
        %v3680 = vpop.f32.mrb[0].mxu0
        %v3681 = vand.u32 %v2607, 4294901760
        %3682 = vmatprep.mubr.f32.mxu0 %v3681
        %v3683 = vand.u32 %v2606, 4294901760
        %3684 = vmatmul.mubr.f32.gmra.mrb[0].mxu0 %v3683
        %v3685 = vpop.f32.mrb[0].mxu0
        %v3686 = vadd.f32 %v3453, %v3685
        %v3687 = vpop.f32.mrb[0].mxu0
        %v3688 = vand.u32 %v2609, 4294901760
        %3689 = vmatprep.mubr.f32.mxu0 %v3688
        %v3690 = vand.u32 %v2608, 4294901760
        %3691 = vmatmul.mubr.f32.gmra.mrb[0].mxu0 %v3690
        %v3692 = vpop.f32.mrb[0].mxu0
        %v3693 = vadd.f32 %v3464, %v3692
        %v3694 = vpop.f32.mrb[0].mxu0
        %v3695 = vand.u32 %v2611, 4294901760
        %3696 = vmatprep.mubr.f32.mxu0 %v3695
        %v3697 = vand.u32 %v2610, 4294901760
        %3698 = vmatmul.mubr.f32.gmra.mrb[0].mxu0 %v3697
        %v3699 = vpop.f32.mrb[0].mxu0
        %v3700 = vadd.f32 %v3475, %v3699
        %v3701 = vpop.f32.mrb[0].mxu0
        %v3702 = vand.u32 %v2613, 4294901760
        %3703 = vmatprep.mubr.f32.mxu0 %v3702
        %v3704 = vand.u32 %v2612, 4294901760
        %3705 = vmatmul.mubr.f32.gmra.mrb[0].mxu0 %v3704
        %v3706 = vpop.f32.mrb[0].mxu0
        %v3707 = vadd.f32 %v3486, %v3706
        %v3708 = vpop.f32.mrb[0].mxu0
        %v3709 = vand.u32 %v2615, 4294901760
        %3710 = vmatprep.mubr.f32.mxu0 %v3709
        %v3711 = vand.u32 %v2614, 4294901760
        %3712 = vmatmul.mubr.f32.gmra.mrb[0].mxu0 %v3711
        %v3713 = vpop.f32.mrb[0].mxu0
        %v3714 = vadd.f32 %v3497, %v3713
        %v3715 = vpop.f32.mrb[0].mxu0
        %3716 = vdwg.mxu0
        %3717 = vmatprep.subr.mxu0 0.0
        %v3718 = vand.u32 %v343, 4294901760
        %3719 = vmatpush1.msra.mxu0 %v3718
        %3720 = vmatprep.subr.mxu0 0.0
        %v3721 = vand.u32 %v344, 4294901760
        %3722 = vmatpush1.msra.mxu0 %v3721
        %3723 = vmatprep.subr.mxu0 0.0
        %v3724 = vand.u32 %v345, 4294901760
        %3725 = vmatpush1.msra.mxu0 %v3724
        %3726 = vmatprep.subr.mxu0 0.0
        %v3727 = vand.u32 %v346, 4294901760
        %3728 = vmatpush1.msra.mxu0 %v3727
        %3729 = vmatprep.subr.mxu0 0.0
        %v3730 = vand.u32 %v347, 4294901760
        %3731 = vmatpush1.msra.mxu0 %v3730
        %3732 = vmatprep.subr.mxu0 0.0
        %v3733 = vand.u32 %v348, 4294901760
        %3734 = vmatpush1.msra.mxu0 %v3733
        %3735 = vmatprep.subr.mxu0 0.0
        %v3736 = vand.u32 %v349, 4294901760
        %3737 = vmatpush1.msra.mxu0 %v3736
        %3738 = vmatprep.subr.mxu0 0.0
        %v3739 = vand.u32 %v350, 4294901760
        %3740 = vmatpush1.msra.mxu0 %v3739
        %3741 = vmatprep.subr.mxu0 0.0
        %v3742 = vand.u32 %v351, 4294901760
        %3743 = vmatpush1.msra.mxu0 %v3742
        %3744 = vmatprep.subr.mxu0 0.0
        %v3745 = vand.u32 %v352, 4294901760
        %3746 = vmatpush1.msra.mxu0 %v3745
        %3747 = vmatprep.subr.mxu0 0.0
        %v3748 = vand.u32 %v353, 4294901760
        %3749 = vmatpush1.msra.mxu0 %v3748
        %3750 = vmatprep.subr.mxu0 0.0
        %v3751 = vand.u32 %v354, 4294901760
        %3752 = vmatpush1.msra.mxu0 %v3751
        %3753 = vmatprep.subr.mxu0 0.0
        %v3754 = vand.u32 %v355, 4294901760
        %3755 = vmatpush1.msra.mxu0 %v3754
        %3756 = vmatprep.subr.mxu0 0.0
        %v3757 = vand.u32 %v356, 4294901760
        %3758 = vmatpush1.msra.mxu0 %v3757
        %3759 = vmatprep.subr.mxu0 0.0
        %v3760 = vand.u32 %v357, 4294901760
        %3761 = vmatpush1.msra.mxu0 %v3760
        %3762 = vmatprep.subr.mxu0 0.0
        %v3763 = vand.u32 %v358, 4294901760
        %3764 = vmatpush1.msra.mxu0 %v3763
        %3765 = vmatprep.subr.mxu0 0.0
        %v3766 = vand.u32 %v359, 4294901760
        %3767 = vmatpush1.msra.mxu0 %v3766
        %3768 = vmatprep.subr.mxu0 0.0
        %v3769 = vand.u32 %v360, 4294901760
        %3770 = vmatpush1.msra.mxu0 %v3769
        %3771 = vmatprep.subr.mxu0 0.0
        %v3772 = vand.u32 %v361, 4294901760
        %3773 = vmatpush1.msra.mxu0 %v3772
        %3774 = vmatprep.subr.mxu0 0.0
        %v3775 = vand.u32 %v362, 4294901760
        %3776 = vmatpush1.msra.mxu0 %v3775
        %3777 = vmatprep.subr.mxu0 0.0
        %v3778 = vand.u32 %v363, 4294901760
        %3779 = vmatpush1.msra.mxu0 %v3778
        %3780 = vmatprep.subr.mxu0 0.0
        %v3781 = vand.u32 %v364, 4294901760
        %3782 = vmatpush1.msra.mxu0 %v3781
        %3783 = vmatprep.subr.mxu0 0.0
        %v3784 = vand.u32 %v365, 4294901760
        %3785 = vmatpush1.msra.mxu0 %v3784
        %3786 = vmatprep.subr.mxu0 0.0
        %v3787 = vand.u32 %v366, 4294901760
        %3788 = vmatpush1.msra.mxu0 %v3787
        %3789 = vmatprep.subr.mxu0 0.0
        %v3790 = vand.u32 %v367, 4294901760
        %3791 = vmatpush1.msra.mxu0 %v3790
        %3792 = vmatprep.subr.mxu0 0.0
        %v3793 = vand.u32 %v368, 4294901760
        %3794 = vmatpush1.msra.mxu0 %v3793
        %3795 = vmatprep.subr.mxu0 0.0
        %v3796 = vand.u32 %v369, 4294901760
        %3797 = vmatpush1.msra.mxu0 %v3796
        %3798 = vmatprep.subr.mxu0 0.0
        %v3799 = vand.u32 %v370, 4294901760
        %3800 = vmatpush1.msra.mxu0 %v3799
        %3801 = vmatprep.subr.mxu0 0.0
        %v3802 = vand.u32 %v371, 4294901760
        %3803 = vmatpush1.msra.mxu0 %v3802
        %3804 = vmatprep.subr.mxu0 0.0
        %v3805 = vand.u32 %v372, 4294901760
        %3806 = vmatpush1.msra.mxu0 %v3805
        %3807 = vmatprep.subr.mxu0 0.0
        %v3808 = vand.u32 %v373, 4294901760
        %3809 = vmatpush1.msra.mxu0 %v3808
        %3810 = vmatprep.subr.mxu0 0.0
        %v3811 = vand.u32 %v374, 4294901760
        %3812 = vmatpush1.msra.mxu0 %v3811
        %v3813 = vand.u32 %v2601, 4294901760
        %3814 = vmatprep.mubr.f32.mxu0 %v3813
        %v3815 = vand.u32 %v2600, 4294901760
        %3816 = vmatmul.mubr.f32.gmra.mrb[0].mxu0 %v3815
        %v3817 = vpop.f32.mrb[0].mxu0
        %v3818 = vadd.f32 %v3665, %v3817
        %v3819 = vpop.f32.mrb[0].mxu0
        %v3820 = vand.u32 %v2603, 4294901760
        %3821 = vmatprep.mubr.f32.mxu0 %v3820
        %v3822 = vand.u32 %v2602, 4294901760
        %3823 = vmatmul.mubr.f32.gmra.mrb[0].mxu0 %v3822
        %v3824 = vpop.f32.mrb[0].mxu0
        %v3825 = vadd.f32 %v3672, %v3824
        %v3826 = vpop.f32.mrb[0].mxu0
        %v3827 = vand.u32 %v2605, 4294901760
        %3828 = vmatprep.mubr.f32.mxu0 %v3827
        %v3829 = vand.u32 %v2604, 4294901760
        %3830 = vmatmul.mubr.f32.gmra.mrb[0].mxu0 %v3829
        %v3831 = vpop.f32.mrb[0].mxu0
        %v3832 = vadd.f32 %v3679, %v3831
        %v3833 = vpop.f32.mrb[0].mxu0
        %v3834 = vand.u32 %v2607, 4294901760
        %3835 = vmatprep.mubr.f32.mxu0 %v3834
        %v3836 = vand.u32 %v2606, 4294901760
        %3837 = vmatmul.mubr.f32.gmra.mrb[0].mxu0 %v3836
        %v3838 = vpop.f32.mrb[0].mxu0
        %v3839 = vadd.f32 %v3686, %v3838
        %v3840 = vpop.f32.mrb[0].mxu0
        %v3841 = vand.u32 %v2609, 4294901760
        %3842 = vmatprep.mubr.f32.mxu0 %v3841
        %v3843 = vand.u32 %v2608, 4294901760
        %3844 = vmatmul.mubr.f32.gmra.mrb[0].mxu0 %v3843
        %v3845 = vpop.f32.mrb[0].mxu0
        %v3846 = vadd.f32 %v3693, %v3845
        %v3847 = vpop.f32.mrb[0].mxu0
        %v3848 = vand.u32 %v2611, 4294901760
        %3849 = vmatprep.mubr.f32.mxu0 %v3848
        %v3850 = vand.u32 %v2610, 4294901760
        %3851 = vmatmul.mubr.f32.gmra.mrb[0].mxu0 %v3850
        %v3852 = vpop.f32.mrb[0].mxu0
        %v3853 = vadd.f32 %v3700, %v3852
        %v3854 = vpop.f32.mrb[0].mxu0
        %v3855 = vand.u32 %v2613, 4294901760
        %3856 = vmatprep.mubr.f32.mxu0 %v3855
        %v3857 = vand.u32 %v2612, 4294901760
        %3858 = vmatmul.mubr.f32.gmra.mrb[0].mxu0 %v3857
        %v3859 = vpop.f32.mrb[0].mxu0
        %v3860 = vadd.f32 %v3707, %v3859
        %v3861 = vpop.f32.mrb[0].mxu0
        %v3862 = vand.u32 %v2615, 4294901760
        %3863 = vmatprep.mubr.f32.mxu0 %v3862
        %v3864 = vand.u32 %v2614, 4294901760
        %3865 = vmatmul.mubr.f32.gmra.mrb[0].mxu0 %v3864
        %v3866 = vpop.f32.mrb[0].mxu0
        %v3867 = vadd.f32 %v3714, %v3866
        %v3868 = vpop.f32.mrb[0].mxu0
        %3869 = vdwg.mxu0
        %3870 = vst [vmem:[%s302] sm:$0xff] %v3818
        %3871 = vst [vmem:[%s302 + $0x8] sm:$0xff] %v3825
        %3872 = vst [vmem:[%s302 + $0x10] sm:$0xff] %v3832
        %3873 = vst [vmem:[%s302 + $0x18] sm:$0xff] %v3839
        %3874 = vst [vmem:[%s302 + $0x20] sm:$0xff] %v3846
        %3875 = vst [vmem:[%s302 + $0x28] sm:$0xff] %v3853
        %3876 = vst [vmem:[%s302 + $0x30] sm:$0xff] %v3860
        %3877 = vst [vmem:[%s302 + $0x38] sm:$0xff] %v3867
        %v3878 = vsub.f32 %v3818, %v335
        %v3879 = vsub.f32 %v3825, %v336
        %v3880 = vsub.f32 %v3832, %v337
        %v3881 = vsub.f32 %v3839, %v338
        %v3882 = vsub.f32 %v3846, %v339
        %v3883 = vsub.f32 %v3853, %v340
        %v3884 = vsub.f32 %v3860, %v341
        %v3885 = vsub.f32 %v3867, %v342
        %v3886 = vmul.f32 %v3878, %v3878
        %v3887 = vmul.f32 %v3879, %v3879
        %v3888 = vmul.f32 %v3880, %v3880
        %v3889 = vmul.f32 %v3881, %v3881
        %v3890 = vmul.f32 %v3882, %v3882
        %v3891 = vmul.f32 %v3883, %v3883
        %v3892 = vmul.f32 %v3884, %v3884
        %v3893 = vmul.f32 %v3885, %v3885
        %v3894 = vadd.f32 %v3886, %v3887
        %v3895 = vadd.f32 %v3894, %v3888
        %v3896 = vadd.f32 %v3895, %v3889
        %v3897 = vadd.f32 %v3896, %v3890
        %v3898 = vadd.f32 %v3897, %v3891
        %v3899 = vadd.f32 %v3898, %v3892
        %v3900 = vadd.f32 %v3899, %v3893
        %v3901 = vrot.slane %v3900, 4
        %v3902 = vadd.f32 %v3900, %v3901
        %v3903 = vrot.slane %v3902, 2
        %v3904 = vadd.f32 %v3902, %v3903
        %v3905 = vrot.slane %v3904, 1
        %v3906 = vadd.f32 %v3904, %v3905
        %v3907 = vadd.f32 %v335, %v336
        %v3908 = vadd.f32 %v3907, %v337
        %v3909 = vadd.f32 %v3908, %v338
        %v3910 = vadd.f32 %v3909, %v339
        %v3911 = vadd.f32 %v3910, %v340
        %v3912 = vadd.f32 %v3911, %v341
        %v3913 = vadd.f32 %v3912, %v342
        %v3914 = vrot.slane %v3913, 4
        %v3915 = vadd.f32 %v3913, %v3914
        %v3916 = vrot.slane %v3915, 2
        %v3917 = vadd.f32 %v3915, %v3916
        %v3918 = vrot.slane %v3917, 1
        %v3919 = vadd.f32 %v3917, %v3918
        %v3920 = vrcp.pop 64.0
        %v3921 = vmul.f32 %v3919, %v3920
        %v3922 = vsub.f32 %v335, %v3921
        %v3923 = vsub.f32 %v336, %v3921
        %v3924 = vsub.f32 %v337, %v3921
        %v3925 = vsub.f32 %v338, %v3921
        %v3926 = vsub.f32 %v339, %v3921
        %v3927 = vsub.f32 %v340, %v3921
        %v3928 = vsub.f32 %v341, %v3921
        %v3929 = vsub.f32 %v342, %v3921
        %v3930 = vmul.f32 %v3922, %v3922
        %v3931 = vmul.f32 %v3923, %v3923
        %v3932 = vmul.f32 %v3924, %v3924
        %v3933 = vmul.f32 %v3925, %v3925
        %v3934 = vmul.f32 %v3926, %v3926
        %v3935 = vmul.f32 %v3927, %v3927
        %v3936 = vmul.f32 %v3928, %v3928
        %v3937 = vmul.f32 %v3929, %v3929
        %v3938 = vadd.f32 %v3930, %v3931
        %v3939 = vadd.f32 %v3938, %v3932
        %v3940 = vadd.f32 %v3939, %v3933
        %v3941 = vadd.f32 %v3940, %v3934
        %v3942 = vadd.f32 %v3941, %v3935
        %v3943 = vadd.f32 %v3942, %v3936
        %v3944 = vadd.f32 %v3943, %v3937
        %v3945 = vrot.slane %v3944, 4
        %v3946 = vadd.f32 %v3944, %v3945
        %v3947 = vrot.slane %v3946, 2
        %v3948 = vadd.f32 %v3946, %v3947
        %v3949 = vrot.slane %v3948, 1
        %v3950 = vadd.f32 %v3948, %v3949
        %vm3951 = vcmask 1040384
        %v3952 = vsel %vm3951, %v3906, %v3919
        %vm3953 = vcmask 1041408
        %v3954 = vsel %vm3953, %v3952, %v3950
        %vm3955 = vcmask 1042432
        %v3956 = vsel %vm3955, %v3954, 0.0
        %3957 = vst [vmem:[%s316] sm:$0xff] %v3956
        %s3958 = sand.u32 %s125, 1
        %s3959 = scalar_lea.sflag [#allocation4], %s3958
        %s3960 = sand.u32 %s125, 1
        %s3961 = smul.addr %s3960, 64
        %s3962 = scalar_lea.vmem [#allocation8], %s3961
        %s3963 = sand.u32 %s28, 1
        %s3964 = scalar_lea.sflag [#allocation10], %s3963
        %s3965 = sand.u32 %s151, 1
        %s3966 = smul.addr %s3965, 64
        %s3967 = scalar_lea.vmem [#allocation9], %s3966
        %s3968 = sand.u32 %s28, 1
        %s3969 = scalar_lea.sflag [#allocation10], %s3968
        %s3970 = sand.u32 %s177, 1
        %s3971 = smul.addr %s3970, 8
        %s3972 = scalar_lea.vmem [#allocation11], %s3971
        // Predicated region
        $region49: #{tpu_custom_call.1} parent=35 // pred_check
          %p3973 = pneg %p135
        $region50: #{tpu_custom_call.1} parent=35 // pred_check_branch
          %3975 = sbr.rel (%p3973) target = $region52
        $region51: #{tpu_custom_call.1} parent=35 // pred_region
          %s3976 = smul.u32 8, %s28
          %s3978 = ssub.s32 1024, 1024
          %3979 = vsyncadd %s3959, %s3978
          %s3980 = smul.addr %s3976, 128
          %s3981 = scalar_lea.hbm %s4, %s3980
          %s3982 = sshll.u32 %s3962, 4
          %s3983 = int_to_ptr.vmem [resolvable:$true] %s3982
          %3988 = dma.vmem_to_hbm [thread:$0]  %s3983, 1024, %s3981, %s3959, 128, 128, 8
        $region52: #{tpu_custom_call.1} parent=35 // pred_fallthru
          _
        // Predicated region
        $region53: #{tpu_custom_call.1} parent=35 // pred_check
          %p3989 = pneg %p161
        $region54: #{tpu_custom_call.1} parent=35 // pred_check_branch
          %3991 = sbr.rel (%p3989) target = $region56
        $region55: #{tpu_custom_call.1} parent=35 // pred_region
          %s3992 = smul.u32 8, %s28
          %s3994 = ssub.s32 1024, 1024
          %3995 = vsyncadd %s3964, %s3994
          %s3996 = smul.addr %s3992, 128
          %s3997 = scalar_lea.hbm %s5, %s3996
          %s3998 = sshll.u32 %s3967, 4
          %s3999 = int_to_ptr.vmem [resolvable:$true] %s3998
          %4004 = dma.vmem_to_hbm [thread:$0]  %s3999, 1024, %s3997, %s3964, 128, 128, 8
        $region56: #{tpu_custom_call.1} parent=35 // pred_fallthru
          _
        // Predicated region
        $region57: #{tpu_custom_call.1} parent=35 // pred_check
          %p4005 = pneg %p187
        $region58: #{tpu_custom_call.1} parent=35 // pred_check_branch
          %4007 = sbr.rel (%p4005) target = $region60
        $region59: #{tpu_custom_call.1} parent=35 // pred_region
          %s4009 = ssub.s32 128, 128
          %4010 = vsyncadd %s3969, %s4009
          %s4011 = smul.addr %s28, 128
          %s4012 = scalar_lea.hbm %s6, %s4011
          %s4014 = sshll.u32 %s3972, 4
          %s4015 = int_to_ptr.vmem [resolvable:$true] %s4014
          %4017 = dma.vmem_to_hbm [thread:$0]  %s4015, 128, %s4012, %s3969
        $region60: #{tpu_custom_call.1} parent=35 // pred_fallthru
          _
      $region36: #{tpu_custom_call.1} parent=5 // pred_fallthru
        _
      %p4018 = scmp.le.s32.totalorder 2, %s23
      // Predicated region
      $region61: #{tpu_custom_call.1} parent=5 // pred_check
        %p4019 = pneg %p4018
      $region62: #{tpu_custom_call.1} parent=5 // pred_check_branch
        %4021 = sbr.rel (%p4019) target = $region64
      $region63: #{tpu_custom_call.1} parent=5 // pred_region
        %s4022 = ssub.s32 %s23, 2
        // Predicated region
        $region65: #{tpu_custom_call.1} parent=63 // pred_check
          %p4023 = pneg %p141
        $region66: #{tpu_custom_call.1} parent=63 // pred_check_branch
          %4025 = sbr.rel (%p4023) target = $region68
        $region67: #{tpu_custom_call.1} parent=63 // pred_region
          %s4026 = sand.u32 %s126, 1
          %s4027 = scalar_lea.sflag [#allocation4], %s4026
          %s4028 = sand.u32 %s126, 1
          %s4029 = smul.addr %s4028, 64
          %s4030 = scalar_lea.vmem [#allocation8], %s4029
          %4031 = dma.done %s4027, 1024
        $region68: #{tpu_custom_call.1} parent=63 // pred_fallthru
          _
        // Predicated region
        $region69: #{tpu_custom_call.1} parent=63 // pred_check
          %p4032 = pneg %p167
        $region70: #{tpu_custom_call.1} parent=63 // pred_check_branch
          %4034 = sbr.rel (%p4032) target = $region72
        $region71: #{tpu_custom_call.1} parent=63 // pred_region
          %s4035 = sand.u32 %s29, 1
          %s4036 = scalar_lea.sflag [#allocation10], %s4035
          %s4037 = sand.u32 %s152, 1
          %s4038 = smul.addr %s4037, 64
          %s4039 = scalar_lea.vmem [#allocation9], %s4038
          %4040 = dma.done %s4036, 1024
        $region72: #{tpu_custom_call.1} parent=63 // pred_fallthru
          _
        // Predicated region
        $region73: #{tpu_custom_call.1} parent=63 // pred_check
          %p4041 = pneg %p193
        $region74: #{tpu_custom_call.1} parent=63 // pred_check_branch
          %4043 = sbr.rel (%p4041) target = $region76
        $region75: #{tpu_custom_call.1} parent=63 // pred_region
          %s4044 = sand.u32 %s29, 1
          %s4045 = scalar_lea.sflag [#allocation10], %s4044
          %s4046 = sand.u32 %s178, 1
          %s4047 = smul.addr %s4046, 8
          %s4048 = scalar_lea.vmem [#allocation11], %s4047
          %4049 = dma.done %s4045, 128
        $region76: #{tpu_custom_call.1} parent=63 // pred_fallthru
          _
      $region64: #{tpu_custom_call.1} parent=5 // pred_fallthru
        _
    $region6: #{tpu_custom_call.1} parent=1 // loop_footer
      %s27 = sadd.s32 1, %s23
    $region7: #{tpu_custom_call.1} parent=1 // loop_footer_branch
      %22 = sbr.rel target = $region3
    $region8: #{tpu_custom_call.1} parent=1 // loop_exit
      _
    %4050 = vsyncpa [#allocation3], 1
    %s4051 = scalar_lea.sflag [#allocation3], 1
    %4052 = vsyncpa %s4051, 1
    %4053 = vsyncpa [#allocation6], 1
    %4054 = vsyncpa [#allocation4], 1
    %s4055 = scalar_lea.sflag [#allocation4], 1
    %4056 = vsyncpa %s4055, 1
    %4057 = vsyncpa [#allocation10], 1
    %s4058 = scalar_lea.sflag [#allocation10], 1
    %4059 = vsyncpa %s4058, 1

// kernel: tpu_custom_call.1
$region0: #{tpu_custom_call.1}
  #allocation0 [shape = 'u32[]', space=smem, size = 0x4, offset = 0x4, fixed_abs, tag = 'smem constant byte address 0x4 - core index']
  #allocation1 [shape = 'u32[144,128]{1,0:T(1,128)}', space=vmem, size = 0x12000, scoped, tag = 'internal scratch']
  %s0 = inlined_call_operand.hbm [shape: f32[128,128], index: 0, kind: input, shape index: {}]
  %s1 = inlined_call_operand.vmem [shape: f32[1,128], index: 1, kind: input, shape index: {}]
  %s2 = inlined_call_operand.hbm [shape: f32[256,128], index: 2, kind: input, shape index: {}]
  %s3 = inlined_call_operand.hbm [shape: f32[128,256], index: 3, kind: input, shape index: {}]
  %s4 = inlined_call_operand.hbm [shape: f32[128,128], index: 4, kind: output, shape index: {0}]
  %s5 = inlined_call_operand.hbm [shape: s32[128,128], index: 5, kind: output, shape index: {1}]
  %s6 = inlined_call_operand.hbm [shape: f32[2,8,128], index: 6, kind: output, shape index: {2}]
  %7 = xla_tuple %s4, %s5, %s6
  %s8 = sld [smem:[#allocation0]]
  $region77: #{tpu_custom_call.1} parent=0
    _
  %s10 = ssub.s32 1, %s8
  %s11 = scalar_select 0, %s10, %s8
  $region1: #{tpu_custom_call.1} parent=0
    #allocation2 [shape = 'u8[65536]{0}', space=vmem, size = 0x10000, scoped, tag = 'input window, operand 0']
    #allocation3 [shape = 's32[2]{0}', space=sflag, size = 0x8, scoped, tag = 'scoped memory for tpu_custom_call.1']
    #allocation4 [shape = 's32[2]{0}', space=sflag, size = 0x8, scoped, tag = 'scoped memory for tpu_custom_call.1']
    #allocation5 [shape = 'u8[131072]{0}', space=vmem, size = 0x20000, scoped, tag = 'input window, operand 2, single buffered']
    #allocation6 [shape = 's32[1]{0}', space=sflag, size = 0x4, scoped, tag = 'scoped memory for tpu_custom_call.1']
    #allocation7 [shape = 'u8[131072]{0}', space=vmem, size = 0x20000, scoped, tag = 'input window, operand 3, single buffered']
    #allocation8 [shape = 'u8[65536]{0}', space=vmem, size = 0x10000, scoped, tag = 'output window, operand 0']
    #allocation9 [shape = 'u8[65536]{0}', space=vmem, size = 0x10000, scoped, tag = 'output window, operand 1']
    #allocation10 [shape = 's32[2]{0}', space=sflag, size = 0x8, scoped, tag = 'scoped memory for tpu_custom_call.1']
    #allocation11 [shape = 'u8[8192]{0}', space=vmem, size = 0x2000, scoped, tag = 'output window, operand 2']
    %12 = vsyncpa [#allocation3], 0
    %s13 = scalar_lea.sflag [#allocation3], 1
    %14 = vsyncpa %s13, 0
    %15 = vsyncpa [#allocation6], 0
    %16 = vsyncpa [#allocation4], 0
    %s17 = scalar_lea.sflag [#allocation4], 1
    %18 = vsyncpa %s17, 0
    %19 = vsyncpa [#allocation10], 0
    %s20 = scalar_lea.sflag [#allocation10], 1
    %21 = vsyncpa %s20, 0
    loop: start=0, step=1, limit=4
    $region2: #{tpu_custom_call.1} parent=1 // loop_pre_header
      _
    $region3: #{tpu_custom_call.1} parent=1 // loop_header
      %s23 = sphi 0, %s27
      %p24 = scmp.ge.s32.totalorder %s23, 4
      %s33 = sphi 0, %s35
      %s36 = sphi 0, %s33
      %s37 = sphi 0, %s36
      %s53 = sphi 0, %s37
      %s57 = sphi 0, %s57
      %s59 = sphi 0, %s57
      %s60 = sphi 0, %s59
      %s74 = sphi 0, %s60
      %s78 = sphi 0, %s78
      %s80 = sphi 0, %s78
      %s81 = sphi 0, %s80
      %s95 = sphi 0, %s81
      %s99 = sphi 0, %s99
      %s101 = sphi 0, %s99
      %s102 = sphi 0, %s101
      %s116 = sphi 0, %s102
      %s122 = sphi 0, %s124
      %s125 = sphi 0, %s122
      %s126 = sphi 0, %s125
      %s142 = sphi 0, %s126
      %s148 = sphi 0, %s150
      %s151 = sphi 0, %s148
      %s152 = sphi 0, %s151
      %s168 = sphi 0, %s152
      %s174 = sphi 0, %s176
      %s177 = sphi 0, %s174
      %s178 = sphi 0, %s177
      %s194 = sphi 0, %s178
    $region4: #{tpu_custom_call.1} parent=1 // loop_header_branch
      %26 = sbr.rel (%p24) target = $region8
    $region5: #{tpu_custom_call.1} parent=1 // loop_body
      %s28 = ssub.s32 %s23, 1
      %s29 = ssub.s32 %s23, 2
      %s30 = sadd.s32 %s23, 1
      %s31 = ssub.s32 %s23, %s30
      %p32 = scmp.eq.s32.totalorder %s31, 0
      %s34 = sadd.s32 %s33, 1
      %s35 = scalar_select %p32, %s33, %s34
      %p38 = pneg %p32
      %p39 = scmp.eq.s32.totalorder %s23, 1
      %p40 = por %p38, %p39
      %p41 = scmp.ne.s32.totalorder %s33, %s36
      %p42 = scmp.eq.s32.totalorder %s23, 0
      %p43 = por %p41, %p42
      %p44 = scmp.ne.s32.totalorder %s33, %s36
      %p45 = scmp.eq.s32.totalorder %s28, 1
      %p46 = por %p44, %p45
      %p47 = scmp.ne.s32.totalorder %s36, %s37
      %p48 = scmp.eq.s32.totalorder %s28, 0
      %p49 = por %p47, %p48
      %p50 = scmp.ne.s32.totalorder %s36, %s37
      %p51 = scmp.eq.s32.totalorder %s29, 1
      %p52 = por %p50, %p51
      %p54 = scmp.ne.s32.totalorder %s37, %s53
      %p55 = scmp.eq.s32.totalorder %s29, 0
      %p56 = por %p54, %p55
      %s58 = sadd.s32 %s57, 1
      %p61 = scmp.eq.s32.totalorder %s23, 1
      %p62 = scmp.ne.s32.totalorder %s57, %s59
      %p63 = scmp.eq.s32.totalorder %s23, 0
      %p64 = por %p62, %p63
      %p65 = scmp.ne.s32.totalorder %s57, %s59
      %p66 = scmp.eq.s32.totalorder %s28, 1
      %p67 = por %p65, %p66
      %p68 = scmp.ne.s32.totalorder %s59, %s60
      %p69 = scmp.eq.s32.totalorder %s28, 0
      %p70 = por %p68, %p69
      %p71 = scmp.ne.s32.totalorder %s59, %s60
      %p72 = scmp.eq.s32.totalorder %s29, 1
      %p73 = por %p71, %p72
      %p75 = scmp.ne.s32.totalorder %s60, %s74
      %p76 = scmp.eq.s32.totalorder %s29, 0
      %p77 = por %p75, %p76
      %s79 = sadd.s32 %s78, 1
      %p82 = scmp.eq.s32.totalorder %s23, 1
      %p83 = scmp.ne.s32.totalorder %s78, %s80
      %p84 = scmp.eq.s32.totalorder %s23, 0
      %p85 = por %p83, %p84
      %p86 = scmp.ne.s32.totalorder %s78, %s80
      %p87 = scmp.eq.s32.totalorder %s28, 1
      %p88 = por %p86, %p87
      %p89 = scmp.ne.s32.totalorder %s80, %s81
      %p90 = scmp.eq.s32.totalorder %s28, 0
      %p91 = por %p89, %p90
      %p92 = scmp.ne.s32.totalorder %s80, %s81
      %p93 = scmp.eq.s32.totalorder %s29, 1
      %p94 = por %p92, %p93
      %p96 = scmp.ne.s32.totalorder %s81, %s95
      %p97 = scmp.eq.s32.totalorder %s29, 0
      %p98 = por %p96, %p97
      %s100 = sadd.s32 %s99, 1
      %p103 = scmp.eq.s32.totalorder %s23, 1
      %p104 = scmp.ne.s32.totalorder %s99, %s101
      %p105 = scmp.eq.s32.totalorder %s23, 0
      %p106 = por %p104, %p105
      %p107 = scmp.ne.s32.totalorder %s99, %s101
      %p108 = scmp.eq.s32.totalorder %s28, 1
      %p109 = por %p107, %p108
      %p110 = scmp.ne.s32.totalorder %s101, %s102
      %p111 = scmp.eq.s32.totalorder %s28, 0
      %p112 = por %p110, %p111
      %p113 = scmp.ne.s32.totalorder %s101, %s102
      %p114 = scmp.eq.s32.totalorder %s29, 1
      %p115 = por %p113, %p114
      %p117 = scmp.ne.s32.totalorder %s102, %s116
      %p118 = scmp.eq.s32.totalorder %s29, 0
      %p119 = por %p117, %p118
      %s120 = ssub.s32 %s23, %s30
      %p121 = scmp.eq.s32.totalorder %s120, 0
      %s123 = sadd.s32 %s122, 1
      %s124 = scalar_select %p121, %s122, %s123
      %p127 = pneg %p121
      %p128 = scmp.eq.s32.totalorder %s23, 1
      %p129 = por %p127, %p128
      %p130 = scmp.ne.s32.totalorder %s122, %s125
      %p131 = scmp.eq.s32.totalorder %s23, 0
      %p132 = por %p130, %p131
      %p133 = scmp.ne.s32.totalorder %s122, %s125
      %p134 = scmp.eq.s32.totalorder %s28, 1
      %p135 = por %p133, %p134
      %p136 = scmp.ne.s32.totalorder %s125, %s126
      %p137 = scmp.eq.s32.totalorder %s28, 0
      %p138 = por %p136, %p137
      %p139 = scmp.ne.s32.totalorder %s125, %s126
      %p140 = scmp.eq.s32.totalorder %s29, 1
      %p141 = por %p139, %p140
      %p143 = scmp.ne.s32.totalorder %s126, %s142
      %p144 = scmp.eq.s32.totalorder %s29, 0
      %p145 = por %p143, %p144
      %s146 = ssub.s32 %s23, %s30
      %p147 = scmp.eq.s32.totalorder %s146, 0
      %s149 = sadd.s32 %s148, 1
      %s150 = scalar_select %p147, %s148, %s149
      %p153 = pneg %p147
      %p154 = scmp.eq.s32.totalorder %s23, 1
      %p155 = por %p153, %p154
      %p156 = scmp.ne.s32.totalorder %s148, %s151
      %p157 = scmp.eq.s32.totalorder %s23, 0
      %p158 = por %p156, %p157
      %p159 = scmp.ne.s32.totalorder %s148, %s151
      %p160 = scmp.eq.s32.totalorder %s28, 1
      %p161 = por %p159, %p160
      %p162 = scmp.ne.s32.totalorder %s151, %s152
      %p163 = scmp.eq.s32.totalorder %s28, 0
      %p164 = por %p162, %p163
      %p165 = scmp.ne.s32.totalorder %s151, %s152
      %p166 = scmp.eq.s32.totalorder %s29, 1
      %p167 = por %p165, %p166
      %p169 = scmp.ne.s32.totalorder %s152, %s168
      %p170 = scmp.eq.s32.totalorder %s29, 0
      %p171 = por %p169, %p170
      %s172 = ssub.s32 %s23, %s30
      %p173 = scmp.eq.s32.totalorder %s172, 0
      %s175 = sadd.s32 %s174, 1
      %s176 = scalar_select %p173, %s174, %s175
      %p179 = pneg %p173
      %p180 = scmp.eq.s32.totalorder %s23, 1
      %p181 = por %p179, %p180
      %p182 = scmp.ne.s32.totalorder %s174, %s177
      %p183 = scmp.eq.s32.totalorder %s23, 0
      %p184 = por %p182, %p183
      %p185 = scmp.ne.s32.totalorder %s174, %s177
      %p186 = scmp.eq.s32.totalorder %s28, 1
      %p187 = por %p185, %p186
      %p188 = scmp.ne.s32.totalorder %s177, %s178
      %p189 = scmp.eq.s32.totalorder %s28, 0
      %p190 = por %p188, %p189
      %p191 = scmp.ne.s32.totalorder %s177, %s178
      %p192 = scmp.eq.s32.totalorder %s29, 1
      %p193 = por %p191, %p192
      %p195 = scmp.ne.s32.totalorder %s178, %s194
      %p196 = scmp.eq.s32.totalorder %s29, 0
      %p197 = por %p195, %p196
      %p198 = scmp.le.s32.totalorder 1, %s23
      %p199 = scmp.lt.s32.totalorder %s23, 3
      %p200 = pnand %p198, %p199
      %p201 = pneg %p200
      // Predicated region
      $region9: #{tpu_custom_call.1} parent=5 // pred_check
        _
      $region10: #{tpu_custom_call.1} parent=5 // pred_check_branch
        %203 = sbr.rel (%p200) target = $region12
      $region11: #{tpu_custom_call.1} parent=5 // pred_region
        %s204 = ssub.s32 %s23, 1
        // Predicated region
        $region13: #{tpu_custom_call.1} parent=11 // pred_check
          %p205 = pneg %p70
        $region14: #{tpu_custom_call.1} parent=11 // pred_check_branch
          %207 = sbr.rel (%p205) target = $region16
        $region15: #{tpu_custom_call.1} parent=11 // pred_region
          _
        $region16: #{tpu_custom_call.1} parent=11 // pred_fallthru
          _
        // Predicated region
        $region17: #{tpu_custom_call.1} parent=11 // pred_check
          %p208 = pneg %p91
        $region18: #{tpu_custom_call.1} parent=11 // pred_check_branch
          %210 = sbr.rel (%p208) target = $region20
        $region19: #{tpu_custom_call.1} parent=11 // pred_region
          %s212 = ssub.s32 4096, 4096
          %213 = vsyncadd [#allocation6], %s212
          %s214 = sshll.u32 [#allocation5], 4
          %s215 = int_to_ptr.vmem [resolvable:$true] %s214
          %220 = dma.hbm_to_vmem [thread:$0]  %s2, 4096, %s215, [#allocation6], 128, 128, 8
        $region20: #{tpu_custom_call.1} parent=11 // pred_fallthru
          _
        // Predicated region
        $region21: #{tpu_custom_call.1} parent=11 // pred_check
          %p221 = pneg %p112
        $region22: #{tpu_custom_call.1} parent=11 // pred_check_branch
          %223 = sbr.rel (%p221) target = $region24
        $region23: #{tpu_custom_call.1} parent=11 // pred_region
          %s225 = ssub.s32 4096, 4096
          %226 = vsyncadd [#allocation6], %s225
          %s227 = sshll.u32 [#allocation7], 4
          %s228 = int_to_ptr.vmem [resolvable:$true] %s227
          %233 = dma.hbm_to_vmem [thread:$0]  %s3, 4096, %s228, [#allocation6], 256, 256, 16
        $region24: #{tpu_custom_call.1} parent=11 // pred_fallthru
          _
      $region12: #{tpu_custom_call.1} parent=5 // pred_fallthru
        _
      %p234 = scmp.lt.s32.totalorder %s23, 2
      // Predicated region
      $region25: #{tpu_custom_call.1} parent=5 // pred_check
        %p235 = pneg %p234
      $region26: #{tpu_custom_call.1} parent=5 // pred_check_branch
        %237 = sbr.rel (%p235) target = $region28
      $region27: #{tpu_custom_call.1} parent=5 // pred_region
        // Predicated region
        $region29: #{tpu_custom_call.1} parent=27 // pred_check
          %p238 = pneg %p43
        $region30: #{tpu_custom_call.1} parent=27 // pred_check_branch
          %240 = sbr.rel (%p238) target = $region32
        $region31: #{tpu_custom_call.1} parent=27 // pred_region
          %s241 = sand.u32 %s33, 1
          %s242 = scalar_lea.sflag [#allocation3], %s241
          %s243 = sand.u32 %s33, 1
          %s244 = smul.addr %s243, 64
          %s245 = scalar_lea.vmem [#allocation2], %s244
          %s246 = smul.u32 8, %s23
          %s248 = ssub.s32 1024, 1024
          %249 = vsyncadd %s242, %s248
          %s250 = smul.addr %s246, 128
          %s251 = scalar_lea.hbm %s0, %s250
          %s252 = sshll.u32 %s245, 4
          %s253 = int_to_ptr.vmem [resolvable:$true] %s252
          %258 = dma.hbm_to_vmem [thread:$0]  %s251, 1024, %s253, %s242, 128, 128, 8
        $region32: #{tpu_custom_call.1} parent=27 // pred_fallthru
          _
      $region28: #{tpu_custom_call.1} parent=5 // pred_fallthru
        _
      %p259 = scmp.le.s32.totalorder 1, %s23
      %p260 = scmp.lt.s32.totalorder %s23, 3
      %p261 = pnand %p259, %p260
      %p262 = pneg %p261
      // Predicated region
      $region33: #{tpu_custom_call.1} parent=5 // pred_check
        _
      $region34: #{tpu_custom_call.1} parent=5 // pred_check_branch
        %264 = sbr.rel (%p261) target = $region36
      $region35: #{tpu_custom_call.1} parent=5 // pred_region
        %s265 = ssub.s32 %s23, 1
        %s266 = sand.u32 %s36, 1
        %s267 = scalar_lea.sflag [#allocation3], %s266
        %s268 = sand.u32 %s36, 1
        %s269 = smul.addr %s268, 64
        %s270 = scalar_lea.vmem [#allocation2], %s269
        // Predicated region
        $region37: #{tpu_custom_call.1} parent=35 // pred_check
          %p271 = pneg %p49
        $region38: #{tpu_custom_call.1} parent=35 // pred_check_branch
          %273 = sbr.rel (%p271) target = $region40
        $region39: #{tpu_custom_call.1} parent=35 // pred_region
          %274 = dma.done %s267, 1024
        $region40: #{tpu_custom_call.1} parent=35 // pred_fallthru
          _
        // Predicated region
        $region41: #{tpu_custom_call.1} parent=35 // pred_check
          %p275 = pneg %p91
        $region42: #{tpu_custom_call.1} parent=35 // pred_check_branch
          %277 = sbr.rel (%p275) target = $region44
        $region43: #{tpu_custom_call.1} parent=35 // pred_region
          %278 = dma.done [#allocation6], 4096
        $region44: #{tpu_custom_call.1} parent=35 // pred_fallthru
          _
        // Predicated region
        $region45: #{tpu_custom_call.1} parent=35 // pred_check
          %p279 = pneg %p112
        $region46: #{tpu_custom_call.1} parent=35 // pred_check_branch
          %281 = sbr.rel (%p279) target = $region48
        $region47: #{tpu_custom_call.1} parent=35 // pred_region
          %282 = dma.done [#allocation6], 4096
        $region48: #{tpu_custom_call.1} parent=35 // pred_fallthru
          _
        %s283 = sand.u32 %s36, 1
        %s284 = scalar_lea.sflag [#allocation3], %s283
        %s285 = sand.u32 %s36, 1
        %s286 = smul.addr %s285, 64
        %s287 = scalar_lea.vmem [#allocation2], %s286
        %p288 = pneg %p49
        %p289 = pneg %p46
        %p290 = pneg %p70
        %p291 = pneg %p67
        %p292 = pneg %p91
        %p293 = pneg %p88
        %p294 = pneg %p112
        %p295 = pneg %p109
        %p296 = pneg %p138
        %p297 = pneg %p135
        %s298 = sand.u32 %s125, 1
        %s299 = scalar_lea.sflag [#allocation4], %s298
        %s300 = sand.u32 %s125, 1
        %s301 = smul.addr %s300, 64
        %s302 = scalar_lea.vmem [#allocation8], %s301
        %p303 = pneg %p164
        %p304 = pneg %p161
        %s305 = sand.u32 %s28, 1
        %s306 = scalar_lea.sflag [#allocation10], %s305
        %s307 = sand.u32 %s151, 1
        %s308 = smul.addr %s307, 64
        %s309 = scalar_lea.vmem [#allocation9], %s308
        %p310 = pneg %p190
        %p311 = pneg %p187
        %s312 = sand.u32 %s28, 1
        %s313 = scalar_lea.sflag [#allocation10], %s312
        %s314 = sand.u32 %s177, 1
        %s315 = smul.addr %s314, 8
        %s316 = scalar_lea.vmem [#allocation11], %s315
        %s317 = smul.u32 8, %s28
        %s318 = smul.u32 8, %s28
        %s319 = smul.u32 8, %s28
        %v320 = vld [vmem:[%s270] sm:$0xff]
        %v321 = vld [vmem:[%s270 + $0x8] sm:$0xff]
        %v322 = vld [vmem:[%s270 + $0x10] sm:$0xff]
        %v323 = vld [vmem:[%s270 + $0x18] sm:$0xff]
        %v324 = vld [vmem:[%s270 + $0x20] sm:$0xff]
        %v325 = vld [vmem:[%s270 + $0x28] sm:$0xff]
        %v326 = vld [vmem:[%s270 + $0x30] sm:$0xff]
        %v327 = vld [vmem:[%s270 + $0x38] sm:$0xff]
        %v328 = vld [vmem:[%s1] sm:$0x1]
        %v330 = vlaneseq
        %v331 = vshrl.u32 %v330, 7
        %v332 = vsub.s32 0, %v331
        %v333 = vrot.slane %v328, %v332
        %v335 = vsub.f32 %v320, %v333
        %v336 = vsub.f32 %v321, %v333
        %v337 = vsub.f32 %v322, %v333
        %v338 = vsub.f32 %v323, %v333
        %v339 = vsub.f32 %v324, %v333
        %v340 = vsub.f32 %v325, %v333
        %v341 = vsub.f32 %v326, %v333
        %v342 = vsub.f32 %v327, %v333
        %v343 = vld [vmem:[#allocation5] sm:$0xff]
        %v344 = vld [vmem:[#allocation5 + $0x8] sm:$0xff]
        %v345 = vld [vmem:[#allocation5 + $0x10] sm:$0xff]
        %v346 = vld [vmem:[#allocation5 + $0x18] sm:$0xff]
        %v347 = vld [vmem:[#allocation5 + $0x20] sm:$0xff]
        %v348 = vld [vmem:[#allocation5 + $0x28] sm:$0xff]
        %v349 = vld [vmem:[#allocation5 + $0x30] sm:$0xff]
        %v350 = vld [vmem:[#allocation5 + $0x38] sm:$0xff]
        %v351 = vld [vmem:[#allocation5 + $0x40] sm:$0xff]
        %v352 = vld [vmem:[#allocation5 + $0x48] sm:$0xff]
        %v353 = vld [vmem:[#allocation5 + $0x50] sm:$0xff]
        %v354 = vld [vmem:[#allocation5 + $0x58] sm:$0xff]
        %v355 = vld [vmem:[#allocation5 + $0x60] sm:$0xff]
        %v356 = vld [vmem:[#allocation5 + $0x68] sm:$0xff]
        %v357 = vld [vmem:[#allocation5 + $0x70] sm:$0xff]
        %v358 = vld [vmem:[#allocation5 + $0x78] sm:$0xff]
        %v359 = vld [vmem:[#allocation5 + $0x80] sm:$0xff]
        %v360 = vld [vmem:[#allocation5 + $0x88] sm:$0xff]
        %v361 = vld [vmem:[#allocation5 + $0x90] sm:$0xff]
        %v362 = vld [vmem:[#allocation5 + $0x98] sm:$0xff]
        %v363 = vld [vmem:[#allocation5 + $0xa0] sm:$0xff]
        %v364 = vld [vmem:[#allocation5 + $0xa8] sm:$0xff]
        %v365 = vld [vmem:[#allocation5 + $0xb0] sm:$0xff]
        %v366 = vld [vmem:[#allocation5 + $0xb8] sm:$0xff]
        %v367 = vld [vmem:[#allocation5 + $0xc0] sm:$0xff]
        %v368 = vld [vmem:[#allocation5 + $0xc8] sm:$0xff]
        %v369 = vld [vmem:[#allocation5 + $0xd0] sm:$0xff]
        %v370 = vld [vmem:[#allocation5 + $0xd8] sm:$0xff]
        %v371 = vld [vmem:[#allocation5 + $0xe0] sm:$0xff]
        %v372 = vld [vmem:[#allocation5 + $0xe8] sm:$0xff]
        %v373 = vld [vmem:[#allocation5 + $0xf0] sm:$0xff]
        %v374 = vld [vmem:[#allocation5 + $0xf8] sm:$0xff]
        %v375 = vld [vmem:[#allocation7] sm:$0xff]
        %v376 = vld [vmem:[#allocation7 + $0x8] sm:$0xff]
        %v377 = vld [vmem:[#allocation7 + $0x10] sm:$0xff]
        %v378 = vld [vmem:[#allocation7 + $0x18] sm:$0xff]
        %v379 = vld [vmem:[#allocation7 + $0x20] sm:$0xff]
        %v380 = vld [vmem:[#allocation7 + $0x28] sm:$0xff]
        %v381 = vld [vmem:[#allocation7 + $0x30] sm:$0xff]
        %v382 = vld [vmem:[#allocation7 + $0x38] sm:$0xff]
        %v383 = vld [vmem:[#allocation7 + $0x40] sm:$0xff]
        %v384 = vld [vmem:[#allocation7 + $0x48] sm:$0xff]
        %v385 = vld [vmem:[#allocation7 + $0x50] sm:$0xff]
        %v386 = vld [vmem:[#allocation7 + $0x58] sm:$0xff]
        %v387 = vld [vmem:[#allocation7 + $0x60] sm:$0xff]
        %v388 = vld [vmem:[#allocation7 + $0x68] sm:$0xff]
        %v389 = vld [vmem:[#allocation7 + $0x70] sm:$0xff]
        %v390 = vld [vmem:[#allocation7 + $0x78] sm:$0xff]
        %v391 = vld [vmem:[#allocation7 + $0x80] sm:$0xff]
        %v392 = vld [vmem:[#allocation7 + $0x88] sm:$0xff]
        %v393 = vld [vmem:[#allocation7 + $0x90] sm:$0xff]
        %v394 = vld [vmem:[#allocation7 + $0x98] sm:$0xff]
        %v395 = vld [vmem:[#allocation7 + $0xa0] sm:$0xff]
        %v396 = vld [vmem:[#allocation7 + $0xa8] sm:$0xff]
        %v397 = vld [vmem:[#allocation7 + $0xb0] sm:$0xff]
        %v398 = vld [vmem:[#allocation7 + $0xb8] sm:$0xff]
        %v399 = vld [vmem:[#allocation7 + $0xc0] sm:$0xff]
        %v400 = vld [vmem:[#allocation7 + $0xc8] sm:$0xff]
        %v401 = vld [vmem:[#allocation7 + $0xd0] sm:$0xff]
        %v402 = vld [vmem:[#allocation7 + $0xd8] sm:$0xff]
        %v403 = vld [vmem:[#allocation7 + $0xe0] sm:$0xff]
        %v404 = vld [vmem:[#allocation7 + $0xe8] sm:$0xff]
        %v405 = vld [vmem:[#allocation7 + $0xf0] sm:$0xff]
        %v406 = vld [vmem:[#allocation7 + $0xf8] sm:$0xff]
        %v407 = vand.u32 %v376, 4294901760
        %408 = vmatprep.subr.mxu0 %v407
        %v409 = vand.u32 %v375, 4294901760
        %410 = vmatpush1.msra.mxu0 %v409
        %v411 = vand.u32 %v378, 4294901760
        %412 = vmatprep.subr.mxu0 %v411
        %v413 = vand.u32 %v377, 4294901760
        %414 = vmatpush1.msra.mxu0 %v413
        %v415 = vand.u32 %v380, 4294901760
        %416 = vmatprep.subr.mxu0 %v415
        %v417 = vand.u32 %v379, 4294901760
        %418 = vmatpush1.msra.mxu0 %v417
        %v419 = vand.u32 %v382, 4294901760
        %420 = vmatprep.subr.mxu0 %v419
        %v421 = vand.u32 %v381, 4294901760
        %422 = vmatpush1.msra.mxu0 %v421
        %v423 = vand.u32 %v384, 4294901760
        %424 = vmatprep.subr.mxu0 %v423
        %v425 = vand.u32 %v383, 4294901760
        %426 = vmatpush1.msra.mxu0 %v425
        %v427 = vand.u32 %v386, 4294901760
        %428 = vmatprep.subr.mxu0 %v427
        %v429 = vand.u32 %v385, 4294901760
        %430 = vmatpush1.msra.mxu0 %v429
        %v431 = vand.u32 %v388, 4294901760
        %432 = vmatprep.subr.mxu0 %v431
        %v433 = vand.u32 %v387, 4294901760
        %434 = vmatpush1.msra.mxu0 %v433
        %v435 = vand.u32 %v390, 4294901760
        %436 = vmatprep.subr.mxu0 %v435
        %v437 = vand.u32 %v389, 4294901760
        %438 = vmatpush1.msra.mxu0 %v437
        %v439 = vand.u32 %v392, 4294901760
        %440 = vmatprep.subr.mxu0 %v439
        %v441 = vand.u32 %v391, 4294901760
        %442 = vmatpush1.msra.mxu0 %v441
        %v443 = vand.u32 %v394, 4294901760
        %444 = vmatprep.subr.mxu0 %v443
        %v445 = vand.u32 %v393, 4294901760
        %446 = vmatpush1.msra.mxu0 %v445
        %v447 = vand.u32 %v396, 4294901760
        %448 = vmatprep.subr.mxu0 %v447
        %v449 = vand.u32 %v395, 4294901760
        %450 = vmatpush1.msra.mxu0 %v449
        %v451 = vand.u32 %v398, 4294901760
        %452 = vmatprep.subr.mxu0 %v451
        %v453 = vand.u32 %v397, 4294901760
        %454 = vmatpush1.msra.mxu0 %v453
        %v455 = vand.u32 %v400, 4294901760
        %456 = vmatprep.subr.mxu0 %v455
        %v457 = vand.u32 %v399, 4294901760
        %458 = vmatpush1.msra.mxu0 %v457
        %v459 = vand.u32 %v402, 4294901760
        %460 = vmatprep.subr.mxu0 %v459
        %v461 = vand.u32 %v401, 4294901760
        %462 = vmatpush1.msra.mxu0 %v461
        %v463 = vand.u32 %v404, 4294901760
        %464 = vmatprep.subr.mxu0 %v463
        %v465 = vand.u32 %v403, 4294901760
        %466 = vmatpush1.msra.mxu0 %v465
        %v467 = vand.u32 %v406, 4294901760
        %468 = vmatprep.subr.mxu0 %v467
        %v469 = vand.u32 %v405, 4294901760
        %470 = vmatpush1.msra.mxu0 %v469
        %471 = vmatprep.subr.mxu0 0.0
        %472 = vmatpush1.msra.mxu0 0.0
        %473 = vmatprep.subr.mxu0 0.0
        %474 = vmatpush1.msra.mxu0 0.0
        %475 = vmatprep.subr.mxu0 0.0
        %476 = vmatpush1.msra.mxu0 0.0
        %477 = vmatprep.subr.mxu0 0.0
        %478 = vmatpush1.msra.mxu0 0.0
        %479 = vmatprep.subr.mxu0 0.0
        %480 = vmatpush1.msra.mxu0 0.0
        %481 = vmatprep.subr.mxu0 0.0
        %482 = vmatpush1.msra.mxu0 0.0
        %483 = vmatprep.subr.mxu0 0.0
        %484 = vmatpush1.msra.mxu0 0.0
        %485 = vmatprep.subr.mxu0 0.0
        %486 = vmatpush1.msra.mxu0 0.0
        %487 = vmatprep.subr.mxu0 0.0
        %488 = vmatpush1.msra.mxu0 0.0
        %489 = vmatprep.subr.mxu0 0.0
        %490 = vmatpush1.msra.mxu0 0.0
        %491 = vmatprep.subr.mxu0 0.0
        %492 = vmatpush1.msra.mxu0 0.0
        %493 = vmatprep.subr.mxu0 0.0
        %494 = vmatpush1.msra.mxu0 0.0
        %495 = vmatprep.subr.mxu0 0.0
        %496 = vmatpush1.msra.mxu0 0.0
        %497 = vmatprep.subr.mxu0 0.0
        %498 = vmatpush1.msra.mxu0 0.0
        %499 = vmatprep.subr.mxu0 0.0
        %500 = vmatpush1.msra.mxu0 0.0
        %501 = vmatprep.subr.mxu0 0.0
        %502 = vmatpush1.msra.mxu0 0.0
        %503 = vmatprep.mubr.f32.mxu0 0.0
        %v504 = vand.u32 %v335, 4294901760
        %v505 = vsub.f32 %v335, %v504
        %v506 = vand.u32 %v505, 4294901760
        %v507 = vsub.f32 %v505, %v506
        %v508 = vand.u32 %v507, 4294901760
        %509 = vmatmul.mubr.f32.gmra.mrb[0].mxu0 %v508
        %v510 = vpop.f32.mrb[0].mxu0
        %v511 = vadd.f32 0.0, %v510
        %v512 = vpop.f32.mrb[0].mxu0
        %v513 = vadd.f32 0.0, %v512
        %514 = vmatprep.mubr.f32.mxu0 0.0
        %v515 = vand.u32 %v336, 4294901760
        %v516 = vsub.f32 %v336, %v515
        %v517 = vand.u32 %v516, 4294901760
        %v518 = vsub.f32 %v516, %v517
        %v519 = vand.u32 %v518, 4294901760
        %520 = vmatmul.mubr.f32.gmra.mrb[0].mxu0 %v519
        %v521 = vpop.f32.mrb[0].mxu0
        %v522 = vadd.f32 0.0, %v521
        %v523 = vpop.f32.mrb[0].mxu0
        %v524 = vadd.f32 0.0, %v523
        %525 = vmatprep.mubr.f32.mxu0 0.0
        %v526 = vand.u32 %v337, 4294901760
        %v527 = vsub.f32 %v337, %v526
        %v528 = vand.u32 %v527, 4294901760
        %v529 = vsub.f32 %v527, %v528
        %v530 = vand.u32 %v529, 4294901760
        %531 = vmatmul.mubr.f32.gmra.mrb[0].mxu0 %v530
        %v532 = vpop.f32.mrb[0].mxu0
        %v533 = vadd.f32 0.0, %v532
        %v534 = vpop.f32.mrb[0].mxu0
        %v535 = vadd.f32 0.0, %v534
        %536 = vmatprep.mubr.f32.mxu0 0.0
        %v537 = vand.u32 %v338, 4294901760
        %v538 = vsub.f32 %v338, %v537
        %v539 = vand.u32 %v538, 4294901760
        %v540 = vsub.f32 %v538, %v539
        %v541 = vand.u32 %v540, 4294901760
        %542 = vmatmul.mubr.f32.gmra.mrb[0].mxu0 %v541
        %v543 = vpop.f32.mrb[0].mxu0
        %v544 = vadd.f32 0.0, %v543
        %v545 = vpop.f32.mrb[0].mxu0
        %v546 = vadd.f32 0.0, %v545
        %547 = vmatprep.mubr.f32.mxu0 0.0
        %v548 = vand.u32 %v339, 4294901760
        %v549 = vsub.f32 %v339, %v548
        %v550 = vand.u32 %v549, 4294901760
        %v551 = vsub.f32 %v549, %v550
        %v552 = vand.u32 %v551, 4294901760
        %553 = vmatmul.mubr.f32.gmra.mrb[0].mxu0 %v552
        %v554 = vpop.f32.mrb[0].mxu0
        %v555 = vadd.f32 0.0, %v554
        %v556 = vpop.f32.mrb[0].mxu0
        %v557 = vadd.f32 0.0, %v556
        %558 = vmatprep.mubr.f32.mxu0 0.0
        %v559 = vand.u32 %v340, 4294901760
        %v560 = vsub.f32 %v340, %v559
        %v561 = vand.u32 %v560, 4294901760
        %v562 = vsub.f32 %v560, %v561
        %v563 = vand.u32 %v562, 4294901760
        %564 = vmatmul.mubr.f32.gmra.mrb[0].mxu0 %v563
        %v565 = vpop.f32.mrb[0].mxu0
        %v566 = vadd.f32 0.0, %v565
        %v567 = vpop.f32.mrb[0].mxu0
        %v568 = vadd.f32 0.0, %v567
        %569 = vmatprep.mubr.f32.mxu0 0.0
        %v570 = vand.u32 %v341, 4294901760
        %v571 = vsub.f32 %v341, %v570
        %v572 = vand.u32 %v571, 4294901760
        %v573 = vsub.f32 %v571, %v572
        %v574 = vand.u32 %v573, 4294901760
        %575 = vmatmul.mubr.f32.gmra.mrb[0].mxu0 %v574
        %v576 = vpop.f32.mrb[0].mxu0
        %v577 = vadd.f32 0.0, %v576
        %v578 = vpop.f32.mrb[0].mxu0
        %v579 = vadd.f32 0.0, %v578
        %580 = vmatprep.mubr.f32.mxu0 0.0
        %v581 = vand.u32 %v342, 4294901760
        %v582 = vsub.f32 %v342, %v581
        %v583 = vand.u32 %v582, 4294901760
        %v584 = vsub.f32 %v582, %v583
        %v585 = vand.u32 %v584, 4294901760
        %586 = vmatmul.mubr.f32.gmra.mrb[0].mxu0 %v585
        %v587 = vpop.f32.mrb[0].mxu0
        %v588 = vadd.f32 0.0, %v587
        %v589 = vpop.f32.mrb[0].mxu0
        %v590 = vadd.f32 0.0, %v589
        %591 = vdwg.mxu0
        %v592 = vand.u32 %v376, 4294901760
        %v593 = vsub.f32 %v376, %v592
        %v594 = vand.u32 %v593, 4294901760
        %v595 = vsub.f32 %v593, %v594
        %v596 = vand.u32 %v595, 4294901760
        %597 = vmatprep.subr.mxu0 %v596
        %v598 = vand.u32 %v375, 4294901760
        %v599 = vsub.f32 %v375, %v598
        %v600 = vand.u32 %v599, 4294901760
        %v601 = vsub.f32 %v599, %v600
        %v602 = vand.u32 %v601, 4294901760
        %603 = vmatpush1.msra.mxu0 %v602
        %v604 = vand.u32 %v378, 4294901760
        %v605 = vsub.f32 %v378, %v604
        %v606 = vand.u32 %v605, 4294901760
        %v607 = vsub.f32 %v605, %v606
        %v608 = vand.u32 %v607, 4294901760
        %609 = vmatprep.subr.mxu0 %v608
        %v610 = vand.u32 %v377, 4294901760
        %v611 = vsub.f32 %v377, %v610
        %v612 = vand.u32 %v611, 4294901760
        %v613 = vsub.f32 %v611, %v612
        %v614 = vand.u32 %v613, 4294901760
        %615 = vmatpush1.msra.mxu0 %v614
        %v616 = vand.u32 %v380, 4294901760
        %v617 = vsub.f32 %v380, %v616
        %v618 = vand.u32 %v617, 4294901760
        %v619 = vsub.f32 %v617, %v618
        %v620 = vand.u32 %v619, 4294901760
        %621 = vmatprep.subr.mxu0 %v620
        %v622 = vand.u32 %v379, 4294901760
        %v623 = vsub.f32 %v379, %v622
        %v624 = vand.u32 %v623, 4294901760
        %v625 = vsub.f32 %v623, %v624
        %v626 = vand.u32 %v625, 4294901760
        %627 = vmatpush1.msra.mxu0 %v626
        %v628 = vand.u32 %v382, 4294901760
        %v629 = vsub.f32 %v382, %v628
        %v630 = vand.u32 %v629, 4294901760
        %v631 = vsub.f32 %v629, %v630
        %v632 = vand.u32 %v631, 4294901760
        %633 = vmatprep.subr.mxu0 %v632
        %v634 = vand.u32 %v381, 4294901760
        %v635 = vsub.f32 %v381, %v634
        %v636 = vand.u32 %v635, 4294901760
        %v637 = vsub.f32 %v635, %v636
        %v638 = vand.u32 %v637, 4294901760
        %639 = vmatpush1.msra.mxu0 %v638
        %v640 = vand.u32 %v384, 4294901760
        %v641 = vsub.f32 %v384, %v640
        %v642 = vand.u32 %v641, 4294901760
        %v643 = vsub.f32 %v641, %v642
        %v644 = vand.u32 %v643, 4294901760
        %645 = vmatprep.subr.mxu0 %v644
        %v646 = vand.u32 %v383, 4294901760
        %v647 = vsub.f32 %v383, %v646
        %v648 = vand.u32 %v647, 4294901760
        %v649 = vsub.f32 %v647, %v648
        %v650 = vand.u32 %v649, 4294901760
        %651 = vmatpush1.msra.mxu0 %v650
        %v652 = vand.u32 %v386, 4294901760
        %v653 = vsub.f32 %v386, %v652
        %v654 = vand.u32 %v653, 4294901760
        %v655 = vsub.f32 %v653, %v654
        %v656 = vand.u32 %v655, 4294901760
        %657 = vmatprep.subr.mxu0 %v656
        %v658 = vand.u32 %v385, 4294901760
        %v659 = vsub.f32 %v385, %v658
        %v660 = vand.u32 %v659, 4294901760
        %v661 = vsub.f32 %v659, %v660
        %v662 = vand.u32 %v661, 4294901760
        %663 = vmatpush1.msra.mxu0 %v662
        %v664 = vand.u32 %v388, 4294901760
        %v665 = vsub.f32 %v388, %v664
        %v666 = vand.u32 %v665, 4294901760
        %v667 = vsub.f32 %v665, %v666
        %v668 = vand.u32 %v667, 4294901760
        %669 = vmatprep.subr.mxu0 %v668
        %v670 = vand.u32 %v387, 4294901760
        %v671 = vsub.f32 %v387, %v670
        %v672 = vand.u32 %v671, 4294901760
        %v673 = vsub.f32 %v671, %v672
        %v674 = vand.u32 %v673, 4294901760
        %675 = vmatpush1.msra.mxu0 %v674
        %v676 = vand.u32 %v390, 4294901760
        %v677 = vsub.f32 %v390, %v676
        %v678 = vand.u32 %v677, 4294901760
        %v679 = vsub.f32 %v677, %v678
        %v680 = vand.u32 %v679, 4294901760
        %681 = vmatprep.subr.mxu0 %v680
        %v682 = vand.u32 %v389, 4294901760
        %v683 = vsub.f32 %v389, %v682
        %v684 = vand.u32 %v683, 4294901760
        %v685 = vsub.f32 %v683, %v684
        %v686 = vand.u32 %v685, 4294901760
        %687 = vmatpush1.msra.mxu0 %v686
        %v688 = vand.u32 %v392, 4294901760
        %v689 = vsub.f32 %v392, %v688
        %v690 = vand.u32 %v689, 4294901760
        %v691 = vsub.f32 %v689, %v690
        %v692 = vand.u32 %v691, 4294901760
        %693 = vmatprep.subr.mxu0 %v692
        %v694 = vand.u32 %v391, 4294901760
        %v695 = vsub.f32 %v391, %v694
        %v696 = vand.u32 %v695, 4294901760
        %v697 = vsub.f32 %v695, %v696
        %v698 = vand.u32 %v697, 4294901760
        %699 = vmatpush1.msra.mxu0 %v698
        %v700 = vand.u32 %v394, 4294901760
        %v701 = vsub.f32 %v394, %v700
        %v702 = vand.u32 %v701, 4294901760
        %v703 = vsub.f32 %v701, %v702
        %v704 = vand.u32 %v703, 4294901760
        %705 = vmatprep.subr.mxu0 %v704
        %v706 = vand.u32 %v393, 4294901760
        %v707 = vsub.f32 %v393, %v706
        %v708 = vand.u32 %v707, 4294901760
        %v709 = vsub.f32 %v707, %v708
        %v710 = vand.u32 %v709, 4294901760
        %711 = vmatpush1.msra.mxu0 %v710
        %v712 = vand.u32 %v396, 4294901760
        %v713 = vsub.f32 %v396, %v712
        %v714 = vand.u32 %v713, 4294901760
        %v715 = vsub.f32 %v713, %v714
        %v716 = vand.u32 %v715, 4294901760
        %717 = vmatprep.subr.mxu0 %v716
        %v718 = vand.u32 %v395, 4294901760
        %v719 = vsub.f32 %v395, %v718
        %v720 = vand.u32 %v719, 4294901760
        %v721 = vsub.f32 %v719, %v720
        %v722 = vand.u32 %v721, 4294901760
        %723 = vmatpush1.msra.mxu0 %v722
        %v724 = vand.u32 %v398, 4294901760
        %v725 = vsub.f32 %v398, %v724
        %v726 = vand.u32 %v725, 4294901760
        %v727 = vsub.f32 %v725, %v726
        %v728 = vand.u32 %v727, 4294901760
        %729 = vmatprep.subr.mxu0 %v728
        %v730 = vand.u32 %v397, 4294901760
        %v731 = vsub.f32 %v397, %v730
        %v732 = vand.u32 %v731, 4294901760
        %v733 = vsub.f32 %v731, %v732
        %v734 = vand.u32 %v733, 4294901760
        %735 = vmatpush1.msra.mxu0 %v734
        %v736 = vand.u32 %v400, 4294901760
        %v737 = vsub.f32 %v400, %v736
        %v738 = vand.u32 %v737, 4294901760
        %v739 = vsub.f32 %v737, %v738
        %v740 = vand.u32 %v739, 4294901760
        %741 = vmatprep.subr.mxu0 %v740
        %v742 = vand.u32 %v399, 4294901760
        %v743 = vsub.f32 %v399, %v742
        %v744 = vand.u32 %v743, 4294901760
        %v745 = vsub.f32 %v743, %v744
        %v746 = vand.u32 %v745, 4294901760
        %747 = vmatpush1.msra.mxu0 %v746
        %v748 = vand.u32 %v402, 4294901760
        %v749 = vsub.f32 %v402, %v748
        %v750 = vand.u32 %v749, 4294901760
        %v751 = vsub.f32 %v749, %v750
        %v752 = vand.u32 %v751, 4294901760
        %753 = vmatprep.subr.mxu0 %v752
        %v754 = vand.u32 %v401, 4294901760
        %v755 = vsub.f32 %v401, %v754
        %v756 = vand.u32 %v755, 4294901760
        %v757 = vsub.f32 %v755, %v756
        %v758 = vand.u32 %v757, 4294901760
        %759 = vmatpush1.msra.mxu0 %v758
        %v760 = vand.u32 %v404, 4294901760
        %v761 = vsub.f32 %v404, %v760
        %v762 = vand.u32 %v761, 4294901760
        %v763 = vsub.f32 %v761, %v762
        %v764 = vand.u32 %v763, 4294901760
        %765 = vmatprep.subr.mxu0 %v764
        %v766 = vand.u32 %v403, 4294901760
        %v767 = vsub.f32 %v403, %v766
        %v768 = vand.u32 %v767, 4294901760
        %v769 = vsub.f32 %v767, %v768
        %v770 = vand.u32 %v769, 4294901760
        %771 = vmatpush1.msra.mxu0 %v770
        %v772 = vand.u32 %v406, 4294901760
        %v773 = vsub.f32 %v406, %v772
        %v774 = vand.u32 %v773, 4294901760
        %v775 = vsub.f32 %v773, %v774
        %v776 = vand.u32 %v775, 4294901760
        %777 = vmatprep.subr.mxu0 %v776
        %v778 = vand.u32 %v405, 4294901760
        %v779 = vsub.f32 %v405, %v778
        %v780 = vand.u32 %v779, 4294901760
        %v781 = vsub.f32 %v779, %v780
        %v782 = vand.u32 %v781, 4294901760
        %783 = vmatpush1.msra.mxu0 %v782
        %784 = vmatprep.subr.mxu0 0.0
        %785 = vmatpush1.msra.mxu0 0.0
        %786 = vmatprep.subr.mxu0 0.0
        %787 = vmatpush1.msra.mxu0 0.0
        %788 = vmatprep.subr.mxu0 0.0
        %789 = vmatpush1.msra.mxu0 0.0
        %790 = vmatprep.subr.mxu0 0.0
        %791 = vmatpush1.msra.mxu0 0.0
        %792 = vmatprep.subr.mxu0 0.0
        %793 = vmatpush1.msra.mxu0 0.0
        %794 = vmatprep.subr.mxu0 0.0
        %795 = vmatpush1.msra.mxu0 0.0
        %796 = vmatprep.subr.mxu0 0.0
        %797 = vmatpush1.msra.mxu0 0.0
        %798 = vmatprep.subr.mxu0 0.0
        %799 = vmatpush1.msra.mxu0 0.0
        %800 = vmatprep.subr.mxu0 0.0
        %801 = vmatpush1.msra.mxu0 0.0
        %802 = vmatprep.subr.mxu0 0.0
        %803 = vmatpush1.msra.mxu0 0.0
        %804 = vmatprep.subr.mxu0 0.0
        %805 = vmatpush1.msra.mxu0 0.0
        %806 = vmatprep.subr.mxu0 0.0
        %807 = vmatpush1.msra.mxu0 0.0
        %808 = vmatprep.subr.mxu0 0.0
        %809 = vmatpush1.msra.mxu0 0.0
        %810 = vmatprep.subr.mxu0 0.0
        %811 = vmatpush1.msra.mxu0 0.0
        %812 = vmatprep.subr.mxu0 0.0
        %813 = vmatpush1.msra.mxu0 0.0
        %814 = vmatprep.subr.mxu0 0.0
        %815 = vmatpush1.msra.mxu0 0.0
        %816 = vmatprep.mubr.f32.mxu0 0.0
        %v817 = vand.u32 %v335, 4294901760
        %818 = vmatmul.mubr.f32.gmra.mrb[0].mxu0 %v817
        %v819 = vpop.f32.mrb[0].mxu0
        %v820 = vadd.f32 %v511, %v819
        %v821 = vpop.f32.mrb[0].mxu0
        %v822 = vadd.f32 %v513, %v821
        %823 = vmatprep.mubr.f32.mxu0 0.0
        %v824 = vand.u32 %v336, 4294901760
        %825 = vmatmul.mubr.f32.gmra.mrb[0].mxu0 %v824
        %v826 = vpop.f32.mrb[0].mxu0
        %v827 = vadd.f32 %v522, %v826
        %v828 = vpop.f32.mrb[0].mxu0
        %v829 = vadd.f32 %v524, %v828
        %830 = vmatprep.mubr.f32.mxu0 0.0
        %v831 = vand.u32 %v337, 4294901760
        %832 = vmatmul.mubr.f32.gmra.mrb[0].mxu0 %v831
        %v833 = vpop.f32.mrb[0].mxu0
        %v834 = vadd.f32 %v533, %v833
        %v835 = vpop.f32.mrb[0].mxu0
        %v836 = vadd.f32 %v535, %v835
        %837 = vmatprep.mubr.f32.mxu0 0.0
        %v838 = vand.u32 %v338, 4294901760
        %839 = vmatmul.mubr.f32.gmra.mrb[0].mxu0 %v838
        %v840 = vpop.f32.mrb[0].mxu0
        %v841 = vadd.f32 %v544, %v840
        %v842 = vpop.f32.mrb[0].mxu0
        %v843 = vadd.f32 %v546, %v842
        %844 = vmatprep.mubr.f32.mxu0 0.0
        %v845 = vand.u32 %v339, 4294901760
        %846 = vmatmul.mubr.f32.gmra.mrb[0].mxu0 %v845
        %v847 = vpop.f32.mrb[0].mxu0
        %v848 = vadd.f32 %v555, %v847
        %v849 = vpop.f32.mrb[0].mxu0
        %v850 = vadd.f32 %v557, %v849
        %851 = vmatprep.mubr.f32.mxu0 0.0
        %v852 = vand.u32 %v340, 4294901760
        %853 = vmatmul.mubr.f32.gmra.mrb[0].mxu0 %v852
        %v854 = vpop.f32.mrb[0].mxu0
        %v855 = vadd.f32 %v566, %v854
        %v856 = vpop.f32.mrb[0].mxu0
        %v857 = vadd.f32 %v568, %v856
        %858 = vmatprep.mubr.f32.mxu0 0.0
        %v859 = vand.u32 %v341, 4294901760
        %860 = vmatmul.mubr.f32.gmra.mrb[0].mxu0 %v859
        %v861 = vpop.f32.mrb[0].mxu0
        %v862 = vadd.f32 %v577, %v861
        %v863 = vpop.f32.mrb[0].mxu0
        %v864 = vadd.f32 %v579, %v863
        %865 = vmatprep.mubr.f32.mxu0 0.0
        %v866 = vand.u32 %v342, 4294901760
        %867 = vmatmul.mubr.f32.gmra.mrb[0].mxu0 %v866
        %v868 = vpop.f32.mrb[0].mxu0
        %v869 = vadd.f32 %v588, %v868
        %v870 = vpop.f32.mrb[0].mxu0
        %v871 = vadd.f32 %v590, %v870
        %872 = vdwg.mxu0
        %v873 = vand.u32 %v376, 4294901760
        %v874 = vsub.f32 %v376, %v873
        %875 = vmatprep.subr.mxu0 %v874
        %v876 = vand.u32 %v375, 4294901760
        %v877 = vsub.f32 %v375, %v876
        %878 = vmatpush1.msra.mxu0 %v877
        %v879 = vand.u32 %v378, 4294901760
        %v880 = vsub.f32 %v378, %v879
        %881 = vmatprep.subr.mxu0 %v880
        %v882 = vand.u32 %v377, 4294901760
        %v883 = vsub.f32 %v377, %v882
        %884 = vmatpush1.msra.mxu0 %v883
        %v885 = vand.u32 %v380, 4294901760
        %v886 = vsub.f32 %v380, %v885
        %887 = vmatprep.subr.mxu0 %v886
        %v888 = vand.u32 %v379, 4294901760
        %v889 = vsub.f32 %v379, %v888
        %890 = vmatpush1.msra.mxu0 %v889
        %v891 = vand.u32 %v382, 4294901760
        %v892 = vsub.f32 %v382, %v891
        %893 = vmatprep.subr.mxu0 %v892
        %v894 = vand.u32 %v381, 4294901760
        %v895 = vsub.f32 %v381, %v894
        %896 = vmatpush1.msra.mxu0 %v895
        %v897 = vand.u32 %v384, 4294901760
        %v898 = vsub.f32 %v384, %v897
        %899 = vmatprep.subr.mxu0 %v898
        %v900 = vand.u32 %v383, 4294901760
        %v901 = vsub.f32 %v383, %v900
        %902 = vmatpush1.msra.mxu0 %v901
        %v903 = vand.u32 %v386, 4294901760
        %v904 = vsub.f32 %v386, %v903
        %905 = vmatprep.subr.mxu0 %v904
        %v906 = vand.u32 %v385, 4294901760
        %v907 = vsub.f32 %v385, %v906
        %908 = vmatpush1.msra.mxu0 %v907
        %v909 = vand.u32 %v388, 4294901760
        %v910 = vsub.f32 %v388, %v909
        %911 = vmatprep.subr.mxu0 %v910
        %v912 = vand.u32 %v387, 4294901760
        %v913 = vsub.f32 %v387, %v912
        %914 = vmatpush1.msra.mxu0 %v913
        %v915 = vand.u32 %v390, 4294901760
        %v916 = vsub.f32 %v390, %v915
        %917 = vmatprep.subr.mxu0 %v916
        %v918 = vand.u32 %v389, 4294901760
        %v919 = vsub.f32 %v389, %v918
        %920 = vmatpush1.msra.mxu0 %v919
        %v921 = vand.u32 %v392, 4294901760
        %v922 = vsub.f32 %v392, %v921
        %923 = vmatprep.subr.mxu0 %v922
        %v924 = vand.u32 %v391, 4294901760
        %v925 = vsub.f32 %v391, %v924
        %926 = vmatpush1.msra.mxu0 %v925
        %v927 = vand.u32 %v394, 4294901760
        %v928 = vsub.f32 %v394, %v927
        %929 = vmatprep.subr.mxu0 %v928
        %v930 = vand.u32 %v393, 4294901760
        %v931 = vsub.f32 %v393, %v930
        %932 = vmatpush1.msra.mxu0 %v931
        %v933 = vand.u32 %v396, 4294901760
        %v934 = vsub.f32 %v396, %v933
        %935 = vmatprep.subr.mxu0 %v934
        %v936 = vand.u32 %v395, 4294901760
        %v937 = vsub.f32 %v395, %v936
        %938 = vmatpush1.msra.mxu0 %v937
        %v939 = vand.u32 %v398, 4294901760
        %v940 = vsub.f32 %v398, %v939
        %941 = vmatprep.subr.mxu0 %v940
        %v942 = vand.u32 %v397, 4294901760
        %v943 = vsub.f32 %v397, %v942
        %944 = vmatpush1.msra.mxu0 %v943
        %v945 = vand.u32 %v400, 4294901760
        %v946 = vsub.f32 %v400, %v945
        %947 = vmatprep.subr.mxu0 %v946
        %v948 = vand.u32 %v399, 4294901760
        %v949 = vsub.f32 %v399, %v948
        %950 = vmatpush1.msra.mxu0 %v949
        %v951 = vand.u32 %v402, 4294901760
        %v952 = vsub.f32 %v402, %v951
        %953 = vmatprep.subr.mxu0 %v952
        %v954 = vand.u32 %v401, 4294901760
        %v955 = vsub.f32 %v401, %v954
        %956 = vmatpush1.msra.mxu0 %v955
        %v957 = vand.u32 %v404, 4294901760
        %v958 = vsub.f32 %v404, %v957
        %959 = vmatprep.subr.mxu0 %v958
        %v960 = vand.u32 %v403, 4294901760
        %v961 = vsub.f32 %v403, %v960
        %962 = vmatpush1.msra.mxu0 %v961
        %v963 = vand.u32 %v406, 4294901760
        %v964 = vsub.f32 %v406, %v963
        %965 = vmatprep.subr.mxu0 %v964
        %v966 = vand.u32 %v405, 4294901760
        %v967 = vsub.f32 %v405, %v966
        %968 = vmatpush1.msra.mxu0 %v967
        %969 = vmatprep.subr.mxu0 0.0
        %970 = vmatpush1.msra.mxu0 0.0
        %971 = vmatprep.subr.mxu0 0.0
        %972 = vmatpush1.msra.mxu0 0.0
        %973 = vmatprep.subr.mxu0 0.0
        %974 = vmatpush1.msra.mxu0 0.0
        %975 = vmatprep.subr.mxu0 0.0
        %976 = vmatpush1.msra.mxu0 0.0
        %977 = vmatprep.subr.mxu0 0.0
        %978 = vmatpush1.msra.mxu0 0.0
        %979 = vmatprep.subr.mxu0 0.0
        %980 = vmatpush1.msra.mxu0 0.0
        %981 = vmatprep.subr.mxu0 0.0
        %982 = vmatpush1.msra.mxu0 0.0
        %983 = vmatprep.subr.mxu0 0.0
        %984 = vmatpush1.msra.mxu0 0.0
        %985 = vmatprep.subr.mxu0 0.0
        %986 = vmatpush1.msra.mxu0 0.0
        %987 = vmatprep.subr.mxu0 0.0
        %988 = vmatpush1.msra.mxu0 0.0
        %989 = vmatprep.subr.mxu0 0.0
        %990 = vmatpush1.msra.mxu0 0.0
        %991 = vmatprep.subr.mxu0 0.0
        %992 = vmatpush1.msra.mxu0 0.0
        %993 = vmatprep.subr.mxu0 0.0
        %994 = vmatpush1.msra.mxu0 0.0
        %995 = vmatprep.subr.mxu0 0.0
        %996 = vmatpush1.msra.mxu0 0.0
        %997 = vmatprep.subr.mxu0 0.0
        %998 = vmatpush1.msra.mxu0 0.0
        %999 = vmatprep.subr.mxu0 0.0
        %1000 = vmatpush1.msra.mxu0 0.0
        %1001 = vmatprep.mubr.f32.mxu0 0.0
        %v1002 = vand.u32 %v335, 4294901760
        %v1003 = vsub.f32 %v335, %v1002
        %1004 = vmatmul.mubr.f32.gmra.mrb[0].mxu0 %v1003
        %v1005 = vpop.f32.mrb[0].mxu0
        %v1006 = vadd.f32 %v820, %v1005
        %v1007 = vpop.f32.mrb[0].mxu0
        %v1008 = vadd.f32 %v822, %v1007
        %1009 = vmatprep.mubr.f32.mxu0 0.0
        %v1010 = vand.u32 %v336, 4294901760
        %v1011 = vsub.f32 %v336, %v1010
        %1012 = vmatmul.mubr.f32.gmra.mrb[0].mxu0 %v1011
        %v1013 = vpop.f32.mrb[0].mxu0
        %v1014 = vadd.f32 %v827, %v1013
        %v1015 = vpop.f32.mrb[0].mxu0
        %v1016 = vadd.f32 %v829, %v1015
        %1017 = vmatprep.mubr.f32.mxu0 0.0
        %v1018 = vand.u32 %v337, 4294901760
        %v1019 = vsub.f32 %v337, %v1018
        %1020 = vmatmul.mubr.f32.gmra.mrb[0].mxu0 %v1019
        %v1021 = vpop.f32.mrb[0].mxu0
        %v1022 = vadd.f32 %v834, %v1021
        %v1023 = vpop.f32.mrb[0].mxu0
        %v1024 = vadd.f32 %v836, %v1023
        %1025 = vmatprep.mubr.f32.mxu0 0.0
        %v1026 = vand.u32 %v338, 4294901760
        %v1027 = vsub.f32 %v338, %v1026
        %1028 = vmatmul.mubr.f32.gmra.mrb[0].mxu0 %v1027
        %v1029 = vpop.f32.mrb[0].mxu0
        %v1030 = vadd.f32 %v841, %v1029
        %v1031 = vpop.f32.mrb[0].mxu0
        %v1032 = vadd.f32 %v843, %v1031
        %1033 = vmatprep.mubr.f32.mxu0 0.0
        %v1034 = vand.u32 %v339, 4294901760
        %v1035 = vsub.f32 %v339, %v1034
        %1036 = vmatmul.mubr.f32.gmra.mrb[0].mxu0 %v1035
        %v1037 = vpop.f32.mrb[0].mxu0
        %v1038 = vadd.f32 %v848, %v1037
        %v1039 = vpop.f32.mrb[0].mxu0
        %v1040 = vadd.f32 %v850, %v1039
        %1041 = vmatprep.mubr.f32.mxu0 0.0
        %v1042 = vand.u32 %v340, 4294901760
        %v1043 = vsub.f32 %v340, %v1042
        %1044 = vmatmul.mubr.f32.gmra.mrb[0].mxu0 %v1043
        %v1045 = vpop.f32.mrb[0].mxu0
        %v1046 = vadd.f32 %v855, %v1045
        %v1047 = vpop.f32.mrb[0].mxu0
        %v1048 = vadd.f32 %v857, %v1047
        %1049 = vmatprep.mubr.f32.mxu0 0.0
        %v1050 = vand.u32 %v341, 4294901760
        %v1051 = vsub.f32 %v341, %v1050
        %1052 = vmatmul.mubr.f32.gmra.mrb[0].mxu0 %v1051
        %v1053 = vpop.f32.mrb[0].mxu0
        %v1054 = vadd.f32 %v862, %v1053
        %v1055 = vpop.f32.mrb[0].mxu0
        %v1056 = vadd.f32 %v864, %v1055
        %1057 = vmatprep.mubr.f32.mxu0 0.0
        %v1058 = vand.u32 %v342, 4294901760
        %v1059 = vsub.f32 %v342, %v1058
        %1060 = vmatmul.mubr.f32.gmra.mrb[0].mxu0 %v1059
        %v1061 = vpop.f32.mrb[0].mxu0
        %v1062 = vadd.f32 %v869, %v1061
        %v1063 = vpop.f32.mrb[0].mxu0
        %v1064 = vadd.f32 %v871, %v1063
        %1065 = vdwg.mxu0
        %v1066 = vand.u32 %v376, 4294901760
        %1067 = vmatprep.subr.mxu0 %v1066
        %v1068 = vand.u32 %v375, 4294901760
        %1069 = vmatpush1.msra.mxu0 %v1068
        %v1070 = vand.u32 %v378, 4294901760
        %1071 = vmatprep.subr.mxu0 %v1070
        %v1072 = vand.u32 %v377, 4294901760
        %1073 = vmatpush1.msra.mxu0 %v1072
        %v1074 = vand.u32 %v380, 4294901760
        %1075 = vmatprep.subr.mxu0 %v1074
        %v1076 = vand.u32 %v379, 4294901760
        %1077 = vmatpush1.msra.mxu0 %v1076
        %v1078 = vand.u32 %v382, 4294901760
        %1079 = vmatprep.subr.mxu0 %v1078
        %v1080 = vand.u32 %v381, 4294901760
        %1081 = vmatpush1.msra.mxu0 %v1080
        %v1082 = vand.u32 %v384, 4294901760
        %1083 = vmatprep.subr.mxu0 %v1082
        %v1084 = vand.u32 %v383, 4294901760
        %1085 = vmatpush1.msra.mxu0 %v1084
        %v1086 = vand.u32 %v386, 4294901760
        %1087 = vmatprep.subr.mxu0 %v1086
        %v1088 = vand.u32 %v385, 4294901760
        %1089 = vmatpush1.msra.mxu0 %v1088
        %v1090 = vand.u32 %v388, 4294901760
        %1091 = vmatprep.subr.mxu0 %v1090
        %v1092 = vand.u32 %v387, 4294901760
        %1093 = vmatpush1.msra.mxu0 %v1092
        %v1094 = vand.u32 %v390, 4294901760
        %1095 = vmatprep.subr.mxu0 %v1094
        %v1096 = vand.u32 %v389, 4294901760
        %1097 = vmatpush1.msra.mxu0 %v1096
        %v1098 = vand.u32 %v392, 4294901760
        %1099 = vmatprep.subr.mxu0 %v1098
        %v1100 = vand.u32 %v391, 4294901760
        %1101 = vmatpush1.msra.mxu0 %v1100
        %v1102 = vand.u32 %v394, 4294901760
        %1103 = vmatprep.subr.mxu0 %v1102
        %v1104 = vand.u32 %v393, 4294901760
        %1105 = vmatpush1.msra.mxu0 %v1104
        %v1106 = vand.u32 %v396, 4294901760
        %1107 = vmatprep.subr.mxu0 %v1106
        %v1108 = vand.u32 %v395, 4294901760
        %1109 = vmatpush1.msra.mxu0 %v1108
        %v1110 = vand.u32 %v398, 4294901760
        %1111 = vmatprep.subr.mxu0 %v1110
        %v1112 = vand.u32 %v397, 4294901760
        %1113 = vmatpush1.msra.mxu0 %v1112
        %v1114 = vand.u32 %v400, 4294901760
        %1115 = vmatprep.subr.mxu0 %v1114
        %v1116 = vand.u32 %v399, 4294901760
        %1117 = vmatpush1.msra.mxu0 %v1116
        %v1118 = vand.u32 %v402, 4294901760
        %1119 = vmatprep.subr.mxu0 %v1118
        %v1120 = vand.u32 %v401, 4294901760
        %1121 = vmatpush1.msra.mxu0 %v1120
        %v1122 = vand.u32 %v404, 4294901760
        %1123 = vmatprep.subr.mxu0 %v1122
        %v1124 = vand.u32 %v403, 4294901760
        %1125 = vmatpush1.msra.mxu0 %v1124
        %v1126 = vand.u32 %v406, 4294901760
        %1127 = vmatprep.subr.mxu0 %v1126
        %v1128 = vand.u32 %v405, 4294901760
        %1129 = vmatpush1.msra.mxu0 %v1128
        %1130 = vmatprep.subr.mxu0 0.0
        %1131 = vmatpush1.msra.mxu0 0.0
        %1132 = vmatprep.subr.mxu0 0.0
        %1133 = vmatpush1.msra.mxu0 0.0
        %1134 = vmatprep.subr.mxu0 0.0
        %1135 = vmatpush1.msra.mxu0 0.0
        %1136 = vmatprep.subr.mxu0 0.0
        %1137 = vmatpush1.msra.mxu0 0.0
        %1138 = vmatprep.subr.mxu0 0.0
        %1139 = vmatpush1.msra.mxu0 0.0
        %1140 = vmatprep.subr.mxu0 0.0
        %1141 = vmatpush1.msra.mxu0 0.0
        %1142 = vmatprep.subr.mxu0 0.0
        %1143 = vmatpush1.msra.mxu0 0.0
        %1144 = vmatprep.subr.mxu0 0.0
        %1145 = vmatpush1.msra.mxu0 0.0
        %1146 = vmatprep.subr.mxu0 0.0
        %1147 = vmatpush1.msra.mxu0 0.0
        %1148 = vmatprep.subr.mxu0 0.0
        %1149 = vmatpush1.msra.mxu0 0.0
        %1150 = vmatprep.subr.mxu0 0.0
        %1151 = vmatpush1.msra.mxu0 0.0
        %1152 = vmatprep.subr.mxu0 0.0
        %1153 = vmatpush1.msra.mxu0 0.0
        %1154 = vmatprep.subr.mxu0 0.0
        %1155 = vmatpush1.msra.mxu0 0.0
        %1156 = vmatprep.subr.mxu0 0.0
        %1157 = vmatpush1.msra.mxu0 0.0
        %1158 = vmatprep.subr.mxu0 0.0
        %1159 = vmatpush1.msra.mxu0 0.0
        %1160 = vmatprep.subr.mxu0 0.0
        %1161 = vmatpush1.msra.mxu0 0.0
        %1162 = vmatprep.mubr.f32.mxu0 0.0
        %v1163 = vand.u32 %v335, 4294901760
        %v1164 = vsub.f32 %v335, %v1163
        %v1165 = vand.u32 %v1164, 4294901760
        %1166 = vmatmul.mubr.f32.gmra.mrb[0].mxu0 %v1165
        %v1167 = vpop.f32.mrb[0].mxu0
        %v1168 = vadd.f32 %v1006, %v1167
        %v1169 = vpop.f32.mrb[0].mxu0
        %v1170 = vadd.f32 %v1008, %v1169
        %1171 = vmatprep.mubr.f32.mxu0 0.0
        %v1172 = vand.u32 %v336, 4294901760
        %v1173 = vsub.f32 %v336, %v1172
        %v1174 = vand.u32 %v1173, 4294901760
        %1175 = vmatmul.mubr.f32.gmra.mrb[0].mxu0 %v1174
        %v1176 = vpop.f32.mrb[0].mxu0
        %v1177 = vadd.f32 %v1014, %v1176
        %v1178 = vpop.f32.mrb[0].mxu0
        %v1179 = vadd.f32 %v1016, %v1178
        %1180 = vmatprep.mubr.f32.mxu0 0.0
        %v1181 = vand.u32 %v337, 4294901760
        %v1182 = vsub.f32 %v337, %v1181
        %v1183 = vand.u32 %v1182, 4294901760
        %1184 = vmatmul.mubr.f32.gmra.mrb[0].mxu0 %v1183
        %v1185 = vpop.f32.mrb[0].mxu0
        %v1186 = vadd.f32 %v1022, %v1185
        %v1187 = vpop.f32.mrb[0].mxu0
        %v1188 = vadd.f32 %v1024, %v1187
        %1189 = vmatprep.mubr.f32.mxu0 0.0
        %v1190 = vand.u32 %v338, 4294901760
        %v1191 = vsub.f32 %v338, %v1190
        %v1192 = vand.u32 %v1191, 4294901760
        %1193 = vmatmul.mubr.f32.gmra.mrb[0].mxu0 %v1192
        %v1194 = vpop.f32.mrb[0].mxu0
        %v1195 = vadd.f32 %v1030, %v1194
        %v1196 = vpop.f32.mrb[0].mxu0
        %v1197 = vadd.f32 %v1032, %v1196
        %1198 = vmatprep.mubr.f32.mxu0 0.0
        %v1199 = vand.u32 %v339, 4294901760
        %v1200 = vsub.f32 %v339, %v1199
        %v1201 = vand.u32 %v1200, 4294901760
        %1202 = vmatmul.mubr.f32.gmra.mrb[0].mxu0 %v1201
        %v1203 = vpop.f32.mrb[0].mxu0
        %v1204 = vadd.f32 %v1038, %v1203
        %v1205 = vpop.f32.mrb[0].mxu0
        %v1206 = vadd.f32 %v1040, %v1205
        %1207 = vmatprep.mubr.f32.mxu0 0.0
        %v1208 = vand.u32 %v340, 4294901760
        %v1209 = vsub.f32 %v340, %v1208
        %v1210 = vand.u32 %v1209, 4294901760
        %1211 = vmatmul.mubr.f32.gmra.mrb[0].mxu0 %v1210
        %v1212 = vpop.f32.mrb[0].mxu0
        %v1213 = vadd.f32 %v1046, %v1212
        %v1214 = vpop.f32.mrb[0].mxu0
        %v1215 = vadd.f32 %v1048, %v1214
        %1216 = vmatprep.mubr.f32.mxu0 0.0
        %v1217 = vand.u32 %v341, 4294901760
        %v1218 = vsub.f32 %v341, %v1217
        %v1219 = vand.u32 %v1218, 4294901760
        %1220 = vmatmul.mubr.f32.gmra.mrb[0].mxu0 %v1219
        %v1221 = vpop.f32.mrb[0].mxu0
        %v1222 = vadd.f32 %v1054, %v1221
        %v1223 = vpop.f32.mrb[0].mxu0
        %v1224 = vadd.f32 %v1056, %v1223
        %1225 = vmatprep.mubr.f32.mxu0 0.0
        %v1226 = vand.u32 %v342, 4294901760
        %v1227 = vsub.f32 %v342, %v1226
        %v1228 = vand.u32 %v1227, 4294901760
        %1229 = vmatmul.mubr.f32.gmra.mrb[0].mxu0 %v1228
        %v1230 = vpop.f32.mrb[0].mxu0
        %v1231 = vadd.f32 %v1062, %v1230
        %v1232 = vpop.f32.mrb[0].mxu0
        %v1233 = vadd.f32 %v1064, %v1232
        %1234 = vdwg.mxu0
        %v1235 = vand.u32 %v376, 4294901760
        %v1236 = vsub.f32 %v376, %v1235
        %v1237 = vand.u32 %v1236, 4294901760
        %1238 = vmatprep.subr.mxu0 %v1237
        %v1239 = vand.u32 %v375, 4294901760
        %v1240 = vsub.f32 %v375, %v1239
        %v1241 = vand.u32 %v1240, 4294901760
        %1242 = vmatpush1.msra.mxu0 %v1241
        %v1243 = vand.u32 %v378, 4294901760
        %v1244 = vsub.f32 %v378, %v1243
        %v1245 = vand.u32 %v1244, 4294901760
        %1246 = vmatprep.subr.mxu0 %v1245
        %v1247 = vand.u32 %v377, 4294901760
        %v1248 = vsub.f32 %v377, %v1247
        %v1249 = vand.u32 %v1248, 4294901760
        %1250 = vmatpush1.msra.mxu0 %v1249
        %v1251 = vand.u32 %v380, 4294901760
        %v1252 = vsub.f32 %v380, %v1251
        %v1253 = vand.u32 %v1252, 4294901760
        %1254 = vmatprep.subr.mxu0 %v1253
        %v1255 = vand.u32 %v379, 4294901760
        %v1256 = vsub.f32 %v379, %v1255
        %v1257 = vand.u32 %v1256, 4294901760
        %1258 = vmatpush1.msra.mxu0 %v1257
        %v1259 = vand.u32 %v382, 4294901760
        %v1260 = vsub.f32 %v382, %v1259
        %v1261 = vand.u32 %v1260, 4294901760
        %1262 = vmatprep.subr.mxu0 %v1261
        %v1263 = vand.u32 %v381, 4294901760
        %v1264 = vsub.f32 %v381, %v1263
        %v1265 = vand.u32 %v1264, 4294901760
        %1266 = vmatpush1.msra.mxu0 %v1265
        %v1267 = vand.u32 %v384, 4294901760
        %v1268 = vsub.f32 %v384, %v1267
        %v1269 = vand.u32 %v1268, 4294901760
        %1270 = vmatprep.subr.mxu0 %v1269
        %v1271 = vand.u32 %v383, 4294901760
        %v1272 = vsub.f32 %v383, %v1271
        %v1273 = vand.u32 %v1272, 4294901760
        %1274 = vmatpush1.msra.mxu0 %v1273
        %v1275 = vand.u32 %v386, 4294901760
        %v1276 = vsub.f32 %v386, %v1275
        %v1277 = vand.u32 %v1276, 4294901760
        %1278 = vmatprep.subr.mxu0 %v1277
        %v1279 = vand.u32 %v385, 4294901760
        %v1280 = vsub.f32 %v385, %v1279
        %v1281 = vand.u32 %v1280, 4294901760
        %1282 = vmatpush1.msra.mxu0 %v1281
        %v1283 = vand.u32 %v388, 4294901760
        %v1284 = vsub.f32 %v388, %v1283
        %v1285 = vand.u32 %v1284, 4294901760
        %1286 = vmatprep.subr.mxu0 %v1285
        %v1287 = vand.u32 %v387, 4294901760
        %v1288 = vsub.f32 %v387, %v1287
        %v1289 = vand.u32 %v1288, 4294901760
        %1290 = vmatpush1.msra.mxu0 %v1289
        %v1291 = vand.u32 %v390, 4294901760
        %v1292 = vsub.f32 %v390, %v1291
        %v1293 = vand.u32 %v1292, 4294901760
        %1294 = vmatprep.subr.mxu0 %v1293
        %v1295 = vand.u32 %v389, 4294901760
        %v1296 = vsub.f32 %v389, %v1295
        %v1297 = vand.u32 %v1296, 4294901760
        %1298 = vmatpush1.msra.mxu0 %v1297
        %v1299 = vand.u32 %v392, 4294901760
        %v1300 = vsub.f32 %v392, %v1299
        %v1301 = vand.u32 %v1300, 4294901760
        %1302 = vmatprep.subr.mxu0 %v1301
        %v1303 = vand.u32 %v391, 4294901760
        %v1304 = vsub.f32 %v391, %v1303
        %v1305 = vand.u32 %v1304, 4294901760
        %1306 = vmatpush1.msra.mxu0 %v1305
        %v1307 = vand.u32 %v394, 4294901760
        %v1308 = vsub.f32 %v394, %v1307
        %v1309 = vand.u32 %v1308, 4294901760
        %1310 = vmatprep.subr.mxu0 %v1309
        %v1311 = vand.u32 %v393, 4294901760
        %v1312 = vsub.f32 %v393, %v1311
        %v1313 = vand.u32 %v1312, 4294901760
        %1314 = vmatpush1.msra.mxu0 %v1313
        %v1315 = vand.u32 %v396, 4294901760
        %v1316 = vsub.f32 %v396, %v1315
        %v1317 = vand.u32 %v1316, 4294901760
        %1318 = vmatprep.subr.mxu0 %v1317
        %v1319 = vand.u32 %v395, 4294901760
        %v1320 = vsub.f32 %v395, %v1319
        %v1321 = vand.u32 %v1320, 4294901760
        %1322 = vmatpush1.msra.mxu0 %v1321
        %v1323 = vand.u32 %v398, 4294901760
        %v1324 = vsub.f32 %v398, %v1323
        %v1325 = vand.u32 %v1324, 4294901760
        %1326 = vmatprep.subr.mxu0 %v1325
        %v1327 = vand.u32 %v397, 4294901760
        %v1328 = vsub.f32 %v397, %v1327
        %v1329 = vand.u32 %v1328, 4294901760
        %1330 = vmatpush1.msra.mxu0 %v1329
        %v1331 = vand.u32 %v400, 4294901760
        %v1332 = vsub.f32 %v400, %v1331
        %v1333 = vand.u32 %v1332, 4294901760
        %1334 = vmatprep.subr.mxu0 %v1333
        %v1335 = vand.u32 %v399, 4294901760
        %v1336 = vsub.f32 %v399, %v1335
        %v1337 = vand.u32 %v1336, 4294901760
        %1338 = vmatpush1.msra.mxu0 %v1337
        %v1339 = vand.u32 %v402, 4294901760
        %v1340 = vsub.f32 %v402, %v1339
        %v1341 = vand.u32 %v1340, 4294901760
        %1342 = vmatprep.subr.mxu0 %v1341
        %v1343 = vand.u32 %v401, 4294901760
        %v1344 = vsub.f32 %v401, %v1343
        %v1345 = vand.u32 %v1344, 4294901760
        %1346 = vmatpush1.msra.mxu0 %v1345
        %v1347 = vand.u32 %v404, 4294901760
        %v1348 = vsub.f32 %v404, %v1347
        %v1349 = vand.u32 %v1348, 4294901760
        %1350 = vmatprep.subr.mxu0 %v1349
        %v1351 = vand.u32 %v403, 4294901760
        %v1352 = vsub.f32 %v403, %v1351
        %v1353 = vand.u32 %v1352, 4294901760
        %1354 = vmatpush1.msra.mxu0 %v1353
        %v1355 = vand.u32 %v406, 4294901760
        %v1356 = vsub.f32 %v406, %v1355
        %v1357 = vand.u32 %v1356, 4294901760
        %1358 = vmatprep.subr.mxu0 %v1357
        %v1359 = vand.u32 %v405, 4294901760
        %v1360 = vsub.f32 %v405, %v1359
        %v1361 = vand.u32 %v1360, 4294901760
        %1362 = vmatpush1.msra.mxu0 %v1361
        %1363 = vmatprep.subr.mxu0 0.0
        %1364 = vmatpush1.msra.mxu0 0.0
        %1365 = vmatprep.subr.mxu0 0.0
        %1366 = vmatpush1.msra.mxu0 0.0
        %1367 = vmatprep.subr.mxu0 0.0
        %1368 = vmatpush1.msra.mxu0 0.0
        %1369 = vmatprep.subr.mxu0 0.0
        %1370 = vmatpush1.msra.mxu0 0.0
        %1371 = vmatprep.subr.mxu0 0.0
        %1372 = vmatpush1.msra.mxu0 0.0
        %1373 = vmatprep.subr.mxu0 0.0
        %1374 = vmatpush1.msra.mxu0 0.0
        %1375 = vmatprep.subr.mxu0 0.0
        %1376 = vmatpush1.msra.mxu0 0.0
        %1377 = vmatprep.subr.mxu0 0.0
        %1378 = vmatpush1.msra.mxu0 0.0
        %1379 = vmatprep.subr.mxu0 0.0
        %1380 = vmatpush1.msra.mxu0 0.0
        %1381 = vmatprep.subr.mxu0 0.0
        %1382 = vmatpush1.msra.mxu0 0.0
        %1383 = vmatprep.subr.mxu0 0.0
        %1384 = vmatpush1.msra.mxu0 0.0
        %1385 = vmatprep.subr.mxu0 0.0
        %1386 = vmatpush1.msra.mxu0 0.0
        %1387 = vmatprep.subr.mxu0 0.0
        %1388 = vmatpush1.msra.mxu0 0.0
        %1389 = vmatprep.subr.mxu0 0.0
        %1390 = vmatpush1.msra.mxu0 0.0
        %1391 = vmatprep.subr.mxu0 0.0
        %1392 = vmatpush1.msra.mxu0 0.0
        %1393 = vmatprep.subr.mxu0 0.0
        %1394 = vmatpush1.msra.mxu0 0.0
        %1395 = vmatprep.mubr.f32.mxu0 0.0
        %v1396 = vand.u32 %v335, 4294901760
        %1397 = vmatmul.mubr.f32.gmra.mrb[0].mxu0 %v1396
        %v1398 = vpop.f32.mrb[0].mxu0
        %v1399 = vadd.f32 %v1168, %v1398
        %v1400 = vpop.f32.mrb[0].mxu0
        %v1401 = vadd.f32 %v1170, %v1400
        %1402 = vmatprep.mubr.f32.mxu0 0.0
        %v1403 = vand.u32 %v336, 4294901760
        %1404 = vmatmul.mubr.f32.gmra.mrb[0].mxu0 %v1403
        %v1405 = vpop.f32.mrb[0].mxu0
        %v1406 = vadd.f32 %v1177, %v1405
        %v1407 = vpop.f32.mrb[0].mxu0
        %v1408 = vadd.f32 %v1179, %v1407
        %1409 = vmatprep.mubr.f32.mxu0 0.0
        %v1410 = vand.u32 %v337, 4294901760
        %1411 = vmatmul.mubr.f32.gmra.mrb[0].mxu0 %v1410
        %v1412 = vpop.f32.mrb[0].mxu0
        %v1413 = vadd.f32 %v1186, %v1412
        %v1414 = vpop.f32.mrb[0].mxu0
        %v1415 = vadd.f32 %v1188, %v1414
        %1416 = vmatprep.mubr.f32.mxu0 0.0
        %v1417 = vand.u32 %v338, 4294901760
        %1418 = vmatmul.mubr.f32.gmra.mrb[0].mxu0 %v1417
        %v1419 = vpop.f32.mrb[0].mxu0
        %v1420 = vadd.f32 %v1195, %v1419
        %v1421 = vpop.f32.mrb[0].mxu0
        %v1422 = vadd.f32 %v1197, %v1421
        %1423 = vmatprep.mubr.f32.mxu0 0.0
        %v1424 = vand.u32 %v339, 4294901760
        %1425 = vmatmul.mubr.f32.gmra.mrb[0].mxu0 %v1424
        %v1426 = vpop.f32.mrb[0].mxu0
        %v1427 = vadd.f32 %v1204, %v1426
        %v1428 = vpop.f32.mrb[0].mxu0
        %v1429 = vadd.f32 %v1206, %v1428
        %1430 = vmatprep.mubr.f32.mxu0 0.0
        %v1431 = vand.u32 %v340, 4294901760
        %1432 = vmatmul.mubr.f32.gmra.mrb[0].mxu0 %v1431
        %v1433 = vpop.f32.mrb[0].mxu0
        %v1434 = vadd.f32 %v1213, %v1433
        %v1435 = vpop.f32.mrb[0].mxu0
        %v1436 = vadd.f32 %v1215, %v1435
        %1437 = vmatprep.mubr.f32.mxu0 0.0
        %v1438 = vand.u32 %v341, 4294901760
        %1439 = vmatmul.mubr.f32.gmra.mrb[0].mxu0 %v1438
        %v1440 = vpop.f32.mrb[0].mxu0
        %v1441 = vadd.f32 %v1222, %v1440
        %v1442 = vpop.f32.mrb[0].mxu0
        %v1443 = vadd.f32 %v1224, %v1442
        %1444 = vmatprep.mubr.f32.mxu0 0.0
        %v1445 = vand.u32 %v342, 4294901760
        %1446 = vmatmul.mubr.f32.gmra.mrb[0].mxu0 %v1445
        %v1447 = vpop.f32.mrb[0].mxu0
        %v1448 = vadd.f32 %v1231, %v1447
        %v1449 = vpop.f32.mrb[0].mxu0
        %v1450 = vadd.f32 %v1233, %v1449
        %1451 = vdwg.mxu0
        %v1452 = vand.u32 %v376, 4294901760
        %1453 = vmatprep.subr.mxu0 %v1452
        %v1454 = vand.u32 %v375, 4294901760
        %1455 = vmatpush1.msra.mxu0 %v1454
        %v1456 = vand.u32 %v378, 4294901760
        %1457 = vmatprep.subr.mxu0 %v1456
        %v1458 = vand.u32 %v377, 4294901760
        %1459 = vmatpush1.msra.mxu0 %v1458
        %v1460 = vand.u32 %v380, 4294901760
        %1461 = vmatprep.subr.mxu0 %v1460
        %v1462 = vand.u32 %v379, 4294901760
        %1463 = vmatpush1.msra.mxu0 %v1462
        %v1464 = vand.u32 %v382, 4294901760
        %1465 = vmatprep.subr.mxu0 %v1464
        %v1466 = vand.u32 %v381, 4294901760
        %1467 = vmatpush1.msra.mxu0 %v1466
        %v1468 = vand.u32 %v384, 4294901760
        %1469 = vmatprep.subr.mxu0 %v1468
        %v1470 = vand.u32 %v383, 4294901760
        %1471 = vmatpush1.msra.mxu0 %v1470
        %v1472 = vand.u32 %v386, 4294901760
        %1473 = vmatprep.subr.mxu0 %v1472
        %v1474 = vand.u32 %v385, 4294901760
        %1475 = vmatpush1.msra.mxu0 %v1474
        %v1476 = vand.u32 %v388, 4294901760
        %1477 = vmatprep.subr.mxu0 %v1476
        %v1478 = vand.u32 %v387, 4294901760
        %1479 = vmatpush1.msra.mxu0 %v1478
        %v1480 = vand.u32 %v390, 4294901760
        %1481 = vmatprep.subr.mxu0 %v1480
        %v1482 = vand.u32 %v389, 4294901760
        %1483 = vmatpush1.msra.mxu0 %v1482
        %v1484 = vand.u32 %v392, 4294901760
        %1485 = vmatprep.subr.mxu0 %v1484
        %v1486 = vand.u32 %v391, 4294901760
        %1487 = vmatpush1.msra.mxu0 %v1486
        %v1488 = vand.u32 %v394, 4294901760
        %1489 = vmatprep.subr.mxu0 %v1488
        %v1490 = vand.u32 %v393, 4294901760
        %1491 = vmatpush1.msra.mxu0 %v1490
        %v1492 = vand.u32 %v396, 4294901760
        %1493 = vmatprep.subr.mxu0 %v1492
        %v1494 = vand.u32 %v395, 4294901760
        %1495 = vmatpush1.msra.mxu0 %v1494
        %v1496 = vand.u32 %v398, 4294901760
        %1497 = vmatprep.subr.mxu0 %v1496
        %v1498 = vand.u32 %v397, 4294901760
        %1499 = vmatpush1.msra.mxu0 %v1498
        %v1500 = vand.u32 %v400, 4294901760
        %1501 = vmatprep.subr.mxu0 %v1500
        %v1502 = vand.u32 %v399, 4294901760
        %1503 = vmatpush1.msra.mxu0 %v1502
        %v1504 = vand.u32 %v402, 4294901760
        %1505 = vmatprep.subr.mxu0 %v1504
        %v1506 = vand.u32 %v401, 4294901760
        %1507 = vmatpush1.msra.mxu0 %v1506
        %v1508 = vand.u32 %v404, 4294901760
        %1509 = vmatprep.subr.mxu0 %v1508
        %v1510 = vand.u32 %v403, 4294901760
        %1511 = vmatpush1.msra.mxu0 %v1510
        %v1512 = vand.u32 %v406, 4294901760
        %1513 = vmatprep.subr.mxu0 %v1512
        %v1514 = vand.u32 %v405, 4294901760
        %1515 = vmatpush1.msra.mxu0 %v1514
        %1516 = vmatprep.subr.mxu0 0.0
        %1517 = vmatpush1.msra.mxu0 0.0
        %1518 = vmatprep.subr.mxu0 0.0
        %1519 = vmatpush1.msra.mxu0 0.0
        %1520 = vmatprep.subr.mxu0 0.0
        %1521 = vmatpush1.msra.mxu0 0.0
        %1522 = vmatprep.subr.mxu0 0.0
        %1523 = vmatpush1.msra.mxu0 0.0
        %1524 = vmatprep.subr.mxu0 0.0
        %1525 = vmatpush1.msra.mxu0 0.0
        %1526 = vmatprep.subr.mxu0 0.0
        %1527 = vmatpush1.msra.mxu0 0.0
        %1528 = vmatprep.subr.mxu0 0.0
        %1529 = vmatpush1.msra.mxu0 0.0
        %1530 = vmatprep.subr.mxu0 0.0
        %1531 = vmatpush1.msra.mxu0 0.0
        %1532 = vmatprep.subr.mxu0 0.0
        %1533 = vmatpush1.msra.mxu0 0.0
        %1534 = vmatprep.subr.mxu0 0.0
        %1535 = vmatpush1.msra.mxu0 0.0
        %1536 = vmatprep.subr.mxu0 0.0
        %1537 = vmatpush1.msra.mxu0 0.0
        %1538 = vmatprep.subr.mxu0 0.0
        %1539 = vmatpush1.msra.mxu0 0.0
        %1540 = vmatprep.subr.mxu0 0.0
        %1541 = vmatpush1.msra.mxu0 0.0
        %1542 = vmatprep.subr.mxu0 0.0
        %1543 = vmatpush1.msra.mxu0 0.0
        %1544 = vmatprep.subr.mxu0 0.0
        %1545 = vmatpush1.msra.mxu0 0.0
        %1546 = vmatprep.subr.mxu0 0.0
        %1547 = vmatpush1.msra.mxu0 0.0
        %1548 = vmatprep.mubr.f32.mxu0 0.0
        %v1549 = vand.u32 %v335, 4294901760
        %1550 = vmatmul.mubr.f32.gmra.mrb[0].mxu0 %v1549
        %v1551 = vpop.f32.mrb[0].mxu0
        %v1552 = vadd.f32 %v1399, %v1551
        %v1553 = vpop.f32.mrb[0].mxu0
        %v1554 = vadd.f32 %v1401, %v1553
        %1555 = vmatprep.mubr.f32.mxu0 0.0
        %v1556 = vand.u32 %v336, 4294901760
        %1557 = vmatmul.mubr.f32.gmra.mrb[0].mxu0 %v1556
        %v1558 = vpop.f32.mrb[0].mxu0
        %v1559 = vadd.f32 %v1406, %v1558
        %v1560 = vpop.f32.mrb[0].mxu0
        %v1561 = vadd.f32 %v1408, %v1560
        %1562 = vmatprep.mubr.f32.mxu0 0.0
        %v1563 = vand.u32 %v337, 4294901760
        %1564 = vmatmul.mubr.f32.gmra.mrb[0].mxu0 %v1563
        %v1565 = vpop.f32.mrb[0].mxu0
        %v1566 = vadd.f32 %v1413, %v1565
        %v1567 = vpop.f32.mrb[0].mxu0
        %v1568 = vadd.f32 %v1415, %v1567
        %1569 = vmatprep.mubr.f32.mxu0 0.0
        %v1570 = vand.u32 %v338, 4294901760
        %1571 = vmatmul.mubr.f32.gmra.mrb[0].mxu0 %v1570
        %v1572 = vpop.f32.mrb[0].mxu0
        %v1573 = vadd.f32 %v1420, %v1572
        %v1574 = vpop.f32.mrb[0].mxu0
        %v1575 = vadd.f32 %v1422, %v1574
        %1576 = vmatprep.mubr.f32.mxu0 0.0
        %v1577 = vand.u32 %v339, 4294901760
        %1578 = vmatmul.mubr.f32.gmra.mrb[0].mxu0 %v1577
        %v1579 = vpop.f32.mrb[0].mxu0
        %v1580 = vadd.f32 %v1427, %v1579
        %v1581 = vpop.f32.mrb[0].mxu0
        %v1582 = vadd.f32 %v1429, %v1581
        %1583 = vmatprep.mubr.f32.mxu0 0.0
        %v1584 = vand.u32 %v340, 4294901760
        %1585 = vmatmul.mubr.f32.gmra.mrb[0].mxu0 %v1584
        %v1586 = vpop.f32.mrb[0].mxu0
        %v1587 = vadd.f32 %v1434, %v1586
        %v1588 = vpop.f32.mrb[0].mxu0
        %v1589 = vadd.f32 %v1436, %v1588
        %1590 = vmatprep.mubr.f32.mxu0 0.0
        %v1591 = vand.u32 %v341, 4294901760
        %1592 = vmatmul.mubr.f32.gmra.mrb[0].mxu0 %v1591
        %v1593 = vpop.f32.mrb[0].mxu0
        %v1594 = vadd.f32 %v1441, %v1593
        %v1595 = vpop.f32.mrb[0].mxu0
        %v1596 = vadd.f32 %v1443, %v1595
        %1597 = vmatprep.mubr.f32.mxu0 0.0
        %v1598 = vand.u32 %v342, 4294901760
        %1599 = vmatmul.mubr.f32.gmra.mrb[0].mxu0 %v1598
        %v1600 = vpop.f32.mrb[0].mxu0
        %v1601 = vadd.f32 %v1448, %v1600
        %v1602 = vpop.f32.mrb[0].mxu0
        %v1603 = vadd.f32 %v1450, %v1602
        %1604 = vdwg.mxu0
        %1605 = vst [vmem:[%s309] sm:$0xff] 0
        %1606 = vst [vmem:[%s309 + $0x8] sm:$0xff] 0
        %1607 = vst [vmem:[%s309 + $0x10] sm:$0xff] 0
        %1608 = vst [vmem:[%s309 + $0x18] sm:$0xff] 0
        %1609 = vst [vmem:[%s309 + $0x20] sm:$0xff] 0
        %1610 = vst [vmem:[%s309 + $0x28] sm:$0xff] 0
        %1611 = vst [vmem:[%s309 + $0x30] sm:$0xff] 0
        %1612 = vst [vmem:[%s309 + $0x38] sm:$0xff] 0
        %v1613 = vlaneseq
        %v1614 = vand.u32 %v1613, 127
        %v1615 = vadd.s32 %v1614, 128
        %v1616 = vmax.f32 %v1552, %v1554
        %1617 = vmax.xlane.f32.xlu0 %v1616
        %v1618 = vpop.xlane.xlu0 %1617
        %v1619 = vmax.f32 %v1559, %v1561
        %1620 = vmax.xlane.f32.xlu0 %v1619
        %v1621 = vpop.xlane.xlu0 %1620
        %v1622 = vmax.f32 %v1566, %v1568
        %1623 = vmax.xlane.f32.xlu0 %v1622
        %v1624 = vpop.xlane.xlu0 %1623
        %v1625 = vmax.f32 %v1573, %v1575
        %1626 = vmax.xlane.f32.xlu0 %v1625
        %v1627 = vpop.xlane.xlu0 %1626
        %v1628 = vmax.f32 %v1580, %v1582
        %1629 = vmax.xlane.f32.xlu0 %v1628
        %v1630 = vpop.xlane.xlu0 %1629
        %v1631 = vmax.f32 %v1587, %v1589
        %1632 = vmax.xlane.f32.xlu0 %v1631
        %v1633 = vpop.xlane.xlu0 %1632
        %v1634 = vmax.f32 %v1594, %v1596
        %1635 = vmax.xlane.f32.xlu0 %v1634
        %v1636 = vpop.xlane.xlu0 %1635
        %v1637 = vmax.f32 %v1601, %v1603
        %1638 = vmax.xlane.f32.xlu0 %v1637
        %v1639 = vpop.xlane.xlu0 %1638
        %vm1640 = vcmp.eq.f32.partialorder %v1552, %v1618
        %vm1641 = vcmp.eq.f32.partialorder %v1554, %v1618
        %vm1642 = vcmp.eq.f32.partialorder %v1559, %v1621
        %vm1643 = vcmp.eq.f32.partialorder %v1561, %v1621
        %vm1644 = vcmp.eq.f32.partialorder %v1566, %v1624
        %vm1645 = vcmp.eq.f32.partialorder %v1568, %v1624
        %vm1646 = vcmp.eq.f32.partialorder %v1573, %v1627
        %vm1647 = vcmp.eq.f32.partialorder %v1575, %v1627
        %vm1648 = vcmp.eq.f32.partialorder %v1580, %v1630
        %vm1649 = vcmp.eq.f32.partialorder %v1582, %v1630
        %vm1650 = vcmp.eq.f32.partialorder %v1587, %v1633
        %vm1651 = vcmp.eq.f32.partialorder %v1589, %v1633
        %vm1652 = vcmp.eq.f32.partialorder %v1594, %v1636
        %vm1653 = vcmp.eq.f32.partialorder %v1596, %v1636
        %vm1654 = vcmp.eq.f32.partialorder %v1601, %v1639
        %vm1655 = vcmp.eq.f32.partialorder %v1603, %v1639
        %v1656 = vsel %vm1640, %v1614, 256
        %v1657 = vsel %vm1641, %v1615, 256
        %v1658 = vsel %vm1642, %v1614, 256
        %v1659 = vsel %vm1643, %v1615, 256
        %v1660 = vsel %vm1644, %v1614, 256
        %v1661 = vsel %vm1645, %v1615, 256
        %v1662 = vsel %vm1646, %v1614, 256
        %v1663 = vsel %vm1647, %v1615, 256
        %v1664 = vsel %vm1648, %v1614, 256
        %v1665 = vsel %vm1649, %v1615, 256
        %v1666 = vsel %vm1650, %v1614, 256
        %v1667 = vsel %vm1651, %v1615, 256
        %v1668 = vsel %vm1652, %v1614, 256
        %v1669 = vsel %vm1653, %v1615, 256
        %v1670 = vsel %vm1654, %v1614, 256
        %v1671 = vsel %vm1655, %v1615, 256
        %vm1672 = vcmp.lt.s32.totalorder %v1656, %v1657
        %v1673 = vsel %vm1672, %v1656, %v1657
        %v1674 = vand.u32 %v1673, 65535
        %v1675 = vshra.s32 %v1673, 16
        %v1676 = vcvt.s32.f32 %v1674
        %v1677 = vcvt.s32.f32 %v1675
        %1678 = vmin.xlane.f32.xlu0 %v1677
        %v1679 = vpop.xlane.xlu0 %1678
        %vm1680 = vcmp.eq.f32.partialorder %v1677, %v1679
        %v1681 = vsel %vm1680, %v1676, inf
        %1682 = vmin.xlane.f32.xlu0 %v1681
        %v1683 = vpop.xlane.xlu0 %1682
        %v1684 = vcvt.f32.s32 %v1683
        %v1685 = vcvt.f32.s32 %v1679
        %v1686 = vshll.u32 %v1685, 16
        %v1687 = vadd.s32 %v1686, %v1684
        %vm1688 = vcmp.lt.s32.totalorder %v1658, %v1659
        %v1689 = vsel %vm1688, %v1658, %v1659
        %v1690 = vand.u32 %v1689, 65535
        %v1691 = vshra.s32 %v1689, 16
        %v1692 = vcvt.s32.f32 %v1690
        %v1693 = vcvt.s32.f32 %v1691
        %1694 = vmin.xlane.f32.xlu0 %v1693
        %v1695 = vpop.xlane.xlu0 %1694
        %vm1696 = vcmp.eq.f32.partialorder %v1693, %v1695
        %v1697 = vsel %vm1696, %v1692, inf
        %1698 = vmin.xlane.f32.xlu0 %v1697
        %v1699 = vpop.xlane.xlu0 %1698
        %v1700 = vcvt.f32.s32 %v1699
        %v1701 = vcvt.f32.s32 %v1695
        %v1702 = vshll.u32 %v1701, 16
        %v1703 = vadd.s32 %v1702, %v1700
        %vm1704 = vcmp.lt.s32.totalorder %v1660, %v1661
        %v1705 = vsel %vm1704, %v1660, %v1661
        %v1706 = vand.u32 %v1705, 65535
        %v1707 = vshra.s32 %v1705, 16
        %v1708 = vcvt.s32.f32 %v1706
        %v1709 = vcvt.s32.f32 %v1707
        %1710 = vmin.xlane.f32.xlu0 %v1709
        %v1711 = vpop.xlane.xlu0 %1710
        %vm1712 = vcmp.eq.f32.partialorder %v1709, %v1711
        %v1713 = vsel %vm1712, %v1708, inf
        %1714 = vmin.xlane.f32.xlu0 %v1713
        %v1715 = vpop.xlane.xlu0 %1714
        %v1716 = vcvt.f32.s32 %v1715
        %v1717 = vcvt.f32.s32 %v1711
        %v1718 = vshll.u32 %v1717, 16
        %v1719 = vadd.s32 %v1718, %v1716
        %vm1720 = vcmp.lt.s32.totalorder %v1662, %v1663
        %v1721 = vsel %vm1720, %v1662, %v1663
        %v1722 = vand.u32 %v1721, 65535
        %v1723 = vshra.s32 %v1721, 16
        %v1724 = vcvt.s32.f32 %v1722
        %v1725 = vcvt.s32.f32 %v1723
        %1726 = vmin.xlane.f32.xlu0 %v1725
        %v1727 = vpop.xlane.xlu0 %1726
        %vm1728 = vcmp.eq.f32.partialorder %v1725, %v1727
        %v1729 = vsel %vm1728, %v1724, inf
        %1730 = vmin.xlane.f32.xlu0 %v1729
        %v1731 = vpop.xlane.xlu0 %1730
        %v1732 = vcvt.f32.s32 %v1731
        %v1733 = vcvt.f32.s32 %v1727
        %v1734 = vshll.u32 %v1733, 16
        %v1735 = vadd.s32 %v1734, %v1732
        %vm1736 = vcmp.lt.s32.totalorder %v1664, %v1665
        %v1737 = vsel %vm1736, %v1664, %v1665
        %v1738 = vand.u32 %v1737, 65535
        %v1739 = vshra.s32 %v1737, 16
        %v1740 = vcvt.s32.f32 %v1738
        %v1741 = vcvt.s32.f32 %v1739
        %1742 = vmin.xlane.f32.xlu0 %v1741
        %v1743 = vpop.xlane.xlu0 %1742
        %vm1744 = vcmp.eq.f32.partialorder %v1741, %v1743
        %v1745 = vsel %vm1744, %v1740, inf
        %1746 = vmin.xlane.f32.xlu0 %v1745
        %v1747 = vpop.xlane.xlu0 %1746
        %v1748 = vcvt.f32.s32 %v1747
        %v1749 = vcvt.f32.s32 %v1743
        %v1750 = vshll.u32 %v1749, 16
        %v1751 = vadd.s32 %v1750, %v1748
        %vm1752 = vcmp.lt.s32.totalorder %v1666, %v1667
        %v1753 = vsel %vm1752, %v1666, %v1667
        %v1754 = vand.u32 %v1753, 65535
        %v1755 = vshra.s32 %v1753, 16
        %v1756 = vcvt.s32.f32 %v1754
        %v1757 = vcvt.s32.f32 %v1755
        %1758 = vmin.xlane.f32.xlu0 %v1757
        %v1759 = vpop.xlane.xlu0 %1758
        %vm1760 = vcmp.eq.f32.partialorder %v1757, %v1759
        %v1761 = vsel %vm1760, %v1756, inf
        %1762 = vmin.xlane.f32.xlu0 %v1761
        %v1763 = vpop.xlane.xlu0 %1762
        %v1764 = vcvt.f32.s32 %v1763
        %v1765 = vcvt.f32.s32 %v1759
        %v1766 = vshll.u32 %v1765, 16
        %v1767 = vadd.s32 %v1766, %v1764
        %vm1768 = vcmp.lt.s32.totalorder %v1668, %v1669
        %v1769 = vsel %vm1768, %v1668, %v1669
        %v1770 = vand.u32 %v1769, 65535
        %v1771 = vshra.s32 %v1769, 16
        %v1772 = vcvt.s32.f32 %v1770
        %v1773 = vcvt.s32.f32 %v1771
        %1774 = vmin.xlane.f32.xlu0 %v1773
        %v1775 = vpop.xlane.xlu0 %1774
        %vm1776 = vcmp.eq.f32.partialorder %v1773, %v1775
        %v1777 = vsel %vm1776, %v1772, inf
        %1778 = vmin.xlane.f32.xlu0 %v1777
        %v1779 = vpop.xlane.xlu0 %1778
        %v1780 = vcvt.f32.s32 %v1779
        %v1781 = vcvt.f32.s32 %v1775
        %v1782 = vshll.u32 %v1781, 16
        %v1783 = vadd.s32 %v1782, %v1780
        %vm1784 = vcmp.lt.s32.totalorder %v1670, %v1671
        %v1785 = vsel %vm1784, %v1670, %v1671
        %v1786 = vand.u32 %v1785, 65535
        %v1787 = vshra.s32 %v1785, 16
        %v1788 = vcvt.s32.f32 %v1786
        %v1789 = vcvt.s32.f32 %v1787
        %1790 = vmin.xlane.f32.xlu0 %v1789
        %v1791 = vpop.xlane.xlu0 %1790
        %vm1792 = vcmp.eq.f32.partialorder %v1789, %v1791
        %v1793 = vsel %vm1792, %v1788, inf
        %1794 = vmin.xlane.f32.xlu0 %v1793
        %v1795 = vpop.xlane.xlu0 %1794
        %v1796 = vcvt.f32.s32 %v1795
        %v1797 = vcvt.f32.s32 %v1791
        %v1798 = vshll.u32 %v1797, 16
        %v1799 = vadd.s32 %v1798, %v1796
        %vm1800 = vcmp.eq.s32.totalorder %v1614, %v1687
        %vm1801 = vcmp.eq.s32.totalorder %v1615, %v1687
        %vm1802 = vcmp.eq.s32.totalorder %v1614, %v1703
        %vm1803 = vcmp.eq.s32.totalorder %v1615, %v1703
        %vm1804 = vcmp.eq.s32.totalorder %v1614, %v1719
        %vm1805 = vcmp.eq.s32.totalorder %v1615, %v1719
        %vm1806 = vcmp.eq.s32.totalorder %v1614, %v1735
        %vm1807 = vcmp.eq.s32.totalorder %v1615, %v1735
        %vm1808 = vcmp.eq.s32.totalorder %v1614, %v1751
        %vm1809 = vcmp.eq.s32.totalorder %v1615, %v1751
        %vm1810 = vcmp.eq.s32.totalorder %v1614, %v1767
        %vm1811 = vcmp.eq.s32.totalorder %v1615, %v1767
        %vm1812 = vcmp.eq.s32.totalorder %v1614, %v1783
        %vm1813 = vcmp.eq.s32.totalorder %v1615, %v1783
        %vm1814 = vcmp.eq.s32.totalorder %v1614, %v1799
        %vm1815 = vcmp.eq.s32.totalorder %v1615, %v1799
        %v1816 = vsel %vm1800, -inf, %v1552
        %v1817 = vsel %vm1801, -inf, %v1554
        %v1818 = vsel %vm1802, -inf, %v1559
        %v1819 = vsel %vm1803, -inf, %v1561
        %v1820 = vsel %vm1804, -inf, %v1566
        %v1821 = vsel %vm1805, -inf, %v1568
        %v1822 = vsel %vm1806, -inf, %v1573
        %v1823 = vsel %vm1807, -inf, %v1575
        %v1824 = vsel %vm1808, -inf, %v1580
        %v1825 = vsel %vm1809, -inf, %v1582
        %v1826 = vsel %vm1810, -inf, %v1587
        %v1827 = vsel %vm1811, -inf, %v1589
        %v1828 = vsel %vm1812, -inf, %v1594
        %v1829 = vsel %vm1813, -inf, %v1596
        %v1830 = vsel %vm1814, -inf, %v1601
        %v1831 = vsel %vm1815, -inf, %v1603
        %vm1840 = vcmask 7168
        %1841 = vst.msk [vmem:[%s309] sm:$0xff] %vm1840, %v1618
        %1842 = vst.msk [vmem:[%s309 + $0x8] sm:$0xff] %vm1840, %v1621
        %1843 = vst.msk [vmem:[%s309 + $0x10] sm:$0xff] %vm1840, %v1624
        %1844 = vst.msk [vmem:[%s309 + $0x18] sm:$0xff] %vm1840, %v1627
        %1845 = vst.msk [vmem:[%s309 + $0x20] sm:$0xff] %vm1840, %v1630
        %1846 = vst.msk [vmem:[%s309 + $0x28] sm:$0xff] %vm1840, %v1633
        %1847 = vst.msk [vmem:[%s309 + $0x30] sm:$0xff] %vm1840, %v1636
        %1848 = vst.msk [vmem:[%s309 + $0x38] sm:$0xff] %vm1840, %v1639
        %vm1849 = vcmask 39968
        %1850 = vst.msk [vmem:[%s309] sm:$0xff] %vm1849, %v1687
        %1851 = vst.msk [vmem:[%s309 + $0x8] sm:$0xff] %vm1849, %v1703
        %1852 = vst.msk [vmem:[%s309 + $0x10] sm:$0xff] %vm1849, %v1719
        %1853 = vst.msk [vmem:[%s309 + $0x18] sm:$0xff] %vm1849, %v1735
        %1854 = vst.msk [vmem:[%s309 + $0x20] sm:$0xff] %vm1849, %v1751
        %1855 = vst.msk [vmem:[%s309 + $0x28] sm:$0xff] %vm1849, %v1767
        %1856 = vst.msk [vmem:[%s309 + $0x30] sm:$0xff] %vm1849, %v1783
        %1857 = vst.msk [vmem:[%s309 + $0x38] sm:$0xff] %vm1849, %v1799
        %v1858 = vmax.f32 %v1816, %v1817
        %1859 = vmax.xlane.f32.xlu0 %v1858
        %v1860 = vpop.xlane.xlu0 %1859
        %v1861 = vmax.f32 %v1818, %v1819
        %1862 = vmax.xlane.f32.xlu0 %v1861
        %v1863 = vpop.xlane.xlu0 %1862
        %v1864 = vmax.f32 %v1820, %v1821
        %1865 = vmax.xlane.f32.xlu0 %v1864
        %v1866 = vpop.xlane.xlu0 %1865
        %v1867 = vmax.f32 %v1822, %v1823
        %1868 = vmax.xlane.f32.xlu0 %v1867
        %v1869 = vpop.xlane.xlu0 %1868
        %v1870 = vmax.f32 %v1824, %v1825
        %1871 = vmax.xlane.f32.xlu0 %v1870
        %v1872 = vpop.xlane.xlu0 %1871
        %v1873 = vmax.f32 %v1826, %v1827
        %1874 = vmax.xlane.f32.xlu0 %v1873
        %v1875 = vpop.xlane.xlu0 %1874
        %v1876 = vmax.f32 %v1828, %v1829
        %1877 = vmax.xlane.f32.xlu0 %v1876
        %v1878 = vpop.xlane.xlu0 %1877
        %v1879 = vmax.f32 %v1830, %v1831
        %1880 = vmax.xlane.f32.xlu0 %v1879
        %v1881 = vpop.xlane.xlu0 %1880
        %vm1882 = vcmp.eq.f32.partialorder %v1816, %v1860
        %vm1883 = vcmp.eq.f32.partialorder %v1817, %v1860
        %vm1884 = vcmp.eq.f32.partialorder %v1818, %v1863
        %vm1885 = vcmp.eq.f32.partialorder %v1819, %v1863
        %vm1886 = vcmp.eq.f32.partialorder %v1820, %v1866
        %vm1887 = vcmp.eq.f32.partialorder %v1821, %v1866
        %vm1888 = vcmp.eq.f32.partialorder %v1822, %v1869
        %vm1889 = vcmp.eq.f32.partialorder %v1823, %v1869
        %vm1890 = vcmp.eq.f32.partialorder %v1824, %v1872
        %vm1891 = vcmp.eq.f32.partialorder %v1825, %v1872
        %vm1892 = vcmp.eq.f32.partialorder %v1826, %v1875
        %vm1893 = vcmp.eq.f32.partialorder %v1827, %v1875
        %vm1894 = vcmp.eq.f32.partialorder %v1828, %v1878
        %vm1895 = vcmp.eq.f32.partialorder %v1829, %v1878
        %vm1896 = vcmp.eq.f32.partialorder %v1830, %v1881
        %vm1897 = vcmp.eq.f32.partialorder %v1831, %v1881
        %v1898 = vsel %vm1882, %v1614, 256
        %v1899 = vsel %vm1883, %v1615, 256
        %v1900 = vsel %vm1884, %v1614, 256
        %v1901 = vsel %vm1885, %v1615, 256
        %v1902 = vsel %vm1886, %v1614, 256
        %v1903 = vsel %vm1887, %v1615, 256
        %v1904 = vsel %vm1888, %v1614, 256
        %v1905 = vsel %vm1889, %v1615, 256
        %v1906 = vsel %vm1890, %v1614, 256
        %v1907 = vsel %vm1891, %v1615, 256
        %v1908 = vsel %vm1892, %v1614, 256
        %v1909 = vsel %vm1893, %v1615, 256
        %v1910 = vsel %vm1894, %v1614, 256
        %v1911 = vsel %vm1895, %v1615, 256
        %v1912 = vsel %vm1896, %v1614, 256
        %v1913 = vsel %vm1897, %v1615, 256
        %vm1914 = vcmp.lt.s32.totalorder %v1898, %v1899
        %v1915 = vsel %vm1914, %v1898, %v1899
        %v1916 = vand.u32 %v1915, 65535
        %v1917 = vshra.s32 %v1915, 16
        %v1918 = vcvt.s32.f32 %v1916
        %v1919 = vcvt.s32.f32 %v1917
        %1920 = vmin.xlane.f32.xlu0 %v1919
        %v1921 = vpop.xlane.xlu0 %1920
        %vm1922 = vcmp.eq.f32.partialorder %v1919, %v1921
        %v1923 = vsel %vm1922, %v1918, inf
        %1924 = vmin.xlane.f32.xlu0 %v1923
        %v1925 = vpop.xlane.xlu0 %1924
        %v1926 = vcvt.f32.s32 %v1925
        %v1927 = vcvt.f32.s32 %v1921
        %v1928 = vshll.u32 %v1927, 16
        %v1929 = vadd.s32 %v1928, %v1926
        %vm1930 = vcmp.lt.s32.totalorder %v1900, %v1901
        %v1931 = vsel %vm1930, %v1900, %v1901
        %v1932 = vand.u32 %v1931, 65535
        %v1933 = vshra.s32 %v1931, 16
        %v1934 = vcvt.s32.f32 %v1932
        %v1935 = vcvt.s32.f32 %v1933
        %1936 = vmin.xlane.f32.xlu0 %v1935
        %v1937 = vpop.xlane.xlu0 %1936
        %vm1938 = vcmp.eq.f32.partialorder %v1935, %v1937
        %v1939 = vsel %vm1938, %v1934, inf
        %1940 = vmin.xlane.f32.xlu0 %v1939
        %v1941 = vpop.xlane.xlu0 %1940
        %v1942 = vcvt.f32.s32 %v1941
        %v1943 = vcvt.f32.s32 %v1937
        %v1944 = vshll.u32 %v1943, 16
        %v1945 = vadd.s32 %v1944, %v1942
        %vm1946 = vcmp.lt.s32.totalorder %v1902, %v1903
        %v1947 = vsel %vm1946, %v1902, %v1903
        %v1948 = vand.u32 %v1947, 65535
        %v1949 = vshra.s32 %v1947, 16
        %v1950 = vcvt.s32.f32 %v1948
        %v1951 = vcvt.s32.f32 %v1949
        %1952 = vmin.xlane.f32.xlu0 %v1951
        %v1953 = vpop.xlane.xlu0 %1952
        %vm1954 = vcmp.eq.f32.partialorder %v1951, %v1953
        %v1955 = vsel %vm1954, %v1950, inf
        %1956 = vmin.xlane.f32.xlu0 %v1955
        %v1957 = vpop.xlane.xlu0 %1956
        %v1958 = vcvt.f32.s32 %v1957
        %v1959 = vcvt.f32.s32 %v1953
        %v1960 = vshll.u32 %v1959, 16
        %v1961 = vadd.s32 %v1960, %v1958
        %vm1962 = vcmp.lt.s32.totalorder %v1904, %v1905
        %v1963 = vsel %vm1962, %v1904, %v1905
        %v1964 = vand.u32 %v1963, 65535
        %v1965 = vshra.s32 %v1963, 16
        %v1966 = vcvt.s32.f32 %v1964
        %v1967 = vcvt.s32.f32 %v1965
        %1968 = vmin.xlane.f32.xlu0 %v1967
        %v1969 = vpop.xlane.xlu0 %1968
        %vm1970 = vcmp.eq.f32.partialorder %v1967, %v1969
        %v1971 = vsel %vm1970, %v1966, inf
        %1972 = vmin.xlane.f32.xlu0 %v1971
        %v1973 = vpop.xlane.xlu0 %1972
        %v1974 = vcvt.f32.s32 %v1973
        %v1975 = vcvt.f32.s32 %v1969
        %v1976 = vshll.u32 %v1975, 16
        %v1977 = vadd.s32 %v1976, %v1974
        %vm1978 = vcmp.lt.s32.totalorder %v1906, %v1907
        %v1979 = vsel %vm1978, %v1906, %v1907
        %v1980 = vand.u32 %v1979, 65535
        %v1981 = vshra.s32 %v1979, 16
        %v1982 = vcvt.s32.f32 %v1980
        %v1983 = vcvt.s32.f32 %v1981
        %1984 = vmin.xlane.f32.xlu0 %v1983
        %v1985 = vpop.xlane.xlu0 %1984
        %vm1986 = vcmp.eq.f32.partialorder %v1983, %v1985
        %v1987 = vsel %vm1986, %v1982, inf
        %1988 = vmin.xlane.f32.xlu0 %v1987
        %v1989 = vpop.xlane.xlu0 %1988
        %v1990 = vcvt.f32.s32 %v1989
        %v1991 = vcvt.f32.s32 %v1985
        %v1992 = vshll.u32 %v1991, 16
        %v1993 = vadd.s32 %v1992, %v1990
        %vm1994 = vcmp.lt.s32.totalorder %v1908, %v1909
        %v1995 = vsel %vm1994, %v1908, %v1909
        %v1996 = vand.u32 %v1995, 65535
        %v1997 = vshra.s32 %v1995, 16
        %v1998 = vcvt.s32.f32 %v1996
        %v1999 = vcvt.s32.f32 %v1997
        %2000 = vmin.xlane.f32.xlu0 %v1999
        %v2001 = vpop.xlane.xlu0 %2000
        %vm2002 = vcmp.eq.f32.partialorder %v1999, %v2001
        %v2003 = vsel %vm2002, %v1998, inf
        %2004 = vmin.xlane.f32.xlu0 %v2003
        %v2005 = vpop.xlane.xlu0 %2004
        %v2006 = vcvt.f32.s32 %v2005
        %v2007 = vcvt.f32.s32 %v2001
        %v2008 = vshll.u32 %v2007, 16
        %v2009 = vadd.s32 %v2008, %v2006
        %vm2010 = vcmp.lt.s32.totalorder %v1910, %v1911
        %v2011 = vsel %vm2010, %v1910, %v1911
        %v2012 = vand.u32 %v2011, 65535
        %v2013 = vshra.s32 %v2011, 16
        %v2014 = vcvt.s32.f32 %v2012
        %v2015 = vcvt.s32.f32 %v2013
        %2016 = vmin.xlane.f32.xlu0 %v2015
        %v2017 = vpop.xlane.xlu0 %2016
        %vm2018 = vcmp.eq.f32.partialorder %v2015, %v2017
        %v2019 = vsel %vm2018, %v2014, inf
        %2020 = vmin.xlane.f32.xlu0 %v2019
        %v2021 = vpop.xlane.xlu0 %2020
        %v2022 = vcvt.f32.s32 %v2021
        %v2023 = vcvt.f32.s32 %v2017
        %v2024 = vshll.u32 %v2023, 16
        %v2025 = vadd.s32 %v2024, %v2022
        %vm2026 = vcmp.lt.s32.totalorder %v1912, %v1913
        %v2027 = vsel %vm2026, %v1912, %v1913
        %v2028 = vand.u32 %v2027, 65535
        %v2029 = vshra.s32 %v2027, 16
        %v2030 = vcvt.s32.f32 %v2028
        %v2031 = vcvt.s32.f32 %v2029
        %2032 = vmin.xlane.f32.xlu0 %v2031
        %v2033 = vpop.xlane.xlu0 %2032
        %vm2034 = vcmp.eq.f32.partialorder %v2031, %v2033
        %v2035 = vsel %vm2034, %v2030, inf
        %2036 = vmin.xlane.f32.xlu0 %v2035
        %v2037 = vpop.xlane.xlu0 %2036
        %v2038 = vcvt.f32.s32 %v2037
        %v2039 = vcvt.f32.s32 %v2033
        %v2040 = vshll.u32 %v2039, 16
        %v2041 = vadd.s32 %v2040, %v2038
        %vm2042 = vcmp.eq.s32.totalorder %v1614, %v1929
        %vm2043 = vcmp.eq.s32.totalorder %v1615, %v1929
        %vm2044 = vcmp.eq.s32.totalorder %v1614, %v1945
        %vm2045 = vcmp.eq.s32.totalorder %v1615, %v1945
        %vm2046 = vcmp.eq.s32.totalorder %v1614, %v1961
        %vm2047 = vcmp.eq.s32.totalorder %v1615, %v1961
        %vm2048 = vcmp.eq.s32.totalorder %v1614, %v1977
        %vm2049 = vcmp.eq.s32.totalorder %v1615, %v1977
        %vm2050 = vcmp.eq.s32.totalorder %v1614, %v1993
        %vm2051 = vcmp.eq.s32.totalorder %v1615, %v1993
        %vm2052 = vcmp.eq.s32.totalorder %v1614, %v2009
        %vm2053 = vcmp.eq.s32.totalorder %v1615, %v2009
        %vm2054 = vcmp.eq.s32.totalorder %v1614, %v2025
        %vm2055 = vcmp.eq.s32.totalorder %v1615, %v2025
        %vm2056 = vcmp.eq.s32.totalorder %v1614, %v2041
        %vm2057 = vcmp.eq.s32.totalorder %v1615, %v2041
        %v2058 = vsel %vm2042, -inf, %v1816
        %v2059 = vsel %vm2043, -inf, %v1817
        %v2060 = vsel %vm2044, -inf, %v1818
        %v2061 = vsel %vm2045, -inf, %v1819
        %v2062 = vsel %vm2046, -inf, %v1820
        %v2063 = vsel %vm2047, -inf, %v1821
        %v2064 = vsel %vm2048, -inf, %v1822
        %v2065 = vsel %vm2049, -inf, %v1823
        %v2066 = vsel %vm2050, -inf, %v1824
        %v2067 = vsel %vm2051, -inf, %v1825
        %v2068 = vsel %vm2052, -inf, %v1826
        %v2069 = vsel %vm2053, -inf, %v1827
        %v2070 = vsel %vm2054, -inf, %v1828
        %v2071 = vsel %vm2055, -inf, %v1829
        %v2072 = vsel %vm2056, -inf, %v1830
        %v2073 = vsel %vm2057, -inf, %v1831
        %vm2082 = vcmask 15368
        %2083 = vst.msk [vmem:[%s309] sm:$0xff] %vm2082, %v1860
        %2084 = vst.msk [vmem:[%s309 + $0x8] sm:$0xff] %vm2082, %v1863
        %2085 = vst.msk [vmem:[%s309 + $0x10] sm:$0xff] %vm2082, %v1866
        %2086 = vst.msk [vmem:[%s309 + $0x18] sm:$0xff] %vm2082, %v1869
        %2087 = vst.msk [vmem:[%s309 + $0x20] sm:$0xff] %vm2082, %v1872
        %2088 = vst.msk [vmem:[%s309 + $0x28] sm:$0xff] %vm2082, %v1875
        %2089 = vst.msk [vmem:[%s309 + $0x30] sm:$0xff] %vm2082, %v1878
        %2090 = vst.msk [vmem:[%s309 + $0x38] sm:$0xff] %vm2082, %v1881
        %vm2091 = vcmask 48168
        %2092 = vst.msk [vmem:[%s309] sm:$0xff] %vm2091, %v1929
        %2093 = vst.msk [vmem:[%s309 + $0x8] sm:$0xff] %vm2091, %v1945
        %2094 = vst.msk [vmem:[%s309 + $0x10] sm:$0xff] %vm2091, %v1961
        %2095 = vst.msk [vmem:[%s309 + $0x18] sm:$0xff] %vm2091, %v1977
        %2096 = vst.msk [vmem:[%s309 + $0x20] sm:$0xff] %vm2091, %v1993
        %2097 = vst.msk [vmem:[%s309 + $0x28] sm:$0xff] %vm2091, %v2009
        %2098 = vst.msk [vmem:[%s309 + $0x30] sm:$0xff] %vm2091, %v2025
        %2099 = vst.msk [vmem:[%s309 + $0x38] sm:$0xff] %vm2091, %v2041
        %v2100 = vmax.f32 %v2058, %v2059
        %2101 = vmax.xlane.f32.xlu0 %v2100
        %v2102 = vpop.xlane.xlu0 %2101
        %v2103 = vmax.f32 %v2060, %v2061
        %2104 = vmax.xlane.f32.xlu0 %v2103
        %v2105 = vpop.xlane.xlu0 %2104
        %v2106 = vmax.f32 %v2062, %v2063
        %2107 = vmax.xlane.f32.xlu0 %v2106
        %v2108 = vpop.xlane.xlu0 %2107
        %v2109 = vmax.f32 %v2064, %v2065
        %2110 = vmax.xlane.f32.xlu0 %v2109
        %v2111 = vpop.xlane.xlu0 %2110
        %v2112 = vmax.f32 %v2066, %v2067
        %2113 = vmax.xlane.f32.xlu0 %v2112
        %v2114 = vpop.xlane.xlu0 %2113
        %v2115 = vmax.f32 %v2068, %v2069
        %2116 = vmax.xlane.f32.xlu0 %v2115
        %v2117 = vpop.xlane.xlu0 %2116
        %v2118 = vmax.f32 %v2070, %v2071
        %2119 = vmax.xlane.f32.xlu0 %v2118
        %v2120 = vpop.xlane.xlu0 %2119
        %v2121 = vmax.f32 %v2072, %v2073
        %2122 = vmax.xlane.f32.xlu0 %v2121
        %v2123 = vpop.xlane.xlu0 %2122
        %vm2124 = vcmp.eq.f32.partialorder %v2058, %v2102
        %vm2125 = vcmp.eq.f32.partialorder %v2059, %v2102
        %vm2126 = vcmp.eq.f32.partialorder %v2060, %v2105
        %vm2127 = vcmp.eq.f32.partialorder %v2061, %v2105
        %vm2128 = vcmp.eq.f32.partialorder %v2062, %v2108
        %vm2129 = vcmp.eq.f32.partialorder %v2063, %v2108
        %vm2130 = vcmp.eq.f32.partialorder %v2064, %v2111
        %vm2131 = vcmp.eq.f32.partialorder %v2065, %v2111
        %vm2132 = vcmp.eq.f32.partialorder %v2066, %v2114
        %vm2133 = vcmp.eq.f32.partialorder %v2067, %v2114
        %vm2134 = vcmp.eq.f32.partialorder %v2068, %v2117
        %vm2135 = vcmp.eq.f32.partialorder %v2069, %v2117
        %vm2136 = vcmp.eq.f32.partialorder %v2070, %v2120
        %vm2137 = vcmp.eq.f32.partialorder %v2071, %v2120
        %vm2138 = vcmp.eq.f32.partialorder %v2072, %v2123
        %vm2139 = vcmp.eq.f32.partialorder %v2073, %v2123
        %v2140 = vsel %vm2124, %v1614, 256
        %v2141 = vsel %vm2125, %v1615, 256
        %v2142 = vsel %vm2126, %v1614, 256
        %v2143 = vsel %vm2127, %v1615, 256
        %v2144 = vsel %vm2128, %v1614, 256
        %v2145 = vsel %vm2129, %v1615, 256
        %v2146 = vsel %vm2130, %v1614, 256
        %v2147 = vsel %vm2131, %v1615, 256
        %v2148 = vsel %vm2132, %v1614, 256
        %v2149 = vsel %vm2133, %v1615, 256
        %v2150 = vsel %vm2134, %v1614, 256
        %v2151 = vsel %vm2135, %v1615, 256
        %v2152 = vsel %vm2136, %v1614, 256
        %v2153 = vsel %vm2137, %v1615, 256
        %v2154 = vsel %vm2138, %v1614, 256
        %v2155 = vsel %vm2139, %v1615, 256
        %vm2156 = vcmp.lt.s32.totalorder %v2140, %v2141
        %v2157 = vsel %vm2156, %v2140, %v2141
        %v2158 = vand.u32 %v2157, 65535
        %v2159 = vshra.s32 %v2157, 16
        %v2160 = vcvt.s32.f32 %v2158
        %v2161 = vcvt.s32.f32 %v2159
        %2162 = vmin.xlane.f32.xlu0 %v2161
        %v2163 = vpop.xlane.xlu0 %2162
        %vm2164 = vcmp.eq.f32.partialorder %v2161, %v2163
        %v2165 = vsel %vm2164, %v2160, inf
        %2166 = vmin.xlane.f32.xlu0 %v2165
        %v2167 = vpop.xlane.xlu0 %2166
        %v2168 = vcvt.f32.s32 %v2167
        %v2169 = vcvt.f32.s32 %v2163
        %v2170 = vshll.u32 %v2169, 16
        %v2171 = vadd.s32 %v2170, %v2168
        %vm2172 = vcmp.lt.s32.totalorder %v2142, %v2143
        %v2173 = vsel %vm2172, %v2142, %v2143
        %v2174 = vand.u32 %v2173, 65535
        %v2175 = vshra.s32 %v2173, 16
        %v2176 = vcvt.s32.f32 %v2174
        %v2177 = vcvt.s32.f32 %v2175
        %2178 = vmin.xlane.f32.xlu0 %v2177
        %v2179 = vpop.xlane.xlu0 %2178
        %vm2180 = vcmp.eq.f32.partialorder %v2177, %v2179
        %v2181 = vsel %vm2180, %v2176, inf
        %2182 = vmin.xlane.f32.xlu0 %v2181
        %v2183 = vpop.xlane.xlu0 %2182
        %v2184 = vcvt.f32.s32 %v2183
        %v2185 = vcvt.f32.s32 %v2179
        %v2186 = vshll.u32 %v2185, 16
        %v2187 = vadd.s32 %v2186, %v2184
        %vm2188 = vcmp.lt.s32.totalorder %v2144, %v2145
        %v2189 = vsel %vm2188, %v2144, %v2145
        %v2190 = vand.u32 %v2189, 65535
        %v2191 = vshra.s32 %v2189, 16
        %v2192 = vcvt.s32.f32 %v2190
        %v2193 = vcvt.s32.f32 %v2191
        %2194 = vmin.xlane.f32.xlu0 %v2193
        %v2195 = vpop.xlane.xlu0 %2194
        %vm2196 = vcmp.eq.f32.partialorder %v2193, %v2195
        %v2197 = vsel %vm2196, %v2192, inf
        %2198 = vmin.xlane.f32.xlu0 %v2197
        %v2199 = vpop.xlane.xlu0 %2198
        %v2200 = vcvt.f32.s32 %v2199
        %v2201 = vcvt.f32.s32 %v2195
        %v2202 = vshll.u32 %v2201, 16
        %v2203 = vadd.s32 %v2202, %v2200
        %vm2204 = vcmp.lt.s32.totalorder %v2146, %v2147
        %v2205 = vsel %vm2204, %v2146, %v2147
        %v2206 = vand.u32 %v2205, 65535
        %v2207 = vshra.s32 %v2205, 16
        %v2208 = vcvt.s32.f32 %v2206
        %v2209 = vcvt.s32.f32 %v2207
        %2210 = vmin.xlane.f32.xlu0 %v2209
        %v2211 = vpop.xlane.xlu0 %2210
        %vm2212 = vcmp.eq.f32.partialorder %v2209, %v2211
        %v2213 = vsel %vm2212, %v2208, inf
        %2214 = vmin.xlane.f32.xlu0 %v2213
        %v2215 = vpop.xlane.xlu0 %2214
        %v2216 = vcvt.f32.s32 %v2215
        %v2217 = vcvt.f32.s32 %v2211
        %v2218 = vshll.u32 %v2217, 16
        %v2219 = vadd.s32 %v2218, %v2216
        %vm2220 = vcmp.lt.s32.totalorder %v2148, %v2149
        %v2221 = vsel %vm2220, %v2148, %v2149
        %v2222 = vand.u32 %v2221, 65535
        %v2223 = vshra.s32 %v2221, 16
        %v2224 = vcvt.s32.f32 %v2222
        %v2225 = vcvt.s32.f32 %v2223
        %2226 = vmin.xlane.f32.xlu0 %v2225
        %v2227 = vpop.xlane.xlu0 %2226
        %vm2228 = vcmp.eq.f32.partialorder %v2225, %v2227
        %v2229 = vsel %vm2228, %v2224, inf
        %2230 = vmin.xlane.f32.xlu0 %v2229
        %v2231 = vpop.xlane.xlu0 %2230
        %v2232 = vcvt.f32.s32 %v2231
        %v2233 = vcvt.f32.s32 %v2227
        %v2234 = vshll.u32 %v2233, 16
        %v2235 = vadd.s32 %v2234, %v2232
        %vm2236 = vcmp.lt.s32.totalorder %v2150, %v2151
        %v2237 = vsel %vm2236, %v2150, %v2151
        %v2238 = vand.u32 %v2237, 65535
        %v2239 = vshra.s32 %v2237, 16
        %v2240 = vcvt.s32.f32 %v2238
        %v2241 = vcvt.s32.f32 %v2239
        %2242 = vmin.xlane.f32.xlu0 %v2241
        %v2243 = vpop.xlane.xlu0 %2242
        %vm2244 = vcmp.eq.f32.partialorder %v2241, %v2243
        %v2245 = vsel %vm2244, %v2240, inf
        %2246 = vmin.xlane.f32.xlu0 %v2245
        %v2247 = vpop.xlane.xlu0 %2246
        %v2248 = vcvt.f32.s32 %v2247
        %v2249 = vcvt.f32.s32 %v2243
        %v2250 = vshll.u32 %v2249, 16
        %v2251 = vadd.s32 %v2250, %v2248
        %vm2252 = vcmp.lt.s32.totalorder %v2152, %v2153
        %v2253 = vsel %vm2252, %v2152, %v2153
        %v2254 = vand.u32 %v2253, 65535
        %v2255 = vshra.s32 %v2253, 16
        %v2256 = vcvt.s32.f32 %v2254
        %v2257 = vcvt.s32.f32 %v2255
        %2258 = vmin.xlane.f32.xlu0 %v2257
        %v2259 = vpop.xlane.xlu0 %2258
        %vm2260 = vcmp.eq.f32.partialorder %v2257, %v2259
        %v2261 = vsel %vm2260, %v2256, inf
        %2262 = vmin.xlane.f32.xlu0 %v2261
        %v2263 = vpop.xlane.xlu0 %2262
        %v2264 = vcvt.f32.s32 %v2263
        %v2265 = vcvt.f32.s32 %v2259
        %v2266 = vshll.u32 %v2265, 16
        %v2267 = vadd.s32 %v2266, %v2264
        %vm2268 = vcmp.lt.s32.totalorder %v2154, %v2155
        %v2269 = vsel %vm2268, %v2154, %v2155
        %v2270 = vand.u32 %v2269, 65535
        %v2271 = vshra.s32 %v2269, 16
        %v2272 = vcvt.s32.f32 %v2270
        %v2273 = vcvt.s32.f32 %v2271
        %2274 = vmin.xlane.f32.xlu0 %v2273
        %v2275 = vpop.xlane.xlu0 %2274
        %vm2276 = vcmp.eq.f32.partialorder %v2273, %v2275
        %v2277 = vsel %vm2276, %v2272, inf
        %2278 = vmin.xlane.f32.xlu0 %v2277
        %v2279 = vpop.xlane.xlu0 %2278
        %v2280 = vcvt.f32.s32 %v2279
        %v2281 = vcvt.f32.s32 %v2275
        %v2282 = vshll.u32 %v2281, 16
        %v2283 = vadd.s32 %v2282, %v2280
        %vm2284 = vcmp.eq.s32.totalorder %v1614, %v2171
        %vm2285 = vcmp.eq.s32.totalorder %v1615, %v2171
        %vm2286 = vcmp.eq.s32.totalorder %v1614, %v2187
        %vm2287 = vcmp.eq.s32.totalorder %v1615, %v2187
        %vm2288 = vcmp.eq.s32.totalorder %v1614, %v2203
        %vm2289 = vcmp.eq.s32.totalorder %v1615, %v2203
        %vm2290 = vcmp.eq.s32.totalorder %v1614, %v2219
        %vm2291 = vcmp.eq.s32.totalorder %v1615, %v2219
        %vm2292 = vcmp.eq.s32.totalorder %v1614, %v2235
        %vm2293 = vcmp.eq.s32.totalorder %v1615, %v2235
        %vm2294 = vcmp.eq.s32.totalorder %v1614, %v2251
        %vm2295 = vcmp.eq.s32.totalorder %v1615, %v2251
        %vm2296 = vcmp.eq.s32.totalorder %v1614, %v2267
        %vm2297 = vcmp.eq.s32.totalorder %v1615, %v2267
        %vm2298 = vcmp.eq.s32.totalorder %v1614, %v2283
        %vm2299 = vcmp.eq.s32.totalorder %v1615, %v2283
        %v2300 = vsel %vm2284, -inf, %v2058
        %v2301 = vsel %vm2285, -inf, %v2059
        %v2302 = vsel %vm2286, -inf, %v2060
        %v2303 = vsel %vm2287, -inf, %v2061
        %v2304 = vsel %vm2288, -inf, %v2062
        %v2305 = vsel %vm2289, -inf, %v2063
        %v2306 = vsel %vm2290, -inf, %v2064
        %v2307 = vsel %vm2291, -inf, %v2065
        %v2308 = vsel %vm2292, -inf, %v2066
        %v2309 = vsel %vm2293, -inf, %v2067
        %v2310 = vsel %vm2294, -inf, %v2068
        %v2311 = vsel %vm2295, -inf, %v2069
        %v2312 = vsel %vm2296, -inf, %v2070
        %v2313 = vsel %vm2297, -inf, %v2071
        %v2314 = vsel %vm2298, -inf, %v2072
        %v2315 = vsel %vm2299, -inf, %v2073
        %vm2324 = vcmask 23568
        %2325 = vst.msk [vmem:[%s309] sm:$0xff] %vm2324, %v2102
        %2326 = vst.msk [vmem:[%s309 + $0x8] sm:$0xff] %vm2324, %v2105
        %2327 = vst.msk [vmem:[%s309 + $0x10] sm:$0xff] %vm2324, %v2108
        %2328 = vst.msk [vmem:[%s309 + $0x18] sm:$0xff] %vm2324, %v2111
        %2329 = vst.msk [vmem:[%s309 + $0x20] sm:$0xff] %vm2324, %v2114
        %2330 = vst.msk [vmem:[%s309 + $0x28] sm:$0xff] %vm2324, %v2117
        %2331 = vst.msk [vmem:[%s309 + $0x30] sm:$0xff] %vm2324, %v2120
        %2332 = vst.msk [vmem:[%s309 + $0x38] sm:$0xff] %vm2324, %v2123
        %vm2333 = vcmask 56368
        %2334 = vst.msk [vmem:[%s309] sm:$0xff] %vm2333, %v2171
        %2335 = vst.msk [vmem:[%s309 + $0x8] sm:$0xff] %vm2333, %v2187
        %2336 = vst.msk [vmem:[%s309 + $0x10] sm:$0xff] %vm2333, %v2203
        %2337 = vst.msk [vmem:[%s309 + $0x18] sm:$0xff] %vm2333, %v2219
        %2338 = vst.msk [vmem:[%s309 + $0x20] sm:$0xff] %vm2333, %v2235
        %2339 = vst.msk [vmem:[%s309 + $0x28] sm:$0xff] %vm2333, %v2251
        %2340 = vst.msk [vmem:[%s309 + $0x30] sm:$0xff] %vm2333, %v2267
        %2341 = vst.msk [vmem:[%s309 + $0x38] sm:$0xff] %vm2333, %v2283
        %v2342 = vmax.f32 %v2300, %v2301
        %2343 = vmax.xlane.f32.xlu0 %v2342
        %v2344 = vpop.xlane.xlu0 %2343
        %v2345 = vmax.f32 %v2302, %v2303
        %2346 = vmax.xlane.f32.xlu0 %v2345
        %v2347 = vpop.xlane.xlu0 %2346
        %v2348 = vmax.f32 %v2304, %v2305
        %2349 = vmax.xlane.f32.xlu0 %v2348
        %v2350 = vpop.xlane.xlu0 %2349
        %v2351 = vmax.f32 %v2306, %v2307
        %2352 = vmax.xlane.f32.xlu0 %v2351
        %v2353 = vpop.xlane.xlu0 %2352
        %v2354 = vmax.f32 %v2308, %v2309
        %2355 = vmax.xlane.f32.xlu0 %v2354
        %v2356 = vpop.xlane.xlu0 %2355
        %v2357 = vmax.f32 %v2310, %v2311
        %2358 = vmax.xlane.f32.xlu0 %v2357
        %v2359 = vpop.xlane.xlu0 %2358
        %v2360 = vmax.f32 %v2312, %v2313
        %2361 = vmax.xlane.f32.xlu0 %v2360
        %v2362 = vpop.xlane.xlu0 %2361
        %v2363 = vmax.f32 %v2314, %v2315
        %2364 = vmax.xlane.f32.xlu0 %v2363
        %v2365 = vpop.xlane.xlu0 %2364
        %vm2366 = vcmp.eq.f32.partialorder %v2300, %v2344
        %vm2367 = vcmp.eq.f32.partialorder %v2301, %v2344
        %vm2368 = vcmp.eq.f32.partialorder %v2302, %v2347
        %vm2369 = vcmp.eq.f32.partialorder %v2303, %v2347
        %vm2370 = vcmp.eq.f32.partialorder %v2304, %v2350
        %vm2371 = vcmp.eq.f32.partialorder %v2305, %v2350
        %vm2372 = vcmp.eq.f32.partialorder %v2306, %v2353
        %vm2373 = vcmp.eq.f32.partialorder %v2307, %v2353
        %vm2374 = vcmp.eq.f32.partialorder %v2308, %v2356
        %vm2375 = vcmp.eq.f32.partialorder %v2309, %v2356
        %vm2376 = vcmp.eq.f32.partialorder %v2310, %v2359
        %vm2377 = vcmp.eq.f32.partialorder %v2311, %v2359
        %vm2378 = vcmp.eq.f32.partialorder %v2312, %v2362
        %vm2379 = vcmp.eq.f32.partialorder %v2313, %v2362
        %vm2380 = vcmp.eq.f32.partialorder %v2314, %v2365
        %vm2381 = vcmp.eq.f32.partialorder %v2315, %v2365
        %v2382 = vsel %vm2366, %v1614, 256
        %v2383 = vsel %vm2367, %v1615, 256
        %v2384 = vsel %vm2368, %v1614, 256
        %v2385 = vsel %vm2369, %v1615, 256
        %v2386 = vsel %vm2370, %v1614, 256
        %v2387 = vsel %vm2371, %v1615, 256
        %v2388 = vsel %vm2372, %v1614, 256
        %v2389 = vsel %vm2373, %v1615, 256
        %v2390 = vsel %vm2374, %v1614, 256
        %v2391 = vsel %vm2375, %v1615, 256
        %v2392 = vsel %vm2376, %v1614, 256
        %v2393 = vsel %vm2377, %v1615, 256
        %v2394 = vsel %vm2378, %v1614, 256
        %v2395 = vsel %vm2379, %v1615, 256
        %v2396 = vsel %vm2380, %v1614, 256
        %v2397 = vsel %vm2381, %v1615, 256
        %vm2398 = vcmp.lt.s32.totalorder %v2382, %v2383
        %v2399 = vsel %vm2398, %v2382, %v2383
        %v2400 = vand.u32 %v2399, 65535
        %v2401 = vshra.s32 %v2399, 16
        %v2402 = vcvt.s32.f32 %v2400
        %v2403 = vcvt.s32.f32 %v2401
        %2404 = vmin.xlane.f32.xlu0 %v2403
        %v2405 = vpop.xlane.xlu0 %2404
        %vm2406 = vcmp.eq.f32.partialorder %v2403, %v2405
        %v2407 = vsel %vm2406, %v2402, inf
        %2408 = vmin.xlane.f32.xlu0 %v2407
        %v2409 = vpop.xlane.xlu0 %2408
        %v2410 = vcvt.f32.s32 %v2409
        %v2411 = vcvt.f32.s32 %v2405
        %v2412 = vshll.u32 %v2411, 16
        %v2413 = vadd.s32 %v2412, %v2410
        %vm2414 = vcmp.lt.s32.totalorder %v2384, %v2385
        %v2415 = vsel %vm2414, %v2384, %v2385
        %v2416 = vand.u32 %v2415, 65535
        %v2417 = vshra.s32 %v2415, 16
        %v2418 = vcvt.s32.f32 %v2416
        %v2419 = vcvt.s32.f32 %v2417
        %2420 = vmin.xlane.f32.xlu0 %v2419
        %v2421 = vpop.xlane.xlu0 %2420
        %vm2422 = vcmp.eq.f32.partialorder %v2419, %v2421
        %v2423 = vsel %vm2422, %v2418, inf
        %2424 = vmin.xlane.f32.xlu0 %v2423
        %v2425 = vpop.xlane.xlu0 %2424
        %v2426 = vcvt.f32.s32 %v2425
        %v2427 = vcvt.f32.s32 %v2421
        %v2428 = vshll.u32 %v2427, 16
        %v2429 = vadd.s32 %v2428, %v2426
        %vm2430 = vcmp.lt.s32.totalorder %v2386, %v2387
        %v2431 = vsel %vm2430, %v2386, %v2387
        %v2432 = vand.u32 %v2431, 65535
        %v2433 = vshra.s32 %v2431, 16
        %v2434 = vcvt.s32.f32 %v2432
        %v2435 = vcvt.s32.f32 %v2433
        %2436 = vmin.xlane.f32.xlu0 %v2435
        %v2437 = vpop.xlane.xlu0 %2436
        %vm2438 = vcmp.eq.f32.partialorder %v2435, %v2437
        %v2439 = vsel %vm2438, %v2434, inf
        %2440 = vmin.xlane.f32.xlu0 %v2439
        %v2441 = vpop.xlane.xlu0 %2440
        %v2442 = vcvt.f32.s32 %v2441
        %v2443 = vcvt.f32.s32 %v2437
        %v2444 = vshll.u32 %v2443, 16
        %v2445 = vadd.s32 %v2444, %v2442
        %vm2446 = vcmp.lt.s32.totalorder %v2388, %v2389
        %v2447 = vsel %vm2446, %v2388, %v2389
        %v2448 = vand.u32 %v2447, 65535
        %v2449 = vshra.s32 %v2447, 16
        %v2450 = vcvt.s32.f32 %v2448
        %v2451 = vcvt.s32.f32 %v2449
        %2452 = vmin.xlane.f32.xlu0 %v2451
        %v2453 = vpop.xlane.xlu0 %2452
        %vm2454 = vcmp.eq.f32.partialorder %v2451, %v2453
        %v2455 = vsel %vm2454, %v2450, inf
        %2456 = vmin.xlane.f32.xlu0 %v2455
        %v2457 = vpop.xlane.xlu0 %2456
        %v2458 = vcvt.f32.s32 %v2457
        %v2459 = vcvt.f32.s32 %v2453
        %v2460 = vshll.u32 %v2459, 16
        %v2461 = vadd.s32 %v2460, %v2458
        %vm2462 = vcmp.lt.s32.totalorder %v2390, %v2391
        %v2463 = vsel %vm2462, %v2390, %v2391
        %v2464 = vand.u32 %v2463, 65535
        %v2465 = vshra.s32 %v2463, 16
        %v2466 = vcvt.s32.f32 %v2464
        %v2467 = vcvt.s32.f32 %v2465
        %2468 = vmin.xlane.f32.xlu0 %v2467
        %v2469 = vpop.xlane.xlu0 %2468
        %vm2470 = vcmp.eq.f32.partialorder %v2467, %v2469
        %v2471 = vsel %vm2470, %v2466, inf
        %2472 = vmin.xlane.f32.xlu0 %v2471
        %v2473 = vpop.xlane.xlu0 %2472
        %v2474 = vcvt.f32.s32 %v2473
        %v2475 = vcvt.f32.s32 %v2469
        %v2476 = vshll.u32 %v2475, 16
        %v2477 = vadd.s32 %v2476, %v2474
        %vm2478 = vcmp.lt.s32.totalorder %v2392, %v2393
        %v2479 = vsel %vm2478, %v2392, %v2393
        %v2480 = vand.u32 %v2479, 65535
        %v2481 = vshra.s32 %v2479, 16
        %v2482 = vcvt.s32.f32 %v2480
        %v2483 = vcvt.s32.f32 %v2481
        %2484 = vmin.xlane.f32.xlu0 %v2483
        %v2485 = vpop.xlane.xlu0 %2484
        %vm2486 = vcmp.eq.f32.partialorder %v2483, %v2485
        %v2487 = vsel %vm2486, %v2482, inf
        %2488 = vmin.xlane.f32.xlu0 %v2487
        %v2489 = vpop.xlane.xlu0 %2488
        %v2490 = vcvt.f32.s32 %v2489
        %v2491 = vcvt.f32.s32 %v2485
        %v2492 = vshll.u32 %v2491, 16
        %v2493 = vadd.s32 %v2492, %v2490
        %vm2494 = vcmp.lt.s32.totalorder %v2394, %v2395
        %v2495 = vsel %vm2494, %v2394, %v2395
        %v2496 = vand.u32 %v2495, 65535
        %v2497 = vshra.s32 %v2495, 16
        %v2498 = vcvt.s32.f32 %v2496
        %v2499 = vcvt.s32.f32 %v2497
        %2500 = vmin.xlane.f32.xlu0 %v2499
        %v2501 = vpop.xlane.xlu0 %2500
        %vm2502 = vcmp.eq.f32.partialorder %v2499, %v2501
        %v2503 = vsel %vm2502, %v2498, inf
        %2504 = vmin.xlane.f32.xlu0 %v2503
        %v2505 = vpop.xlane.xlu0 %2504
        %v2506 = vcvt.f32.s32 %v2505
        %v2507 = vcvt.f32.s32 %v2501
        %v2508 = vshll.u32 %v2507, 16
        %v2509 = vadd.s32 %v2508, %v2506
        %vm2510 = vcmp.lt.s32.totalorder %v2396, %v2397
        %v2511 = vsel %vm2510, %v2396, %v2397
        %v2512 = vand.u32 %v2511, 65535
        %v2513 = vshra.s32 %v2511, 16
        %v2514 = vcvt.s32.f32 %v2512
        %v2515 = vcvt.s32.f32 %v2513
        %2516 = vmin.xlane.f32.xlu0 %v2515
        %v2517 = vpop.xlane.xlu0 %2516
        %vm2518 = vcmp.eq.f32.partialorder %v2515, %v2517
        %v2519 = vsel %vm2518, %v2514, inf
        %2520 = vmin.xlane.f32.xlu0 %v2519
        %v2521 = vpop.xlane.xlu0 %2520
        %v2522 = vcvt.f32.s32 %v2521
        %v2523 = vcvt.f32.s32 %v2517
        %v2524 = vshll.u32 %v2523, 16
        %v2525 = vadd.s32 %v2524, %v2522
        %vm2526 = vcmp.eq.s32.totalorder %v1614, %v2413
        %vm2527 = vcmp.eq.s32.totalorder %v1615, %v2413
        %vm2528 = vcmp.eq.s32.totalorder %v1614, %v2429
        %vm2529 = vcmp.eq.s32.totalorder %v1615, %v2429
        %vm2530 = vcmp.eq.s32.totalorder %v1614, %v2445
        %vm2531 = vcmp.eq.s32.totalorder %v1615, %v2445
        %vm2532 = vcmp.eq.s32.totalorder %v1614, %v2461
        %vm2533 = vcmp.eq.s32.totalorder %v1615, %v2461
        %vm2534 = vcmp.eq.s32.totalorder %v1614, %v2477
        %vm2535 = vcmp.eq.s32.totalorder %v1615, %v2477
        %vm2536 = vcmp.eq.s32.totalorder %v1614, %v2493
        %vm2537 = vcmp.eq.s32.totalorder %v1615, %v2493
        %vm2538 = vcmp.eq.s32.totalorder %v1614, %v2509
        %vm2539 = vcmp.eq.s32.totalorder %v1615, %v2509
        %vm2540 = vcmp.eq.s32.totalorder %v1614, %v2525
        %vm2541 = vcmp.eq.s32.totalorder %v1615, %v2525
        %v2542 = vsel %vm2526, -inf, %v2300
        %v2543 = vsel %vm2527, -inf, %v2301
        %v2544 = vsel %vm2528, -inf, %v2302
        %v2545 = vsel %vm2529, -inf, %v2303
        %v2546 = vsel %vm2530, -inf, %v2304
        %v2547 = vsel %vm2531, -inf, %v2305
        %v2548 = vsel %vm2532, -inf, %v2306
        %v2549 = vsel %vm2533, -inf, %v2307
        %v2550 = vsel %vm2534, -inf, %v2308
        %v2551 = vsel %vm2535, -inf, %v2309
        %v2552 = vsel %vm2536, -inf, %v2310
        %v2553 = vsel %vm2537, -inf, %v2311
        %v2554 = vsel %vm2538, -inf, %v2312
        %v2555 = vsel %vm2539, -inf, %v2313
        %v2556 = vsel %vm2540, -inf, %v2314
        %v2557 = vsel %vm2541, -inf, %v2315
        %vm2566 = vcmask 31768
        %2567 = vst.msk [vmem:[%s309] sm:$0xff] %vm2566, %v2344
        %2568 = vst.msk [vmem:[%s309 + $0x8] sm:$0xff] %vm2566, %v2347
        %2569 = vst.msk [vmem:[%s309 + $0x10] sm:$0xff] %vm2566, %v2350
        %2570 = vst.msk [vmem:[%s309 + $0x18] sm:$0xff] %vm2566, %v2353
        %2571 = vst.msk [vmem:[%s309 + $0x20] sm:$0xff] %vm2566, %v2356
        %2572 = vst.msk [vmem:[%s309 + $0x28] sm:$0xff] %vm2566, %v2359
        %2573 = vst.msk [vmem:[%s309 + $0x30] sm:$0xff] %vm2566, %v2362
        %2574 = vst.msk [vmem:[%s309 + $0x38] sm:$0xff] %vm2566, %v2365
        %vm2575 = vcmask 64568
        %2576 = vst.msk [vmem:[%s309] sm:$0xff] %vm2575, %v2413
        %2577 = vst.msk [vmem:[%s309 + $0x8] sm:$0xff] %vm2575, %v2429
        %2578 = vst.msk [vmem:[%s309 + $0x10] sm:$0xff] %vm2575, %v2445
        %2579 = vst.msk [vmem:[%s309 + $0x18] sm:$0xff] %vm2575, %v2461
        %2580 = vst.msk [vmem:[%s309 + $0x20] sm:$0xff] %vm2575, %v2477
        %2581 = vst.msk [vmem:[%s309 + $0x28] sm:$0xff] %vm2575, %v2493
        %2582 = vst.msk [vmem:[%s309 + $0x30] sm:$0xff] %vm2575, %v2509
        %2583 = vst.msk [vmem:[%s309 + $0x38] sm:$0xff] %vm2575, %v2525
        %vm2584 = vcmp.lt.f32.partialorder %v2542, %v1552
        %vm2585 = vcmp.lt.f32.partialorder %v2543, %v1554
        %vm2586 = vcmp.lt.f32.partialorder %v2544, %v1559
        %vm2587 = vcmp.lt.f32.partialorder %v2545, %v1561
        %vm2588 = vcmp.lt.f32.partialorder %v2546, %v1566
        %vm2589 = vcmp.lt.f32.partialorder %v2547, %v1568
        %vm2590 = vcmp.lt.f32.partialorder %v2548, %v1573
        %vm2591 = vcmp.lt.f32.partialorder %v2549, %v1575
        %vm2592 = vcmp.lt.f32.partialorder %v2550, %v1580
        %vm2593 = vcmp.lt.f32.partialorder %v2551, %v1582
        %vm2594 = vcmp.lt.f32.partialorder %v2552, %v1587
        %vm2595 = vcmp.lt.f32.partialorder %v2553, %v1589
        %vm2596 = vcmp.lt.f32.partialorder %v2554, %v1594
        %vm2597 = vcmp.lt.f32.partialorder %v2555, %v1596
        %vm2598 = vcmp.lt.f32.partialorder %v2556, %v1601
        %vm2599 = vcmp.lt.f32.partialorder %v2557, %v1603
        %v2600 = vsel %vm2584, %v1552, 0.0
        %v2601 = vsel %vm2585, %v1554, 0.0
        %v2602 = vsel %vm2586, %v1559, 0.0
        %v2603 = vsel %vm2587, %v1561, 0.0
        %v2604 = vsel %vm2588, %v1566, 0.0
        %v2605 = vsel %vm2589, %v1568, 0.0
        %v2606 = vsel %vm2590, %v1573, 0.0
        %v2607 = vsel %vm2591, %v1575, 0.0
        %v2608 = vsel %vm2592, %v1580, 0.0
        %v2609 = vsel %vm2593, %v1582, 0.0
        %v2610 = vsel %vm2594, %v1587, 0.0
        %v2611 = vsel %vm2595, %v1589, 0.0
        %v2612 = vsel %vm2596, %v1594, 0.0
        %v2613 = vsel %vm2597, %v1596, 0.0
        %v2614 = vsel %vm2598, %v1601, 0.0
        %v2615 = vsel %vm2599, %v1603, 0.0
        %2616 = vmatprep.subr.mxu0 0.0
        %v2617 = vand.u32 %v343, 4294901760
        %2618 = vmatpush1.msra.mxu0 %v2617
        %2619 = vmatprep.subr.mxu0 0.0
        %v2620 = vand.u32 %v344, 4294901760
        %2621 = vmatpush1.msra.mxu0 %v2620
        %2622 = vmatprep.subr.mxu0 0.0
        %v2623 = vand.u32 %v345, 4294901760
        %2624 = vmatpush1.msra.mxu0 %v2623
        %2625 = vmatprep.subr.mxu0 0.0
        %v2626 = vand.u32 %v346, 4294901760
        %2627 = vmatpush1.msra.mxu0 %v2626
        %2628 = vmatprep.subr.mxu0 0.0
        %v2629 = vand.u32 %v347, 4294901760
        %2630 = vmatpush1.msra.mxu0 %v2629
        %2631 = vmatprep.subr.mxu0 0.0
        %v2632 = vand.u32 %v348, 4294901760
        %2633 = vmatpush1.msra.mxu0 %v2632
        %2634 = vmatprep.subr.mxu0 0.0
        %v2635 = vand.u32 %v349, 4294901760
        %2636 = vmatpush1.msra.mxu0 %v2635
        %2637 = vmatprep.subr.mxu0 0.0
        %v2638 = vand.u32 %v350, 4294901760
        %2639 = vmatpush1.msra.mxu0 %v2638
        %2640 = vmatprep.subr.mxu0 0.0
        %v2641 = vand.u32 %v351, 4294901760
        %2642 = vmatpush1.msra.mxu0 %v2641
        %2643 = vmatprep.subr.mxu0 0.0
        %v2644 = vand.u32 %v352, 4294901760
        %2645 = vmatpush1.msra.mxu0 %v2644
        %2646 = vmatprep.subr.mxu0 0.0
        %v2647 = vand.u32 %v353, 4294901760
        %2648 = vmatpush1.msra.mxu0 %v2647
        %2649 = vmatprep.subr.mxu0 0.0
        %v2650 = vand.u32 %v354, 4294901760
        %2651 = vmatpush1.msra.mxu0 %v2650
        %2652 = vmatprep.subr.mxu0 0.0
        %v2653 = vand.u32 %v355, 4294901760
        %2654 = vmatpush1.msra.mxu0 %v2653
        %2655 = vmatprep.subr.mxu0 0.0
        %v2656 = vand.u32 %v356, 4294901760
        %2657 = vmatpush1.msra.mxu0 %v2656
        %2658 = vmatprep.subr.mxu0 0.0
        %v2659 = vand.u32 %v357, 4294901760
        %2660 = vmatpush1.msra.mxu0 %v2659
        %2661 = vmatprep.subr.mxu0 0.0
        %v2662 = vand.u32 %v358, 4294901760
        %2663 = vmatpush1.msra.mxu0 %v2662
        %2664 = vmatprep.subr.mxu0 0.0
        %v2665 = vand.u32 %v359, 4294901760
        %2666 = vmatpush1.msra.mxu0 %v2665
        %2667 = vmatprep.subr.mxu0 0.0
        %v2668 = vand.u32 %v360, 4294901760
        %2669 = vmatpush1.msra.mxu0 %v2668
        %2670 = vmatprep.subr.mxu0 0.0
        %v2671 = vand.u32 %v361, 4294901760
        %2672 = vmatpush1.msra.mxu0 %v2671
        %2673 = vmatprep.subr.mxu0 0.0
        %v2674 = vand.u32 %v362, 4294901760
        %2675 = vmatpush1.msra.mxu0 %v2674
        %2676 = vmatprep.subr.mxu0 0.0
        %v2677 = vand.u32 %v363, 4294901760
        %2678 = vmatpush1.msra.mxu0 %v2677
        %2679 = vmatprep.subr.mxu0 0.0
        %v2680 = vand.u32 %v364, 4294901760
        %2681 = vmatpush1.msra.mxu0 %v2680
        %2682 = vmatprep.subr.mxu0 0.0
        %v2683 = vand.u32 %v365, 4294901760
        %2684 = vmatpush1.msra.mxu0 %v2683
        %2685 = vmatprep.subr.mxu0 0.0
        %v2686 = vand.u32 %v366, 4294901760
        %2687 = vmatpush1.msra.mxu0 %v2686
        %2688 = vmatprep.subr.mxu0 0.0
        %v2689 = vand.u32 %v367, 4294901760
        %2690 = vmatpush1.msra.mxu0 %v2689
        %2691 = vmatprep.subr.mxu0 0.0
        %v2692 = vand.u32 %v368, 4294901760
        %2693 = vmatpush1.msra.mxu0 %v2692
        %2694 = vmatprep.subr.mxu0 0.0
        %v2695 = vand.u32 %v369, 4294901760
        %2696 = vmatpush1.msra.mxu0 %v2695
        %2697 = vmatprep.subr.mxu0 0.0
        %v2698 = vand.u32 %v370, 4294901760
        %2699 = vmatpush1.msra.mxu0 %v2698
        %2700 = vmatprep.subr.mxu0 0.0
        %v2701 = vand.u32 %v371, 4294901760
        %2702 = vmatpush1.msra.mxu0 %v2701
        %2703 = vmatprep.subr.mxu0 0.0
        %v2704 = vand.u32 %v372, 4294901760
        %2705 = vmatpush1.msra.mxu0 %v2704
        %2706 = vmatprep.subr.mxu0 0.0
        %v2707 = vand.u32 %v373, 4294901760
        %2708 = vmatpush1.msra.mxu0 %v2707
        %2709 = vmatprep.subr.mxu0 0.0
        %v2710 = vand.u32 %v374, 4294901760
        %2711 = vmatpush1.msra.mxu0 %v2710
        %v2712 = vand.u32 %v2601, 4294901760
        %v2713 = vsub.f32 %v2601, %v2712
        %v2714 = vand.u32 %v2713, 4294901760
        %v2715 = vsub.f32 %v2713, %v2714
        %v2716 = vand.u32 %v2715, 4294901760
        %2717 = vmatprep.mubr.f32.mxu0 %v2716
        %v2718 = vand.u32 %v2600, 4294901760
        %v2719 = vsub.f32 %v2600, %v2718
        %v2720 = vand.u32 %v2719, 4294901760
        %v2721 = vsub.f32 %v2719, %v2720
        %v2722 = vand.u32 %v2721, 4294901760
        %2723 = vmatmul.mubr.f32.gmra.mrb[0].mxu0 %v2722
        %v2724 = vpop.f32.mrb[0].mxu0
        %v2725 = vadd.f32 %v333, %v2724
        %v2726 = vpop.f32.mrb[0].mxu0
        %v2727 = vand.u32 %v2603, 4294901760
        %v2728 = vsub.f32 %v2603, %v2727
        %v2729 = vand.u32 %v2728, 4294901760
        %v2730 = vsub.f32 %v2728, %v2729
        %v2731 = vand.u32 %v2730, 4294901760
        %2732 = vmatprep.mubr.f32.mxu0 %v2731
        %v2733 = vand.u32 %v2602, 4294901760
        %v2734 = vsub.f32 %v2602, %v2733
        %v2735 = vand.u32 %v2734, 4294901760
        %v2736 = vsub.f32 %v2734, %v2735
        %v2737 = vand.u32 %v2736, 4294901760
        %2738 = vmatmul.mubr.f32.gmra.mrb[0].mxu0 %v2737
        %v2739 = vpop.f32.mrb[0].mxu0
        %v2740 = vadd.f32 %v333, %v2739
        %v2741 = vpop.f32.mrb[0].mxu0
        %v2742 = vand.u32 %v2605, 4294901760
        %v2743 = vsub.f32 %v2605, %v2742
        %v2744 = vand.u32 %v2743, 4294901760
        %v2745 = vsub.f32 %v2743, %v2744
        %v2746 = vand.u32 %v2745, 4294901760
        %2747 = vmatprep.mubr.f32.mxu0 %v2746
        %v2748 = vand.u32 %v2604, 4294901760
        %v2749 = vsub.f32 %v2604, %v2748
        %v2750 = vand.u32 %v2749, 4294901760
        %v2751 = vsub.f32 %v2749, %v2750
        %v2752 = vand.u32 %v2751, 4294901760
        %2753 = vmatmul.mubr.f32.gmra.mrb[0].mxu0 %v2752
        %v2754 = vpop.f32.mrb[0].mxu0
        %v2755 = vadd.f32 %v333, %v2754
        %v2756 = vpop.f32.mrb[0].mxu0
        %v2757 = vand.u32 %v2607, 4294901760
        %v2758 = vsub.f32 %v2607, %v2757
        %v2759 = vand.u32 %v2758, 4294901760
        %v2760 = vsub.f32 %v2758, %v2759
        %v2761 = vand.u32 %v2760, 4294901760
        %2762 = vmatprep.mubr.f32.mxu0 %v2761
        %v2763 = vand.u32 %v2606, 4294901760
        %v2764 = vsub.f32 %v2606, %v2763
        %v2765 = vand.u32 %v2764, 4294901760
        %v2766 = vsub.f32 %v2764, %v2765
        %v2767 = vand.u32 %v2766, 4294901760
        %2768 = vmatmul.mubr.f32.gmra.mrb[0].mxu0 %v2767
        %v2769 = vpop.f32.mrb[0].mxu0
        %v2770 = vadd.f32 %v333, %v2769
        %v2771 = vpop.f32.mrb[0].mxu0
        %v2772 = vand.u32 %v2609, 4294901760
        %v2773 = vsub.f32 %v2609, %v2772
        %v2774 = vand.u32 %v2773, 4294901760
        %v2775 = vsub.f32 %v2773, %v2774
        %v2776 = vand.u32 %v2775, 4294901760
        %2777 = vmatprep.mubr.f32.mxu0 %v2776
        %v2778 = vand.u32 %v2608, 4294901760
        %v2779 = vsub.f32 %v2608, %v2778
        %v2780 = vand.u32 %v2779, 4294901760
        %v2781 = vsub.f32 %v2779, %v2780
        %v2782 = vand.u32 %v2781, 4294901760
        %2783 = vmatmul.mubr.f32.gmra.mrb[0].mxu0 %v2782
        %v2784 = vpop.f32.mrb[0].mxu0
        %v2785 = vadd.f32 %v333, %v2784
        %v2786 = vpop.f32.mrb[0].mxu0
        %v2787 = vand.u32 %v2611, 4294901760
        %v2788 = vsub.f32 %v2611, %v2787
        %v2789 = vand.u32 %v2788, 4294901760
        %v2790 = vsub.f32 %v2788, %v2789
        %v2791 = vand.u32 %v2790, 4294901760
        %2792 = vmatprep.mubr.f32.mxu0 %v2791
        %v2793 = vand.u32 %v2610, 4294901760
        %v2794 = vsub.f32 %v2610, %v2793
        %v2795 = vand.u32 %v2794, 4294901760
        %v2796 = vsub.f32 %v2794, %v2795
        %v2797 = vand.u32 %v2796, 4294901760
        %2798 = vmatmul.mubr.f32.gmra.mrb[0].mxu0 %v2797
        %v2799 = vpop.f32.mrb[0].mxu0
        %v2800 = vadd.f32 %v333, %v2799
        %v2801 = vpop.f32.mrb[0].mxu0
        %v2802 = vand.u32 %v2613, 4294901760
        %v2803 = vsub.f32 %v2613, %v2802
        %v2804 = vand.u32 %v2803, 4294901760
        %v2805 = vsub.f32 %v2803, %v2804
        %v2806 = vand.u32 %v2805, 4294901760
        %2807 = vmatprep.mubr.f32.mxu0 %v2806
        %v2808 = vand.u32 %v2612, 4294901760
        %v2809 = vsub.f32 %v2612, %v2808
        %v2810 = vand.u32 %v2809, 4294901760
        %v2811 = vsub.f32 %v2809, %v2810
        %v2812 = vand.u32 %v2811, 4294901760
        %2813 = vmatmul.mubr.f32.gmra.mrb[0].mxu0 %v2812
        %v2814 = vpop.f32.mrb[0].mxu0
        %v2815 = vadd.f32 %v333, %v2814
        %v2816 = vpop.f32.mrb[0].mxu0
        %v2817 = vand.u32 %v2615, 4294901760
        %v2818 = vsub.f32 %v2615, %v2817
        %v2819 = vand.u32 %v2818, 4294901760
        %v2820 = vsub.f32 %v2818, %v2819
        %v2821 = vand.u32 %v2820, 4294901760
        %2822 = vmatprep.mubr.f32.mxu0 %v2821
        %v2823 = vand.u32 %v2614, 4294901760
        %v2824 = vsub.f32 %v2614, %v2823
        %v2825 = vand.u32 %v2824, 4294901760
        %v2826 = vsub.f32 %v2824, %v2825
        %v2827 = vand.u32 %v2826, 4294901760
        %2828 = vmatmul.mubr.f32.gmra.mrb[0].mxu0 %v2827
        %v2829 = vpop.f32.mrb[0].mxu0
        %v2830 = vadd.f32 %v333, %v2829
        %v2831 = vpop.f32.mrb[0].mxu0
        %2832 = vdwg.mxu0
        %2833 = vmatprep.subr.mxu0 0.0
        %v2834 = vand.u32 %v343, 4294901760
        %v2835 = vsub.f32 %v343, %v2834
        %v2836 = vand.u32 %v2835, 4294901760
        %v2837 = vsub.f32 %v2835, %v2836
        %v2838 = vand.u32 %v2837, 4294901760
        %2839 = vmatpush1.msra.mxu0 %v2838
        %2840 = vmatprep.subr.mxu0 0.0
        %v2841 = vand.u32 %v344, 4294901760
        %v2842 = vsub.f32 %v344, %v2841
        %v2843 = vand.u32 %v2842, 4294901760
        %v2844 = vsub.f32 %v2842, %v2843
        %v2845 = vand.u32 %v2844, 4294901760
        %2846 = vmatpush1.msra.mxu0 %v2845
        %2847 = vmatprep.subr.mxu0 0.0
        %v2848 = vand.u32 %v345, 4294901760
        %v2849 = vsub.f32 %v345, %v2848
        %v2850 = vand.u32 %v2849, 4294901760
        %v2851 = vsub.f32 %v2849, %v2850
        %v2852 = vand.u32 %v2851, 4294901760
        %2853 = vmatpush1.msra.mxu0 %v2852
        %2854 = vmatprep.subr.mxu0 0.0
        %v2855 = vand.u32 %v346, 4294901760
        %v2856 = vsub.f32 %v346, %v2855
        %v2857 = vand.u32 %v2856, 4294901760
        %v2858 = vsub.f32 %v2856, %v2857
        %v2859 = vand.u32 %v2858, 4294901760
        %2860 = vmatpush1.msra.mxu0 %v2859
        %2861 = vmatprep.subr.mxu0 0.0
        %v2862 = vand.u32 %v347, 4294901760
        %v2863 = vsub.f32 %v347, %v2862
        %v2864 = vand.u32 %v2863, 4294901760
        %v2865 = vsub.f32 %v2863, %v2864
        %v2866 = vand.u32 %v2865, 4294901760
        %2867 = vmatpush1.msra.mxu0 %v2866
        %2868 = vmatprep.subr.mxu0 0.0
        %v2869 = vand.u32 %v348, 4294901760
        %v2870 = vsub.f32 %v348, %v2869
        %v2871 = vand.u32 %v2870, 4294901760
        %v2872 = vsub.f32 %v2870, %v2871
        %v2873 = vand.u32 %v2872, 4294901760
        %2874 = vmatpush1.msra.mxu0 %v2873
        %2875 = vmatprep.subr.mxu0 0.0
        %v2876 = vand.u32 %v349, 4294901760
        %v2877 = vsub.f32 %v349, %v2876
        %v2878 = vand.u32 %v2877, 4294901760
        %v2879 = vsub.f32 %v2877, %v2878
        %v2880 = vand.u32 %v2879, 4294901760
        %2881 = vmatpush1.msra.mxu0 %v2880
        %2882 = vmatprep.subr.mxu0 0.0
        %v2883 = vand.u32 %v350, 4294901760
        %v2884 = vsub.f32 %v350, %v2883
        %v2885 = vand.u32 %v2884, 4294901760
        %v2886 = vsub.f32 %v2884, %v2885
        %v2887 = vand.u32 %v2886, 4294901760
        %2888 = vmatpush1.msra.mxu0 %v2887
        %2889 = vmatprep.subr.mxu0 0.0
        %v2890 = vand.u32 %v351, 4294901760
        %v2891 = vsub.f32 %v351, %v2890
        %v2892 = vand.u32 %v2891, 4294901760
        %v2893 = vsub.f32 %v2891, %v2892
        %v2894 = vand.u32 %v2893, 4294901760
        %2895 = vmatpush1.msra.mxu0 %v2894
        %2896 = vmatprep.subr.mxu0 0.0
        %v2897 = vand.u32 %v352, 4294901760
        %v2898 = vsub.f32 %v352, %v2897
        %v2899 = vand.u32 %v2898, 4294901760
        %v2900 = vsub.f32 %v2898, %v2899
        %v2901 = vand.u32 %v2900, 4294901760
        %2902 = vmatpush1.msra.mxu0 %v2901
        %2903 = vmatprep.subr.mxu0 0.0
        %v2904 = vand.u32 %v353, 4294901760
        %v2905 = vsub.f32 %v353, %v2904
        %v2906 = vand.u32 %v2905, 4294901760
        %v2907 = vsub.f32 %v2905, %v2906
        %v2908 = vand.u32 %v2907, 4294901760
        %2909 = vmatpush1.msra.mxu0 %v2908
        %2910 = vmatprep.subr.mxu0 0.0
        %v2911 = vand.u32 %v354, 4294901760
        %v2912 = vsub.f32 %v354, %v2911
        %v2913 = vand.u32 %v2912, 4294901760
        %v2914 = vsub.f32 %v2912, %v2913
        %v2915 = vand.u32 %v2914, 4294901760
        %2916 = vmatpush1.msra.mxu0 %v2915
        %2917 = vmatprep.subr.mxu0 0.0
        %v2918 = vand.u32 %v355, 4294901760
        %v2919 = vsub.f32 %v355, %v2918
        %v2920 = vand.u32 %v2919, 4294901760
        %v2921 = vsub.f32 %v2919, %v2920
        %v2922 = vand.u32 %v2921, 4294901760
        %2923 = vmatpush1.msra.mxu0 %v2922
        %2924 = vmatprep.subr.mxu0 0.0
        %v2925 = vand.u32 %v356, 4294901760
        %v2926 = vsub.f32 %v356, %v2925
        %v2927 = vand.u32 %v2926, 4294901760
        %v2928 = vsub.f32 %v2926, %v2927
        %v2929 = vand.u32 %v2928, 4294901760
        %2930 = vmatpush1.msra.mxu0 %v2929
        %2931 = vmatprep.subr.mxu0 0.0
        %v2932 = vand.u32 %v357, 4294901760
        %v2933 = vsub.f32 %v357, %v2932
        %v2934 = vand.u32 %v2933, 4294901760
        %v2935 = vsub.f32 %v2933, %v2934
        %v2936 = vand.u32 %v2935, 4294901760
        %2937 = vmatpush1.msra.mxu0 %v2936
        %2938 = vmatprep.subr.mxu0 0.0
        %v2939 = vand.u32 %v358, 4294901760
        %v2940 = vsub.f32 %v358, %v2939
        %v2941 = vand.u32 %v2940, 4294901760
        %v2942 = vsub.f32 %v2940, %v2941
        %v2943 = vand.u32 %v2942, 4294901760
        %2944 = vmatpush1.msra.mxu0 %v2943
        %2945 = vmatprep.subr.mxu0 0.0
        %v2946 = vand.u32 %v359, 4294901760
        %v2947 = vsub.f32 %v359, %v2946
        %v2948 = vand.u32 %v2947, 4294901760
        %v2949 = vsub.f32 %v2947, %v2948
        %v2950 = vand.u32 %v2949, 4294901760
        %2951 = vmatpush1.msra.mxu0 %v2950
        %2952 = vmatprep.subr.mxu0 0.0
        %v2953 = vand.u32 %v360, 4294901760
        %v2954 = vsub.f32 %v360, %v2953
        %v2955 = vand.u32 %v2954, 4294901760
        %v2956 = vsub.f32 %v2954, %v2955
        %v2957 = vand.u32 %v2956, 4294901760
        %2958 = vmatpush1.msra.mxu0 %v2957
        %2959 = vmatprep.subr.mxu0 0.0
        %v2960 = vand.u32 %v361, 4294901760
        %v2961 = vsub.f32 %v361, %v2960
        %v2962 = vand.u32 %v2961, 4294901760
        %v2963 = vsub.f32 %v2961, %v2962
        %v2964 = vand.u32 %v2963, 4294901760
        %2965 = vmatpush1.msra.mxu0 %v2964
        %2966 = vmatprep.subr.mxu0 0.0
        %v2967 = vand.u32 %v362, 4294901760
        %v2968 = vsub.f32 %v362, %v2967
        %v2969 = vand.u32 %v2968, 4294901760
        %v2970 = vsub.f32 %v2968, %v2969
        %v2971 = vand.u32 %v2970, 4294901760
        %2972 = vmatpush1.msra.mxu0 %v2971
        %2973 = vmatprep.subr.mxu0 0.0
        %v2974 = vand.u32 %v363, 4294901760
        %v2975 = vsub.f32 %v363, %v2974
        %v2976 = vand.u32 %v2975, 4294901760
        %v2977 = vsub.f32 %v2975, %v2976
        %v2978 = vand.u32 %v2977, 4294901760
        %2979 = vmatpush1.msra.mxu0 %v2978
        %2980 = vmatprep.subr.mxu0 0.0
        %v2981 = vand.u32 %v364, 4294901760
        %v2982 = vsub.f32 %v364, %v2981
        %v2983 = vand.u32 %v2982, 4294901760
        %v2984 = vsub.f32 %v2982, %v2983
        %v2985 = vand.u32 %v2984, 4294901760
        %2986 = vmatpush1.msra.mxu0 %v2985
        %2987 = vmatprep.subr.mxu0 0.0
        %v2988 = vand.u32 %v365, 4294901760
        %v2989 = vsub.f32 %v365, %v2988
        %v2990 = vand.u32 %v2989, 4294901760
        %v2991 = vsub.f32 %v2989, %v2990
        %v2992 = vand.u32 %v2991, 4294901760
        %2993 = vmatpush1.msra.mxu0 %v2992
        %2994 = vmatprep.subr.mxu0 0.0
        %v2995 = vand.u32 %v366, 4294901760
        %v2996 = vsub.f32 %v366, %v2995
        %v2997 = vand.u32 %v2996, 4294901760
        %v2998 = vsub.f32 %v2996, %v2997
        %v2999 = vand.u32 %v2998, 4294901760
        %3000 = vmatpush1.msra.mxu0 %v2999
        %3001 = vmatprep.subr.mxu0 0.0
        %v3002 = vand.u32 %v367, 4294901760
        %v3003 = vsub.f32 %v367, %v3002
        %v3004 = vand.u32 %v3003, 4294901760
        %v3005 = vsub.f32 %v3003, %v3004
        %v3006 = vand.u32 %v3005, 4294901760
        %3007 = vmatpush1.msra.mxu0 %v3006
        %3008 = vmatprep.subr.mxu0 0.0
        %v3009 = vand.u32 %v368, 4294901760
        %v3010 = vsub.f32 %v368, %v3009
        %v3011 = vand.u32 %v3010, 4294901760
        %v3012 = vsub.f32 %v3010, %v3011
        %v3013 = vand.u32 %v3012, 4294901760
        %3014 = vmatpush1.msra.mxu0 %v3013
        %3015 = vmatprep.subr.mxu0 0.0
        %v3016 = vand.u32 %v369, 4294901760
        %v3017 = vsub.f32 %v369, %v3016
        %v3018 = vand.u32 %v3017, 4294901760
        %v3019 = vsub.f32 %v3017, %v3018
        %v3020 = vand.u32 %v3019, 4294901760
        %3021 = vmatpush1.msra.mxu0 %v3020
        %3022 = vmatprep.subr.mxu0 0.0
        %v3023 = vand.u32 %v370, 4294901760
        %v3024 = vsub.f32 %v370, %v3023
        %v3025 = vand.u32 %v3024, 4294901760
        %v3026 = vsub.f32 %v3024, %v3025
        %v3027 = vand.u32 %v3026, 4294901760
        %3028 = vmatpush1.msra.mxu0 %v3027
        %3029 = vmatprep.subr.mxu0 0.0
        %v3030 = vand.u32 %v371, 4294901760
        %v3031 = vsub.f32 %v371, %v3030
        %v3032 = vand.u32 %v3031, 4294901760
        %v3033 = vsub.f32 %v3031, %v3032
        %v3034 = vand.u32 %v3033, 4294901760
        %3035 = vmatpush1.msra.mxu0 %v3034
        %3036 = vmatprep.subr.mxu0 0.0
        %v3037 = vand.u32 %v372, 4294901760
        %v3038 = vsub.f32 %v372, %v3037
        %v3039 = vand.u32 %v3038, 4294901760
        %v3040 = vsub.f32 %v3038, %v3039
        %v3041 = vand.u32 %v3040, 4294901760
        %3042 = vmatpush1.msra.mxu0 %v3041
        %3043 = vmatprep.subr.mxu0 0.0
        %v3044 = vand.u32 %v373, 4294901760
        %v3045 = vsub.f32 %v373, %v3044
        %v3046 = vand.u32 %v3045, 4294901760
        %v3047 = vsub.f32 %v3045, %v3046
        %v3048 = vand.u32 %v3047, 4294901760
        %3049 = vmatpush1.msra.mxu0 %v3048
        %3050 = vmatprep.subr.mxu0 0.0
        %v3051 = vand.u32 %v374, 4294901760
        %v3052 = vsub.f32 %v374, %v3051
        %v3053 = vand.u32 %v3052, 4294901760
        %v3054 = vsub.f32 %v3052, %v3053
        %v3055 = vand.u32 %v3054, 4294901760
        %3056 = vmatpush1.msra.mxu0 %v3055
        %v3057 = vand.u32 %v2601, 4294901760
        %3058 = vmatprep.mubr.f32.mxu0 %v3057
        %v3059 = vand.u32 %v2600, 4294901760
        %3060 = vmatmul.mubr.f32.gmra.mrb[0].mxu0 %v3059
        %v3061 = vpop.f32.mrb[0].mxu0
        %v3062 = vadd.f32 %v2725, %v3061
        %v3063 = vpop.f32.mrb[0].mxu0
        %v3064 = vand.u32 %v2603, 4294901760
        %3065 = vmatprep.mubr.f32.mxu0 %v3064
        %v3066 = vand.u32 %v2602, 4294901760
        %3067 = vmatmul.mubr.f32.gmra.mrb[0].mxu0 %v3066
        %v3068 = vpop.f32.mrb[0].mxu0
        %v3069 = vadd.f32 %v2740, %v3068
        %v3070 = vpop.f32.mrb[0].mxu0
        %v3071 = vand.u32 %v2605, 4294901760
        %3072 = vmatprep.mubr.f32.mxu0 %v3071
        %v3073 = vand.u32 %v2604, 4294901760
        %3074 = vmatmul.mubr.f32.gmra.mrb[0].mxu0 %v3073
        %v3075 = vpop.f32.mrb[0].mxu0
        %v3076 = vadd.f32 %v2755, %v3075
        %v3077 = vpop.f32.mrb[0].mxu0
        %v3078 = vand.u32 %v2607, 4294901760
        %3079 = vmatprep.mubr.f32.mxu0 %v3078
        %v3080 = vand.u32 %v2606, 4294901760
        %3081 = vmatmul.mubr.f32.gmra.mrb[0].mxu0 %v3080
        %v3082 = vpop.f32.mrb[0].mxu0
        %v3083 = vadd.f32 %v2770, %v3082
        %v3084 = vpop.f32.mrb[0].mxu0
        %v3085 = vand.u32 %v2609, 4294901760
        %3086 = vmatprep.mubr.f32.mxu0 %v3085
        %v3087 = vand.u32 %v2608, 4294901760
        %3088 = vmatmul.mubr.f32.gmra.mrb[0].mxu0 %v3087
        %v3089 = vpop.f32.mrb[0].mxu0
        %v3090 = vadd.f32 %v2785, %v3089
        %v3091 = vpop.f32.mrb[0].mxu0
        %v3092 = vand.u32 %v2611, 4294901760
        %3093 = vmatprep.mubr.f32.mxu0 %v3092
        %v3094 = vand.u32 %v2610, 4294901760
        %3095 = vmatmul.mubr.f32.gmra.mrb[0].mxu0 %v3094
        %v3096 = vpop.f32.mrb[0].mxu0
        %v3097 = vadd.f32 %v2800, %v3096
        %v3098 = vpop.f32.mrb[0].mxu0
        %v3099 = vand.u32 %v2613, 4294901760
        %3100 = vmatprep.mubr.f32.mxu0 %v3099
        %v3101 = vand.u32 %v2612, 4294901760
        %3102 = vmatmul.mubr.f32.gmra.mrb[0].mxu0 %v3101
        %v3103 = vpop.f32.mrb[0].mxu0
        %v3104 = vadd.f32 %v2815, %v3103
        %v3105 = vpop.f32.mrb[0].mxu0
        %v3106 = vand.u32 %v2615, 4294901760
        %3107 = vmatprep.mubr.f32.mxu0 %v3106
        %v3108 = vand.u32 %v2614, 4294901760
        %3109 = vmatmul.mubr.f32.gmra.mrb[0].mxu0 %v3108
        %v3110 = vpop.f32.mrb[0].mxu0
        %v3111 = vadd.f32 %v2830, %v3110
        %v3112 = vpop.f32.mrb[0].mxu0
        %3113 = vdwg.mxu0
        %3114 = vmatprep.subr.mxu0 0.0
        %v3115 = vand.u32 %v343, 4294901760
        %v3116 = vsub.f32 %v343, %v3115
        %3117 = vmatpush1.msra.mxu0 %v3116
        %3118 = vmatprep.subr.mxu0 0.0
        %v3119 = vand.u32 %v344, 4294901760
        %v3120 = vsub.f32 %v344, %v3119
        %3121 = vmatpush1.msra.mxu0 %v3120
        %3122 = vmatprep.subr.mxu0 0.0
        %v3123 = vand.u32 %v345, 4294901760
        %v3124 = vsub.f32 %v345, %v3123
        %3125 = vmatpush1.msra.mxu0 %v3124
        %3126 = vmatprep.subr.mxu0 0.0
        %v3127 = vand.u32 %v346, 4294901760
        %v3128 = vsub.f32 %v346, %v3127
        %3129 = vmatpush1.msra.mxu0 %v3128
        %3130 = vmatprep.subr.mxu0 0.0
        %v3131 = vand.u32 %v347, 4294901760
        %v3132 = vsub.f32 %v347, %v3131
        %3133 = vmatpush1.msra.mxu0 %v3132
        %3134 = vmatprep.subr.mxu0 0.0
        %v3135 = vand.u32 %v348, 4294901760
        %v3136 = vsub.f32 %v348, %v3135
        %3137 = vmatpush1.msra.mxu0 %v3136
        %3138 = vmatprep.subr.mxu0 0.0
        %v3139 = vand.u32 %v349, 4294901760
        %v3140 = vsub.f32 %v349, %v3139
        %3141 = vmatpush1.msra.mxu0 %v3140
        %3142 = vmatprep.subr.mxu0 0.0
        %v3143 = vand.u32 %v350, 4294901760
        %v3144 = vsub.f32 %v350, %v3143
        %3145 = vmatpush1.msra.mxu0 %v3144
        %3146 = vmatprep.subr.mxu0 0.0
        %v3147 = vand.u32 %v351, 4294901760
        %v3148 = vsub.f32 %v351, %v3147
        %3149 = vmatpush1.msra.mxu0 %v3148
        %3150 = vmatprep.subr.mxu0 0.0
        %v3151 = vand.u32 %v352, 4294901760
        %v3152 = vsub.f32 %v352, %v3151
        %3153 = vmatpush1.msra.mxu0 %v3152
        %3154 = vmatprep.subr.mxu0 0.0
        %v3155 = vand.u32 %v353, 4294901760
        %v3156 = vsub.f32 %v353, %v3155
        %3157 = vmatpush1.msra.mxu0 %v3156
        %3158 = vmatprep.subr.mxu0 0.0
        %v3159 = vand.u32 %v354, 4294901760
        %v3160 = vsub.f32 %v354, %v3159
        %3161 = vmatpush1.msra.mxu0 %v3160
        %3162 = vmatprep.subr.mxu0 0.0
        %v3163 = vand.u32 %v355, 4294901760
        %v3164 = vsub.f32 %v355, %v3163
        %3165 = vmatpush1.msra.mxu0 %v3164
        %3166 = vmatprep.subr.mxu0 0.0
        %v3167 = vand.u32 %v356, 4294901760
        %v3168 = vsub.f32 %v356, %v3167
        %3169 = vmatpush1.msra.mxu0 %v3168
        %3170 = vmatprep.subr.mxu0 0.0
        %v3171 = vand.u32 %v357, 4294901760
        %v3172 = vsub.f32 %v357, %v3171
        %3173 = vmatpush1.msra.mxu0 %v3172
        %3174 = vmatprep.subr.mxu0 0.0
        %v3175 = vand.u32 %v358, 4294901760
        %v3176 = vsub.f32 %v358, %v3175
        %3177 = vmatpush1.msra.mxu0 %v3176
        %3178 = vmatprep.subr.mxu0 0.0
        %v3179 = vand.u32 %v359, 4294901760
        %v3180 = vsub.f32 %v359, %v3179
        %3181 = vmatpush1.msra.mxu0 %v3180
        %3182 = vmatprep.subr.mxu0 0.0
        %v3183 = vand.u32 %v360, 4294901760
        %v3184 = vsub.f32 %v360, %v3183
        %3185 = vmatpush1.msra.mxu0 %v3184
        %3186 = vmatprep.subr.mxu0 0.0
        %v3187 = vand.u32 %v361, 4294901760
        %v3188 = vsub.f32 %v361, %v3187
        %3189 = vmatpush1.msra.mxu0 %v3188
        %3190 = vmatprep.subr.mxu0 0.0
        %v3191 = vand.u32 %v362, 4294901760
        %v3192 = vsub.f32 %v362, %v3191
        %3193 = vmatpush1.msra.mxu0 %v3192
        %3194 = vmatprep.subr.mxu0 0.0
        %v3195 = vand.u32 %v363, 4294901760
        %v3196 = vsub.f32 %v363, %v3195
        %3197 = vmatpush1.msra.mxu0 %v3196
        %3198 = vmatprep.subr.mxu0 0.0
        %v3199 = vand.u32 %v364, 4294901760
        %v3200 = vsub.f32 %v364, %v3199
        %3201 = vmatpush1.msra.mxu0 %v3200
        %3202 = vmatprep.subr.mxu0 0.0
        %v3203 = vand.u32 %v365, 4294901760
        %v3204 = vsub.f32 %v365, %v3203
        %3205 = vmatpush1.msra.mxu0 %v3204
        %3206 = vmatprep.subr.mxu0 0.0
        %v3207 = vand.u32 %v366, 4294901760
        %v3208 = vsub.f32 %v366, %v3207
        %3209 = vmatpush1.msra.mxu0 %v3208
        %3210 = vmatprep.subr.mxu0 0.0
        %v3211 = vand.u32 %v367, 4294901760
        %v3212 = vsub.f32 %v367, %v3211
        %3213 = vmatpush1.msra.mxu0 %v3212
        %3214 = vmatprep.subr.mxu0 0.0
        %v3215 = vand.u32 %v368, 4294901760
        %v3216 = vsub.f32 %v368, %v3215
        %3217 = vmatpush1.msra.mxu0 %v3216
        %3218 = vmatprep.subr.mxu0 0.0
        %v3219 = vand.u32 %v369, 4294901760
        %v3220 = vsub.f32 %v369, %v3219
        %3221 = vmatpush1.msra.mxu0 %v3220
        %3222 = vmatprep.subr.mxu0 0.0
        %v3223 = vand.u32 %v370, 4294901760
        %v3224 = vsub.f32 %v370, %v3223
        %3225 = vmatpush1.msra.mxu0 %v3224
        %3226 = vmatprep.subr.mxu0 0.0
        %v3227 = vand.u32 %v371, 4294901760
        %v3228 = vsub.f32 %v371, %v3227
        %3229 = vmatpush1.msra.mxu0 %v3228
        %3230 = vmatprep.subr.mxu0 0.0
        %v3231 = vand.u32 %v372, 4294901760
        %v3232 = vsub.f32 %v372, %v3231
        %3233 = vmatpush1.msra.mxu0 %v3232
        %3234 = vmatprep.subr.mxu0 0.0
        %v3235 = vand.u32 %v373, 4294901760
        %v3236 = vsub.f32 %v373, %v3235
        %3237 = vmatpush1.msra.mxu0 %v3236
        %3238 = vmatprep.subr.mxu0 0.0
        %v3239 = vand.u32 %v374, 4294901760
        %v3240 = vsub.f32 %v374, %v3239
        %3241 = vmatpush1.msra.mxu0 %v3240
        %v3242 = vand.u32 %v2601, 4294901760
        %v3243 = vsub.f32 %v2601, %v3242
        %3244 = vmatprep.mubr.f32.mxu0 %v3243
        %v3245 = vand.u32 %v2600, 4294901760
        %v3246 = vsub.f32 %v2600, %v3245
        %3247 = vmatmul.mubr.f32.gmra.mrb[0].mxu0 %v3246
        %v3248 = vpop.f32.mrb[0].mxu0
        %v3249 = vadd.f32 %v3062, %v3248
        %v3250 = vpop.f32.mrb[0].mxu0
        %v3251 = vand.u32 %v2603, 4294901760
        %v3252 = vsub.f32 %v2603, %v3251
        %3253 = vmatprep.mubr.f32.mxu0 %v3252
        %v3254 = vand.u32 %v2602, 4294901760
        %v3255 = vsub.f32 %v2602, %v3254
        %3256 = vmatmul.mubr.f32.gmra.mrb[0].mxu0 %v3255
        %v3257 = vpop.f32.mrb[0].mxu0
        %v3258 = vadd.f32 %v3069, %v3257
        %v3259 = vpop.f32.mrb[0].mxu0
        %v3260 = vand.u32 %v2605, 4294901760
        %v3261 = vsub.f32 %v2605, %v3260
        %3262 = vmatprep.mubr.f32.mxu0 %v3261
        %v3263 = vand.u32 %v2604, 4294901760
        %v3264 = vsub.f32 %v2604, %v3263
        %3265 = vmatmul.mubr.f32.gmra.mrb[0].mxu0 %v3264
        %v3266 = vpop.f32.mrb[0].mxu0
        %v3267 = vadd.f32 %v3076, %v3266
        %v3268 = vpop.f32.mrb[0].mxu0
        %v3269 = vand.u32 %v2607, 4294901760
        %v3270 = vsub.f32 %v2607, %v3269
        %3271 = vmatprep.mubr.f32.mxu0 %v3270
        %v3272 = vand.u32 %v2606, 4294901760
        %v3273 = vsub.f32 %v2606, %v3272
        %3274 = vmatmul.mubr.f32.gmra.mrb[0].mxu0 %v3273
        %v3275 = vpop.f32.mrb[0].mxu0
        %v3276 = vadd.f32 %v3083, %v3275
        %v3277 = vpop.f32.mrb[0].mxu0
        %v3278 = vand.u32 %v2609, 4294901760
        %v3279 = vsub.f32 %v2609, %v3278
        %3280 = vmatprep.mubr.f32.mxu0 %v3279
        %v3281 = vand.u32 %v2608, 4294901760
        %v3282 = vsub.f32 %v2608, %v3281
        %3283 = vmatmul.mubr.f32.gmra.mrb[0].mxu0 %v3282
        %v3284 = vpop.f32.mrb[0].mxu0
        %v3285 = vadd.f32 %v3090, %v3284
        %v3286 = vpop.f32.mrb[0].mxu0
        %v3287 = vand.u32 %v2611, 4294901760
        %v3288 = vsub.f32 %v2611, %v3287
        %3289 = vmatprep.mubr.f32.mxu0 %v3288
        %v3290 = vand.u32 %v2610, 4294901760
        %v3291 = vsub.f32 %v2610, %v3290
        %3292 = vmatmul.mubr.f32.gmra.mrb[0].mxu0 %v3291
        %v3293 = vpop.f32.mrb[0].mxu0
        %v3294 = vadd.f32 %v3097, %v3293
        %v3295 = vpop.f32.mrb[0].mxu0
        %v3296 = vand.u32 %v2613, 4294901760
        %v3297 = vsub.f32 %v2613, %v3296
        %3298 = vmatprep.mubr.f32.mxu0 %v3297
        %v3299 = vand.u32 %v2612, 4294901760
        %v3300 = vsub.f32 %v2612, %v3299
        %3301 = vmatmul.mubr.f32.gmra.mrb[0].mxu0 %v3300
        %v3302 = vpop.f32.mrb[0].mxu0
        %v3303 = vadd.f32 %v3104, %v3302
        %v3304 = vpop.f32.mrb[0].mxu0
        %v3305 = vand.u32 %v2615, 4294901760
        %v3306 = vsub.f32 %v2615, %v3305
        %3307 = vmatprep.mubr.f32.mxu0 %v3306
        %v3308 = vand.u32 %v2614, 4294901760
        %v3309 = vsub.f32 %v2614, %v3308
        %3310 = vmatmul.mubr.f32.gmra.mrb[0].mxu0 %v3309
        %v3311 = vpop.f32.mrb[0].mxu0
        %v3312 = vadd.f32 %v3111, %v3311
        %v3313 = vpop.f32.mrb[0].mxu0
        %3314 = vdwg.mxu0
        %3315 = vmatprep.subr.mxu0 0.0
        %v3316 = vand.u32 %v343, 4294901760
        %3317 = vmatpush1.msra.mxu0 %v3316
        %3318 = vmatprep.subr.mxu0 0.0
        %v3319 = vand.u32 %v344, 4294901760
        %3320 = vmatpush1.msra.mxu0 %v3319
        %3321 = vmatprep.subr.mxu0 0.0
        %v3322 = vand.u32 %v345, 4294901760
        %3323 = vmatpush1.msra.mxu0 %v3322
        %3324 = vmatprep.subr.mxu0 0.0
        %v3325 = vand.u32 %v346, 4294901760
        %3326 = vmatpush1.msra.mxu0 %v3325
        %3327 = vmatprep.subr.mxu0 0.0
        %v3328 = vand.u32 %v347, 4294901760
        %3329 = vmatpush1.msra.mxu0 %v3328
        %3330 = vmatprep.subr.mxu0 0.0
        %v3331 = vand.u32 %v348, 4294901760
        %3332 = vmatpush1.msra.mxu0 %v3331
        %3333 = vmatprep.subr.mxu0 0.0
        %v3334 = vand.u32 %v349, 4294901760
        %3335 = vmatpush1.msra.mxu0 %v3334
        %3336 = vmatprep.subr.mxu0 0.0
        %v3337 = vand.u32 %v350, 4294901760
        %3338 = vmatpush1.msra.mxu0 %v3337
        %3339 = vmatprep.subr.mxu0 0.0
        %v3340 = vand.u32 %v351, 4294901760
        %3341 = vmatpush1.msra.mxu0 %v3340
        %3342 = vmatprep.subr.mxu0 0.0
        %v3343 = vand.u32 %v352, 4294901760
        %3344 = vmatpush1.msra.mxu0 %v3343
        %3345 = vmatprep.subr.mxu0 0.0
        %v3346 = vand.u32 %v353, 4294901760
        %3347 = vmatpush1.msra.mxu0 %v3346
        %3348 = vmatprep.subr.mxu0 0.0
        %v3349 = vand.u32 %v354, 4294901760
        %3350 = vmatpush1.msra.mxu0 %v3349
        %3351 = vmatprep.subr.mxu0 0.0
        %v3352 = vand.u32 %v355, 4294901760
        %3353 = vmatpush1.msra.mxu0 %v3352
        %3354 = vmatprep.subr.mxu0 0.0
        %v3355 = vand.u32 %v356, 4294901760
        %3356 = vmatpush1.msra.mxu0 %v3355
        %3357 = vmatprep.subr.mxu0 0.0
        %v3358 = vand.u32 %v357, 4294901760
        %3359 = vmatpush1.msra.mxu0 %v3358
        %3360 = vmatprep.subr.mxu0 0.0
        %v3361 = vand.u32 %v358, 4294901760
        %3362 = vmatpush1.msra.mxu0 %v3361
        %3363 = vmatprep.subr.mxu0 0.0
        %v3364 = vand.u32 %v359, 4294901760
        %3365 = vmatpush1.msra.mxu0 %v3364
        %3366 = vmatprep.subr.mxu0 0.0
        %v3367 = vand.u32 %v360, 4294901760
        %3368 = vmatpush1.msra.mxu0 %v3367
        %3369 = vmatprep.subr.mxu0 0.0
        %v3370 = vand.u32 %v361, 4294901760
        %3371 = vmatpush1.msra.mxu0 %v3370
        %3372 = vmatprep.subr.mxu0 0.0
        %v3373 = vand.u32 %v362, 4294901760
        %3374 = vmatpush1.msra.mxu0 %v3373
        %3375 = vmatprep.subr.mxu0 0.0
        %v3376 = vand.u32 %v363, 4294901760
        %3377 = vmatpush1.msra.mxu0 %v3376
        %3378 = vmatprep.subr.mxu0 0.0
        %v3379 = vand.u32 %v364, 4294901760
        %3380 = vmatpush1.msra.mxu0 %v3379
        %3381 = vmatprep.subr.mxu0 0.0
        %v3382 = vand.u32 %v365, 4294901760
        %3383 = vmatpush1.msra.mxu0 %v3382
        %3384 = vmatprep.subr.mxu0 0.0
        %v3385 = vand.u32 %v366, 4294901760
        %3386 = vmatpush1.msra.mxu0 %v3385
        %3387 = vmatprep.subr.mxu0 0.0
        %v3388 = vand.u32 %v367, 4294901760
        %3389 = vmatpush1.msra.mxu0 %v3388
        %3390 = vmatprep.subr.mxu0 0.0
        %v3391 = vand.u32 %v368, 4294901760
        %3392 = vmatpush1.msra.mxu0 %v3391
        %3393 = vmatprep.subr.mxu0 0.0
        %v3394 = vand.u32 %v369, 4294901760
        %3395 = vmatpush1.msra.mxu0 %v3394
        %3396 = vmatprep.subr.mxu0 0.0
        %v3397 = vand.u32 %v370, 4294901760
        %3398 = vmatpush1.msra.mxu0 %v3397
        %3399 = vmatprep.subr.mxu0 0.0
        %v3400 = vand.u32 %v371, 4294901760
        %3401 = vmatpush1.msra.mxu0 %v3400
        %3402 = vmatprep.subr.mxu0 0.0
        %v3403 = vand.u32 %v372, 4294901760
        %3404 = vmatpush1.msra.mxu0 %v3403
        %3405 = vmatprep.subr.mxu0 0.0
        %v3406 = vand.u32 %v373, 4294901760
        %3407 = vmatpush1.msra.mxu0 %v3406
        %3408 = vmatprep.subr.mxu0 0.0
        %v3409 = vand.u32 %v374, 4294901760
        %3410 = vmatpush1.msra.mxu0 %v3409
        %v3411 = vand.u32 %v2601, 4294901760
        %v3412 = vsub.f32 %v2601, %v3411
        %v3413 = vand.u32 %v3412, 4294901760
        %3414 = vmatprep.mubr.f32.mxu0 %v3413
        %v3415 = vand.u32 %v2600, 4294901760
        %v3416 = vsub.f32 %v2600, %v3415
        %v3417 = vand.u32 %v3416, 4294901760
        %3418 = vmatmul.mubr.f32.gmra.mrb[0].mxu0 %v3417
        %v3419 = vpop.f32.mrb[0].mxu0
        %v3420 = vadd.f32 %v3249, %v3419
        %v3421 = vpop.f32.mrb[0].mxu0
        %v3422 = vand.u32 %v2603, 4294901760
        %v3423 = vsub.f32 %v2603, %v3422
        %v3424 = vand.u32 %v3423, 4294901760
        %3425 = vmatprep.mubr.f32.mxu0 %v3424
        %v3426 = vand.u32 %v2602, 4294901760
        %v3427 = vsub.f32 %v2602, %v3426
        %v3428 = vand.u32 %v3427, 4294901760
        %3429 = vmatmul.mubr.f32.gmra.mrb[0].mxu0 %v3428
        %v3430 = vpop.f32.mrb[0].mxu0
        %v3431 = vadd.f32 %v3258, %v3430
        %v3432 = vpop.f32.mrb[0].mxu0
        %v3433 = vand.u32 %v2605, 4294901760
        %v3434 = vsub.f32 %v2605, %v3433
        %v3435 = vand.u32 %v3434, 4294901760
        %3436 = vmatprep.mubr.f32.mxu0 %v3435
        %v3437 = vand.u32 %v2604, 4294901760
        %v3438 = vsub.f32 %v2604, %v3437
        %v3439 = vand.u32 %v3438, 4294901760
        %3440 = vmatmul.mubr.f32.gmra.mrb[0].mxu0 %v3439
        %v3441 = vpop.f32.mrb[0].mxu0
        %v3442 = vadd.f32 %v3267, %v3441
        %v3443 = vpop.f32.mrb[0].mxu0
        %v3444 = vand.u32 %v2607, 4294901760
        %v3445 = vsub.f32 %v2607, %v3444
        %v3446 = vand.u32 %v3445, 4294901760
        %3447 = vmatprep.mubr.f32.mxu0 %v3446
        %v3448 = vand.u32 %v2606, 4294901760
        %v3449 = vsub.f32 %v2606, %v3448
        %v3450 = vand.u32 %v3449, 4294901760
        %3451 = vmatmul.mubr.f32.gmra.mrb[0].mxu0 %v3450
        %v3452 = vpop.f32.mrb[0].mxu0
        %v3453 = vadd.f32 %v3276, %v3452
        %v3454 = vpop.f32.mrb[0].mxu0
        %v3455 = vand.u32 %v2609, 4294901760
        %v3456 = vsub.f32 %v2609, %v3455
        %v3457 = vand.u32 %v3456, 4294901760
        %3458 = vmatprep.mubr.f32.mxu0 %v3457
        %v3459 = vand.u32 %v2608, 4294901760
        %v3460 = vsub.f32 %v2608, %v3459
        %v3461 = vand.u32 %v3460, 4294901760
        %3462 = vmatmul.mubr.f32.gmra.mrb[0].mxu0 %v3461
        %v3463 = vpop.f32.mrb[0].mxu0
        %v3464 = vadd.f32 %v3285, %v3463
        %v3465 = vpop.f32.mrb[0].mxu0
        %v3466 = vand.u32 %v2611, 4294901760
        %v3467 = vsub.f32 %v2611, %v3466
        %v3468 = vand.u32 %v3467, 4294901760
        %3469 = vmatprep.mubr.f32.mxu0 %v3468
        %v3470 = vand.u32 %v2610, 4294901760
        %v3471 = vsub.f32 %v2610, %v3470
        %v3472 = vand.u32 %v3471, 4294901760
        %3473 = vmatmul.mubr.f32.gmra.mrb[0].mxu0 %v3472
        %v3474 = vpop.f32.mrb[0].mxu0
        %v3475 = vadd.f32 %v3294, %v3474
        %v3476 = vpop.f32.mrb[0].mxu0
        %v3477 = vand.u32 %v2613, 4294901760
        %v3478 = vsub.f32 %v2613, %v3477
        %v3479 = vand.u32 %v3478, 4294901760
        %3480 = vmatprep.mubr.f32.mxu0 %v3479
        %v3481 = vand.u32 %v2612, 4294901760
        %v3482 = vsub.f32 %v2612, %v3481
        %v3483 = vand.u32 %v3482, 4294901760
        %3484 = vmatmul.mubr.f32.gmra.mrb[0].mxu0 %v3483
        %v3485 = vpop.f32.mrb[0].mxu0
        %v3486 = vadd.f32 %v3303, %v3485
        %v3487 = vpop.f32.mrb[0].mxu0
        %v3488 = vand.u32 %v2615, 4294901760
        %v3489 = vsub.f32 %v2615, %v3488
        %v3490 = vand.u32 %v3489, 4294901760
        %3491 = vmatprep.mubr.f32.mxu0 %v3490
        %v3492 = vand.u32 %v2614, 4294901760
        %v3493 = vsub.f32 %v2614, %v3492
        %v3494 = vand.u32 %v3493, 4294901760
        %3495 = vmatmul.mubr.f32.gmra.mrb[0].mxu0 %v3494
        %v3496 = vpop.f32.mrb[0].mxu0
        %v3497 = vadd.f32 %v3312, %v3496
        %v3498 = vpop.f32.mrb[0].mxu0
        %3499 = vdwg.mxu0
        %3500 = vmatprep.subr.mxu0 0.0
        %v3501 = vand.u32 %v343, 4294901760
        %v3502 = vsub.f32 %v343, %v3501
        %v3503 = vand.u32 %v3502, 4294901760
        %3504 = vmatpush1.msra.mxu0 %v3503
        %3505 = vmatprep.subr.mxu0 0.0
        %v3506 = vand.u32 %v344, 4294901760
        %v3507 = vsub.f32 %v344, %v3506
        %v3508 = vand.u32 %v3507, 4294901760
        %3509 = vmatpush1.msra.mxu0 %v3508
        %3510 = vmatprep.subr.mxu0 0.0
        %v3511 = vand.u32 %v345, 4294901760
        %v3512 = vsub.f32 %v345, %v3511
        %v3513 = vand.u32 %v3512, 4294901760
        %3514 = vmatpush1.msra.mxu0 %v3513
        %3515 = vmatprep.subr.mxu0 0.0
        %v3516 = vand.u32 %v346, 4294901760
        %v3517 = vsub.f32 %v346, %v3516
        %v3518 = vand.u32 %v3517, 4294901760
        %3519 = vmatpush1.msra.mxu0 %v3518
        %3520 = vmatprep.subr.mxu0 0.0
        %v3521 = vand.u32 %v347, 4294901760
        %v3522 = vsub.f32 %v347, %v3521
        %v3523 = vand.u32 %v3522, 4294901760
        %3524 = vmatpush1.msra.mxu0 %v3523
        %3525 = vmatprep.subr.mxu0 0.0
        %v3526 = vand.u32 %v348, 4294901760
        %v3527 = vsub.f32 %v348, %v3526
        %v3528 = vand.u32 %v3527, 4294901760
        %3529 = vmatpush1.msra.mxu0 %v3528
        %3530 = vmatprep.subr.mxu0 0.0
        %v3531 = vand.u32 %v349, 4294901760
        %v3532 = vsub.f32 %v349, %v3531
        %v3533 = vand.u32 %v3532, 4294901760
        %3534 = vmatpush1.msra.mxu0 %v3533
        %3535 = vmatprep.subr.mxu0 0.0
        %v3536 = vand.u32 %v350, 4294901760
        %v3537 = vsub.f32 %v350, %v3536
        %v3538 = vand.u32 %v3537, 4294901760
        %3539 = vmatpush1.msra.mxu0 %v3538
        %3540 = vmatprep.subr.mxu0 0.0
        %v3541 = vand.u32 %v351, 4294901760
        %v3542 = vsub.f32 %v351, %v3541
        %v3543 = vand.u32 %v3542, 4294901760
        %3544 = vmatpush1.msra.mxu0 %v3543
        %3545 = vmatprep.subr.mxu0 0.0
        %v3546 = vand.u32 %v352, 4294901760
        %v3547 = vsub.f32 %v352, %v3546
        %v3548 = vand.u32 %v3547, 4294901760
        %3549 = vmatpush1.msra.mxu0 %v3548
        %3550 = vmatprep.subr.mxu0 0.0
        %v3551 = vand.u32 %v353, 4294901760
        %v3552 = vsub.f32 %v353, %v3551
        %v3553 = vand.u32 %v3552, 4294901760
        %3554 = vmatpush1.msra.mxu0 %v3553
        %3555 = vmatprep.subr.mxu0 0.0
        %v3556 = vand.u32 %v354, 4294901760
        %v3557 = vsub.f32 %v354, %v3556
        %v3558 = vand.u32 %v3557, 4294901760
        %3559 = vmatpush1.msra.mxu0 %v3558
        %3560 = vmatprep.subr.mxu0 0.0
        %v3561 = vand.u32 %v355, 4294901760
        %v3562 = vsub.f32 %v355, %v3561
        %v3563 = vand.u32 %v3562, 4294901760
        %3564 = vmatpush1.msra.mxu0 %v3563
        %3565 = vmatprep.subr.mxu0 0.0
        %v3566 = vand.u32 %v356, 4294901760
        %v3567 = vsub.f32 %v356, %v3566
        %v3568 = vand.u32 %v3567, 4294901760
        %3569 = vmatpush1.msra.mxu0 %v3568
        %3570 = vmatprep.subr.mxu0 0.0
        %v3571 = vand.u32 %v357, 4294901760
        %v3572 = vsub.f32 %v357, %v3571
        %v3573 = vand.u32 %v3572, 4294901760
        %3574 = vmatpush1.msra.mxu0 %v3573
        %3575 = vmatprep.subr.mxu0 0.0
        %v3576 = vand.u32 %v358, 4294901760
        %v3577 = vsub.f32 %v358, %v3576
        %v3578 = vand.u32 %v3577, 4294901760
        %3579 = vmatpush1.msra.mxu0 %v3578
        %3580 = vmatprep.subr.mxu0 0.0
        %v3581 = vand.u32 %v359, 4294901760
        %v3582 = vsub.f32 %v359, %v3581
        %v3583 = vand.u32 %v3582, 4294901760
        %3584 = vmatpush1.msra.mxu0 %v3583
        %3585 = vmatprep.subr.mxu0 0.0
        %v3586 = vand.u32 %v360, 4294901760
        %v3587 = vsub.f32 %v360, %v3586
        %v3588 = vand.u32 %v3587, 4294901760
        %3589 = vmatpush1.msra.mxu0 %v3588
        %3590 = vmatprep.subr.mxu0 0.0
        %v3591 = vand.u32 %v361, 4294901760
        %v3592 = vsub.f32 %v361, %v3591
        %v3593 = vand.u32 %v3592, 4294901760
        %3594 = vmatpush1.msra.mxu0 %v3593
        %3595 = vmatprep.subr.mxu0 0.0
        %v3596 = vand.u32 %v362, 4294901760
        %v3597 = vsub.f32 %v362, %v3596
        %v3598 = vand.u32 %v3597, 4294901760
        %3599 = vmatpush1.msra.mxu0 %v3598
        %3600 = vmatprep.subr.mxu0 0.0
        %v3601 = vand.u32 %v363, 4294901760
        %v3602 = vsub.f32 %v363, %v3601
        %v3603 = vand.u32 %v3602, 4294901760
        %3604 = vmatpush1.msra.mxu0 %v3603
        %3605 = vmatprep.subr.mxu0 0.0
        %v3606 = vand.u32 %v364, 4294901760
        %v3607 = vsub.f32 %v364, %v3606
        %v3608 = vand.u32 %v3607, 4294901760
        %3609 = vmatpush1.msra.mxu0 %v3608
        %3610 = vmatprep.subr.mxu0 0.0
        %v3611 = vand.u32 %v365, 4294901760
        %v3612 = vsub.f32 %v365, %v3611
        %v3613 = vand.u32 %v3612, 4294901760
        %3614 = vmatpush1.msra.mxu0 %v3613
        %3615 = vmatprep.subr.mxu0 0.0
        %v3616 = vand.u32 %v366, 4294901760
        %v3617 = vsub.f32 %v366, %v3616
        %v3618 = vand.u32 %v3617, 4294901760
        %3619 = vmatpush1.msra.mxu0 %v3618
        %3620 = vmatprep.subr.mxu0 0.0
        %v3621 = vand.u32 %v367, 4294901760
        %v3622 = vsub.f32 %v367, %v3621
        %v3623 = vand.u32 %v3622, 4294901760
        %3624 = vmatpush1.msra.mxu0 %v3623
        %3625 = vmatprep.subr.mxu0 0.0
        %v3626 = vand.u32 %v368, 4294901760
        %v3627 = vsub.f32 %v368, %v3626
        %v3628 = vand.u32 %v3627, 4294901760
        %3629 = vmatpush1.msra.mxu0 %v3628
        %3630 = vmatprep.subr.mxu0 0.0
        %v3631 = vand.u32 %v369, 4294901760
        %v3632 = vsub.f32 %v369, %v3631
        %v3633 = vand.u32 %v3632, 4294901760
        %3634 = vmatpush1.msra.mxu0 %v3633
        %3635 = vmatprep.subr.mxu0 0.0
        %v3636 = vand.u32 %v370, 4294901760
        %v3637 = vsub.f32 %v370, %v3636
        %v3638 = vand.u32 %v3637, 4294901760
        %3639 = vmatpush1.msra.mxu0 %v3638
        %3640 = vmatprep.subr.mxu0 0.0
        %v3641 = vand.u32 %v371, 4294901760
        %v3642 = vsub.f32 %v371, %v3641
        %v3643 = vand.u32 %v3642, 4294901760
        %3644 = vmatpush1.msra.mxu0 %v3643
        %3645 = vmatprep.subr.mxu0 0.0
        %v3646 = vand.u32 %v372, 4294901760
        %v3647 = vsub.f32 %v372, %v3646
        %v3648 = vand.u32 %v3647, 4294901760
        %3649 = vmatpush1.msra.mxu0 %v3648
        %3650 = vmatprep.subr.mxu0 0.0
        %v3651 = vand.u32 %v373, 4294901760
        %v3652 = vsub.f32 %v373, %v3651
        %v3653 = vand.u32 %v3652, 4294901760
        %3654 = vmatpush1.msra.mxu0 %v3653
        %3655 = vmatprep.subr.mxu0 0.0
        %v3656 = vand.u32 %v374, 4294901760
        %v3657 = vsub.f32 %v374, %v3656
        %v3658 = vand.u32 %v3657, 4294901760
        %3659 = vmatpush1.msra.mxu0 %v3658
        %v3660 = vand.u32 %v2601, 4294901760
        %3661 = vmatprep.mubr.f32.mxu0 %v3660
        %v3662 = vand.u32 %v2600, 4294901760
        %3663 = vmatmul.mubr.f32.gmra.mrb[0].mxu0 %v3662
        %v3664 = vpop.f32.mrb[0].mxu0
        %v3665 = vadd.f32 %v3420, %v3664
        %v3666 = vpop.f32.mrb[0].mxu0
        %v3667 = vand.u32 %v2603, 4294901760
        %3668 = vmatprep.mubr.f32.mxu0 %v3667
        %v3669 = vand.u32 %v2602, 4294901760
        %3670 = vmatmul.mubr.f32.gmra.mrb[0].mxu0 %v3669
        %v3671 = vpop.f32.mrb[0].mxu0
        %v3672 = vadd.f32 %v3431, %v3671
        %v3673 = vpop.f32.mrb[0].mxu0
        %v3674 = vand.u32 %v2605, 4294901760
        %3675 = vmatprep.mubr.f32.mxu0 %v3674
        %v3676 = vand.u32 %v2604, 4294901760
        %3677 = vmatmul.mubr.f32.gmra.mrb[0].mxu0 %v3676
        %v3678 = vpop.f32.mrb[0].mxu0
        %v3679 = vadd.f32 %v3442, %v3678
        %v3680 = vpop.f32.mrb[0].mxu0
        %v3681 = vand.u32 %v2607, 4294901760
        %3682 = vmatprep.mubr.f32.mxu0 %v3681
        %v3683 = vand.u32 %v2606, 4294901760
        %3684 = vmatmul.mubr.f32.gmra.mrb[0].mxu0 %v3683
        %v3685 = vpop.f32.mrb[0].mxu0
        %v3686 = vadd.f32 %v3453, %v3685
        %v3687 = vpop.f32.mrb[0].mxu0
        %v3688 = vand.u32 %v2609, 4294901760
        %3689 = vmatprep.mubr.f32.mxu0 %v3688
        %v3690 = vand.u32 %v2608, 4294901760
        %3691 = vmatmul.mubr.f32.gmra.mrb[0].mxu0 %v3690
        %v3692 = vpop.f32.mrb[0].mxu0
        %v3693 = vadd.f32 %v3464, %v3692
        %v3694 = vpop.f32.mrb[0].mxu0
        %v3695 = vand.u32 %v2611, 4294901760
        %3696 = vmatprep.mubr.f32.mxu0 %v3695
        %v3697 = vand.u32 %v2610, 4294901760
        %3698 = vmatmul.mubr.f32.gmra.mrb[0].mxu0 %v3697
        %v3699 = vpop.f32.mrb[0].mxu0
        %v3700 = vadd.f32 %v3475, %v3699
        %v3701 = vpop.f32.mrb[0].mxu0
        %v3702 = vand.u32 %v2613, 4294901760
        %3703 = vmatprep.mubr.f32.mxu0 %v3702
        %v3704 = vand.u32 %v2612, 4294901760
        %3705 = vmatmul.mubr.f32.gmra.mrb[0].mxu0 %v3704
        %v3706 = vpop.f32.mrb[0].mxu0
        %v3707 = vadd.f32 %v3486, %v3706
        %v3708 = vpop.f32.mrb[0].mxu0
        %v3709 = vand.u32 %v2615, 4294901760
        %3710 = vmatprep.mubr.f32.mxu0 %v3709
        %v3711 = vand.u32 %v2614, 4294901760
        %3712 = vmatmul.mubr.f32.gmra.mrb[0].mxu0 %v3711
        %v3713 = vpop.f32.mrb[0].mxu0
        %v3714 = vadd.f32 %v3497, %v3713
        %v3715 = vpop.f32.mrb[0].mxu0
        %3716 = vdwg.mxu0
        %3717 = vmatprep.subr.mxu0 0.0
        %v3718 = vand.u32 %v343, 4294901760
        %3719 = vmatpush1.msra.mxu0 %v3718
        %3720 = vmatprep.subr.mxu0 0.0
        %v3721 = vand.u32 %v344, 4294901760
        %3722 = vmatpush1.msra.mxu0 %v3721
        %3723 = vmatprep.subr.mxu0 0.0
        %v3724 = vand.u32 %v345, 4294901760
        %3725 = vmatpush1.msra.mxu0 %v3724
        %3726 = vmatprep.subr.mxu0 0.0
        %v3727 = vand.u32 %v346, 4294901760
        %3728 = vmatpush1.msra.mxu0 %v3727
        %3729 = vmatprep.subr.mxu0 0.0
        %v3730 = vand.u32 %v347, 4294901760
        %3731 = vmatpush1.msra.mxu0 %v3730
        %3732 = vmatprep.subr.mxu0 0.0
        %v3733 = vand.u32 %v348, 4294901760
        %3734 = vmatpush1.msra.mxu0 %v3733
        %3735 = vmatprep.subr.mxu0 0.0
        %v3736 = vand.u32 %v349, 4294901760
        %3737 = vmatpush1.msra.mxu0 %v3736
        %3738 = vmatprep.subr.mxu0 0.0
        %v3739 = vand.u32 %v350, 4294901760
        %3740 = vmatpush1.msra.mxu0 %v3739
        %3741 = vmatprep.subr.mxu0 0.0
        %v3742 = vand.u32 %v351, 4294901760
        %3743 = vmatpush1.msra.mxu0 %v3742
        %3744 = vmatprep.subr.mxu0 0.0
        %v3745 = vand.u32 %v352, 4294901760
        %3746 = vmatpush1.msra.mxu0 %v3745
        %3747 = vmatprep.subr.mxu0 0.0
        %v3748 = vand.u32 %v353, 4294901760
        %3749 = vmatpush1.msra.mxu0 %v3748
        %3750 = vmatprep.subr.mxu0 0.0
        %v3751 = vand.u32 %v354, 4294901760
        %3752 = vmatpush1.msra.mxu0 %v3751
        %3753 = vmatprep.subr.mxu0 0.0
        %v3754 = vand.u32 %v355, 4294901760
        %3755 = vmatpush1.msra.mxu0 %v3754
        %3756 = vmatprep.subr.mxu0 0.0
        %v3757 = vand.u32 %v356, 4294901760
        %3758 = vmatpush1.msra.mxu0 %v3757
        %3759 = vmatprep.subr.mxu0 0.0
        %v3760 = vand.u32 %v357, 4294901760
        %3761 = vmatpush1.msra.mxu0 %v3760
        %3762 = vmatprep.subr.mxu0 0.0
        %v3763 = vand.u32 %v358, 4294901760
        %3764 = vmatpush1.msra.mxu0 %v3763
        %3765 = vmatprep.subr.mxu0 0.0
        %v3766 = vand.u32 %v359, 4294901760
        %3767 = vmatpush1.msra.mxu0 %v3766
        %3768 = vmatprep.subr.mxu0 0.0
        %v3769 = vand.u32 %v360, 4294901760
        %3770 = vmatpush1.msra.mxu0 %v3769
        %3771 = vmatprep.subr.mxu0 0.0
        %v3772 = vand.u32 %v361, 4294901760
        %3773 = vmatpush1.msra.mxu0 %v3772
        %3774 = vmatprep.subr.mxu0 0.0
        %v3775 = vand.u32 %v362, 4294901760
        %3776 = vmatpush1.msra.mxu0 %v3775
        %3777 = vmatprep.subr.mxu0 0.0
        %v3778 = vand.u32 %v363, 4294901760
        %3779 = vmatpush1.msra.mxu0 %v3778
        %3780 = vmatprep.subr.mxu0 0.0
        %v3781 = vand.u32 %v364, 4294901760
        %3782 = vmatpush1.msra.mxu0 %v3781
        %3783 = vmatprep.subr.mxu0 0.0
        %v3784 = vand.u32 %v365, 4294901760
        %3785 = vmatpush1.msra.mxu0 %v3784
        %3786 = vmatprep.subr.mxu0 0.0
        %v3787 = vand.u32 %v366, 4294901760
        %3788 = vmatpush1.msra.mxu0 %v3787
        %3789 = vmatprep.subr.mxu0 0.0
        %v3790 = vand.u32 %v367, 4294901760
        %3791 = vmatpush1.msra.mxu0 %v3790
        %3792 = vmatprep.subr.mxu0 0.0
        %v3793 = vand.u32 %v368, 4294901760
        %3794 = vmatpush1.msra.mxu0 %v3793
        %3795 = vmatprep.subr.mxu0 0.0
        %v3796 = vand.u32 %v369, 4294901760
        %3797 = vmatpush1.msra.mxu0 %v3796
        %3798 = vmatprep.subr.mxu0 0.0
        %v3799 = vand.u32 %v370, 4294901760
        %3800 = vmatpush1.msra.mxu0 %v3799
        %3801 = vmatprep.subr.mxu0 0.0
        %v3802 = vand.u32 %v371, 4294901760
        %3803 = vmatpush1.msra.mxu0 %v3802
        %3804 = vmatprep.subr.mxu0 0.0
        %v3805 = vand.u32 %v372, 4294901760
        %3806 = vmatpush1.msra.mxu0 %v3805
        %3807 = vmatprep.subr.mxu0 0.0
        %v3808 = vand.u32 %v373, 4294901760
        %3809 = vmatpush1.msra.mxu0 %v3808
        %3810 = vmatprep.subr.mxu0 0.0
        %v3811 = vand.u32 %v374, 4294901760
        %3812 = vmatpush1.msra.mxu0 %v3811
        %v3813 = vand.u32 %v2601, 4294901760
        %3814 = vmatprep.mubr.f32.mxu0 %v3813
        %v3815 = vand.u32 %v2600, 4294901760
        %3816 = vmatmul.mubr.f32.gmra.mrb[0].mxu0 %v3815
        %v3817 = vpop.f32.mrb[0].mxu0
        %v3818 = vadd.f32 %v3665, %v3817
        %v3819 = vpop.f32.mrb[0].mxu0
        %v3820 = vand.u32 %v2603, 4294901760
        %3821 = vmatprep.mubr.f32.mxu0 %v3820
        %v3822 = vand.u32 %v2602, 4294901760
        %3823 = vmatmul.mubr.f32.gmra.mrb[0].mxu0 %v3822
        %v3824 = vpop.f32.mrb[0].mxu0
        %v3825 = vadd.f32 %v3672, %v3824
        %v3826 = vpop.f32.mrb[0].mxu0
        %v3827 = vand.u32 %v2605, 4294901760
        %3828 = vmatprep.mubr.f32.mxu0 %v3827
        %v3829 = vand.u32 %v2604, 4294901760
        %3830 = vmatmul.mubr.f32.gmra.mrb[0].mxu0 %v3829
        %v3831 = vpop.f32.mrb[0].mxu0
        %v3832 = vadd.f32 %v3679, %v3831
        %v3833 = vpop.f32.mrb[0].mxu0
        %v3834 = vand.u32 %v2607, 4294901760
        %3835 = vmatprep.mubr.f32.mxu0 %v3834
        %v3836 = vand.u32 %v2606, 4294901760
        %3837 = vmatmul.mubr.f32.gmra.mrb[0].mxu0 %v3836
        %v3838 = vpop.f32.mrb[0].mxu0
        %v3839 = vadd.f32 %v3686, %v3838
        %v3840 = vpop.f32.mrb[0].mxu0
        %v3841 = vand.u32 %v2609, 4294901760
        %3842 = vmatprep.mubr.f32.mxu0 %v3841
        %v3843 = vand.u32 %v2608, 4294901760
        %3844 = vmatmul.mubr.f32.gmra.mrb[0].mxu0 %v3843
        %v3845 = vpop.f32.mrb[0].mxu0
        %v3846 = vadd.f32 %v3693, %v3845
        %v3847 = vpop.f32.mrb[0].mxu0
        %v3848 = vand.u32 %v2611, 4294901760
        %3849 = vmatprep.mubr.f32.mxu0 %v3848
        %v3850 = vand.u32 %v2610, 4294901760
        %3851 = vmatmul.mubr.f32.gmra.mrb[0].mxu0 %v3850
        %v3852 = vpop.f32.mrb[0].mxu0
        %v3853 = vadd.f32 %v3700, %v3852
        %v3854 = vpop.f32.mrb[0].mxu0
        %v3855 = vand.u32 %v2613, 4294901760
        %3856 = vmatprep.mubr.f32.mxu0 %v3855
        %v3857 = vand.u32 %v2612, 4294901760
        %3858 = vmatmul.mubr.f32.gmra.mrb[0].mxu0 %v3857
        %v3859 = vpop.f32.mrb[0].mxu0
        %v3860 = vadd.f32 %v3707, %v3859
        %v3861 = vpop.f32.mrb[0].mxu0
        %v3862 = vand.u32 %v2615, 4294901760
        %3863 = vmatprep.mubr.f32.mxu0 %v3862
        %v3864 = vand.u32 %v2614, 4294901760
        %3865 = vmatmul.mubr.f32.gmra.mrb[0].mxu0 %v3864
        %v3866 = vpop.f32.mrb[0].mxu0
        %v3867 = vadd.f32 %v3714, %v3866
        %v3868 = vpop.f32.mrb[0].mxu0
        %3869 = vdwg.mxu0
        %3870 = vst [vmem:[%s302] sm:$0xff] %v3818
        %3871 = vst [vmem:[%s302 + $0x8] sm:$0xff] %v3825
        %3872 = vst [vmem:[%s302 + $0x10] sm:$0xff] %v3832
        %3873 = vst [vmem:[%s302 + $0x18] sm:$0xff] %v3839
        %3874 = vst [vmem:[%s302 + $0x20] sm:$0xff] %v3846
        %3875 = vst [vmem:[%s302 + $0x28] sm:$0xff] %v3853
        %3876 = vst [vmem:[%s302 + $0x30] sm:$0xff] %v3860
        %3877 = vst [vmem:[%s302 + $0x38] sm:$0xff] %v3867
        %v3878 = vsub.f32 %v3818, %v335
        %v3879 = vsub.f32 %v3825, %v336
        %v3880 = vsub.f32 %v3832, %v337
        %v3881 = vsub.f32 %v3839, %v338
        %v3882 = vsub.f32 %v3846, %v339
        %v3883 = vsub.f32 %v3853, %v340
        %v3884 = vsub.f32 %v3860, %v341
        %v3885 = vsub.f32 %v3867, %v342
        %v3886 = vmul.f32 %v3878, %v3878
        %v3887 = vmul.f32 %v3879, %v3879
        %v3888 = vmul.f32 %v3880, %v3880
        %v3889 = vmul.f32 %v3881, %v3881
        %v3890 = vmul.f32 %v3882, %v3882
        %v3891 = vmul.f32 %v3883, %v3883
        %v3892 = vmul.f32 %v3884, %v3884
        %v3893 = vmul.f32 %v3885, %v3885
        %v3894 = vadd.f32 %v3886, %v3887
        %v3895 = vadd.f32 %v3894, %v3888
        %v3896 = vadd.f32 %v3895, %v3889
        %v3897 = vadd.f32 %v3896, %v3890
        %v3898 = vadd.f32 %v3897, %v3891
        %v3899 = vadd.f32 %v3898, %v3892
        %v3900 = vadd.f32 %v3899, %v3893
        %v3901 = vrot.slane %v3900, 4
        %v3902 = vadd.f32 %v3900, %v3901
        %v3903 = vrot.slane %v3902, 2
        %v3904 = vadd.f32 %v3902, %v3903
        %v3905 = vrot.slane %v3904, 1
        %v3906 = vadd.f32 %v3904, %v3905
        %v3907 = vadd.f32 %v335, %v336
        %v3908 = vadd.f32 %v3907, %v337
        %v3909 = vadd.f32 %v3908, %v338
        %v3910 = vadd.f32 %v3909, %v339
        %v3911 = vadd.f32 %v3910, %v340
        %v3912 = vadd.f32 %v3911, %v341
        %v3913 = vadd.f32 %v3912, %v342
        %v3914 = vrot.slane %v3913, 4
        %v3915 = vadd.f32 %v3913, %v3914
        %v3916 = vrot.slane %v3915, 2
        %v3917 = vadd.f32 %v3915, %v3916
        %v3918 = vrot.slane %v3917, 1
        %v3919 = vadd.f32 %v3917, %v3918
        %v3920 = vrcp.pop 64.0
        %v3921 = vmul.f32 %v3919, %v3920
        %v3922 = vsub.f32 %v335, %v3921
        %v3923 = vsub.f32 %v336, %v3921
        %v3924 = vsub.f32 %v337, %v3921
        %v3925 = vsub.f32 %v338, %v3921
        %v3926 = vsub.f32 %v339, %v3921
        %v3927 = vsub.f32 %v340, %v3921
        %v3928 = vsub.f32 %v341, %v3921
        %v3929 = vsub.f32 %v342, %v3921
        %v3930 = vmul.f32 %v3922, %v3922
        %v3931 = vmul.f32 %v3923, %v3923
        %v3932 = vmul.f32 %v3924, %v3924
        %v3933 = vmul.f32 %v3925, %v3925
        %v3934 = vmul.f32 %v3926, %v3926
        %v3935 = vmul.f32 %v3927, %v3927
        %v3936 = vmul.f32 %v3928, %v3928
        %v3937 = vmul.f32 %v3929, %v3929
        %v3938 = vadd.f32 %v3930, %v3931
        %v3939 = vadd.f32 %v3938, %v3932
        %v3940 = vadd.f32 %v3939, %v3933
        %v3941 = vadd.f32 %v3940, %v3934
        %v3942 = vadd.f32 %v3941, %v3935
        %v3943 = vadd.f32 %v3942, %v3936
        %v3944 = vadd.f32 %v3943, %v3937
        %v3945 = vrot.slane %v3944, 4
        %v3946 = vadd.f32 %v3944, %v3945
        %v3947 = vrot.slane %v3946, 2
        %v3948 = vadd.f32 %v3946, %v3947
        %v3949 = vrot.slane %v3948, 1
        %v3950 = vadd.f32 %v3948, %v3949
        %vm3951 = vcmask 1040384
        %v3952 = vsel %vm3951, %v3906, %v3919
        %vm3953 = vcmask 1041408
        %v3954 = vsel %vm3953, %v3952, %v3950
        %vm3955 = vcmask 1042432
        %v3956 = vsel %vm3955, %v3954, 0.0
        %3957 = vst [vmem:[%s316] sm:$0xff] %v3956
        %s3958 = sand.u32 %s125, 1
        %s3959 = scalar_lea.sflag [#allocation4], %s3958
        %s3960 = sand.u32 %s125, 1
        %s3961 = smul.addr %s3960, 64
        %s3962 = scalar_lea.vmem [#allocation8], %s3961
        %s3963 = sand.u32 %s28, 1
        %s3964 = scalar_lea.sflag [#allocation10], %s3963
        %s3965 = sand.u32 %s151, 1
        %s3966 = smul.addr %s3965, 64
        %s3967 = scalar_lea.vmem [#allocation9], %s3966
        %s3968 = sand.u32 %s28, 1
        %s3969 = scalar_lea.sflag [#allocation10], %s3968
        %s3970 = sand.u32 %s177, 1
        %s3971 = smul.addr %s3970, 8
        %s3972 = scalar_lea.vmem [#allocation11], %s3971
        // Predicated region
        $region49: #{tpu_custom_call.1} parent=35 // pred_check
          %p3973 = pneg %p135
        $region50: #{tpu_custom_call.1} parent=35 // pred_check_branch
          %3975 = sbr.rel (%p3973) target = $region52
        $region51: #{tpu_custom_call.1} parent=35 // pred_region
          %s3976 = smul.u32 8, %s28
          %s3978 = ssub.s32 1024, 1024
          %3979 = vsyncadd %s3959, %s3978
          %s3980 = smul.addr %s3976, 128
          %s3981 = scalar_lea.hbm %s4, %s3980
          %s3982 = sshll.u32 %s3962, 4
          %s3983 = int_to_ptr.vmem [resolvable:$true] %s3982
          %3988 = dma.vmem_to_hbm [thread:$0]  %s3983, 1024, %s3981, %s3959, 128, 128, 8
        $region52: #{tpu_custom_call.1} parent=35 // pred_fallthru
          _
        // Predicated region
        $region53: #{tpu_custom_call.1} parent=35 // pred_check
          %p3989 = pneg %p161
        $region54: #{tpu_custom_call.1} parent=35 // pred_check_branch
          %3991 = sbr.rel (%p3989) target = $region56
        $region55: #{tpu_custom_call.1} parent=35 // pred_region
          %s3992 = smul.u32 8, %s28
          %s3994 = ssub.s32 1024, 1024
          %3995 = vsyncadd %s3964, %s3994
          %s3996 = smul.addr %s3992, 128
          %s3997 = scalar_lea.hbm %s5, %s3996
          %s3998 = sshll.u32 %s3967, 4
          %s3999 = int_to_ptr.vmem [resolvable:$true] %s3998
          %4004 = dma.vmem_to_hbm [thread:$0]  %s3999, 1024, %s3997, %s3964, 128, 128, 8
        $region56: #{tpu_custom_call.1} parent=35 // pred_fallthru
          _
        // Predicated region
        $region57: #{tpu_custom_call.1} parent=35 // pred_check
          %p4005 = pneg %p187
        $region58: #{tpu_custom_call.1} parent=35 // pred_check_branch
          %4007 = sbr.rel (%p4005) target = $region60
        $region59: #{tpu_custom_call.1} parent=35 // pred_region
          %s4009 = ssub.s32 128, 128
          %4010 = vsyncadd %s3969, %s4009
          %s4011 = smul.addr %s28, 128
          %s4012 = scalar_lea.hbm %s6, %s4011
          %s4014 = sshll.u32 %s3972, 4
          %s4015 = int_to_ptr.vmem [resolvable:$true] %s4014
          %4017 = dma.vmem_to_hbm [thread:$0]  %s4015, 128, %s4012, %s3969
        $region60: #{tpu_custom_call.1} parent=35 // pred_fallthru
          _
      $region36: #{tpu_custom_call.1} parent=5 // pred_fallthru
        _
      %p4018 = scmp.le.s32.totalorder 2, %s23
      // Predicated region
      $region61: #{tpu_custom_call.1} parent=5 // pred_check
        %p4019 = pneg %p4018
      $region62: #{tpu_custom_call.1} parent=5 // pred_check_branch
        %4021 = sbr.rel (%p4019) target = $region64
      $region63: #{tpu_custom_call.1} parent=5 // pred_region
        %s4022 = ssub.s32 %s23, 2
        // Predicated region
        $region65: #{tpu_custom_call.1} parent=63 // pred_check
          %p4023 = pneg %p141
        $region66: #{tpu_custom_call.1} parent=63 // pred_check_branch
          %4025 = sbr.rel (%p4023) target = $region68
        $region67: #{tpu_custom_call.1} parent=63 // pred_region
          %s4026 = sand.u32 %s126, 1
          %s4027 = scalar_lea.sflag [#allocation4], %s4026
          %s4028 = sand.u32 %s126, 1
          %s4029 = smul.addr %s4028, 64
          %s4030 = scalar_lea.vmem [#allocation8], %s4029
          %4031 = dma.done %s4027, 1024
        $region68: #{tpu_custom_call.1} parent=63 // pred_fallthru
          _
        // Predicated region
        $region69: #{tpu_custom_call.1} parent=63 // pred_check
          %p4032 = pneg %p167
        $region70: #{tpu_custom_call.1} parent=63 // pred_check_branch
          %4034 = sbr.rel (%p4032) target = $region72
        $region71: #{tpu_custom_call.1} parent=63 // pred_region
          %s4035 = sand.u32 %s29, 1
          %s4036 = scalar_lea.sflag [#allocation10], %s4035
          %s4037 = sand.u32 %s152, 1
          %s4038 = smul.addr %s4037, 64
          %s4039 = scalar_lea.vmem [#allocation9], %s4038
          %4040 = dma.done %s4036, 1024
        $region72: #{tpu_custom_call.1} parent=63 // pred_fallthru
          _
        // Predicated region
        $region73: #{tpu_custom_call.1} parent=63 // pred_check
          %p4041 = pneg %p193
        $region74: #{tpu_custom_call.1} parent=63 // pred_check_branch
          %4043 = sbr.rel (%p4041) target = $region76
        $region75: #{tpu_custom_call.1} parent=63 // pred_region
          %s4044 = sand.u32 %s29, 1
          %s4045 = scalar_lea.sflag [#allocation10], %s4044
          %s4046 = sand.u32 %s178, 1
          %s4047 = smul.addr %s4046, 8
          %s4048 = scalar_lea.vmem [#allocation11], %s4047
          %4049 = dma.done %s4045, 128
        $region76: #{tpu_custom_call.1} parent=63 // pred_fallthru
          _
      $region64: #{tpu_custom_call.1} parent=5 // pred_fallthru
        _
    $region6: #{tpu_custom_call.1} parent=1 // loop_footer
      %s27 = sadd.s32 1, %s23
    $region7: #{tpu_custom_call.1} parent=1 // loop_footer_branch
      %22 = sbr.rel target = $region3
    $region8: #{tpu_custom_call.1} parent=1 // loop_exit
      _
    %4050 = vsyncpa [#allocation3], 1
    %s4051 = scalar_lea.sflag [#allocation3], 1
    %4052 = vsyncpa %s4051, 1
    %4053 = vsyncpa [#allocation6], 1
    %4054 = vsyncpa [#allocation4], 1
    %s4055 = scalar_lea.sflag [#allocation4], 1
    %4056 = vsyncpa %s4055, 1
    %4057 = vsyncpa [#allocation10], 1
    %s4058 = scalar_lea.sflag [#allocation10], 1
    %4059 = vsyncpa %s4058, 1

</llo_original>
